<compile_context>
chip_gen: v7x
topology: tpu7x:2x2x1
jax: 0.10.0
libtpu: 0.0.40
codegen_flags: <defaults>
</compile_context>

<pallas_src>
import math
import jax
import jax.numpy as jnp
from jax.experimental import pallas as pl
from jax.experimental.pallas import tpu as pltpu


def _vmem_spec():
    return pl.BlockSpec(memory_space=pltpu.MemorySpace.VMEM)


_NPER = 10  # arrays per GRU layer after per-gate splitting


# --------------------------- fused Pallas kernel ----------------------------

def _gru_cell(x, h, w):
    # PyTorch nn.GRU cell semantics, gate order (r, z, n), per-gate weight slabs.
    (w_rx, w_rh, w_zx, w_zh, w_nx, w_nh, b_r, b_z, b_nx, b_nh) = w
    r = jax.nn.sigmoid(jnp.dot(x, w_rx, preferred_element_type=jnp.float32)
                       + jnp.dot(h, w_rh, preferred_element_type=jnp.float32) + b_r)
    z = jax.nn.sigmoid(jnp.dot(x, w_zx, preferred_element_type=jnp.float32)
                       + jnp.dot(h, w_zh, preferred_element_type=jnp.float32) + b_z)
    n = jnp.tanh(jnp.dot(x, w_nx, preferred_element_type=jnp.float32) + b_nx
                 + r * (jnp.dot(h, w_nh, preferred_element_type=jnp.float32) + b_nh))
    return (1.0 - z) * n + z * h


def _make_fused_kernel(T_in, T_out, L, H, D_out, D_a):
    """Single-kernel encoder + decoder + output head. T_in/T_out/L are small and static,
    so the time/layer loops are fully unrolled inside the kernel (everything stays in VMEM)."""

    def kernel(x_seq_ref, yattr_ref, genc_ref, *rest):
        # rest = enc weights (L*_NPER) + dec weights (L*_NPER) + [out_w, out_b]
        #        + [out_ref] + [cat2h_scratch, catin_scratch]
        enc_w = [tuple(r[...] for r in rest[l * _NPER:(l + 1) * _NPER]) for l in range(L)]
        off = L * _NPER
        dec_w = [tuple(r[...] for r in rest[off + l * _NPER: off + (l + 1) * _NPER])
                 for l in range(L)]
        out_w = rest[2 * L * _NPER][...]
        out_b = rest[2 * L * _NPER + 1][...]
        out_ref = rest[2 * L * _NPER + 2]
        cat2h_ref = rest[2 * L * _NPER + 3]
        catin_ref = rest[2 * L * _NPER + 4]

        M = x_seq_ref.shape[1]

        # ---- encoder GRU over T_in steps (hidden H), state carried in VMEM values ----
        enc_h = [jnp.zeros((M, H), jnp.float32) for _ in range(L)]
        for t in range(T_in):
            inp = x_seq_ref[t]
            for l in range(L):
                enc_h[l] = _gru_cell(inp, enc_h[l], enc_w[l])
                inp = enc_h[l]

        # ---- decoder init hidden = concat(enc_hidden, server_graph_encoding) -> 2H ----
        # (concat done as adjacent-column writes into a VMEM scratch, no HBM round-trip)
        dec_h = []
        for l in range(L):
            cat2h_ref[:, 0:H] = enc_h[l]
            cat2h_ref[:, H:2 * H] = genc_ref[l]
            dec_h.append(cat2h_ref[...])

        # ---- autoregressive decoder + output Linear (eval path, deterministic) ----
        last_input = x_seq_ref[T_in - 1]
        for t in range(T_out):
            inp = last_input
            for l in range(L):
                dec_h[l] = _gru_cell(inp, dec_h[l], dec_w[l])
                inp = dec_h[l]
            out_t = jnp.dot(inp, out_w, preferred_element_type=jnp.float32) + out_b
            out_ref[t] = out_t
            # next decoder input = concat(out_t, y_attr[t]) written into adjacent scratch columns
            catin_ref[:, 0:D_out] = out_t
            catin_ref[:, D_out:D_out + D_a] = yattr_ref[t]
            last_input = catin_ref[...]

    return kernel


# --------------------- parameter prep (PyTorch GRU layout) -------------------

def _split_gru_layer(p, hid):
    """Split packed (in, 3H)/(H, 3H) GRU weights into per-gate slabs, pre-summing the
    r/z biases (b_ih + b_hh) so no gate slicing happens inside the kernel."""
    w_ih_t, w_hh_t, b_ih, b_hh = p["w_ih_t"], p["w_hh_t"], p["b_ih"], p["b_hh"]
    w_rx, w_zx, w_nx = w_ih_t[:, 0:hid], w_ih_t[:, hid:2 * hid], w_ih_t[:, 2 * hid:3 * hid]
    w_rh, w_zh, w_nh = w_hh_t[:, 0:hid], w_hh_t[:, hid:2 * hid], w_hh_t[:, 2 * hid:3 * hid]
    b_r = b_ih[:, 0:hid] + b_hh[:, 0:hid]
    b_z = b_ih[:, hid:2 * hid] + b_hh[:, hid:2 * hid]
    b_nx = b_ih[:, 2 * hid:3 * hid]
    b_nh = b_hh[:, 2 * hid:3 * hid]
    return [w_rx, w_rh, w_zx, w_zh, w_nx, w_nh, b_r, b_z, b_nx, b_nh]


def init_gru_params(key, num_layers, input_size, hidden_size):
    layers = []
    bound = 1.0 / math.sqrt(hidden_size)
    for l in range(num_layers):
        in_dim = input_size if l == 0 else hidden_size
        key, k1, k2, k3, k4 = jax.random.split(key, 5)
        w_ih = jax.random.uniform(k1, (3 * hidden_size, in_dim), jnp.float32, -bound, bound)
        w_hh = jax.random.uniform(k2, (3 * hidden_size, hidden_size), jnp.float32, -bound, bound)
        b_ih = jax.random.uniform(k3, (3 * hidden_size,), jnp.float32, -bound, bound)
        b_hh = jax.random.uniform(k4, (3 * hidden_size,), jnp.float32, -bound, bound)
        layers.append(dict(w_ih_t=w_ih.T, w_hh_t=w_hh.T,
                           b_ih=b_ih[None, :], b_hh=b_hh[None, :]))
    return layers, key


def init_params(key, input_size, hidden_size, output_size, num_layers):
    enc, key = init_gru_params(key, num_layers, input_size, hidden_size)
    dec, key = init_gru_params(key, num_layers, input_size, 2 * hidden_size)
    bound = 1.0 / math.sqrt(2 * hidden_size)
    key, k1, k2 = jax.random.split(key, 3)
    out_w = jax.random.uniform(k1, (output_size, 2 * hidden_size), jnp.float32, -bound, bound)
    out_b = jax.random.uniform(k2, (output_size,), jnp.float32, -bound, bound)
    return dict(encoder=enc, decoder=dec, out_w_t=out_w.T, out_b=out_b[None, :],
                hidden_size=hidden_size, gru_num_layers=num_layers)


# ------------------------------ forward passes -------------------------------

def split_fed_client_forward_pallas(params, x, x_attr, y_attr, server_graph_encoding):
    # x: (B, T_in, N, D_x), x_attr: (B, T_in, N, D_a), y_attr: (B, T_out, N, D_a)
    # server_graph_encoding: (L, B, N, H) (already permuted as in local_train/local_eval)
    B, T_in, N, D_x = x.shape
    D_a = x_attr.shape[-1]
    T_out = y_attr.shape[1]
    H = params["hidden_size"]
    L = params["gru_num_layers"]
    M = B * N
    out_w_t = params["out_w_t"]
    D_out = out_w_t.shape[1]

    x_input = jnp.concatenate([x, x_attr], axis=-1)
    x_input = jnp.transpose(x_input, (1, 0, 2, 3)).reshape(T_in, M, D_x + D_a)
    y_attr_input = jnp.transpose(y_attr, (1, 0, 2, 3)).reshape(T_out, M, D_a)
    graph_enc = server_graph_encoding.reshape(L, M, H)

    flat_w = []
    for p in params["encoder"]:
        flat_w += _split_gru_layer(p, H)
    for p in params["decoder"]:
        flat_w += _split_gru_layer(p, 2 * H)
    flat_w += [out_w_t, params["out_b"]]

    kernel = _make_fused_kernel(T_in, T_out, L, H, D_out, D_a)
    out = pl.pallas_call(
        kernel,
        out_shape=jax.ShapeDtypeStruct((T_out, M, D_out), jnp.float32),
        in_specs=[_vmem_spec()] * (3 + len(flat_w)),
        out_specs=_vmem_spec(),
        scratch_shapes=[pltpu.VMEM((M, 2 * H), jnp.float32),         # decoder-init concat buffer
                        pltpu.VMEM((M, D_out + D_a), jnp.float32)],  # per-step decoder input buffer
    )(x_input, y_attr_input, graph_enc, *flat_w)

    # TODO(synk): at production CNFGNN sizes (B*N in the tens of thousands) tile the row
    # dimension with a "parallel" grid axis + BlockSpec (rows ~1024) and set vmem_limit_bytes;
    # the toy shapes here fit comfortably as full-array VMEM blocks.
    return jnp.transpose(out.reshape(T_out, B, N, D_out), (1, 0, 2, 3))


# pure-JAX reference (packed PyTorch GRU layout) for correctness checking
def _gru_cell_ref(x, h, p):
    H = h.shape[1]
    gi = x @ p["w_ih_t"] + p["b_ih"]
    gh = h @ p["w_hh_t"] + p["b_hh"]
    r = jax.nn.sigmoid(gi[:, 0:H] + gh[:, 0:H])
    z = jax.nn.sigmoid(gi[:, H:2 * H] + gh[:, H:2 * H])
    n = jnp.tanh(gi[:, 2 * H:3 * H] + r * gh[:, 2 * H:3 * H])
    return (1.0 - z) * n + z * h


def split_fed_client_forward_ref(params, x, x_attr, y_attr, server_graph_encoding):
    B, T_in, N, _ = x.shape
    T_out = y_attr.shape[1]
    H = params["hidden_size"]
    L = params["gru_num_layers"]
    M = B * N

    x_input = jnp.concatenate([x, x_attr], axis=-1)
    x_input = jnp.transpose(x_input, (1, 0, 2, 3)).reshape(T_in, M, -1)
    y_attr_input = jnp.transpose(y_attr, (1, 0, 2, 3)).reshape(T_out, M, -1)
    graph_enc = server_graph_encoding.reshape(L, M, H)

    enc_h = [jnp.zeros((M, H), jnp.float32) for _ in range(L)]
    for t in range(T_in):
        inp = x_input[t]
        for l in range(L):
            enc_h[l] = _gru_cell_ref(inp, enc_h[l], params["encoder"][l])
            inp = enc_h[l]

    dec_h = [jnp.concatenate([enc_h[l], graph_enc[l]], axis=-1) for l in range(L)]
    last_input = x_input[-1]
    outs = []
    for t in range(T_out):
        inp = last_input
        for l in range(L):
            dec_h[l] = _gru_cell_ref(inp, dec_h[l], params["decoder"][l])
            inp = dec_h[l]
        out_t = inp @ params["out_w_t"] + params["out_b"]
        outs.append(out_t)
        last_input = jnp.concatenate([out_t, y_attr_input[t]], axis=-1)

    out = jnp.stack(outs)
    return jnp.transpose(out.reshape(T_out, B, N, -1), (1, 0, 2, 3))


# TODO(synk): local_train/local_eval (DataLoader, MSE loss, optimizer steps, teacher forcing)
# are host-side orchestration / training-mode behavior, not kernel work; only the deterministic
# forward pass is implemented here.


if __name__ == "__main__":
    key = jax.random.PRNGKey(0)
    B, N = 2, 4           # batch, graph nodes
    T_in, T_out = 8, 8    # history / horizon length
    D_x, D_a = 1, 2       # feature dim, attribute dim -> GRU input size 3
    H, L = 32, 1          # hidden size, gru_num_layers
    input_size = D_x + D_a
    output_size = D_x

    kp, kx = jax.random.split(key)
    params = init_params(kp, input_size, H, output_size, L)

    k1, k2, k3, k4 = jax.random.split(kx, 4)
    x = jax.random.normal(k1, (B, T_in, N, D_x), jnp.float32)
    x_attr = jax.random.normal(k2, (B, T_in, N, D_a), jnp.float32)
    y_attr = jax.random.normal(k3, (B, T_out, N, D_a), jnp.float32)
    server_graph_encoding = jax.random.normal(k4, (L, B, N, H), jnp.float32)

    y_pred = split_fed_client_forward_pallas(params, x, x_attr, y_attr, server_graph_encoding)
    y_pred = jax.block_until_ready(y_pred)
    assert y_pred.shape == (B, T_out, N, output_size), y_pred.shape

    y_ref = split_fed_client_forward_ref(params, x, x_attr, y_attr, server_graph_encoding)
    y_ref = jax.block_until_ready(y_ref)
    assert jnp.allclose(y_pred, y_ref, atol=1e-4, rtol=1e-4)

    print("KERNEL_OK")
</pallas_src>

<mosaic_0001>
module attributes {stable_mosaic.version = 11 : i64} {
  func.func @kernel(%arg0: memref<8x8x3xf32, #tpu.memory_space<vmem>>, %arg1: memref<8x8x2xf32, #tpu.memory_space<vmem>>, %arg2: memref<1x8x32xf32, #tpu.memory_space<vmem>>, %arg3: memref<3x32xf32, #tpu.memory_space<vmem>>, %arg4: memref<32x32xf32, #tpu.memory_space<vmem>>, %arg5: memref<3x32xf32, #tpu.memory_space<vmem>>, %arg6: memref<32x32xf32, #tpu.memory_space<vmem>>, %arg7: memref<3x32xf32, #tpu.memory_space<vmem>>, %arg8: memref<32x32xf32, #tpu.memory_space<vmem>>, %arg9: memref<1x32xf32, #tpu.memory_space<vmem>>, %arg10: memref<1x32xf32, #tpu.memory_space<vmem>>, %arg11: memref<1x32xf32, #tpu.memory_space<vmem>>, %arg12: memref<1x32xf32, #tpu.memory_space<vmem>>, %arg13: memref<3x64xf32, #tpu.memory_space<vmem>>, %arg14: memref<64x64xf32, #tpu.memory_space<vmem>>, %arg15: memref<3x64xf32, #tpu.memory_space<vmem>>, %arg16: memref<64x64xf32, #tpu.memory_space<vmem>>, %arg17: memref<3x64xf32, #tpu.memory_space<vmem>>, %arg18: memref<64x64xf32, #tpu.memory_space<vmem>>, %arg19: memref<1x64xf32, #tpu.memory_space<vmem>>, %arg20: memref<1x64xf32, #tpu.memory_space<vmem>>, %arg21: memref<1x64xf32, #tpu.memory_space<vmem>>, %arg22: memref<1x64xf32, #tpu.memory_space<vmem>>, %arg23: memref<64x1xf32, #tpu.memory_space<vmem>>, %arg24: memref<1x1xf32, #tpu.memory_space<vmem>>, %arg25: memref<8x8x1xf32, #tpu.memory_space<vmem>>, %arg26: memref<8x64xf32, #tpu.memory_space<vmem>>, %arg27: memref<8x3xf32, #tpu.memory_space<vmem>>) attributes {dimension_semantics = [], scalar_prefetch = 0 : i64, scratch_operands = 2 : i64, tpu.core_type = #tpu.core_type<tc>} {
    %c0 = arith.constant 0 : index
    %c0_0 = arith.constant 0 : index
    %0 = vector.load %arg3[%c0, %c0_0] : memref<3x32xf32, #tpu.memory_space<vmem>>, vector<3x32xf32>
    %c0_1 = arith.constant 0 : index
    %c0_2 = arith.constant 0 : index
    %1 = vector.load %arg4[%c0_1, %c0_2] : memref<32x32xf32, #tpu.memory_space<vmem>>, vector<32x32xf32>
    %c0_3 = arith.constant 0 : index
    %c0_4 = arith.constant 0 : index
    %2 = vector.load %arg5[%c0_3, %c0_4] : memref<3x32xf32, #tpu.memory_space<vmem>>, vector<3x32xf32>
    %c0_5 = arith.constant 0 : index
    %c0_6 = arith.constant 0 : index
    %3 = vector.load %arg6[%c0_5, %c0_6] : memref<32x32xf32, #tpu.memory_space<vmem>>, vector<32x32xf32>
    %c0_7 = arith.constant 0 : index
    %c0_8 = arith.constant 0 : index
    %4 = vector.load %arg7[%c0_7, %c0_8] : memref<3x32xf32, #tpu.memory_space<vmem>>, vector<3x32xf32>
    %c0_9 = arith.constant 0 : index
    %c0_10 = arith.constant 0 : index
    %5 = vector.load %arg8[%c0_9, %c0_10] : memref<32x32xf32, #tpu.memory_space<vmem>>, vector<32x32xf32>
    %c0_11 = arith.constant 0 : index
    %c0_12 = arith.constant 0 : index
    %6 = vector.load %arg9[%c0_11, %c0_12] : memref<1x32xf32, #tpu.memory_space<vmem>>, vector<1x32xf32>
    %c0_13 = arith.constant 0 : index
    %c0_14 = arith.constant 0 : index
    %7 = vector.load %arg10[%c0_13, %c0_14] : memref<1x32xf32, #tpu.memory_space<vmem>>, vector<1x32xf32>
    %c0_15 = arith.constant 0 : index
    %c0_16 = arith.constant 0 : index
    %8 = vector.load %arg11[%c0_15, %c0_16] : memref<1x32xf32, #tpu.memory_space<vmem>>, vector<1x32xf32>
    %c0_17 = arith.constant 0 : index
    %c0_18 = arith.constant 0 : index
    %9 = vector.load %arg12[%c0_17, %c0_18] : memref<1x32xf32, #tpu.memory_space<vmem>>, vector<1x32xf32>
    %c0_19 = arith.constant 0 : index
    %c0_20 = arith.constant 0 : index
    %10 = vector.load %arg13[%c0_19, %c0_20] : memref<3x64xf32, #tpu.memory_space<vmem>>, vector<3x64xf32>
    %c0_21 = arith.constant 0 : index
    %c0_22 = arith.constant 0 : index
    %11 = vector.load %arg14[%c0_21, %c0_22] : memref<64x64xf32, #tpu.memory_space<vmem>>, vector<64x64xf32>
    %c0_23 = arith.constant 0 : index
    %c0_24 = arith.constant 0 : index
    %12 = vector.load %arg15[%c0_23, %c0_24] : memref<3x64xf32, #tpu.memory_space<vmem>>, vector<3x64xf32>
    %c0_25 = arith.constant 0 : index
    %c0_26 = arith.constant 0 : index
    %13 = vector.load %arg16[%c0_25, %c0_26] : memref<64x64xf32, #tpu.memory_space<vmem>>, vector<64x64xf32>
    %c0_27 = arith.constant 0 : index
    %c0_28 = arith.constant 0 : index
    %14 = vector.load %arg17[%c0_27, %c0_28] : memref<3x64xf32, #tpu.memory_space<vmem>>, vector<3x64xf32>
    %c0_29 = arith.constant 0 : index
    %c0_30 = arith.constant 0 : index
    %15 = vector.load %arg18[%c0_29, %c0_30] : memref<64x64xf32, #tpu.memory_space<vmem>>, vector<64x64xf32>
    %c0_31 = arith.constant 0 : index
    %c0_32 = arith.constant 0 : index
    %16 = vector.load %arg19[%c0_31, %c0_32] : memref<1x64xf32, #tpu.memory_space<vmem>>, vector<1x64xf32>
    %c0_33 = arith.constant 0 : index
    %c0_34 = arith.constant 0 : index
    %17 = vector.load %arg20[%c0_33, %c0_34] : memref<1x64xf32, #tpu.memory_space<vmem>>, vector<1x64xf32>
    %c0_35 = arith.constant 0 : index
    %c0_36 = arith.constant 0 : index
    %18 = vector.load %arg21[%c0_35, %c0_36] : memref<1x64xf32, #tpu.memory_space<vmem>>, vector<1x64xf32>
    %c0_37 = arith.constant 0 : index
    %c0_38 = arith.constant 0 : index
    %19 = vector.load %arg22[%c0_37, %c0_38] : memref<1x64xf32, #tpu.memory_space<vmem>>, vector<1x64xf32>
    %c0_39 = arith.constant 0 : index
    %c0_40 = arith.constant 0 : index
    %20 = vector.load %arg23[%c0_39, %c0_40] : memref<64x1xf32, #tpu.memory_space<vmem>>, vector<64x1xf32>
    %c0_41 = arith.constant 0 : index
    %c0_42 = arith.constant 0 : index
    %21 = vector.load %arg24[%c0_41, %c0_42] : memref<1x1xf32, #tpu.memory_space<vmem>>, vector<1x1xf32>
    %cst = arith.constant 0.000000e+00 : f32
    %22 = vector.broadcast %cst : f32 to vector<8x32xf32>
    %c0_43 = arith.constant 0 : index
    %c0_44 = arith.constant 0 : index
    %c0_45 = arith.constant 0 : index
    %23 = vector.load %arg0[%c0_43, %c0_44, %c0_45] : memref<8x8x3xf32, #tpu.memory_space<vmem>>, vector<1x8x3xf32>
    %24 = vector.shape_cast %23 : vector<1x8x3xf32> to vector<8x3xf32>
    %cst_46 = arith.constant dense<0.000000e+00> : vector<8x32xf32>
    %25 = tpu.matmul %24, %0, %cst_46 {dimension_numbers = #tpu.dot_dimension_numbers<[1], [0], [0], [1], [0, 0, 1, 1], [], []>} : vector<8x3xf32>, vector<3x32xf32>, vector<8x32xf32> -> vector<8x32xf32>
    %cst_47 = arith.constant dense<0.000000e+00> : vector<8x32xf32>
    %26 = tpu.matmul %22, %1, %cst_47 {dimension_numbers = #tpu.dot_dimension_numbers<[1], [0], [0], [1], [0, 0, 1, 1], [], []>} : vector<8x32xf32>, vector<32x32xf32>, vector<8x32xf32> -> vector<8x32xf32>
    %27 = arith.addf %25, %26 : vector<8x32xf32>
    %28 = vector.broadcast %6 : vector<1x32xf32> to vector<8x32xf32>
    %29 = arith.addf %27, %28 : vector<8x32xf32>
    %30 = arith.negf %29 : vector<8x32xf32>
    %31 = math.exp %30 : vector<8x32xf32>
    %cst_48 = arith.constant 1.000000e+00 : f32
    %32 = vector.broadcast %cst_48 : f32 to vector<8x32xf32>
    %33 = arith.addf %32, %31 : vector<8x32xf32>
    %34 = arith.divf %32, %33 : vector<8x32xf32>
    %cst_49 = arith.constant dense<0.000000e+00> : vector<8x32xf32>
    %35 = tpu.matmul %24, %2, %cst_49 {dimension_numbers = #tpu.dot_dimension_numbers<[1], [0], [0], [1], [0, 0, 1, 1], [], []>} : vector<8x3xf32>, vector<3x32xf32>, vector<8x32xf32> -> vector<8x32xf32>
    %cst_50 = arith.constant dense<0.000000e+00> : vector<8x32xf32>
    %36 = tpu.matmul %22, %3, %cst_50 {dimension_numbers = #tpu.dot_dimension_numbers<[1], [0], [0], [1], [0, 0, 1, 1], [], []>} : vector<8x32xf32>, vector<32x32xf32>, vector<8x32xf32> -> vector<8x32xf32>
    %37 = arith.addf %35, %36 : vector<8x32xf32>
    %38 = vector.broadcast %7 : vector<1x32xf32> to vector<8x32xf32>
    %39 = arith.addf %37, %38 : vector<8x32xf32>
    %40 = arith.negf %39 : vector<8x32xf32>
    %41 = math.exp %40 : vector<8x32xf32>
    %cst_51 = arith.constant 1.000000e+00 : f32
    %42 = vector.broadcast %cst_51 : f32 to vector<8x32xf32>
    %43 = arith.addf %42, %41 : vector<8x32xf32>
    %44 = arith.divf %42, %43 : vector<8x32xf32>
    %cst_52 = arith.constant dense<0.000000e+00> : vector<8x32xf32>
    %45 = tpu.matmul %24, %4, %cst_52 {dimension_numbers = #tpu.dot_dimension_numbers<[1], [0], [0], [1], [0, 0, 1, 1], [], []>} : vector<8x3xf32>, vector<3x32xf32>, vector<8x32xf32> -> vector<8x32xf32>
    %46 = vector.broadcast %8 : vector<1x32xf32> to vector<8x32xf32>
    %47 = arith.addf %45, %46 : vector<8x32xf32>
    %cst_53 = arith.constant dense<0.000000e+00> : vector<8x32xf32>
    %48 = tpu.matmul %22, %5, %cst_53 {dimension_numbers = #tpu.dot_dimension_numbers<[1], [0], [0], [1], [0, 0, 1, 1], [], []>} : vector<8x32xf32>, vector<32x32xf32>, vector<8x32xf32> -> vector<8x32xf32>
    %49 = vector.broadcast %9 : vector<1x32xf32> to vector<8x32xf32>
    %50 = arith.addf %48, %49 : vector<8x32xf32>
    %51 = arith.mulf %34, %50 : vector<8x32xf32>
    %52 = arith.addf %47, %51 : vector<8x32xf32>
    %53 = math.tanh %52 : vector<8x32xf32>
    %cst_54 = arith.constant 1.000000e+00 : f32
    %54 = vector.broadcast %cst_54 : f32 to vector<8x32xf32>
    %55 = arith.subf %54, %44 : vector<8x32xf32>
    %56 = arith.mulf %55, %53 : vector<8x32xf32>
    %57 = arith.mulf %44, %22 : vector<8x32xf32>
    %58 = arith.addf %56, %57 : vector<8x32xf32>
    %c1 = arith.constant 1 : index
    %c0_55 = arith.constant 0 : index
    %c0_56 = arith.constant 0 : index
    %59 = vector.load %arg0[%c1, %c0_55, %c0_56] : memref<8x8x3xf32, #tpu.memory_space<vmem>>, vector<1x8x3xf32>
    %60 = vector.shape_cast %59 : vector<1x8x3xf32> to vector<8x3xf32>
    %cst_57 = arith.constant dense<0.000000e+00> : vector<8x32xf32>
    %61 = tpu.matmul %60, %0, %cst_57 {dimension_numbers = #tpu.dot_dimension_numbers<[1], [0], [0], [1], [0, 0, 1, 1], [], []>} : vector<8x3xf32>, vector<3x32xf32>, vector<8x32xf32> -> vector<8x32xf32>
    %cst_58 = arith.constant dense<0.000000e+00> : vector<8x32xf32>
    %62 = tpu.matmul %58, %1, %cst_58 {dimension_numbers = #tpu.dot_dimension_numbers<[1], [0], [0], [1], [0, 0, 1, 1], [], []>} : vector<8x32xf32>, vector<32x32xf32>, vector<8x32xf32> -> vector<8x32xf32>
    %63 = arith.addf %61, %62 : vector<8x32xf32>
    %64 = vector.broadcast %6 : vector<1x32xf32> to vector<8x32xf32>
    %65 = arith.addf %63, %64 : vector<8x32xf32>
    %66 = arith.negf %65 : vector<8x32xf32>
    %67 = math.exp %66 : vector<8x32xf32>
    %cst_59 = arith.constant 1.000000e+00 : f32
    %68 = vector.broadcast %cst_59 : f32 to vector<8x32xf32>
    %69 = arith.addf %68, %67 : vector<8x32xf32>
    %70 = arith.divf %68, %69 : vector<8x32xf32>
    %cst_60 = arith.constant dense<0.000000e+00> : vector<8x32xf32>
    %71 = tpu.matmul %60, %2, %cst_60 {dimension_numbers = #tpu.dot_dimension_numbers<[1], [0], [0], [1], [0, 0, 1, 1], [], []>} : vector<8x3xf32>, vector<3x32xf32>, vector<8x32xf32> -> vector<8x32xf32>
    %cst_61 = arith.constant dense<0.000000e+00> : vector<8x32xf32>
    %72 = tpu.matmul %58, %3, %cst_61 {dimension_numbers = #tpu.dot_dimension_numbers<[1], [0], [0], [1], [0, 0, 1, 1], [], []>} : vector<8x32xf32>, vector<32x32xf32>, vector<8x32xf32> -> vector<8x32xf32>
    %73 = arith.addf %71, %72 : vector<8x32xf32>
    %74 = vector.broadcast %7 : vector<1x32xf32> to vector<8x32xf32>
    %75 = arith.addf %73, %74 : vector<8x32xf32>
    %76 = arith.negf %75 : vector<8x32xf32>
    %77 = math.exp %76 : vector<8x32xf32>
    %cst_62 = arith.constant 1.000000e+00 : f32
    %78 = vector.broadcast %cst_62 : f32 to vector<8x32xf32>
    %79 = arith.addf %78, %77 : vector<8x32xf32>
    %80 = arith.divf %78, %79 : vector<8x32xf32>
    %cst_63 = arith.constant dense<0.000000e+00> : vector<8x32xf32>
    %81 = tpu.matmul %60, %4, %cst_63 {dimension_numbers = #tpu.dot_dimension_numbers<[1], [0], [0], [1], [0, 0, 1, 1], [], []>} : vector<8x3xf32>, vector<3x32xf32>, vector<8x32xf32> -> vector<8x32xf32>
    %82 = vector.broadcast %8 : vector<1x32xf32> to vector<8x32xf32>
    %83 = arith.addf %81, %82 : vector<8x32xf32>
    %cst_64 = arith.constant dense<0.000000e+00> : vector<8x32xf32>
    %84 = tpu.matmul %58, %5, %cst_64 {dimension_numbers = #tpu.dot_dimension_numbers<[1], [0], [0], [1], [0, 0, 1, 1], [], []>} : vector<8x32xf32>, vector<32x32xf32>, vector<8x32xf32> -> vector<8x32xf32>
    %85 = vector.broadcast %9 : vector<1x32xf32> to vector<8x32xf32>
    %86 = arith.addf %84, %85 : vector<8x32xf32>
    %87 = arith.mulf %70, %86 : vector<8x32xf32>
    %88 = arith.addf %83, %87 : vector<8x32xf32>
    %89 = math.tanh %88 : vector<8x32xf32>
    %cst_65 = arith.constant 1.000000e+00 : f32
    %90 = vector.broadcast %cst_65 : f32 to vector<8x32xf32>
    %91 = arith.subf %90, %80 : vector<8x32xf32>
    %92 = arith.mulf %91, %89 : vector<8x32xf32>
    %93 = arith.mulf %80, %58 : vector<8x32xf32>
    %94 = arith.addf %92, %93 : vector<8x32xf32>
    %c2 = arith.constant 2 : index
    %c0_66 = arith.constant 0 : index
    %c0_67 = arith.constant 0 : index
    %95 = vector.load %arg0[%c2, %c0_66, %c0_67] : memref<8x8x3xf32, #tpu.memory_space<vmem>>, vector<1x8x3xf32>
    %96 = vector.shape_cast %95 : vector<1x8x3xf32> to vector<8x3xf32>
    %cst_68 = arith.constant dense<0.000000e+00> : vector<8x32xf32>
    %97 = tpu.matmul %96, %0, %cst_68 {dimension_numbers = #tpu.dot_dimension_numbers<[1], [0], [0], [1], [0, 0, 1, 1], [], []>} : vector<8x3xf32>, vector<3x32xf32>, vector<8x32xf32> -> vector<8x32xf32>
    %cst_69 = arith.constant dense<0.000000e+00> : vector<8x32xf32>
    %98 = tpu.matmul %94, %1, %cst_69 {dimension_numbers = #tpu.dot_dimension_numbers<[1], [0], [0], [1], [0, 0, 1, 1], [], []>} : vector<8x32xf32>, vector<32x32xf32>, vector<8x32xf32> -> vector<8x32xf32>
    %99 = arith.addf %97, %98 : vector<8x32xf32>
    %100 = vector.broadcast %6 : vector<1x32xf32> to vector<8x32xf32>
    %101 = arith.addf %99, %100 : vector<8x32xf32>
    %102 = arith.negf %101 : vector<8x32xf32>
    %103 = math.exp %102 : vector<8x32xf32>
    %cst_70 = arith.constant 1.000000e+00 : f32
    %104 = vector.broadcast %cst_70 : f32 to vector<8x32xf32>
    %105 = arith.addf %104, %103 : vector<8x32xf32>
    %106 = arith.divf %104, %105 : vector<8x32xf32>
    %cst_71 = arith.constant dense<0.000000e+00> : vector<8x32xf32>
    %107 = tpu.matmul %96, %2, %cst_71 {dimension_numbers = #tpu.dot_dimension_numbers<[1], [0], [0], [1], [0, 0, 1, 1], [], []>} : vector<8x3xf32>, vector<3x32xf32>, vector<8x32xf32> -> vector<8x32xf32>
    %cst_72 = arith.constant dense<0.000000e+00> : vector<8x32xf32>
    %108 = tpu.matmul %94, %3, %cst_72 {dimension_numbers = #tpu.dot_dimension_numbers<[1], [0], [0], [1], [0, 0, 1, 1], [], []>} : vector<8x32xf32>, vector<32x32xf32>, vector<8x32xf32> -> vector<8x32xf32>
    %109 = arith.addf %107, %108 : vector<8x32xf32>
    %110 = vector.broadcast %7 : vector<1x32xf32> to vector<8x32xf32>
    %111 = arith.addf %109, %110 : vector<8x32xf32>
    %112 = arith.negf %111 : vector<8x32xf32>
    %113 = math.exp %112 : vector<8x32xf32>
    %cst_73 = arith.constant 1.000000e+00 : f32
    %114 = vector.broadcast %cst_73 : f32 to vector<8x32xf32>
    %115 = arith.addf %114, %113 : vector<8x32xf32>
    %116 = arith.divf %114, %115 : vector<8x32xf32>
    %cst_74 = arith.constant dense<0.000000e+00> : vector<8x32xf32>
    %117 = tpu.matmul %96, %4, %cst_74 {dimension_numbers = #tpu.dot_dimension_numbers<[1], [0], [0], [1], [0, 0, 1, 1], [], []>} : vector<8x3xf32>, vector<3x32xf32>, vector<8x32xf32> -> vector<8x32xf32>
    %118 = vector.broadcast %8 : vector<1x32xf32> to vector<8x32xf32>
    %119 = arith.addf %117, %118 : vector<8x32xf32>
    %cst_75 = arith.constant dense<0.000000e+00> : vector<8x32xf32>
    %120 = tpu.matmul %94, %5, %cst_75 {dimension_numbers = #tpu.dot_dimension_numbers<[1], [0], [0], [1], [0, 0, 1, 1], [], []>} : vector<8x32xf32>, vector<32x32xf32>, vector<8x32xf32> -> vector<8x32xf32>
    %121 = vector.broadcast %9 : vector<1x32xf32> to vector<8x32xf32>
    %122 = arith.addf %120, %121 : vector<8x32xf32>
    %123 = arith.mulf %106, %122 : vector<8x32xf32>
    %124 = arith.addf %119, %123 : vector<8x32xf32>
    %125 = math.tanh %124 : vector<8x32xf32>
    %cst_76 = arith.constant 1.000000e+00 : f32
    %126 = vector.broadcast %cst_76 : f32 to vector<8x32xf32>
    %127 = arith.subf %126, %116 : vector<8x32xf32>
    %128 = arith.mulf %127, %125 : vector<8x32xf32>
    %129 = arith.mulf %116, %94 : vector<8x32xf32>
    %130 = arith.addf %128, %129 : vector<8x32xf32>
    %c3 = arith.constant 3 : index
    %c0_77 = arith.constant 0 : index
    %c0_78 = arith.constant 0 : index
    %131 = vector.load %arg0[%c3, %c0_77, %c0_78] : memref<8x8x3xf32, #tpu.memory_space<vmem>>, vector<1x8x3xf32>
    %132 = vector.shape_cast %131 : vector<1x8x3xf32> to vector<8x3xf32>
    %cst_79 = arith.constant dense<0.000000e+00> : vector<8x32xf32>
    %133 = tpu.matmul %132, %0, %cst_79 {dimension_numbers = #tpu.dot_dimension_numbers<[1], [0], [0], [1], [0, 0, 1, 1], [], []>} : vector<8x3xf32>, vector<3x32xf32>, vector<8x32xf32> -> vector<8x32xf32>
    %cst_80 = arith.constant dense<0.000000e+00> : vector<8x32xf32>
    %134 = tpu.matmul %130, %1, %cst_80 {dimension_numbers = #tpu.dot_dimension_numbers<[1], [0], [0], [1], [0, 0, 1, 1], [], []>} : vector<8x32xf32>, vector<32x32xf32>, vector<8x32xf32> -> vector<8x32xf32>
    %135 = arith.addf %133, %134 : vector<8x32xf32>
    %136 = vector.broadcast %6 : vector<1x32xf32> to vector<8x32xf32>
    %137 = arith.addf %135, %136 : vector<8x32xf32>
    %138 = arith.negf %137 : vector<8x32xf32>
    %139 = math.exp %138 : vector<8x32xf32>
    %cst_81 = arith.constant 1.000000e+00 : f32
    %140 = vector.broadcast %cst_81 : f32 to vector<8x32xf32>
    %141 = arith.addf %140, %139 : vector<8x32xf32>
    %142 = arith.divf %140, %141 : vector<8x32xf32>
    %cst_82 = arith.constant dense<0.000000e+00> : vector<8x32xf32>
    %143 = tpu.matmul %132, %2, %cst_82 {dimension_numbers = #tpu.dot_dimension_numbers<[1], [0], [0], [1], [0, 0, 1, 1], [], []>} : vector<8x3xf32>, vector<3x32xf32>, vector<8x32xf32> -> vector<8x32xf32>
    %cst_83 = arith.constant dense<0.000000e+00> : vector<8x32xf32>
    %144 = tpu.matmul %130, %3, %cst_83 {dimension_numbers = #tpu.dot_dimension_numbers<[1], [0], [0], [1], [0, 0, 1, 1], [], []>} : vector<8x32xf32>, vector<32x32xf32>, vector<8x32xf32> -> vector<8x32xf32>
    %145 = arith.addf %143, %144 : vector<8x32xf32>
    %146 = vector.broadcast %7 : vector<1x32xf32> to vector<8x32xf32>
    %147 = arith.addf %145, %146 : vector<8x32xf32>
    %148 = arith.negf %147 : vector<8x32xf32>
    %149 = math.exp %148 : vector<8x32xf32>
    %cst_84 = arith.constant 1.000000e+00 : f32
    %150 = vector.broadcast %cst_84 : f32 to vector<8x32xf32>
    %151 = arith.addf %150, %149 : vector<8x32xf32>
    %152 = arith.divf %150, %151 : vector<8x32xf32>
    %cst_85 = arith.constant dense<0.000000e+00> : vector<8x32xf32>
    %153 = tpu.matmul %132, %4, %cst_85 {dimension_numbers = #tpu.dot_dimension_numbers<[1], [0], [0], [1], [0, 0, 1, 1], [], []>} : vector<8x3xf32>, vector<3x32xf32>, vector<8x32xf32> -> vector<8x32xf32>
    %154 = vector.broadcast %8 : vector<1x32xf32> to vector<8x32xf32>
    %155 = arith.addf %153, %154 : vector<8x32xf32>
    %cst_86 = arith.constant dense<0.000000e+00> : vector<8x32xf32>
    %156 = tpu.matmul %130, %5, %cst_86 {dimension_numbers = #tpu.dot_dimension_numbers<[1], [0], [0], [1], [0, 0, 1, 1], [], []>} : vector<8x32xf32>, vector<32x32xf32>, vector<8x32xf32> -> vector<8x32xf32>
    %157 = vector.broadcast %9 : vector<1x32xf32> to vector<8x32xf32>
    %158 = arith.addf %156, %157 : vector<8x32xf32>
    %159 = arith.mulf %142, %158 : vector<8x32xf32>
    %160 = arith.addf %155, %159 : vector<8x32xf32>
    %161 = math.tanh %160 : vector<8x32xf32>
    %cst_87 = arith.constant 1.000000e+00 : f32
    %162 = vector.broadcast %cst_87 : f32 to vector<8x32xf32>
    %163 = arith.subf %162, %152 : vector<8x32xf32>
    %164 = arith.mulf %163, %161 : vector<8x32xf32>
    %165 = arith.mulf %152, %130 : vector<8x32xf32>
    %166 = arith.addf %164, %165 : vector<8x32xf32>
    %c4 = arith.constant 4 : index
    %c0_88 = arith.constant 0 : index
    %c0_89 = arith.constant 0 : index
    %167 = vector.load %arg0[%c4, %c0_88, %c0_89] : memref<8x8x3xf32, #tpu.memory_space<vmem>>, vector<1x8x3xf32>
    %168 = vector.shape_cast %167 : vector<1x8x3xf32> to vector<8x3xf32>
    %cst_90 = arith.constant dense<0.000000e+00> : vector<8x32xf32>
    %169 = tpu.matmul %168, %0, %cst_90 {dimension_numbers = #tpu.dot_dimension_numbers<[1], [0], [0], [1], [0, 0, 1, 1], [], []>} : vector<8x3xf32>, vector<3x32xf32>, vector<8x32xf32> -> vector<8x32xf32>
    %cst_91 = arith.constant dense<0.000000e+00> : vector<8x32xf32>
    %170 = tpu.matmul %166, %1, %cst_91 {dimension_numbers = #tpu.dot_dimension_numbers<[1], [0], [0], [1], [0, 0, 1, 1], [], []>} : vector<8x32xf32>, vector<32x32xf32>, vector<8x32xf32> -> vector<8x32xf32>
    %171 = arith.addf %169, %170 : vector<8x32xf32>
    %172 = vector.broadcast %6 : vector<1x32xf32> to vector<8x32xf32>
    %173 = arith.addf %171, %172 : vector<8x32xf32>
    %174 = arith.negf %173 : vector<8x32xf32>
    %175 = math.exp %174 : vector<8x32xf32>
    %cst_92 = arith.constant 1.000000e+00 : f32
    %176 = vector.broadcast %cst_92 : f32 to vector<8x32xf32>
    %177 = arith.addf %176, %175 : vector<8x32xf32>
    %178 = arith.divf %176, %177 : vector<8x32xf32>
    %cst_93 = arith.constant dense<0.000000e+00> : vector<8x32xf32>
    %179 = tpu.matmul %168, %2, %cst_93 {dimension_numbers = #tpu.dot_dimension_numbers<[1], [0], [0], [1], [0, 0, 1, 1], [], []>} : vector<8x3xf32>, vector<3x32xf32>, vector<8x32xf32> -> vector<8x32xf32>
    %cst_94 = arith.constant dense<0.000000e+00> : vector<8x32xf32>
    %180 = tpu.matmul %166, %3, %cst_94 {dimension_numbers = #tpu.dot_dimension_numbers<[1], [0], [0], [1], [0, 0, 1, 1], [], []>} : vector<8x32xf32>, vector<32x32xf32>, vector<8x32xf32> -> vector<8x32xf32>
    %181 = arith.addf %179, %180 : vector<8x32xf32>
    %182 = vector.broadcast %7 : vector<1x32xf32> to vector<8x32xf32>
    %183 = arith.addf %181, %182 : vector<8x32xf32>
    %184 = arith.negf %183 : vector<8x32xf32>
    %185 = math.exp %184 : vector<8x32xf32>
    %cst_95 = arith.constant 1.000000e+00 : f32
    %186 = vector.broadcast %cst_95 : f32 to vector<8x32xf32>
    %187 = arith.addf %186, %185 : vector<8x32xf32>
    %188 = arith.divf %186, %187 : vector<8x32xf32>
    %cst_96 = arith.constant dense<0.000000e+00> : vector<8x32xf32>
    %189 = tpu.matmul %168, %4, %cst_96 {dimension_numbers = #tpu.dot_dimension_numbers<[1], [0], [0], [1], [0, 0, 1, 1], [], []>} : vector<8x3xf32>, vector<3x32xf32>, vector<8x32xf32> -> vector<8x32xf32>
    %190 = vector.broadcast %8 : vector<1x32xf32> to vector<8x32xf32>
    %191 = arith.addf %189, %190 : vector<8x32xf32>
    %cst_97 = arith.constant dense<0.000000e+00> : vector<8x32xf32>
    %192 = tpu.matmul %166, %5, %cst_97 {dimension_numbers = #tpu.dot_dimension_numbers<[1], [0], [0], [1], [0, 0, 1, 1], [], []>} : vector<8x32xf32>, vector<32x32xf32>, vector<8x32xf32> -> vector<8x32xf32>
    %193 = vector.broadcast %9 : vector<1x32xf32> to vector<8x32xf32>
    %194 = arith.addf %192, %193 : vector<8x32xf32>
    %195 = arith.mulf %178, %194 : vector<8x32xf32>
    %196 = arith.addf %191, %195 : vector<8x32xf32>
    %197 = math.tanh %196 : vector<8x32xf32>
    %cst_98 = arith.constant 1.000000e+00 : f32
    %198 = vector.broadcast %cst_98 : f32 to vector<8x32xf32>
    %199 = arith.subf %198, %188 : vector<8x32xf32>
    %200 = arith.mulf %199, %197 : vector<8x32xf32>
    %201 = arith.mulf %188, %166 : vector<8x32xf32>
    %202 = arith.addf %200, %201 : vector<8x32xf32>
    %c5 = arith.constant 5 : index
    %c0_99 = arith.constant 0 : index
    %c0_100 = arith.constant 0 : index
    %203 = vector.load %arg0[%c5, %c0_99, %c0_100] : memref<8x8x3xf32, #tpu.memory_space<vmem>>, vector<1x8x3xf32>
    %204 = vector.shape_cast %203 : vector<1x8x3xf32> to vector<8x3xf32>
    %cst_101 = arith.constant dense<0.000000e+00> : vector<8x32xf32>
    %205 = tpu.matmul %204, %0, %cst_101 {dimension_numbers = #tpu.dot_dimension_numbers<[1], [0], [0], [1], [0, 0, 1, 1], [], []>} : vector<8x3xf32>, vector<3x32xf32>, vector<8x32xf32> -> vector<8x32xf32>
    %cst_102 = arith.constant dense<0.000000e+00> : vector<8x32xf32>
    %206 = tpu.matmul %202, %1, %cst_102 {dimension_numbers = #tpu.dot_dimension_numbers<[1], [0], [0], [1], [0, 0, 1, 1], [], []>} : vector<8x32xf32>, vector<32x32xf32>, vector<8x32xf32> -> vector<8x32xf32>
    %207 = arith.addf %205, %206 : vector<8x32xf32>
    %208 = vector.broadcast %6 : vector<1x32xf32> to vector<8x32xf32>
    %209 = arith.addf %207, %208 : vector<8x32xf32>
    %210 = arith.negf %209 : vector<8x32xf32>
    %211 = math.exp %210 : vector<8x32xf32>
    %cst_103 = arith.constant 1.000000e+00 : f32
    %212 = vector.broadcast %cst_103 : f32 to vector<8x32xf32>
    %213 = arith.addf %212, %211 : vector<8x32xf32>
    %214 = arith.divf %212, %213 : vector<8x32xf32>
    %cst_104 = arith.constant dense<0.000000e+00> : vector<8x32xf32>
    %215 = tpu.matmul %204, %2, %cst_104 {dimension_numbers = #tpu.dot_dimension_numbers<[1], [0], [0], [1], [0, 0, 1, 1], [], []>} : vector<8x3xf32>, vector<3x32xf32>, vector<8x32xf32> -> vector<8x32xf32>
    %cst_105 = arith.constant dense<0.000000e+00> : vector<8x32xf32>
    %216 = tpu.matmul %202, %3, %cst_105 {dimension_numbers = #tpu.dot_dimension_numbers<[1], [0], [0], [1], [0, 0, 1, 1], [], []>} : vector<8x32xf32>, vector<32x32xf32>, vector<8x32xf32> -> vector<8x32xf32>
    %217 = arith.addf %215, %216 : vector<8x32xf32>
    %218 = vector.broadcast %7 : vector<1x32xf32> to vector<8x32xf32>
    %219 = arith.addf %217, %218 : vector<8x32xf32>
    %220 = arith.negf %219 : vector<8x32xf32>
    %221 = math.exp %220 : vector<8x32xf32>
    %cst_106 = arith.constant 1.000000e+00 : f32
    %222 = vector.broadcast %cst_106 : f32 to vector<8x32xf32>
    %223 = arith.addf %222, %221 : vector<8x32xf32>
    %224 = arith.divf %222, %223 : vector<8x32xf32>
    %cst_107 = arith.constant dense<0.000000e+00> : vector<8x32xf32>
    %225 = tpu.matmul %204, %4, %cst_107 {dimension_numbers = #tpu.dot_dimension_numbers<[1], [0], [0], [1], [0, 0, 1, 1], [], []>} : vector<8x3xf32>, vector<3x32xf32>, vector<8x32xf32> -> vector<8x32xf32>
    %226 = vector.broadcast %8 : vector<1x32xf32> to vector<8x32xf32>
    %227 = arith.addf %225, %226 : vector<8x32xf32>
    %cst_108 = arith.constant dense<0.000000e+00> : vector<8x32xf32>
    %228 = tpu.matmul %202, %5, %cst_108 {dimension_numbers = #tpu.dot_dimension_numbers<[1], [0], [0], [1], [0, 0, 1, 1], [], []>} : vector<8x32xf32>, vector<32x32xf32>, vector<8x32xf32> -> vector<8x32xf32>
    %229 = vector.broadcast %9 : vector<1x32xf32> to vector<8x32xf32>
    %230 = arith.addf %228, %229 : vector<8x32xf32>
    %231 = arith.mulf %214, %230 : vector<8x32xf32>
    %232 = arith.addf %227, %231 : vector<8x32xf32>
    %233 = math.tanh %232 : vector<8x32xf32>
    %cst_109 = arith.constant 1.000000e+00 : f32
    %234 = vector.broadcast %cst_109 : f32 to vector<8x32xf32>
    %235 = arith.subf %234, %224 : vector<8x32xf32>
    %236 = arith.mulf %235, %233 : vector<8x32xf32>
    %237 = arith.mulf %224, %202 : vector<8x32xf32>
    %238 = arith.addf %236, %237 : vector<8x32xf32>
    %c6 = arith.constant 6 : index
    %c0_110 = arith.constant 0 : index
    %c0_111 = arith.constant 0 : index
    %239 = vector.load %arg0[%c6, %c0_110, %c0_111] : memref<8x8x3xf32, #tpu.memory_space<vmem>>, vector<1x8x3xf32>
    %240 = vector.shape_cast %239 : vector<1x8x3xf32> to vector<8x3xf32>
    %cst_112 = arith.constant dense<0.000000e+00> : vector<8x32xf32>
    %241 = tpu.matmul %240, %0, %cst_112 {dimension_numbers = #tpu.dot_dimension_numbers<[1], [0], [0], [1], [0, 0, 1, 1], [], []>} : vector<8x3xf32>, vector<3x32xf32>, vector<8x32xf32> -> vector<8x32xf32>
    %cst_113 = arith.constant dense<0.000000e+00> : vector<8x32xf32>
    %242 = tpu.matmul %238, %1, %cst_113 {dimension_numbers = #tpu.dot_dimension_numbers<[1], [0], [0], [1], [0, 0, 1, 1], [], []>} : vector<8x32xf32>, vector<32x32xf32>, vector<8x32xf32> -> vector<8x32xf32>
    %243 = arith.addf %241, %242 : vector<8x32xf32>
    %244 = vector.broadcast %6 : vector<1x32xf32> to vector<8x32xf32>
    %245 = arith.addf %243, %244 : vector<8x32xf32>
    %246 = arith.negf %245 : vector<8x32xf32>
    %247 = math.exp %246 : vector<8x32xf32>
    %cst_114 = arith.constant 1.000000e+00 : f32
    %248 = vector.broadcast %cst_114 : f32 to vector<8x32xf32>
    %249 = arith.addf %248, %247 : vector<8x32xf32>
    %250 = arith.divf %248, %249 : vector<8x32xf32>
    %cst_115 = arith.constant dense<0.000000e+00> : vector<8x32xf32>
    %251 = tpu.matmul %240, %2, %cst_115 {dimension_numbers = #tpu.dot_dimension_numbers<[1], [0], [0], [1], [0, 0, 1, 1], [], []>} : vector<8x3xf32>, vector<3x32xf32>, vector<8x32xf32> -> vector<8x32xf32>
    %cst_116 = arith.constant dense<0.000000e+00> : vector<8x32xf32>
    %252 = tpu.matmul %238, %3, %cst_116 {dimension_numbers = #tpu.dot_dimension_numbers<[1], [0], [0], [1], [0, 0, 1, 1], [], []>} : vector<8x32xf32>, vector<32x32xf32>, vector<8x32xf32> -> vector<8x32xf32>
    %253 = arith.addf %251, %252 : vector<8x32xf32>
    %254 = vector.broadcast %7 : vector<1x32xf32> to vector<8x32xf32>
    %255 = arith.addf %253, %254 : vector<8x32xf32>
    %256 = arith.negf %255 : vector<8x32xf32>
    %257 = math.exp %256 : vector<8x32xf32>
    %cst_117 = arith.constant 1.000000e+00 : f32
    %258 = vector.broadcast %cst_117 : f32 to vector<8x32xf32>
    %259 = arith.addf %258, %257 : vector<8x32xf32>
    %260 = arith.divf %258, %259 : vector<8x32xf32>
    %cst_118 = arith.constant dense<0.000000e+00> : vector<8x32xf32>
    %261 = tpu.matmul %240, %4, %cst_118 {dimension_numbers = #tpu.dot_dimension_numbers<[1], [0], [0], [1], [0, 0, 1, 1], [], []>} : vector<8x3xf32>, vector<3x32xf32>, vector<8x32xf32> -> vector<8x32xf32>
    %262 = vector.broadcast %8 : vector<1x32xf32> to vector<8x32xf32>
    %263 = arith.addf %261, %262 : vector<8x32xf32>
    %cst_119 = arith.constant dense<0.000000e+00> : vector<8x32xf32>
    %264 = tpu.matmul %238, %5, %cst_119 {dimension_numbers = #tpu.dot_dimension_numbers<[1], [0], [0], [1], [0, 0, 1, 1], [], []>} : vector<8x32xf32>, vector<32x32xf32>, vector<8x32xf32> -> vector<8x32xf32>
    %265 = vector.broadcast %9 : vector<1x32xf32> to vector<8x32xf32>
    %266 = arith.addf %264, %265 : vector<8x32xf32>
    %267 = arith.mulf %250, %266 : vector<8x32xf32>
    %268 = arith.addf %263, %267 : vector<8x32xf32>
    %269 = math.tanh %268 : vector<8x32xf32>
    %cst_120 = arith.constant 1.000000e+00 : f32
    %270 = vector.broadcast %cst_120 : f32 to vector<8x32xf32>
    %271 = arith.subf %270, %260 : vector<8x32xf32>
    %272 = arith.mulf %271, %269 : vector<8x32xf32>
    %273 = arith.mulf %260, %238 : vector<8x32xf32>
    %274 = arith.addf %272, %273 : vector<8x32xf32>
    %c7 = arith.constant 7 : index
    %c0_121 = arith.constant 0 : index
    %c0_122 = arith.constant 0 : index
    %275 = vector.load %arg0[%c7, %c0_121, %c0_122] : memref<8x8x3xf32, #tpu.memory_space<vmem>>, vector<1x8x3xf32>
    %276 = vector.shape_cast %275 : vector<1x8x3xf32> to vector<8x3xf32>
    %cst_123 = arith.constant dense<0.000000e+00> : vector<8x32xf32>
    %277 = tpu.matmul %276, %0, %cst_123 {dimension_numbers = #tpu.dot_dimension_numbers<[1], [0], [0], [1], [0, 0, 1, 1], [], []>} : vector<8x3xf32>, vector<3x32xf32>, vector<8x32xf32> -> vector<8x32xf32>
    %cst_124 = arith.constant dense<0.000000e+00> : vector<8x32xf32>
    %278 = tpu.matmul %274, %1, %cst_124 {dimension_numbers = #tpu.dot_dimension_numbers<[1], [0], [0], [1], [0, 0, 1, 1], [], []>} : vector<8x32xf32>, vector<32x32xf32>, vector<8x32xf32> -> vector<8x32xf32>
    %279 = arith.addf %277, %278 : vector<8x32xf32>
    %280 = vector.broadcast %6 : vector<1x32xf32> to vector<8x32xf32>
    %281 = arith.addf %279, %280 : vector<8x32xf32>
    %282 = arith.negf %281 : vector<8x32xf32>
    %283 = math.exp %282 : vector<8x32xf32>
    %cst_125 = arith.constant 1.000000e+00 : f32
    %284 = vector.broadcast %cst_125 : f32 to vector<8x32xf32>
    %285 = arith.addf %284, %283 : vector<8x32xf32>
    %286 = arith.divf %284, %285 : vector<8x32xf32>
    %cst_126 = arith.constant dense<0.000000e+00> : vector<8x32xf32>
    %287 = tpu.matmul %276, %2, %cst_126 {dimension_numbers = #tpu.dot_dimension_numbers<[1], [0], [0], [1], [0, 0, 1, 1], [], []>} : vector<8x3xf32>, vector<3x32xf32>, vector<8x32xf32> -> vector<8x32xf32>
    %cst_127 = arith.constant dense<0.000000e+00> : vector<8x32xf32>
    %288 = tpu.matmul %274, %3, %cst_127 {dimension_numbers = #tpu.dot_dimension_numbers<[1], [0], [0], [1], [0, 0, 1, 1], [], []>} : vector<8x32xf32>, vector<32x32xf32>, vector<8x32xf32> -> vector<8x32xf32>
    %289 = arith.addf %287, %288 : vector<8x32xf32>
    %290 = vector.broadcast %7 : vector<1x32xf32> to vector<8x32xf32>
    %291 = arith.addf %289, %290 : vector<8x32xf32>
    %292 = arith.negf %291 : vector<8x32xf32>
    %293 = math.exp %292 : vector<8x32xf32>
    %cst_128 = arith.constant 1.000000e+00 : f32
    %294 = vector.broadcast %cst_128 : f32 to vector<8x32xf32>
    %295 = arith.addf %294, %293 : vector<8x32xf32>
    %296 = arith.divf %294, %295 : vector<8x32xf32>
    %cst_129 = arith.constant dense<0.000000e+00> : vector<8x32xf32>
    %297 = tpu.matmul %276, %4, %cst_129 {dimension_numbers = #tpu.dot_dimension_numbers<[1], [0], [0], [1], [0, 0, 1, 1], [], []>} : vector<8x3xf32>, vector<3x32xf32>, vector<8x32xf32> -> vector<8x32xf32>
    %298 = vector.broadcast %8 : vector<1x32xf32> to vector<8x32xf32>
    %299 = arith.addf %297, %298 : vector<8x32xf32>
    %cst_130 = arith.constant dense<0.000000e+00> : vector<8x32xf32>
    %300 = tpu.matmul %274, %5, %cst_130 {dimension_numbers = #tpu.dot_dimension_numbers<[1], [0], [0], [1], [0, 0, 1, 1], [], []>} : vector<8x32xf32>, vector<32x32xf32>, vector<8x32xf32> -> vector<8x32xf32>
    %301 = vector.broadcast %9 : vector<1x32xf32> to vector<8x32xf32>
    %302 = arith.addf %300, %301 : vector<8x32xf32>
    %303 = arith.mulf %286, %302 : vector<8x32xf32>
    %304 = arith.addf %299, %303 : vector<8x32xf32>
    %305 = math.tanh %304 : vector<8x32xf32>
    %cst_131 = arith.constant 1.000000e+00 : f32
    %306 = vector.broadcast %cst_131 : f32 to vector<8x32xf32>
    %307 = arith.subf %306, %296 : vector<8x32xf32>
    %308 = arith.mulf %307, %305 : vector<8x32xf32>
    %309 = arith.mulf %296, %274 : vector<8x32xf32>
    %310 = arith.addf %308, %309 : vector<8x32xf32>
    %c0_132 = arith.constant 0 : index
    %c0_133 = arith.constant 0 : index
    %311 = vector.load %arg26[%c0_132, %c0_133] : memref<8x64xf32, #tpu.memory_space<vmem>>, vector<8x32xf32>
    tpu.vector_store %arg26[%c0_132, %c0_133], %310 {strides = array<i32>} : memref<8x64xf32, #tpu.memory_space<vmem>>, vector<8x32xf32>,
    %c0_134 = arith.constant 0 : index
    %c0_135 = arith.constant 0 : index
    %c0_136 = arith.constant 0 : index
    %312 = vector.load %arg2[%c0_134, %c0_135, %c0_136] : memref<1x8x32xf32, #tpu.memory_space<vmem>>, vector<1x8x32xf32>
    %313 = vector.shape_cast %312 : vector<1x8x32xf32> to vector<8x32xf32>
    %c0_137 = arith.constant 0 : index
    %c32 = arith.constant 32 : index
    %314 = vector.load %arg26[%c0_137, %c32] : memref<8x64xf32, #tpu.memory_space<vmem>>, vector<8x32xf32>
    tpu.vector_store %arg26[%c0_137, %c32], %313 {strides = array<i32>} : memref<8x64xf32, #tpu.memory_space<vmem>>, vector<8x32xf32>,
    %c0_138 = arith.constant 0 : index
    %c0_139 = arith.constant 0 : index
    %315 = vector.load %arg26[%c0_138, %c0_139] : memref<8x64xf32, #tpu.memory_space<vmem>>, vector<8x64xf32>
    %c7_140 = arith.constant 7 : index
    %c0_141 = arith.constant 0 : index
    %c0_142 = arith.constant 0 : index
    %316 = vector.load %arg0[%c7_140, %c0_141, %c0_142] : memref<8x8x3xf32, #tpu.memory_space<vmem>>, vector<1x8x3xf32>
    %317 = vector.shape_cast %316 : vector<1x8x3xf32> to vector<8x3xf32>
    %cst_143 = arith.constant dense<0.000000e+00> : vector<8x64xf32>
    %318 = tpu.matmul %317, %10, %cst_143 {dimension_numbers = #tpu.dot_dimension_numbers<[1], [0], [0], [1], [0, 0, 1, 1], [], []>} : vector<8x3xf32>, vector<3x64xf32>, vector<8x64xf32> -> vector<8x64xf32>
    %cst_144 = arith.constant dense<0.000000e+00> : vector<8x64xf32>
    %319 = tpu.matmul %315, %11, %cst_144 {dimension_numbers = #tpu.dot_dimension_numbers<[1], [0], [0], [1], [0, 0, 1, 1], [], []>} : vector<8x64xf32>, vector<64x64xf32>, vector<8x64xf32> -> vector<8x64xf32>
    %320 = arith.addf %318, %319 : vector<8x64xf32>
    %321 = vector.broadcast %16 : vector<1x64xf32> to vector<8x64xf32>
    %322 = arith.addf %320, %321 : vector<8x64xf32>
    %323 = arith.negf %322 : vector<8x64xf32>
    %324 = math.exp %323 : vector<8x64xf32>
    %cst_145 = arith.constant 1.000000e+00 : f32
    %325 = vector.broadcast %cst_145 : f32 to vector<8x64xf32>
    %326 = arith.addf %325, %324 : vector<8x64xf32>
    %327 = arith.divf %325, %326 : vector<8x64xf32>
    %cst_146 = arith.constant dense<0.000000e+00> : vector<8x64xf32>
    %328 = tpu.matmul %317, %12, %cst_146 {dimension_numbers = #tpu.dot_dimension_numbers<[1], [0], [0], [1], [0, 0, 1, 1], [], []>} : vector<8x3xf32>, vector<3x64xf32>, vector<8x64xf32> -> vector<8x64xf32>
    %cst_147 = arith.constant dense<0.000000e+00> : vector<8x64xf32>
    %329 = tpu.matmul %315, %13, %cst_147 {dimension_numbers = #tpu.dot_dimension_numbers<[1], [0], [0], [1], [0, 0, 1, 1], [], []>} : vector<8x64xf32>, vector<64x64xf32>, vector<8x64xf32> -> vector<8x64xf32>
    %330 = arith.addf %328, %329 : vector<8x64xf32>
    %331 = vector.broadcast %17 : vector<1x64xf32> to vector<8x64xf32>
    %332 = arith.addf %330, %331 : vector<8x64xf32>
    %333 = arith.negf %332 : vector<8x64xf32>
    %334 = math.exp %333 : vector<8x64xf32>
    %cst_148 = arith.constant 1.000000e+00 : f32
    %335 = vector.broadcast %cst_148 : f32 to vector<8x64xf32>
    %336 = arith.addf %335, %334 : vector<8x64xf32>
    %337 = arith.divf %335, %336 : vector<8x64xf32>
    %cst_149 = arith.constant dense<0.000000e+00> : vector<8x64xf32>
    %338 = tpu.matmul %317, %14, %cst_149 {dimension_numbers = #tpu.dot_dimension_numbers<[1], [0], [0], [1], [0, 0, 1, 1], [], []>} : vector<8x3xf32>, vector<3x64xf32>, vector<8x64xf32> -> vector<8x64xf32>
    %339 = vector.broadcast %18 : vector<1x64xf32> to vector<8x64xf32>
    %340 = arith.addf %338, %339 : vector<8x64xf32>
    %cst_150 = arith.constant dense<0.000000e+00> : vector<8x64xf32>
    %341 = tpu.matmul %315, %15, %cst_150 {dimension_numbers = #tpu.dot_dimension_numbers<[1], [0], [0], [1], [0, 0, 1, 1], [], []>} : vector<8x64xf32>, vector<64x64xf32>, vector<8x64xf32> -> vector<8x64xf32>
    %342 = vector.broadcast %19 : vector<1x64xf32> to vector<8x64xf32>
    %343 = arith.addf %341, %342 : vector<8x64xf32>
    %344 = arith.mulf %327, %343 : vector<8x64xf32>
    %345 = arith.addf %340, %344 : vector<8x64xf32>
    %346 = math.tanh %345 : vector<8x64xf32>
    %cst_151 = arith.constant 1.000000e+00 : f32
    %347 = vector.broadcast %cst_151 : f32 to vector<8x64xf32>
    %348 = arith.subf %347, %337 : vector<8x64xf32>
    %349 = arith.mulf %348, %346 : vector<8x64xf32>
    %350 = arith.mulf %337, %315 : vector<8x64xf32>
    %351 = arith.addf %349, %350 : vector<8x64xf32>
    %cst_152 = arith.constant dense<0.000000e+00> : vector<8x1xf32>
    %352 = tpu.matmul %351, %20, %cst_152 {dimension_numbers = #tpu.dot_dimension_numbers<[1], [0], [0], [1], [0, 0, 1, 1], [], []>} : vector<8x64xf32>, vector<64x1xf32>, vector<8x1xf32> -> vector<8x1xf32>
    %353 = vector.broadcast %21 : vector<1x1xf32> to vector<8x1xf32>
    %354 = arith.addf %352, %353 : vector<8x1xf32>
    %c0_153 = arith.constant 0 : index
    %c0_154 = arith.constant 0 : index
    %c0_155 = arith.constant 0 : index
    %355 = vector.load %arg25[%c0_153, %c0_154, %c0_155] : memref<8x8x1xf32, #tpu.memory_space<vmem>>, vector<1x8x1xf32>
    %356 = vector.shape_cast %355 : vector<1x8x1xf32> to vector<8x1xf32>
    %357 = vector.shape_cast %354 : vector<8x1xf32> to vector<1x8x1xf32>
    tpu.vector_store %arg25[%c0_153, %c0_154, %c0_155], %357 {strides = array<i32>} : memref<8x8x1xf32, #tpu.memory_space<vmem>>, vector<1x8x1xf32>,
    %c0_156 = arith.constant 0 : index
    %c0_157 = arith.constant 0 : index
    %358 = vector.load %arg27[%c0_156, %c0_157] : memref<8x3xf32, #tpu.memory_space<vmem>>, vector<8x1xf32>
    tpu.vector_store %arg27[%c0_156, %c0_157], %354 {strides = array<i32>} : memref<8x3xf32, #tpu.memory_space<vmem>>, vector<8x1xf32>,
    %c0_158 = arith.constant 0 : index
    %c0_159 = arith.constant 0 : index
    %c0_160 = arith.constant 0 : index
    %359 = vector.load %arg1[%c0_158, %c0_159, %c0_160] : memref<8x8x2xf32, #tpu.memory_space<vmem>>, vector<1x8x2xf32>
    %360 = vector.shape_cast %359 : vector<1x8x2xf32> to vector<8x2xf32>
    %c0_161 = arith.constant 0 : index
    %c1_162 = arith.constant 1 : index
    %361 = vector.load %arg27[%c0_161, %c1_162] : memref<8x3xf32, #tpu.memory_space<vmem>>, vector<8x2xf32>
    tpu.vector_store %arg27[%c0_161, %c1_162], %360 {strides = array<i32>} : memref<8x3xf32, #tpu.memory_space<vmem>>, vector<8x2xf32>,
    %c0_163 = arith.constant 0 : index
    %c0_164 = arith.constant 0 : index
    %362 = vector.load %arg27[%c0_163, %c0_164] : memref<8x3xf32, #tpu.memory_space<vmem>>, vector<8x3xf32>
    %cst_165 = arith.constant dense<0.000000e+00> : vector<8x64xf32>
    %363 = tpu.matmul %362, %10, %cst_165 {dimension_numbers = #tpu.dot_dimension_numbers<[1], [0], [0], [1], [0, 0, 1, 1], [], []>} : vector<8x3xf32>, vector<3x64xf32>, vector<8x64xf32> -> vector<8x64xf32>
    %cst_166 = arith.constant dense<0.000000e+00> : vector<8x64xf32>
    %364 = tpu.matmul %351, %11, %cst_166 {dimension_numbers = #tpu.dot_dimension_numbers<[1], [0], [0], [1], [0, 0, 1, 1], [], []>} : vector<8x64xf32>, vector<64x64xf32>, vector<8x64xf32> -> vector<8x64xf32>
    %365 = arith.addf %363, %364 : vector<8x64xf32>
    %366 = vector.broadcast %16 : vector<1x64xf32> to vector<8x64xf32>
    %367 = arith.addf %365, %366 : vector<8x64xf32>
    %368 = arith.negf %367 : vector<8x64xf32>
    %369 = math.exp %368 : vector<8x64xf32>
    %cst_167 = arith.constant 1.000000e+00 : f32
    %370 = vector.broadcast %cst_167 : f32 to vector<8x64xf32>
    %371 = arith.addf %370, %369 : vector<8x64xf32>
    %372 = arith.divf %370, %371 : vector<8x64xf32>
    %cst_168 = arith.constant dense<0.000000e+00> : vector<8x64xf32>
    %373 = tpu.matmul %362, %12, %cst_168 {dimension_numbers = #tpu.dot_dimension_numbers<[1], [0], [0], [1], [0, 0, 1, 1], [], []>} : vector<8x3xf32>, vector<3x64xf32>, vector<8x64xf32> -> vector<8x64xf32>
    %cst_169 = arith.constant dense<0.000000e+00> : vector<8x64xf32>
    %374 = tpu.matmul %351, %13, %cst_169 {dimension_numbers = #tpu.dot_dimension_numbers<[1], [0], [0], [1], [0, 0, 1, 1], [], []>} : vector<8x64xf32>, vector<64x64xf32>, vector<8x64xf32> -> vector<8x64xf32>
    %375 = arith.addf %373, %374 : vector<8x64xf32>
    %376 = vector.broadcast %17 : vector<1x64xf32> to vector<8x64xf32>
    %377 = arith.addf %375, %376 : vector<8x64xf32>
    %378 = arith.negf %377 : vector<8x64xf32>
    %379 = math.exp %378 : vector<8x64xf32>
    %cst_170 = arith.constant 1.000000e+00 : f32
    %380 = vector.broadcast %cst_170 : f32 to vector<8x64xf32>
    %381 = arith.addf %380, %379 : vector<8x64xf32>
    %382 = arith.divf %380, %381 : vector<8x64xf32>
    %cst_171 = arith.constant dense<0.000000e+00> : vector<8x64xf32>
    %383 = tpu.matmul %362, %14, %cst_171 {dimension_numbers = #tpu.dot_dimension_numbers<[1], [0], [0], [1], [0, 0, 1, 1], [], []>} : vector<8x3xf32>, vector<3x64xf32>, vector<8x64xf32> -> vector<8x64xf32>
    %384 = vector.broadcast %18 : vector<1x64xf32> to vector<8x64xf32>
    %385 = arith.addf %383, %384 : vector<8x64xf32>
    %cst_172 = arith.constant dense<0.000000e+00> : vector<8x64xf32>
    %386 = tpu.matmul %351, %15, %cst_172 {dimension_numbers = #tpu.dot_dimension_numbers<[1], [0], [0], [1], [0, 0, 1, 1], [], []>} : vector<8x64xf32>, vector<64x64xf32>, vector<8x64xf32> -> vector<8x64xf32>
    %387 = vector.broadcast %19 : vector<1x64xf32> to vector<8x64xf32>
    %388 = arith.addf %386, %387 : vector<8x64xf32>
    %389 = arith.mulf %372, %388 : vector<8x64xf32>
    %390 = arith.addf %385, %389 : vector<8x64xf32>
    %391 = math.tanh %390 : vector<8x64xf32>
    %cst_173 = arith.constant 1.000000e+00 : f32
    %392 = vector.broadcast %cst_173 : f32 to vector<8x64xf32>
    %393 = arith.subf %392, %382 : vector<8x64xf32>
    %394 = arith.mulf %393, %391 : vector<8x64xf32>
    %395 = arith.mulf %382, %351 : vector<8x64xf32>
    %396 = arith.addf %394, %395 : vector<8x64xf32>
    %cst_174 = arith.constant dense<0.000000e+00> : vector<8x1xf32>
    %397 = tpu.matmul %396, %20, %cst_174 {dimension_numbers = #tpu.dot_dimension_numbers<[1], [0], [0], [1], [0, 0, 1, 1], [], []>} : vector<8x64xf32>, vector<64x1xf32>, vector<8x1xf32> -> vector<8x1xf32>
    %398 = vector.broadcast %21 : vector<1x1xf32> to vector<8x1xf32>
    %399 = arith.addf %397, %398 : vector<8x1xf32>
    %c1_175 = arith.constant 1 : index
    %c0_176 = arith.constant 0 : index
    %c0_177 = arith.constant 0 : index
    %400 = vector.load %arg25[%c1_175, %c0_176, %c0_177] : memref<8x8x1xf32, #tpu.memory_space<vmem>>, vector<1x8x1xf32>
    %401 = vector.shape_cast %400 : vector<1x8x1xf32> to vector<8x1xf32>
    %402 = vector.shape_cast %399 : vector<8x1xf32> to vector<1x8x1xf32>
    tpu.vector_store %arg25[%c1_175, %c0_176, %c0_177], %402 {strides = array<i32>} : memref<8x8x1xf32, #tpu.memory_space<vmem>>, vector<1x8x1xf32>,
    %c0_178 = arith.constant 0 : index
    %c0_179 = arith.constant 0 : index
    %403 = vector.load %arg27[%c0_178, %c0_179] : memref<8x3xf32, #tpu.memory_space<vmem>>, vector<8x1xf32>
    tpu.vector_store %arg27[%c0_178, %c0_179], %399 {strides = array<i32>} : memref<8x3xf32, #tpu.memory_space<vmem>>, vector<8x1xf32>,
    %c1_180 = arith.constant 1 : index
    %c0_181 = arith.constant 0 : index
    %c0_182 = arith.constant 0 : index
    %404 = vector.load %arg1[%c1_180, %c0_181, %c0_182] : memref<8x8x2xf32, #tpu.memory_space<vmem>>, vector<1x8x2xf32>
    %405 = vector.shape_cast %404 : vector<1x8x2xf32> to vector<8x2xf32>
    %c0_183 = arith.constant 0 : index
    %c1_184 = arith.constant 1 : index
    %406 = vector.load %arg27[%c0_183, %c1_184] : memref<8x3xf32, #tpu.memory_space<vmem>>, vector<8x2xf32>
    tpu.vector_store %arg27[%c0_183, %c1_184], %405 {strides = array<i32>} : memref<8x3xf32, #tpu.memory_space<vmem>>, vector<8x2xf32>,
    %c0_185 = arith.constant 0 : index
    %c0_186 = arith.constant 0 : index
    %407 = vector.load %arg27[%c0_185, %c0_186] : memref<8x3xf32, #tpu.memory_space<vmem>>, vector<8x3xf32>
    %cst_187 = arith.constant dense<0.000000e+00> : vector<8x64xf32>
    %408 = tpu.matmul %407, %10, %cst_187 {dimension_numbers = #tpu.dot_dimension_numbers<[1], [0], [0], [1], [0, 0, 1, 1], [], []>} : vector<8x3xf32>, vector<3x64xf32>, vector<8x64xf32> -> vector<8x64xf32>
    %cst_188 = arith.constant dense<0.000000e+00> : vector<8x64xf32>
    %409 = tpu.matmul %396, %11, %cst_188 {dimension_numbers = #tpu.dot_dimension_numbers<[1], [0], [0], [1], [0, 0, 1, 1], [], []>} : vector<8x64xf32>, vector<64x64xf32>, vector<8x64xf32> -> vector<8x64xf32>
    %410 = arith.addf %408, %409 : vector<8x64xf32>
    %411 = vector.broadcast %16 : vector<1x64xf32> to vector<8x64xf32>
    %412 = arith.addf %410, %411 : vector<8x64xf32>
    %413 = arith.negf %412 : vector<8x64xf32>
    %414 = math.exp %413 : vector<8x64xf32>
    %cst_189 = arith.constant 1.000000e+00 : f32
    %415 = vector.broadcast %cst_189 : f32 to vector<8x64xf32>
    %416 = arith.addf %415, %414 : vector<8x64xf32>
    %417 = arith.divf %415, %416 : vector<8x64xf32>
    %cst_190 = arith.constant dense<0.000000e+00> : vector<8x64xf32>
    %418 = tpu.matmul %407, %12, %cst_190 {dimension_numbers = #tpu.dot_dimension_numbers<[1], [0], [0], [1], [0, 0, 1, 1], [], []>} : vector<8x3xf32>, vector<3x64xf32>, vector<8x64xf32> -> vector<8x64xf32>
    %cst_191 = arith.constant dense<0.000000e+00> : vector<8x64xf32>
    %419 = tpu.matmul %396, %13, %cst_191 {dimension_numbers = #tpu.dot_dimension_numbers<[1], [0], [0], [1], [0, 0, 1, 1], [], []>} : vector<8x64xf32>, vector<64x64xf32>, vector<8x64xf32> -> vector<8x64xf32>
    %420 = arith.addf %418, %419 : vector<8x64xf32>
    %421 = vector.broadcast %17 : vector<1x64xf32> to vector<8x64xf32>
    %422 = arith.addf %420, %421 : vector<8x64xf32>
    %423 = arith.negf %422 : vector<8x64xf32>
    %424 = math.exp %423 : vector<8x64xf32>
    %cst_192 = arith.constant 1.000000e+00 : f32
    %425 = vector.broadcast %cst_192 : f32 to vector<8x64xf32>
    %426 = arith.addf %425, %424 : vector<8x64xf32>
    %427 = arith.divf %425, %426 : vector<8x64xf32>
    %cst_193 = arith.constant dense<0.000000e+00> : vector<8x64xf32>
    %428 = tpu.matmul %407, %14, %cst_193 {dimension_numbers = #tpu.dot_dimension_numbers<[1], [0], [0], [1], [0, 0, 1, 1], [], []>} : vector<8x3xf32>, vector<3x64xf32>, vector<8x64xf32> -> vector<8x64xf32>
    %429 = vector.broadcast %18 : vector<1x64xf32> to vector<8x64xf32>
    %430 = arith.addf %428, %429 : vector<8x64xf32>
    %cst_194 = arith.constant dense<0.000000e+00> : vector<8x64xf32>
    %431 = tpu.matmul %396, %15, %cst_194 {dimension_numbers = #tpu.dot_dimension_numbers<[1], [0], [0], [1], [0, 0, 1, 1], [], []>} : vector<8x64xf32>, vector<64x64xf32>, vector<8x64xf32> -> vector<8x64xf32>
    %432 = vector.broadcast %19 : vector<1x64xf32> to vector<8x64xf32>
    %433 = arith.addf %431, %432 : vector<8x64xf32>
    %434 = arith.mulf %417, %433 : vector<8x64xf32>
    %435 = arith.addf %430, %434 : vector<8x64xf32>
    %436 = math.tanh %435 : vector<8x64xf32>
    %cst_195 = arith.constant 1.000000e+00 : f32
    %437 = vector.broadcast %cst_195 : f32 to vector<8x64xf32>
    %438 = arith.subf %437, %427 : vector<8x64xf32>
    %439 = arith.mulf %438, %436 : vector<8x64xf32>
    %440 = arith.mulf %427, %396 : vector<8x64xf32>
    %441 = arith.addf %439, %440 : vector<8x64xf32>
    %cst_196 = arith.constant dense<0.000000e+00> : vector<8x1xf32>
    %442 = tpu.matmul %441, %20, %cst_196 {dimension_numbers = #tpu.dot_dimension_numbers<[1], [0], [0], [1], [0, 0, 1, 1], [], []>} : vector<8x64xf32>, vector<64x1xf32>, vector<8x1xf32> -> vector<8x1xf32>
    %443 = vector.broadcast %21 : vector<1x1xf32> to vector<8x1xf32>
    %444 = arith.addf %442, %443 : vector<8x1xf32>
    %c2_197 = arith.constant 2 : index
    %c0_198 = arith.constant 0 : index
    %c0_199 = arith.constant 0 : index
    %445 = vector.load %arg25[%c2_197, %c0_198, %c0_199] : memref<8x8x1xf32, #tpu.memory_space<vmem>>, vector<1x8x1xf32>
    %446 = vector.shape_cast %445 : vector<1x8x1xf32> to vector<8x1xf32>
    %447 = vector.shape_cast %444 : vector<8x1xf32> to vector<1x8x1xf32>
    tpu.vector_store %arg25[%c2_197, %c0_198, %c0_199], %447 {strides = array<i32>} : memref<8x8x1xf32, #tpu.memory_space<vmem>>, vector<1x8x1xf32>,
    %c0_200 = arith.constant 0 : index
    %c0_201 = arith.constant 0 : index
    %448 = vector.load %arg27[%c0_200, %c0_201] : memref<8x3xf32, #tpu.memory_space<vmem>>, vector<8x1xf32>
    tpu.vector_store %arg27[%c0_200, %c0_201], %444 {strides = array<i32>} : memref<8x3xf32, #tpu.memory_space<vmem>>, vector<8x1xf32>,
    %c2_202 = arith.constant 2 : index
    %c0_203 = arith.constant 0 : index
    %c0_204 = arith.constant 0 : index
    %449 = vector.load %arg1[%c2_202, %c0_203, %c0_204] : memref<8x8x2xf32, #tpu.memory_space<vmem>>, vector<1x8x2xf32>
    %450 = vector.shape_cast %449 : vector<1x8x2xf32> to vector<8x2xf32>
    %c0_205 = arith.constant 0 : index
    %c1_206 = arith.constant 1 : index
    %451 = vector.load %arg27[%c0_205, %c1_206] : memref<8x3xf32, #tpu.memory_space<vmem>>, vector<8x2xf32>
    tpu.vector_store %arg27[%c0_205, %c1_206], %450 {strides = array<i32>} : memref<8x3xf32, #tpu.memory_space<vmem>>, vector<8x2xf32>,
    %c0_207 = arith.constant 0 : index
    %c0_208 = arith.constant 0 : index
    %452 = vector.load %arg27[%c0_207, %c0_208] : memref<8x3xf32, #tpu.memory_space<vmem>>, vector<8x3xf32>
    %cst_209 = arith.constant dense<0.000000e+00> : vector<8x64xf32>
    %453 = tpu.matmul %452, %10, %cst_209 {dimension_numbers = #tpu.dot_dimension_numbers<[1], [0], [0], [1], [0, 0, 1, 1], [], []>} : vector<8x3xf32>, vector<3x64xf32>, vector<8x64xf32> -> vector<8x64xf32>
    %cst_210 = arith.constant dense<0.000000e+00> : vector<8x64xf32>
    %454 = tpu.matmul %441, %11, %cst_210 {dimension_numbers = #tpu.dot_dimension_numbers<[1], [0], [0], [1], [0, 0, 1, 1], [], []>} : vector<8x64xf32>, vector<64x64xf32>, vector<8x64xf32> -> vector<8x64xf32>
    %455 = arith.addf %453, %454 : vector<8x64xf32>
    %456 = vector.broadcast %16 : vector<1x64xf32> to vector<8x64xf32>
    %457 = arith.addf %455, %456 : vector<8x64xf32>
    %458 = arith.negf %457 : vector<8x64xf32>
    %459 = math.exp %458 : vector<8x64xf32>
    %cst_211 = arith.constant 1.000000e+00 : f32
    %460 = vector.broadcast %cst_211 : f32 to vector<8x64xf32>
    %461 = arith.addf %460, %459 : vector<8x64xf32>
    %462 = arith.divf %460, %461 : vector<8x64xf32>
    %cst_212 = arith.constant dense<0.000000e+00> : vector<8x64xf32>
    %463 = tpu.matmul %452, %12, %cst_212 {dimension_numbers = #tpu.dot_dimension_numbers<[1], [0], [0], [1], [0, 0, 1, 1], [], []>} : vector<8x3xf32>, vector<3x64xf32>, vector<8x64xf32> -> vector<8x64xf32>
    %cst_213 = arith.constant dense<0.000000e+00> : vector<8x64xf32>
    %464 = tpu.matmul %441, %13, %cst_213 {dimension_numbers = #tpu.dot_dimension_numbers<[1], [0], [0], [1], [0, 0, 1, 1], [], []>} : vector<8x64xf32>, vector<64x64xf32>, vector<8x64xf32> -> vector<8x64xf32>
    %465 = arith.addf %463, %464 : vector<8x64xf32>
    %466 = vector.broadcast %17 : vector<1x64xf32> to vector<8x64xf32>
    %467 = arith.addf %465, %466 : vector<8x64xf32>
    %468 = arith.negf %467 : vector<8x64xf32>
    %469 = math.exp %468 : vector<8x64xf32>
    %cst_214 = arith.constant 1.000000e+00 : f32
    %470 = vector.broadcast %cst_214 : f32 to vector<8x64xf32>
    %471 = arith.addf %470, %469 : vector<8x64xf32>
    %472 = arith.divf %470, %471 : vector<8x64xf32>
    %cst_215 = arith.constant dense<0.000000e+00> : vector<8x64xf32>
    %473 = tpu.matmul %452, %14, %cst_215 {dimension_numbers = #tpu.dot_dimension_numbers<[1], [0], [0], [1], [0, 0, 1, 1], [], []>} : vector<8x3xf32>, vector<3x64xf32>, vector<8x64xf32> -> vector<8x64xf32>
    %474 = vector.broadcast %18 : vector<1x64xf32> to vector<8x64xf32>
    %475 = arith.addf %473, %474 : vector<8x64xf32>
    %cst_216 = arith.constant dense<0.000000e+00> : vector<8x64xf32>
    %476 = tpu.matmul %441, %15, %cst_216 {dimension_numbers = #tpu.dot_dimension_numbers<[1], [0], [0], [1], [0, 0, 1, 1], [], []>} : vector<8x64xf32>, vector<64x64xf32>, vector<8x64xf32> -> vector<8x64xf32>
    %477 = vector.broadcast %19 : vector<1x64xf32> to vector<8x64xf32>
    %478 = arith.addf %476, %477 : vector<8x64xf32>
    %479 = arith.mulf %462, %478 : vector<8x64xf32>
    %480 = arith.addf %475, %479 : vector<8x64xf32>
    %481 = math.tanh %480 : vector<8x64xf32>
    %cst_217 = arith.constant 1.000000e+00 : f32
    %482 = vector.broadcast %cst_217 : f32 to vector<8x64xf32>
    %483 = arith.subf %482, %472 : vector<8x64xf32>
    %484 = arith.mulf %483, %481 : vector<8x64xf32>
    %485 = arith.mulf %472, %441 : vector<8x64xf32>
    %486 = arith.addf %484, %485 : vector<8x64xf32>
    %cst_218 = arith.constant dense<0.000000e+00> : vector<8x1xf32>
    %487 = tpu.matmul %486, %20, %cst_218 {dimension_numbers = #tpu.dot_dimension_numbers<[1], [0], [0], [1], [0, 0, 1, 1], [], []>} : vector<8x64xf32>, vector<64x1xf32>, vector<8x1xf32> -> vector<8x1xf32>
    %488 = vector.broadcast %21 : vector<1x1xf32> to vector<8x1xf32>
    %489 = arith.addf %487, %488 : vector<8x1xf32>
    %c3_219 = arith.constant 3 : index
    %c0_220 = arith.constant 0 : index
    %c0_221 = arith.constant 0 : index
    %490 = vector.load %arg25[%c3_219, %c0_220, %c0_221] : memref<8x8x1xf32, #tpu.memory_space<vmem>>, vector<1x8x1xf32>
    %491 = vector.shape_cast %490 : vector<1x8x1xf32> to vector<8x1xf32>
    %492 = vector.shape_cast %489 : vector<8x1xf32> to vector<1x8x1xf32>
    tpu.vector_store %arg25[%c3_219, %c0_220, %c0_221], %492 {strides = array<i32>} : memref<8x8x1xf32, #tpu.memory_space<vmem>>, vector<1x8x1xf32>,
    %c0_222 = arith.constant 0 : index
    %c0_223 = arith.constant 0 : index
    %493 = vector.load %arg27[%c0_222, %c0_223] : memref<8x3xf32, #tpu.memory_space<vmem>>, vector<8x1xf32>
    tpu.vector_store %arg27[%c0_222, %c0_223], %489 {strides = array<i32>} : memref<8x3xf32, #tpu.memory_space<vmem>>, vector<8x1xf32>,
    %c3_224 = arith.constant 3 : index
    %c0_225 = arith.constant 0 : index
    %c0_226 = arith.constant 0 : index
    %494 = vector.load %arg1[%c3_224, %c0_225, %c0_226] : memref<8x8x2xf32, #tpu.memory_space<vmem>>, vector<1x8x2xf32>
    %495 = vector.shape_cast %494 : vector<1x8x2xf32> to vector<8x2xf32>
    %c0_227 = arith.constant 0 : index
    %c1_228 = arith.constant 1 : index
    %496 = vector.load %arg27[%c0_227, %c1_228] : memref<8x3xf32, #tpu.memory_space<vmem>>, vector<8x2xf32>
    tpu.vector_store %arg27[%c0_227, %c1_228], %495 {strides = array<i32>} : memref<8x3xf32, #tpu.memory_space<vmem>>, vector<8x2xf32>,
    %c0_229 = arith.constant 0 : index
    %c0_230 = arith.constant 0 : index
    %497 = vector.load %arg27[%c0_229, %c0_230] : memref<8x3xf32, #tpu.memory_space<vmem>>, vector<8x3xf32>
    %cst_231 = arith.constant dense<0.000000e+00> : vector<8x64xf32>
    %498 = tpu.matmul %497, %10, %cst_231 {dimension_numbers = #tpu.dot_dimension_numbers<[1], [0], [0], [1], [0, 0, 1, 1], [], []>} : vector<8x3xf32>, vector<3x64xf32>, vector<8x64xf32> -> vector<8x64xf32>
    %cst_232 = arith.constant dense<0.000000e+00> : vector<8x64xf32>
    %499 = tpu.matmul %486, %11, %cst_232 {dimension_numbers = #tpu.dot_dimension_numbers<[1], [0], [0], [1], [0, 0, 1, 1], [], []>} : vector<8x64xf32>, vector<64x64xf32>, vector<8x64xf32> -> vector<8x64xf32>
    %500 = arith.addf %498, %499 : vector<8x64xf32>
    %501 = vector.broadcast %16 : vector<1x64xf32> to vector<8x64xf32>
    %502 = arith.addf %500, %501 : vector<8x64xf32>
    %503 = arith.negf %502 : vector<8x64xf32>
    %504 = math.exp %503 : vector<8x64xf32>
    %cst_233 = arith.constant 1.000000e+00 : f32
    %505 = vector.broadcast %cst_233 : f32 to vector<8x64xf32>
    %506 = arith.addf %505, %504 : vector<8x64xf32>
    %507 = arith.divf %505, %506 : vector<8x64xf32>
    %cst_234 = arith.constant dense<0.000000e+00> : vector<8x64xf32>
    %508 = tpu.matmul %497, %12, %cst_234 {dimension_numbers = #tpu.dot_dimension_numbers<[1], [0], [0], [1], [0, 0, 1, 1], [], []>} : vector<8x3xf32>, vector<3x64xf32>, vector<8x64xf32> -> vector<8x64xf32>
    %cst_235 = arith.constant dense<0.000000e+00> : vector<8x64xf32>
    %509 = tpu.matmul %486, %13, %cst_235 {dimension_numbers = #tpu.dot_dimension_numbers<[1], [0], [0], [1], [0, 0, 1, 1], [], []>} : vector<8x64xf32>, vector<64x64xf32>, vector<8x64xf32> -> vector<8x64xf32>
    %510 = arith.addf %508, %509 : vector<8x64xf32>
    %511 = vector.broadcast %17 : vector<1x64xf32> to vector<8x64xf32>
    %512 = arith.addf %510, %511 : vector<8x64xf32>
    %513 = arith.negf %512 : vector<8x64xf32>
    %514 = math.exp %513 : vector<8x64xf32>
    %cst_236 = arith.constant 1.000000e+00 : f32
    %515 = vector.broadcast %cst_236 : f32 to vector<8x64xf32>
    %516 = arith.addf %515, %514 : vector<8x64xf32>
    %517 = arith.divf %515, %516 : vector<8x64xf32>
    %cst_237 = arith.constant dense<0.000000e+00> : vector<8x64xf32>
    %518 = tpu.matmul %497, %14, %cst_237 {dimension_numbers = #tpu.dot_dimension_numbers<[1], [0], [0], [1], [0, 0, 1, 1], [], []>} : vector<8x3xf32>, vector<3x64xf32>, vector<8x64xf32> -> vector<8x64xf32>
    %519 = vector.broadcast %18 : vector<1x64xf32> to vector<8x64xf32>
    %520 = arith.addf %518, %519 : vector<8x64xf32>
    %cst_238 = arith.constant dense<0.000000e+00> : vector<8x64xf32>
    %521 = tpu.matmul %486, %15, %cst_238 {dimension_numbers = #tpu.dot_dimension_numbers<[1], [0], [0], [1], [0, 0, 1, 1], [], []>} : vector<8x64xf32>, vector<64x64xf32>, vector<8x64xf32> -> vector<8x64xf32>
    %522 = vector.broadcast %19 : vector<1x64xf32> to vector<8x64xf32>
    %523 = arith.addf %521, %522 : vector<8x64xf32>
    %524 = arith.mulf %507, %523 : vector<8x64xf32>
    %525 = arith.addf %520, %524 : vector<8x64xf32>
    %526 = math.tanh %525 : vector<8x64xf32>
    %cst_239 = arith.constant 1.000000e+00 : f32
    %527 = vector.broadcast %cst_239 : f32 to vector<8x64xf32>
    %528 = arith.subf %527, %517 : vector<8x64xf32>
    %529 = arith.mulf %528, %526 : vector<8x64xf32>
    %530 = arith.mulf %517, %486 : vector<8x64xf32>
    %531 = arith.addf %529, %530 : vector<8x64xf32>
    %cst_240 = arith.constant dense<0.000000e+00> : vector<8x1xf32>
    %532 = tpu.matmul %531, %20, %cst_240 {dimension_numbers = #tpu.dot_dimension_numbers<[1], [0], [0], [1], [0, 0, 1, 1], [], []>} : vector<8x64xf32>, vector<64x1xf32>, vector<8x1xf32> -> vector<8x1xf32>
    %533 = vector.broadcast %21 : vector<1x1xf32> to vector<8x1xf32>
    %534 = arith.addf %532, %533 : vector<8x1xf32>
    %c4_241 = arith.constant 4 : index
    %c0_242 = arith.constant 0 : index
    %c0_243 = arith.constant 0 : index
    %535 = vector.load %arg25[%c4_241, %c0_242, %c0_243] : memref<8x8x1xf32, #tpu.memory_space<vmem>>, vector<1x8x1xf32>
    %536 = vector.shape_cast %535 : vector<1x8x1xf32> to vector<8x1xf32>
    %537 = vector.shape_cast %534 : vector<8x1xf32> to vector<1x8x1xf32>
    tpu.vector_store %arg25[%c4_241, %c0_242, %c0_243], %537 {strides = array<i32>} : memref<8x8x1xf32, #tpu.memory_space<vmem>>, vector<1x8x1xf32>,
    %c0_244 = arith.constant 0 : index
    %c0_245 = arith.constant 0 : index
    %538 = vector.load %arg27[%c0_244, %c0_245] : memref<8x3xf32, #tpu.memory_space<vmem>>, vector<8x1xf32>
    tpu.vector_store %arg27[%c0_244, %c0_245], %534 {strides = array<i32>} : memref<8x3xf32, #tpu.memory_space<vmem>>, vector<8x1xf32>,
    %c4_246 = arith.constant 4 : index
    %c0_247 = arith.constant 0 : index
    %c0_248 = arith.constant 0 : index
    %539 = vector.load %arg1[%c4_246, %c0_247, %c0_248] : memref<8x8x2xf32, #tpu.memory_space<vmem>>, vector<1x8x2xf32>
    %540 = vector.shape_cast %539 : vector<1x8x2xf32> to vector<8x2xf32>
    %c0_249 = arith.constant 0 : index
    %c1_250 = arith.constant 1 : index
    %541 = vector.load %arg27[%c0_249, %c1_250] : memref<8x3xf32, #tpu.memory_space<vmem>>, vector<8x2xf32>
    tpu.vector_store %arg27[%c0_249, %c1_250], %540 {strides = array<i32>} : memref<8x3xf32, #tpu.memory_space<vmem>>, vector<8x2xf32>,
    %c0_251 = arith.constant 0 : index
    %c0_252 = arith.constant 0 : index
    %542 = vector.load %arg27[%c0_251, %c0_252] : memref<8x3xf32, #tpu.memory_space<vmem>>, vector<8x3xf32>
    %cst_253 = arith.constant dense<0.000000e+00> : vector<8x64xf32>
    %543 = tpu.matmul %542, %10, %cst_253 {dimension_numbers = #tpu.dot_dimension_numbers<[1], [0], [0], [1], [0, 0, 1, 1], [], []>} : vector<8x3xf32>, vector<3x64xf32>, vector<8x64xf32> -> vector<8x64xf32>
    %cst_254 = arith.constant dense<0.000000e+00> : vector<8x64xf32>
    %544 = tpu.matmul %531, %11, %cst_254 {dimension_numbers = #tpu.dot_dimension_numbers<[1], [0], [0], [1], [0, 0, 1, 1], [], []>} : vector<8x64xf32>, vector<64x64xf32>, vector<8x64xf32> -> vector<8x64xf32>
    %545 = arith.addf %543, %544 : vector<8x64xf32>
    %546 = vector.broadcast %16 : vector<1x64xf32> to vector<8x64xf32>
    %547 = arith.addf %545, %546 : vector<8x64xf32>
    %548 = arith.negf %547 : vector<8x64xf32>
    %549 = math.exp %548 : vector<8x64xf32>
    %cst_255 = arith.constant 1.000000e+00 : f32
    %550 = vector.broadcast %cst_255 : f32 to vector<8x64xf32>
    %551 = arith.addf %550, %549 : vector<8x64xf32>
    %552 = arith.divf %550, %551 : vector<8x64xf32>
    %cst_256 = arith.constant dense<0.000000e+00> : vector<8x64xf32>
    %553 = tpu.matmul %542, %12, %cst_256 {dimension_numbers = #tpu.dot_dimension_numbers<[1], [0], [0], [1], [0, 0, 1, 1], [], []>} : vector<8x3xf32>, vector<3x64xf32>, vector<8x64xf32> -> vector<8x64xf32>
    %cst_257 = arith.constant dense<0.000000e+00> : vector<8x64xf32>
    %554 = tpu.matmul %531, %13, %cst_257 {dimension_numbers = #tpu.dot_dimension_numbers<[1], [0], [0], [1], [0, 0, 1, 1], [], []>} : vector<8x64xf32>, vector<64x64xf32>, vector<8x64xf32> -> vector<8x64xf32>
    %555 = arith.addf %553, %554 : vector<8x64xf32>
    %556 = vector.broadcast %17 : vector<1x64xf32> to vector<8x64xf32>
    %557 = arith.addf %555, %556 : vector<8x64xf32>
    %558 = arith.negf %557 : vector<8x64xf32>
    %559 = math.exp %558 : vector<8x64xf32>
    %cst_258 = arith.constant 1.000000e+00 : f32
    %560 = vector.broadcast %cst_258 : f32 to vector<8x64xf32>
    %561 = arith.addf %560, %559 : vector<8x64xf32>
    %562 = arith.divf %560, %561 : vector<8x64xf32>
    %cst_259 = arith.constant dense<0.000000e+00> : vector<8x64xf32>
    %563 = tpu.matmul %542, %14, %cst_259 {dimension_numbers = #tpu.dot_dimension_numbers<[1], [0], [0], [1], [0, 0, 1, 1], [], []>} : vector<8x3xf32>, vector<3x64xf32>, vector<8x64xf32> -> vector<8x64xf32>
    %564 = vector.broadcast %18 : vector<1x64xf32> to vector<8x64xf32>
    %565 = arith.addf %563, %564 : vector<8x64xf32>
    %cst_260 = arith.constant dense<0.000000e+00> : vector<8x64xf32>
    %566 = tpu.matmul %531, %15, %cst_260 {dimension_numbers = #tpu.dot_dimension_numbers<[1], [0], [0], [1], [0, 0, 1, 1], [], []>} : vector<8x64xf32>, vector<64x64xf32>, vector<8x64xf32> -> vector<8x64xf32>
    %567 = vector.broadcast %19 : vector<1x64xf32> to vector<8x64xf32>
    %568 = arith.addf %566, %567 : vector<8x64xf32>
    %569 = arith.mulf %552, %568 : vector<8x64xf32>
    %570 = arith.addf %565, %569 : vector<8x64xf32>
    %571 = math.tanh %570 : vector<8x64xf32>
    %cst_261 = arith.constant 1.000000e+00 : f32
    %572 = vector.broadcast %cst_261 : f32 to vector<8x64xf32>
    %573 = arith.subf %572, %562 : vector<8x64xf32>
    %574 = arith.mulf %573, %571 : vector<8x64xf32>
    %575 = arith.mulf %562, %531 : vector<8x64xf32>
    %576 = arith.addf %574, %575 : vector<8x64xf32>
    %cst_262 = arith.constant dense<0.000000e+00> : vector<8x1xf32>
    %577 = tpu.matmul %576, %20, %cst_262 {dimension_numbers = #tpu.dot_dimension_numbers<[1], [0], [0], [1], [0, 0, 1, 1], [], []>} : vector<8x64xf32>, vector<64x1xf32>, vector<8x1xf32> -> vector<8x1xf32>
    %578 = vector.broadcast %21 : vector<1x1xf32> to vector<8x1xf32>
    %579 = arith.addf %577, %578 : vector<8x1xf32>
    %c5_263 = arith.constant 5 : index
    %c0_264 = arith.constant 0 : index
    %c0_265 = arith.constant 0 : index
    %580 = vector.load %arg25[%c5_263, %c0_264, %c0_265] : memref<8x8x1xf32, #tpu.memory_space<vmem>>, vector<1x8x1xf32>
    %581 = vector.shape_cast %580 : vector<1x8x1xf32> to vector<8x1xf32>
    %582 = vector.shape_cast %579 : vector<8x1xf32> to vector<1x8x1xf32>
    tpu.vector_store %arg25[%c5_263, %c0_264, %c0_265], %582 {strides = array<i32>} : memref<8x8x1xf32, #tpu.memory_space<vmem>>, vector<1x8x1xf32>,
    %c0_266 = arith.constant 0 : index
    %c0_267 = arith.constant 0 : index
    %583 = vector.load %arg27[%c0_266, %c0_267] : memref<8x3xf32, #tpu.memory_space<vmem>>, vector<8x1xf32>
    tpu.vector_store %arg27[%c0_266, %c0_267], %579 {strides = array<i32>} : memref<8x3xf32, #tpu.memory_space<vmem>>, vector<8x1xf32>,
    %c5_268 = arith.constant 5 : index
    %c0_269 = arith.constant 0 : index
    %c0_270 = arith.constant 0 : index
    %584 = vector.load %arg1[%c5_268, %c0_269, %c0_270] : memref<8x8x2xf32, #tpu.memory_space<vmem>>, vector<1x8x2xf32>
    %585 = vector.shape_cast %584 : vector<1x8x2xf32> to vector<8x2xf32>
    %c0_271 = arith.constant 0 : index
    %c1_272 = arith.constant 1 : index
    %586 = vector.load %arg27[%c0_271, %c1_272] : memref<8x3xf32, #tpu.memory_space<vmem>>, vector<8x2xf32>
    tpu.vector_store %arg27[%c0_271, %c1_272], %585 {strides = array<i32>} : memref<8x3xf32, #tpu.memory_space<vmem>>, vector<8x2xf32>,
    %c0_273 = arith.constant 0 : index
    %c0_274 = arith.constant 0 : index
    %587 = vector.load %arg27[%c0_273, %c0_274] : memref<8x3xf32, #tpu.memory_space<vmem>>, vector<8x3xf32>
    %cst_275 = arith.constant dense<0.000000e+00> : vector<8x64xf32>
    %588 = tpu.matmul %587, %10, %cst_275 {dimension_numbers = #tpu.dot_dimension_numbers<[1], [0], [0], [1], [0, 0, 1, 1], [], []>} : vector<8x3xf32>, vector<3x64xf32>, vector<8x64xf32> -> vector<8x64xf32>
    %cst_276 = arith.constant dense<0.000000e+00> : vector<8x64xf32>
    %589 = tpu.matmul %576, %11, %cst_276 {dimension_numbers = #tpu.dot_dimension_numbers<[1], [0], [0], [1], [0, 0, 1, 1], [], []>} : vector<8x64xf32>, vector<64x64xf32>, vector<8x64xf32> -> vector<8x64xf32>
    %590 = arith.addf %588, %589 : vector<8x64xf32>
    %591 = vector.broadcast %16 : vector<1x64xf32> to vector<8x64xf32>
    %592 = arith.addf %590, %591 : vector<8x64xf32>
    %593 = arith.negf %592 : vector<8x64xf32>
    %594 = math.exp %593 : vector<8x64xf32>
    %cst_277 = arith.constant 1.000000e+00 : f32
    %595 = vector.broadcast %cst_277 : f32 to vector<8x64xf32>
    %596 = arith.addf %595, %594 : vector<8x64xf32>
    %597 = arith.divf %595, %596 : vector<8x64xf32>
    %cst_278 = arith.constant dense<0.000000e+00> : vector<8x64xf32>
    %598 = tpu.matmul %587, %12, %cst_278 {dimension_numbers = #tpu.dot_dimension_numbers<[1], [0], [0], [1], [0, 0, 1, 1], [], []>} : vector<8x3xf32>, vector<3x64xf32>, vector<8x64xf32> -> vector<8x64xf32>
    %cst_279 = arith.constant dense<0.000000e+00> : vector<8x64xf32>
    %599 = tpu.matmul %576, %13, %cst_279 {dimension_numbers = #tpu.dot_dimension_numbers<[1], [0], [0], [1], [0, 0, 1, 1], [], []>} : vector<8x64xf32>, vector<64x64xf32>, vector<8x64xf32> -> vector<8x64xf32>
    %600 = arith.addf %598, %599 : vector<8x64xf32>
    %601 = vector.broadcast %17 : vector<1x64xf32> to vector<8x64xf32>
    %602 = arith.addf %600, %601 : vector<8x64xf32>
    %603 = arith.negf %602 : vector<8x64xf32>
    %604 = math.exp %603 : vector<8x64xf32>
    %cst_280 = arith.constant 1.000000e+00 : f32
    %605 = vector.broadcast %cst_280 : f32 to vector<8x64xf32>
    %606 = arith.addf %605, %604 : vector<8x64xf32>
    %607 = arith.divf %605, %606 : vector<8x64xf32>
    %cst_281 = arith.constant dense<0.000000e+00> : vector<8x64xf32>
    %608 = tpu.matmul %587, %14, %cst_281 {dimension_numbers = #tpu.dot_dimension_numbers<[1], [0], [0], [1], [0, 0, 1, 1], [], []>} : vector<8x3xf32>, vector<3x64xf32>, vector<8x64xf32> -> vector<8x64xf32>
    %609 = vector.broadcast %18 : vector<1x64xf32> to vector<8x64xf32>
    %610 = arith.addf %608, %609 : vector<8x64xf32>
    %cst_282 = arith.constant dense<0.000000e+00> : vector<8x64xf32>
    %611 = tpu.matmul %576, %15, %cst_282 {dimension_numbers = #tpu.dot_dimension_numbers<[1], [0], [0], [1], [0, 0, 1, 1], [], []>} : vector<8x64xf32>, vector<64x64xf32>, vector<8x64xf32> -> vector<8x64xf32>
    %612 = vector.broadcast %19 : vector<1x64xf32> to vector<8x64xf32>
    %613 = arith.addf %611, %612 : vector<8x64xf32>
    %614 = arith.mulf %597, %613 : vector<8x64xf32>
    %615 = arith.addf %610, %614 : vector<8x64xf32>
    %616 = math.tanh %615 : vector<8x64xf32>
    %cst_283 = arith.constant 1.000000e+00 : f32
    %617 = vector.broadcast %cst_283 : f32 to vector<8x64xf32>
    %618 = arith.subf %617, %607 : vector<8x64xf32>
    %619 = arith.mulf %618, %616 : vector<8x64xf32>
    %620 = arith.mulf %607, %576 : vector<8x64xf32>
    %621 = arith.addf %619, %620 : vector<8x64xf32>
    %cst_284 = arith.constant dense<0.000000e+00> : vector<8x1xf32>
    %622 = tpu.matmul %621, %20, %cst_284 {dimension_numbers = #tpu.dot_dimension_numbers<[1], [0], [0], [1], [0, 0, 1, 1], [], []>} : vector<8x64xf32>, vector<64x1xf32>, vector<8x1xf32> -> vector<8x1xf32>
    %623 = vector.broadcast %21 : vector<1x1xf32> to vector<8x1xf32>
    %624 = arith.addf %622, %623 : vector<8x1xf32>
    %c6_285 = arith.constant 6 : index
    %c0_286 = arith.constant 0 : index
    %c0_287 = arith.constant 0 : index
    %625 = vector.load %arg25[%c6_285, %c0_286, %c0_287] : memref<8x8x1xf32, #tpu.memory_space<vmem>>, vector<1x8x1xf32>
    %626 = vector.shape_cast %625 : vector<1x8x1xf32> to vector<8x1xf32>
    %627 = vector.shape_cast %624 : vector<8x1xf32> to vector<1x8x1xf32>
    tpu.vector_store %arg25[%c6_285, %c0_286, %c0_287], %627 {strides = array<i32>} : memref<8x8x1xf32, #tpu.memory_space<vmem>>, vector<1x8x1xf32>,
    %c0_288 = arith.constant 0 : index
    %c0_289 = arith.constant 0 : index
    %628 = vector.load %arg27[%c0_288, %c0_289] : memref<8x3xf32, #tpu.memory_space<vmem>>, vector<8x1xf32>
    tpu.vector_store %arg27[%c0_288, %c0_289], %624 {strides = array<i32>} : memref<8x3xf32, #tpu.memory_space<vmem>>, vector<8x1xf32>,
    %c6_290 = arith.constant 6 : index
    %c0_291 = arith.constant 0 : index
    %c0_292 = arith.constant 0 : index
    %629 = vector.load %arg1[%c6_290, %c0_291, %c0_292] : memref<8x8x2xf32, #tpu.memory_space<vmem>>, vector<1x8x2xf32>
    %630 = vector.shape_cast %629 : vector<1x8x2xf32> to vector<8x2xf32>
    %c0_293 = arith.constant 0 : index
    %c1_294 = arith.constant 1 : index
    %631 = vector.load %arg27[%c0_293, %c1_294] : memref<8x3xf32, #tpu.memory_space<vmem>>, vector<8x2xf32>
    tpu.vector_store %arg27[%c0_293, %c1_294], %630 {strides = array<i32>} : memref<8x3xf32, #tpu.memory_space<vmem>>, vector<8x2xf32>,
    %c0_295 = arith.constant 0 : index
    %c0_296 = arith.constant 0 : index
    %632 = vector.load %arg27[%c0_295, %c0_296] : memref<8x3xf32, #tpu.memory_space<vmem>>, vector<8x3xf32>
    %cst_297 = arith.constant dense<0.000000e+00> : vector<8x64xf32>
    %633 = tpu.matmul %632, %10, %cst_297 {dimension_numbers = #tpu.dot_dimension_numbers<[1], [0], [0], [1], [0, 0, 1, 1], [], []>} : vector<8x3xf32>, vector<3x64xf32>, vector<8x64xf32> -> vector<8x64xf32>
    %cst_298 = arith.constant dense<0.000000e+00> : vector<8x64xf32>
    %634 = tpu.matmul %621, %11, %cst_298 {dimension_numbers = #tpu.dot_dimension_numbers<[1], [0], [0], [1], [0, 0, 1, 1], [], []>} : vector<8x64xf32>, vector<64x64xf32>, vector<8x64xf32> -> vector<8x64xf32>
    %635 = arith.addf %633, %634 : vector<8x64xf32>
    %636 = vector.broadcast %16 : vector<1x64xf32> to vector<8x64xf32>
    %637 = arith.addf %635, %636 : vector<8x64xf32>
    %638 = arith.negf %637 : vector<8x64xf32>
    %639 = math.exp %638 : vector<8x64xf32>
    %cst_299 = arith.constant 1.000000e+00 : f32
    %640 = vector.broadcast %cst_299 : f32 to vector<8x64xf32>
    %641 = arith.addf %640, %639 : vector<8x64xf32>
    %642 = arith.divf %640, %641 : vector<8x64xf32>
    %cst_300 = arith.constant dense<0.000000e+00> : vector<8x64xf32>
    %643 = tpu.matmul %632, %12, %cst_300 {dimension_numbers = #tpu.dot_dimension_numbers<[1], [0], [0], [1], [0, 0, 1, 1], [], []>} : vector<8x3xf32>, vector<3x64xf32>, vector<8x64xf32> -> vector<8x64xf32>
    %cst_301 = arith.constant dense<0.000000e+00> : vector<8x64xf32>
    %644 = tpu.matmul %621, %13, %cst_301 {dimension_numbers = #tpu.dot_dimension_numbers<[1], [0], [0], [1], [0, 0, 1, 1], [], []>} : vector<8x64xf32>, vector<64x64xf32>, vector<8x64xf32> -> vector<8x64xf32>
    %645 = arith.addf %643, %644 : vector<8x64xf32>
    %646 = vector.broadcast %17 : vector<1x64xf32> to vector<8x64xf32>
    %647 = arith.addf %645, %646 : vector<8x64xf32>
    %648 = arith.negf %647 : vector<8x64xf32>
    %649 = math.exp %648 : vector<8x64xf32>
    %cst_302 = arith.constant 1.000000e+00 : f32
    %650 = vector.broadcast %cst_302 : f32 to vector<8x64xf32>
    %651 = arith.addf %650, %649 : vector<8x64xf32>
    %652 = arith.divf %650, %651 : vector<8x64xf32>
    %cst_303 = arith.constant dense<0.000000e+00> : vector<8x64xf32>
    %653 = tpu.matmul %632, %14, %cst_303 {dimension_numbers = #tpu.dot_dimension_numbers<[1], [0], [0], [1], [0, 0, 1, 1], [], []>} : vector<8x3xf32>, vector<3x64xf32>, vector<8x64xf32> -> vector<8x64xf32>
    %654 = vector.broadcast %18 : vector<1x64xf32> to vector<8x64xf32>
    %655 = arith.addf %653, %654 : vector<8x64xf32>
    %cst_304 = arith.constant dense<0.000000e+00> : vector<8x64xf32>
    %656 = tpu.matmul %621, %15, %cst_304 {dimension_numbers = #tpu.dot_dimension_numbers<[1], [0], [0], [1], [0, 0, 1, 1], [], []>} : vector<8x64xf32>, vector<64x64xf32>, vector<8x64xf32> -> vector<8x64xf32>
    %657 = vector.broadcast %19 : vector<1x64xf32> to vector<8x64xf32>
    %658 = arith.addf %656, %657 : vector<8x64xf32>
    %659 = arith.mulf %642, %658 : vector<8x64xf32>
    %660 = arith.addf %655, %659 : vector<8x64xf32>
    %661 = math.tanh %660 : vector<8x64xf32>
    %cst_305 = arith.constant 1.000000e+00 : f32
    %662 = vector.broadcast %cst_305 : f32 to vector<8x64xf32>
    %663 = arith.subf %662, %652 : vector<8x64xf32>
    %664 = arith.mulf %663, %661 : vector<8x64xf32>
    %665 = arith.mulf %652, %621 : vector<8x64xf32>
    %666 = arith.addf %664, %665 : vector<8x64xf32>
    %cst_306 = arith.constant dense<0.000000e+00> : vector<8x1xf32>
    %667 = tpu.matmul %666, %20, %cst_306 {dimension_numbers = #tpu.dot_dimension_numbers<[1], [0], [0], [1], [0, 0, 1, 1], [], []>} : vector<8x64xf32>, vector<64x1xf32>, vector<8x1xf32> -> vector<8x1xf32>
    %668 = vector.broadcast %21 : vector<1x1xf32> to vector<8x1xf32>
    %669 = arith.addf %667, %668 : vector<8x1xf32>
    %c7_307 = arith.constant 7 : index
    %c0_308 = arith.constant 0 : index
    %c0_309 = arith.constant 0 : index
    %670 = vector.load %arg25[%c7_307, %c0_308, %c0_309] : memref<8x8x1xf32, #tpu.memory_space<vmem>>, vector<1x8x1xf32>
    %671 = vector.shape_cast %670 : vector<1x8x1xf32> to vector<8x1xf32>
    %672 = vector.shape_cast %669 : vector<8x1xf32> to vector<1x8x1xf32>
    tpu.vector_store %arg25[%c7_307, %c0_308, %c0_309], %672 {strides = array<i32>} : memref<8x8x1xf32, #tpu.memory_space<vmem>>, vector<1x8x1xf32>,
    %c0_310 = arith.constant 0 : index
    %c0_311 = arith.constant 0 : index
    %673 = vector.load %arg27[%c0_310, %c0_311] : memref<8x3xf32, #tpu.memory_space<vmem>>, vector<8x1xf32>
    tpu.vector_store %arg27[%c0_310, %c0_311], %669 {strides = array<i32>} : memref<8x3xf32, #tpu.memory_space<vmem>>, vector<8x1xf32>,
    %c7_312 = arith.constant 7 : index
    %c0_313 = arith.constant 0 : index
    %c0_314 = arith.constant 0 : index
    %674 = vector.load %arg1[%c7_312, %c0_313, %c0_314] : memref<8x8x2xf32, #tpu.memory_space<vmem>>, vector<1x8x2xf32>
    %675 = vector.shape_cast %674 : vector<1x8x2xf32> to vector<8x2xf32>
    %c0_315 = arith.constant 0 : index
    %c1_316 = arith.constant 1 : index
    %676 = vector.load %arg27[%c0_315, %c1_316] : memref<8x3xf32, #tpu.memory_space<vmem>>, vector<8x2xf32>
    tpu.vector_store %arg27[%c0_315, %c1_316], %675 {strides = array<i32>} : memref<8x3xf32, #tpu.memory_space<vmem>>, vector<8x2xf32>,
    return
  }
}

</mosaic_0001>

<llo_original>
// kernel: tpu_custom_call.1
$region0: #{tpu_custom_call.1}
  #allocation0 [shape = 'u32[]', space=smem, size = 0x4, offset = 0x4, fixed_abs, tag = 'smem constant byte address 0x4 - core index']
  #allocation1 [shape = 'u32[144,128]{1,0:T(1,128)}', space=vmem, size = 0x12000, scoped, tag = 'internal scratch']
  #allocation2 [shape = 'f32[8,64]{1,0:T(8,128)}', space=vmem, size = 0x1000, scoped, tag = 'scratch operand']
  #allocation3 [shape = 'f32[8,3]{1,0:T(8,128)}', space=vmem, size = 0x1000, scoped, tag = 'scratch operand']
  #allocation4 [shape = 'f32[1,1]{1,0:T(1,128)S(1)}', space=vmem, size = 0x200, scoped, tag = 'scoped memory for tpu_custom_call.1']
  %s0 = inlined_call_operand.vmem [shape: f32[8,8,3], index: 0, kind: input, shape index: {}]
  %s1 = inlined_call_operand.vmem [shape: f32[8,8,2], index: 1, kind: input, shape index: {}]
  %s2 = inlined_call_operand.hbm [shape: f32[1,8,32], index: 2, kind: input, shape index: {}]
  %s3 = inlined_call_operand.hbm [shape: f32[3,32], index: 3, kind: input, shape index: {}]
  %s4 = inlined_call_operand.vmem [shape: f32[32,32], index: 4, kind: input, shape index: {}]
  %s5 = inlined_call_operand.hbm [shape: f32[3,32], index: 5, kind: input, shape index: {}]
  %s6 = inlined_call_operand.vmem [shape: f32[32,32], index: 6, kind: input, shape index: {}]
  %s7 = inlined_call_operand.vmem [shape: f32[3,32], index: 7, kind: input, shape index: {}]
  %s8 = inlined_call_operand.hbm [shape: f32[32,32], index: 8, kind: input, shape index: {}]
  %s9 = inlined_call_operand.vmem [shape: f32[1,32], index: 9, kind: input, shape index: {}]
  %s10 = inlined_call_operand.hbm [shape: f32[1,32], index: 10, kind: input, shape index: {}]
  %s11 = inlined_call_operand.vmem [shape: f32[1,32], index: 11, kind: input, shape index: {}]
  %s12 = inlined_call_operand.vmem [shape: f32[1,32], index: 12, kind: input, shape index: {}]
  %s13 = inlined_call_operand.vmem [shape: f32[3,64], index: 13, kind: input, shape index: {}]
  %s14 = inlined_call_operand.vmem [shape: f32[64,64], index: 14, kind: input, shape index: {}]
  %s15 = inlined_call_operand.vmem [shape: f32[3,64], index: 15, kind: input, shape index: {}]
  %s16 = inlined_call_operand.vmem [shape: f32[64,64], index: 16, kind: input, shape index: {}]
  %s17 = inlined_call_operand.vmem [shape: f32[3,64], index: 17, kind: input, shape index: {}]
  %s18 = inlined_call_operand.vmem [shape: f32[64,64], index: 18, kind: input, shape index: {}]
  %s19 = inlined_call_operand.vmem [shape: f32[1,64], index: 19, kind: input, shape index: {}]
  %s20 = inlined_call_operand.vmem [shape: f32[1,64], index: 20, kind: input, shape index: {}]
  %s21 = inlined_call_operand.vmem [shape: f32[1,64], index: 21, kind: input, shape index: {}]
  %s22 = inlined_call_operand.vmem [shape: f32[1,64], index: 22, kind: input, shape index: {}]
  %s23 = inlined_call_operand.vmem [shape: f32[64,1], index: 23, kind: input, shape index: {}]
  %s24 = inlined_call_operand.<no memory space> [shape: f32[1,1], index: 24, kind: input, shape index: {}]
  %s25 = inlined_call_operand.vmem [shape: f32[8,8,1], index: 25, kind: output, shape index: {}]
  %s26 = sld [smem:[#allocation0]]
  $region130: #{tpu_custom_call.1} parent=0
    _
  %s28 = ssub.s32 1, %s26
  %s29 = scalar_select 0, %s28, %s26
  %v30 = vstv %s24
  %31 = vst [vmem:[#allocation4] sm:$0x1] %v30
  $region1: #{tpu_custom_call.1} parent=0
    #allocation5 [shape = 'u8[4096]{0}', space=vmem, size = 0x1000, scoped, tag = 'input window, operand 2, single buffered']
    #allocation6 [shape = 's32[1]{0}', space=sflag, size = 0x4, scoped, tag = 'scoped memory for tpu_custom_call.1']
    #allocation7 [shape = 'u8[2048]{0}', space=vmem, size = 0x800, scoped, tag = 'input window, operand 3, single buffered']
    #allocation8 [shape = 's32[1]{0}', space=sflag, size = 0x4, scoped, tag = 'scoped memory for tpu_custom_call.1']
    #allocation9 [shape = 'u8[2048]{0}', space=vmem, size = 0x800, scoped, tag = 'input window, operand 5, single buffered']
    #allocation10 [shape = 'u8[16384]{0}', space=vmem, size = 0x4000, scoped, tag = 'input window, operand 8, single buffered']
    #allocation11 [shape = 's32[1]{0}', space=sflag, size = 0x4, scoped, tag = 'scoped memory for tpu_custom_call.1']
    #allocation12 [shape = 'u8[512]{0}', space=vmem, size = 0x400, scoped, tag = 'input window, operand 10, single buffered']
    %32 = vsyncpa [#allocation6], 0
    %33 = vsyncpa [#allocation8], 0
    %34 = vsyncpa [#allocation11], 0
    // Predicated region
    $region2: #{tpu_custom_call.1} parent=1 // pred_check
      _
    $region3: #{tpu_custom_call.1} parent=1 // pred_check_branch
      %36 = sbr.rel (0) target = $region5
    $region4: #{tpu_custom_call.1} parent=1 // pred_region
      _
    $region5: #{tpu_custom_call.1} parent=1 // pred_fallthru
      _
    // Predicated region
    $region6: #{tpu_custom_call.1} parent=1 // pred_check
      _
    $region7: #{tpu_custom_call.1} parent=1 // pred_check_branch
      %38 = sbr.rel (0) target = $region9
    $region8: #{tpu_custom_call.1} parent=1 // pred_region
      _
    $region9: #{tpu_custom_call.1} parent=1 // pred_fallthru
      _
    // Predicated region
    $region10: #{tpu_custom_call.1} parent=1 // pred_check
      _
    $region11: #{tpu_custom_call.1} parent=1 // pred_check_branch
      %40 = sbr.rel (0) target = $region13
    $region12: #{tpu_custom_call.1} parent=1 // pred_region
      %s42 = ssub.s32 128, 128
      %43 = vsyncadd [#allocation6], %s42
      %s45 = sshll.u32 [#allocation5], 4
      %s46 = int_to_ptr.vmem [resolvable:$true] %s45
      %48 = dma.hbm_to_vmem [thread:$0]  %s2, 128, %s46, [#allocation6]
    $region13: #{tpu_custom_call.1} parent=1 // pred_fallthru
      _
    // Predicated region
    $region14: #{tpu_custom_call.1} parent=1 // pred_check
      _
    $region15: #{tpu_custom_call.1} parent=1 // pred_check_branch
      %50 = sbr.rel (0) target = $region17
    $region16: #{tpu_custom_call.1} parent=1 // pred_region
      %s52 = ssub.s32 64, 64
      %53 = vsyncadd [#allocation8], %s52
      %s55 = sshll.u32 [#allocation7], 4
      %s56 = int_to_ptr.vmem [resolvable:$true] %s55
      %58 = dma.hbm_to_vmem [thread:$0]  %s3, 64, %s56, [#allocation8]
    $region17: #{tpu_custom_call.1} parent=1 // pred_fallthru
      _
    // Predicated region
    $region18: #{tpu_custom_call.1} parent=1 // pred_check
      _
    $region19: #{tpu_custom_call.1} parent=1 // pred_check_branch
      %60 = sbr.rel (0) target = $region21
    $region20: #{tpu_custom_call.1} parent=1 // pred_region
      _
    $region21: #{tpu_custom_call.1} parent=1 // pred_fallthru
      _
    // Predicated region
    $region22: #{tpu_custom_call.1} parent=1 // pred_check
      _
    $region23: #{tpu_custom_call.1} parent=1 // pred_check_branch
      %62 = sbr.rel (0) target = $region25
    $region24: #{tpu_custom_call.1} parent=1 // pred_region
      %s64 = ssub.s32 64, 64
      %65 = vsyncadd [#allocation8], %s64
      %s67 = sshll.u32 [#allocation9], 4
      %s68 = int_to_ptr.vmem [resolvable:$true] %s67
      %70 = dma.hbm_to_vmem [thread:$0]  %s5, 64, %s68, [#allocation8]
    $region25: #{tpu_custom_call.1} parent=1 // pred_fallthru
      _
    // Predicated region
    $region26: #{tpu_custom_call.1} parent=1 // pred_check
      _
    $region27: #{tpu_custom_call.1} parent=1 // pred_check_branch
      %72 = sbr.rel (0) target = $region29
    $region28: #{tpu_custom_call.1} parent=1 // pred_region
      _
    $region29: #{tpu_custom_call.1} parent=1 // pred_fallthru
      _
    // Predicated region
    $region30: #{tpu_custom_call.1} parent=1 // pred_check
      _
    $region31: #{tpu_custom_call.1} parent=1 // pred_check_branch
      %74 = sbr.rel (0) target = $region33
    $region32: #{tpu_custom_call.1} parent=1 // pred_region
      _
    $region33: #{tpu_custom_call.1} parent=1 // pred_fallthru
      _
    // Predicated region
    $region34: #{tpu_custom_call.1} parent=1 // pred_check
      _
    $region35: #{tpu_custom_call.1} parent=1 // pred_check_branch
      %76 = sbr.rel (0) target = $region37
    $region36: #{tpu_custom_call.1} parent=1 // pred_region
      %s78 = ssub.s32 512, 512
      %79 = vsyncadd [#allocation11], %s78
      %s80 = sshll.u32 [#allocation10], 4
      %s81 = int_to_ptr.vmem [resolvable:$true] %s80
      %86 = dma.hbm_to_vmem [thread:$0]  %s8, 512, %s81, [#allocation11], 128, 128, 8
    $region37: #{tpu_custom_call.1} parent=1 // pred_fallthru
      _
    // Predicated region
    $region38: #{tpu_custom_call.1} parent=1 // pred_check
      _
    $region39: #{tpu_custom_call.1} parent=1 // pred_check_branch
      %88 = sbr.rel (0) target = $region41
    $region40: #{tpu_custom_call.1} parent=1 // pred_region
      _
    $region41: #{tpu_custom_call.1} parent=1 // pred_fallthru
      _
    // Predicated region
    $region42: #{tpu_custom_call.1} parent=1 // pred_check
      _
    $region43: #{tpu_custom_call.1} parent=1 // pred_check_branch
      %90 = sbr.rel (0) target = $region45
    $region44: #{tpu_custom_call.1} parent=1 // pred_region
      %s92 = ssub.s32 16, 16
      %93 = vsyncadd [#allocation11], %s92
      %s95 = sshll.u32 [#allocation12], 4
      %s96 = int_to_ptr.vmem [resolvable:$true] %s95
      %98 = dma.hbm_to_vmem [thread:$0]  %s10, 16, %s96, [#allocation11]
    $region45: #{tpu_custom_call.1} parent=1 // pred_fallthru
      _
    // Predicated region
    $region46: #{tpu_custom_call.1} parent=1 // pred_check
      _
    $region47: #{tpu_custom_call.1} parent=1 // pred_check_branch
      %100 = sbr.rel (0) target = $region49
    $region48: #{tpu_custom_call.1} parent=1 // pred_region
      _
    $region49: #{tpu_custom_call.1} parent=1 // pred_fallthru
      _
    // Predicated region
    $region50: #{tpu_custom_call.1} parent=1 // pred_check
      _
    $region51: #{tpu_custom_call.1} parent=1 // pred_check_branch
      %102 = sbr.rel (0) target = $region53
    $region52: #{tpu_custom_call.1} parent=1 // pred_region
      _
    $region53: #{tpu_custom_call.1} parent=1 // pred_fallthru
      _
    // Predicated region
    $region54: #{tpu_custom_call.1} parent=1 // pred_check
      _
    $region55: #{tpu_custom_call.1} parent=1 // pred_check_branch
      %104 = sbr.rel (0) target = $region57
    $region56: #{tpu_custom_call.1} parent=1 // pred_region
      _
    $region57: #{tpu_custom_call.1} parent=1 // pred_fallthru
      _
    // Predicated region
    $region58: #{tpu_custom_call.1} parent=1 // pred_check
      _
    $region59: #{tpu_custom_call.1} parent=1 // pred_check_branch
      %106 = sbr.rel (0) target = $region61
    $region60: #{tpu_custom_call.1} parent=1 // pred_region
      _
    $region61: #{tpu_custom_call.1} parent=1 // pred_fallthru
      _
    // Predicated region
    $region62: #{tpu_custom_call.1} parent=1 // pred_check
      _
    $region63: #{tpu_custom_call.1} parent=1 // pred_check_branch
      %108 = sbr.rel (0) target = $region65
    $region64: #{tpu_custom_call.1} parent=1 // pred_region
      _
    $region65: #{tpu_custom_call.1} parent=1 // pred_fallthru
      _
    // Predicated region
    $region66: #{tpu_custom_call.1} parent=1 // pred_check
      _
    $region67: #{tpu_custom_call.1} parent=1 // pred_check_branch
      %110 = sbr.rel (0) target = $region69
    $region68: #{tpu_custom_call.1} parent=1 // pred_region
      _
    $region69: #{tpu_custom_call.1} parent=1 // pred_fallthru
      _
    // Predicated region
    $region70: #{tpu_custom_call.1} parent=1 // pred_check
      _
    $region71: #{tpu_custom_call.1} parent=1 // pred_check_branch
      %112 = sbr.rel (0) target = $region73
    $region72: #{tpu_custom_call.1} parent=1 // pred_region
      _
    $region73: #{tpu_custom_call.1} parent=1 // pred_fallthru
      _
    // Predicated region
    $region74: #{tpu_custom_call.1} parent=1 // pred_check
      _
    $region75: #{tpu_custom_call.1} parent=1 // pred_check_branch
      %114 = sbr.rel (0) target = $region77
    $region76: #{tpu_custom_call.1} parent=1 // pred_region
      _
    $region77: #{tpu_custom_call.1} parent=1 // pred_fallthru
      _
    // Predicated region
    $region78: #{tpu_custom_call.1} parent=1 // pred_check
      _
    $region79: #{tpu_custom_call.1} parent=1 // pred_check_branch
      %116 = sbr.rel (0) target = $region81
    $region80: #{tpu_custom_call.1} parent=1 // pred_region
      _
    $region81: #{tpu_custom_call.1} parent=1 // pred_fallthru
      _
    // Predicated region
    $region82: #{tpu_custom_call.1} parent=1 // pred_check
      _
    $region83: #{tpu_custom_call.1} parent=1 // pred_check_branch
      %118 = sbr.rel (0) target = $region85
    $region84: #{tpu_custom_call.1} parent=1 // pred_region
      _
    $region85: #{tpu_custom_call.1} parent=1 // pred_fallthru
      _
    // Predicated region
    $region86: #{tpu_custom_call.1} parent=1 // pred_check
      _
    $region87: #{tpu_custom_call.1} parent=1 // pred_check_branch
      %120 = sbr.rel (0) target = $region89
    $region88: #{tpu_custom_call.1} parent=1 // pred_region
      _
    $region89: #{tpu_custom_call.1} parent=1 // pred_fallthru
      _
    // Predicated region
    $region90: #{tpu_custom_call.1} parent=1 // pred_check
      _
    $region91: #{tpu_custom_call.1} parent=1 // pred_check_branch
      %122 = sbr.rel (0) target = $region93
    $region92: #{tpu_custom_call.1} parent=1 // pred_region
      _
    $region93: #{tpu_custom_call.1} parent=1 // pred_fallthru
      _
    // Predicated region
    $region94: #{tpu_custom_call.1} parent=1 // pred_check
      _
    $region95: #{tpu_custom_call.1} parent=1 // pred_check_branch
      %124 = sbr.rel (0) target = $region97
    $region96: #{tpu_custom_call.1} parent=1 // pred_region
      _
    $region97: #{tpu_custom_call.1} parent=1 // pred_fallthru
      _
    // Predicated region
    $region98: #{tpu_custom_call.1} parent=1 // pred_check
      _
    $region99: #{tpu_custom_call.1} parent=1 // pred_check_branch
      %126 = sbr.rel (0) target = $region101
    $region100: #{tpu_custom_call.1} parent=1 // pred_region
      _
    $region101: #{tpu_custom_call.1} parent=1 // pred_fallthru
      _
    // Predicated region
    $region102: #{tpu_custom_call.1} parent=1 // pred_check
      _
    $region103: #{tpu_custom_call.1} parent=1 // pred_check_branch
      %128 = sbr.rel (0) target = $region105
    $region104: #{tpu_custom_call.1} parent=1 // pred_region
      %129 = dma.done [#allocation6], 128
    $region105: #{tpu_custom_call.1} parent=1 // pred_fallthru
      _
    // Predicated region
    $region106: #{tpu_custom_call.1} parent=1 // pred_check
      _
    $region107: #{tpu_custom_call.1} parent=1 // pred_check_branch
      %131 = sbr.rel (0) target = $region109
    $region108: #{tpu_custom_call.1} parent=1 // pred_region
      %132 = dma.done [#allocation8], 64
    $region109: #{tpu_custom_call.1} parent=1 // pred_fallthru
      _
    // Predicated region
    $region110: #{tpu_custom_call.1} parent=1 // pred_check
      _
    $region111: #{tpu_custom_call.1} parent=1 // pred_check_branch
      %134 = sbr.rel (0) target = $region113
    $region112: #{tpu_custom_call.1} parent=1 // pred_region
      %135 = dma.done [#allocation8], 64
    $region113: #{tpu_custom_call.1} parent=1 // pred_fallthru
      _
    // Predicated region
    $region114: #{tpu_custom_call.1} parent=1 // pred_check
      _
    $region115: #{tpu_custom_call.1} parent=1 // pred_check_branch
      %137 = sbr.rel (0) target = $region117
    $region116: #{tpu_custom_call.1} parent=1 // pred_region
      %138 = dma.done [#allocation11], 512
    $region117: #{tpu_custom_call.1} parent=1 // pred_fallthru
      _
    // Predicated region
    $region118: #{tpu_custom_call.1} parent=1 // pred_check
      _
    $region119: #{tpu_custom_call.1} parent=1 // pred_check_branch
      %140 = sbr.rel (0) target = $region121
    $region120: #{tpu_custom_call.1} parent=1 // pred_region
      %141 = dma.done [#allocation11], 16
    $region121: #{tpu_custom_call.1} parent=1 // pred_fallthru
      _
    %v142 = vld [vmem:[#allocation7] sm:$0x7]
    %v143 = vld [vmem:[%s4] sm:$0xff]
    %v144 = vld [vmem:[%s4 + $0x8] sm:$0xff]
    %v145 = vld [vmem:[%s4 + $0x10] sm:$0xff]
    %v146 = vld [vmem:[%s4 + $0x18] sm:$0xff]
    %v147 = vld [vmem:[#allocation9] sm:$0x7]
    %v148 = vld [vmem:[%s6] sm:$0xff]
    %v149 = vld [vmem:[%s6 + $0x8] sm:$0xff]
    %v150 = vld [vmem:[%s6 + $0x10] sm:$0xff]
    %v151 = vld [vmem:[%s6 + $0x18] sm:$0xff]
    %v152 = vld [vmem:[%s7] sm:$0x7]
    %v153 = vld [vmem:[#allocation10] sm:$0xff]
    %v154 = vld [vmem:[#allocation10 + $0x8] sm:$0xff]
    %v155 = vld [vmem:[#allocation10 + $0x10] sm:$0xff]
    %v156 = vld [vmem:[#allocation10 + $0x18] sm:$0xff]
    %v157 = vld [vmem:[%s9] sm:$0x1]
    %v158 = vld [vmem:[#allocation12] sm:$0x1]
    %v159 = vld [vmem:[%s11] sm:$0x1]
    %v160 = vld [vmem:[%s12] sm:$0x1]
    %v161 = vld [vmem:[%s13] sm:$0x7]
    %v162 = vld [vmem:[%s14] sm:$0xff]
    %v163 = vld [vmem:[%s14 + $0x8] sm:$0xff]
    %v164 = vld [vmem:[%s14 + $0x10] sm:$0xff]
    %v165 = vld [vmem:[%s14 + $0x18] sm:$0xff]
    %v166 = vld [vmem:[%s14 + $0x20] sm:$0xff]
    %v167 = vld [vmem:[%s14 + $0x28] sm:$0xff]
    %v168 = vld [vmem:[%s14 + $0x30] sm:$0xff]
    %v169 = vld [vmem:[%s14 + $0x38] sm:$0xff]
    %v170 = vld [vmem:[%s15] sm:$0x7]
    %v171 = vld [vmem:[%s16] sm:$0xff]
    %v172 = vld [vmem:[%s16 + $0x8] sm:$0xff]
    %v173 = vld [vmem:[%s16 + $0x10] sm:$0xff]
    %v174 = vld [vmem:[%s16 + $0x18] sm:$0xff]
    %v175 = vld [vmem:[%s16 + $0x20] sm:$0xff]
    %v176 = vld [vmem:[%s16 + $0x28] sm:$0xff]
    %v177 = vld [vmem:[%s16 + $0x30] sm:$0xff]
    %v178 = vld [vmem:[%s16 + $0x38] sm:$0xff]
    %v179 = vld [vmem:[%s17] sm:$0x7]
    %v180 = vld [vmem:[%s18] sm:$0xff]
    %v181 = vld [vmem:[%s18 + $0x8] sm:$0xff]
    %v182 = vld [vmem:[%s18 + $0x10] sm:$0xff]
    %v183 = vld [vmem:[%s18 + $0x18] sm:$0xff]
    %v184 = vld [vmem:[%s18 + $0x20] sm:$0xff]
    %v185 = vld [vmem:[%s18 + $0x28] sm:$0xff]
    %v186 = vld [vmem:[%s18 + $0x30] sm:$0xff]
    %v187 = vld [vmem:[%s18 + $0x38] sm:$0xff]
    %v188 = vld [vmem:[%s19] sm:$0x1]
    %v189 = vld [vmem:[%s20] sm:$0x1]
    %v190 = vld [vmem:[%s21] sm:$0x1]
    %v191 = vld [vmem:[%s22] sm:$0x1]
    %v192 = vld [vmem:[%s23] sm:$0xff]
    %v193 = vld [vmem:[%s23 + $0x8] sm:$0xff]
    %v194 = vld [vmem:[%s23 + $0x10] sm:$0xff]
    %v195 = vld [vmem:[%s23 + $0x18] sm:$0xff]
    %v196 = vld [vmem:[%s23 + $0x20] sm:$0xff]
    %v197 = vld [vmem:[%s23 + $0x28] sm:$0xff]
    %v198 = vld [vmem:[%s23 + $0x30] sm:$0xff]
    %v199 = vld [vmem:[%s23 + $0x38] sm:$0xff]
    %v200 = vld [vmem:[#allocation4] sm:$0x1]
    %v201 = vld [vmem:[%s0] sm:$0xff]
    %vm202 = vcmask 261120
    %v204 = vsel %vm202, 0.0, 0
    %206 = vmatprep.subr.mxu0 0.0
    %207 = vmatpush1.msra.mxu0 %v143
    %208 = vmatprep.subr.mxu0 0.0
    %209 = vmatpush1.msra.mxu0 %v144
    %210 = vmatprep.subr.mxu0 0.0
    %211 = vmatpush1.msra.mxu0 %v145
    %212 = vmatprep.subr.mxu0 0.0
    %213 = vmatpush1.msra.mxu0 %v146
    %214 = vmatprep.subr.mxu0 0.0
    %215 = vmatpush1.msra.mxu0 0.0
    %216 = vmatprep.subr.mxu0 0.0
    %217 = vmatpush1.msra.mxu0 0.0
    %218 = vmatprep.subr.mxu0 0.0
    %219 = vmatpush1.msra.mxu0 0.0
    %220 = vmatprep.subr.mxu0 0.0
    %221 = vmatpush1.msra.mxu0 0.0
    %222 = vmatprep.subr.mxu0 0.0
    %223 = vmatpush1.msra.mxu0 0.0
    %224 = vmatprep.subr.mxu0 0.0
    %225 = vmatpush1.msra.mxu0 0.0
    %226 = vmatprep.subr.mxu0 0.0
    %227 = vmatpush1.msra.mxu0 0.0
    %228 = vmatprep.subr.mxu0 0.0
    %229 = vmatpush1.msra.mxu0 0.0
    %230 = vmatprep.subr.mxu0 0.0
    %231 = vmatpush1.msra.mxu0 0.0
    %232 = vmatprep.subr.mxu0 0.0
    %233 = vmatpush1.msra.mxu0 0.0
    %234 = vmatprep.subr.mxu0 0.0
    %235 = vmatpush1.msra.mxu0 0.0
    %236 = vmatprep.subr.mxu0 0.0
    %237 = vmatpush1.msra.mxu0 0.0
    %238 = vmatprep.subr.mxu0 0.0
    %239 = vmatpush1.msra.mxu0 0.0
    %240 = vmatprep.subr.mxu0 0.0
    %241 = vmatpush1.msra.mxu0 0.0
    %242 = vmatprep.subr.mxu0 0.0
    %243 = vmatpush1.msra.mxu0 0.0
    %244 = vmatprep.subr.mxu0 0.0
    %245 = vmatpush1.msra.mxu0 0.0
    %246 = vmatprep.subr.mxu0 0.0
    %247 = vmatpush1.msra.mxu0 0.0
    %248 = vmatprep.subr.mxu0 0.0
    %249 = vmatpush1.msra.mxu0 0.0
    %250 = vmatprep.subr.mxu0 0.0
    %251 = vmatpush1.msra.mxu0 0.0
    %252 = vmatprep.subr.mxu0 0.0
    %253 = vmatpush1.msra.mxu0 0.0
    %254 = vmatprep.subr.mxu0 0.0
    %255 = vmatpush1.msra.mxu0 0.0
    %256 = vmatprep.subr.mxu0 0.0
    %257 = vmatpush1.msra.mxu0 0.0
    %258 = vmatprep.subr.mxu0 0.0
    %259 = vmatpush1.msra.mxu0 0.0
    %260 = vmatprep.subr.mxu0 0.0
    %261 = vmatpush1.msra.mxu0 0.0
    %262 = vmatprep.subr.mxu0 0.0
    %263 = vmatpush1.msra.mxu0 0.0
    %264 = vmatprep.subr.mxu0 0.0
    %265 = vmatpush1.msra.mxu0 0.0
    %266 = vmatprep.subr.mxu0 0.0
    %267 = vmatpush1.msra.mxu0 0.0
    %268 = vmatprep.subr.mxu0 0.0
    %269 = vmatpush1.msra.mxu0 0.0
    %270 = vmatprep.mubr.f32.mxu0 0.0
    %271 = vmatmul.mubr.f32.gmra.mrb[0].mxu0 %v204
    %v272 = vpop.f32.mrb[0].mxu0
    %v273 = vadd.f32 0.0, %v272
    %v274 = vpop.f32.mrb[0].mxu0
    %275 = vdwg.mxu0
    %vm276 = vcmask 23552
    %v278 = vsel %vm276, %v201, 0
    %vm280 = vcmask 1042432
    %v282 = vsel %vm280, %v142, 0
    %284 = vmatprep.subr.mxu0 0.0
    %285 = vmatpush1.msra.mxu0 %v282
    %286 = vmatprep.subr.mxu0 0.0
    %287 = vmatpush1.msra.mxu0 0.0
    %288 = vmatprep.subr.mxu0 0.0
    %289 = vmatpush1.msra.mxu0 0.0
    %290 = vmatprep.subr.mxu0 0.0
    %291 = vmatpush1.msra.mxu0 0.0
    %292 = vmatprep.subr.mxu0 0.0
    %293 = vmatpush1.msra.mxu0 0.0
    %294 = vmatprep.subr.mxu0 0.0
    %295 = vmatpush1.msra.mxu0 0.0
    %296 = vmatprep.subr.mxu0 0.0
    %297 = vmatpush1.msra.mxu0 0.0
    %298 = vmatprep.subr.mxu0 0.0
    %299 = vmatpush1.msra.mxu0 0.0
    %300 = vmatprep.subr.mxu0 0.0
    %301 = vmatpush1.msra.mxu0 0.0
    %302 = vmatprep.subr.mxu0 0.0
    %303 = vmatpush1.msra.mxu0 0.0
    %304 = vmatprep.subr.mxu0 0.0
    %305 = vmatpush1.msra.mxu0 0.0
    %306 = vmatprep.subr.mxu0 0.0
    %307 = vmatpush1.msra.mxu0 0.0
    %308 = vmatprep.subr.mxu0 0.0
    %309 = vmatpush1.msra.mxu0 0.0
    %310 = vmatprep.subr.mxu0 0.0
    %311 = vmatpush1.msra.mxu0 0.0
    %312 = vmatprep.subr.mxu0 0.0
    %313 = vmatpush1.msra.mxu0 0.0
    %314 = vmatprep.subr.mxu0 0.0
    %315 = vmatpush1.msra.mxu0 0.0
    %316 = vmatprep.subr.mxu0 0.0
    %317 = vmatpush1.msra.mxu0 0.0
    %318 = vmatprep.subr.mxu0 0.0
    %319 = vmatpush1.msra.mxu0 0.0
    %320 = vmatprep.subr.mxu0 0.0
    %321 = vmatpush1.msra.mxu0 0.0
    %322 = vmatprep.subr.mxu0 0.0
    %323 = vmatpush1.msra.mxu0 0.0
    %324 = vmatprep.subr.mxu0 0.0
    %325 = vmatpush1.msra.mxu0 0.0
    %326 = vmatprep.subr.mxu0 0.0
    %327 = vmatpush1.msra.mxu0 0.0
    %328 = vmatprep.subr.mxu0 0.0
    %329 = vmatpush1.msra.mxu0 0.0
    %330 = vmatprep.subr.mxu0 0.0
    %331 = vmatpush1.msra.mxu0 0.0
    %332 = vmatprep.subr.mxu0 0.0
    %333 = vmatpush1.msra.mxu0 0.0
    %334 = vmatprep.subr.mxu0 0.0
    %335 = vmatpush1.msra.mxu0 0.0
    %336 = vmatprep.subr.mxu0 0.0
    %337 = vmatpush1.msra.mxu0 0.0
    %338 = vmatprep.subr.mxu0 0.0
    %339 = vmatpush1.msra.mxu0 0.0
    %340 = vmatprep.subr.mxu0 0.0
    %341 = vmatpush1.msra.mxu0 0.0
    %342 = vmatprep.subr.mxu0 0.0
    %343 = vmatpush1.msra.mxu0 0.0
    %344 = vmatprep.subr.mxu0 0.0
    %345 = vmatpush1.msra.mxu0 0.0
    %346 = vmatprep.subr.mxu0 0.0
    %347 = vmatpush1.msra.mxu0 0.0
    %348 = vmatprep.mubr.f32.mxu0 0.0
    %349 = vmatmul.mubr.f32.gmra.mrb[0].mxu0 %v278
    %v350 = vpop.f32.mrb[0].mxu0
    %v351 = vadd.f32 %v273, %v350
    %v352 = vpop.f32.mrb[0].mxu0
    %353 = vdwg.mxu0
    %v355 = vlaneseq
    %v356 = vshrl.u32 %v355, 7
    %v357 = vsub.s32 0, %v356
    %v358 = vrot.slane %v157, %v357
    %v360 = vadd.f32 %v351, %v358
    %v361 = vxor.u32 %v360, 2147483648
    %v362 = vmul.f32 %v361, 1.442695
    %v363 = vpow.pop %v362
    %v364 = vadd.f32 %v363, 1.0
    %v365 = vrcp.pop %v364
    %v366 = vmul.f32 1.0, %v365
    %367 = vmatprep.subr.mxu0 0.0
    %368 = vmatpush1.msra.mxu0 %v148
    %369 = vmatprep.subr.mxu0 0.0
    %370 = vmatpush1.msra.mxu0 %v149
    %371 = vmatprep.subr.mxu0 0.0
    %372 = vmatpush1.msra.mxu0 %v150
    %373 = vmatprep.subr.mxu0 0.0
    %374 = vmatpush1.msra.mxu0 %v151
    %375 = vmatprep.subr.mxu0 0.0
    %376 = vmatpush1.msra.mxu0 0.0
    %377 = vmatprep.subr.mxu0 0.0
    %378 = vmatpush1.msra.mxu0 0.0
    %379 = vmatprep.subr.mxu0 0.0
    %380 = vmatpush1.msra.mxu0 0.0
    %381 = vmatprep.subr.mxu0 0.0
    %382 = vmatpush1.msra.mxu0 0.0
    %383 = vmatprep.subr.mxu0 0.0
    %384 = vmatpush1.msra.mxu0 0.0
    %385 = vmatprep.subr.mxu0 0.0
    %386 = vmatpush1.msra.mxu0 0.0
    %387 = vmatprep.subr.mxu0 0.0
    %388 = vmatpush1.msra.mxu0 0.0
    %389 = vmatprep.subr.mxu0 0.0
    %390 = vmatpush1.msra.mxu0 0.0
    %391 = vmatprep.subr.mxu0 0.0
    %392 = vmatpush1.msra.mxu0 0.0
    %393 = vmatprep.subr.mxu0 0.0
    %394 = vmatpush1.msra.mxu0 0.0
    %395 = vmatprep.subr.mxu0 0.0
    %396 = vmatpush1.msra.mxu0 0.0
    %397 = vmatprep.subr.mxu0 0.0
    %398 = vmatpush1.msra.mxu0 0.0
    %399 = vmatprep.subr.mxu0 0.0
    %400 = vmatpush1.msra.mxu0 0.0
    %401 = vmatprep.subr.mxu0 0.0
    %402 = vmatpush1.msra.mxu0 0.0
    %403 = vmatprep.subr.mxu0 0.0
    %404 = vmatpush1.msra.mxu0 0.0
    %405 = vmatprep.subr.mxu0 0.0
    %406 = vmatpush1.msra.mxu0 0.0
    %407 = vmatprep.subr.mxu0 0.0
    %408 = vmatpush1.msra.mxu0 0.0
    %409 = vmatprep.subr.mxu0 0.0
    %410 = vmatpush1.msra.mxu0 0.0
    %411 = vmatprep.subr.mxu0 0.0
    %412 = vmatpush1.msra.mxu0 0.0
    %413 = vmatprep.subr.mxu0 0.0
    %414 = vmatpush1.msra.mxu0 0.0
    %415 = vmatprep.subr.mxu0 0.0
    %416 = vmatpush1.msra.mxu0 0.0
    %417 = vmatprep.subr.mxu0 0.0
    %418 = vmatpush1.msra.mxu0 0.0
    %419 = vmatprep.subr.mxu0 0.0
    %420 = vmatpush1.msra.mxu0 0.0
    %421 = vmatprep.subr.mxu0 0.0
    %422 = vmatpush1.msra.mxu0 0.0
    %423 = vmatprep.subr.mxu0 0.0
    %424 = vmatpush1.msra.mxu0 0.0
    %425 = vmatprep.subr.mxu0 0.0
    %426 = vmatpush1.msra.mxu0 0.0
    %427 = vmatprep.subr.mxu0 0.0
    %428 = vmatpush1.msra.mxu0 0.0
    %429 = vmatprep.subr.mxu0 0.0
    %430 = vmatpush1.msra.mxu0 0.0
    %431 = vmatprep.mubr.f32.mxu0 0.0
    %432 = vmatmul.mubr.f32.gmra.mrb[0].mxu0 %v204
    %v433 = vpop.f32.mrb[0].mxu0
    %v434 = vadd.f32 0.0, %v433
    %v435 = vpop.f32.mrb[0].mxu0
    %436 = vdwg.mxu0
    %v438 = vsel %vm280, %v147, 0
    %440 = vmatprep.subr.mxu0 0.0
    %441 = vmatpush1.msra.mxu0 %v438
    %442 = vmatprep.subr.mxu0 0.0
    %443 = vmatpush1.msra.mxu0 0.0
    %444 = vmatprep.subr.mxu0 0.0
    %445 = vmatpush1.msra.mxu0 0.0
    %446 = vmatprep.subr.mxu0 0.0
    %447 = vmatpush1.msra.mxu0 0.0
    %448 = vmatprep.subr.mxu0 0.0
    %449 = vmatpush1.msra.mxu0 0.0
    %450 = vmatprep.subr.mxu0 0.0
    %451 = vmatpush1.msra.mxu0 0.0
    %452 = vmatprep.subr.mxu0 0.0
    %453 = vmatpush1.msra.mxu0 0.0
    %454 = vmatprep.subr.mxu0 0.0
    %455 = vmatpush1.msra.mxu0 0.0
    %456 = vmatprep.subr.mxu0 0.0
    %457 = vmatpush1.msra.mxu0 0.0
    %458 = vmatprep.subr.mxu0 0.0
    %459 = vmatpush1.msra.mxu0 0.0
    %460 = vmatprep.subr.mxu0 0.0
    %461 = vmatpush1.msra.mxu0 0.0
    %462 = vmatprep.subr.mxu0 0.0
    %463 = vmatpush1.msra.mxu0 0.0
    %464 = vmatprep.subr.mxu0 0.0
    %465 = vmatpush1.msra.mxu0 0.0
    %466 = vmatprep.subr.mxu0 0.0
    %467 = vmatpush1.msra.mxu0 0.0
    %468 = vmatprep.subr.mxu0 0.0
    %469 = vmatpush1.msra.mxu0 0.0
    %470 = vmatprep.subr.mxu0 0.0
    %471 = vmatpush1.msra.mxu0 0.0
    %472 = vmatprep.subr.mxu0 0.0
    %473 = vmatpush1.msra.mxu0 0.0
    %474 = vmatprep.subr.mxu0 0.0
    %475 = vmatpush1.msra.mxu0 0.0
    %476 = vmatprep.subr.mxu0 0.0
    %477 = vmatpush1.msra.mxu0 0.0
    %478 = vmatprep.subr.mxu0 0.0
    %479 = vmatpush1.msra.mxu0 0.0
    %480 = vmatprep.subr.mxu0 0.0
    %481 = vmatpush1.msra.mxu0 0.0
    %482 = vmatprep.subr.mxu0 0.0
    %483 = vmatpush1.msra.mxu0 0.0
    %484 = vmatprep.subr.mxu0 0.0
    %485 = vmatpush1.msra.mxu0 0.0
    %486 = vmatprep.subr.mxu0 0.0
    %487 = vmatpush1.msra.mxu0 0.0
    %488 = vmatprep.subr.mxu0 0.0
    %489 = vmatpush1.msra.mxu0 0.0
    %490 = vmatprep.subr.mxu0 0.0
    %491 = vmatpush1.msra.mxu0 0.0
    %492 = vmatprep.subr.mxu0 0.0
    %493 = vmatpush1.msra.mxu0 0.0
    %494 = vmatprep.subr.mxu0 0.0
    %495 = vmatpush1.msra.mxu0 0.0
    %496 = vmatprep.subr.mxu0 0.0
    %497 = vmatpush1.msra.mxu0 0.0
    %498 = vmatprep.subr.mxu0 0.0
    %499 = vmatpush1.msra.mxu0 0.0
    %500 = vmatprep.subr.mxu0 0.0
    %501 = vmatpush1.msra.mxu0 0.0
    %502 = vmatprep.subr.mxu0 0.0
    %503 = vmatpush1.msra.mxu0 0.0
    %504 = vmatprep.mubr.f32.mxu0 0.0
    %505 = vmatmul.mubr.f32.gmra.mrb[0].mxu0 %v278
    %v506 = vpop.f32.mrb[0].mxu0
    %v507 = vadd.f32 %v434, %v506
    %v508 = vpop.f32.mrb[0].mxu0
    %509 = vdwg.mxu0
    %v511 = vlaneseq
    %v512 = vshrl.u32 %v511, 7
    %v513 = vsub.s32 0, %v512
    %v514 = vrot.slane %v158, %v513
    %v516 = vadd.f32 %v507, %v514
    %v517 = vxor.u32 %v516, 2147483648
    %v518 = vmul.f32 %v517, 1.442695
    %v519 = vpow.pop %v518
    %v520 = vadd.f32 %v519, 1.0
    %v521 = vrcp.pop %v520
    %v522 = vmul.f32 1.0, %v521
    %v524 = vlaneseq
    %v525 = vshrl.u32 %v524, 7
    %v526 = vsub.s32 0, %v525
    %v527 = vrot.slane %v159, %v526
    %v530 = vsel %vm280, %v152, 0
    %532 = vmatprep.subr.mxu0 0.0
    %533 = vmatpush1.msra.mxu0 %v530
    %534 = vmatprep.subr.mxu0 0.0
    %535 = vmatpush1.msra.mxu0 0.0
    %536 = vmatprep.subr.mxu0 0.0
    %537 = vmatpush1.msra.mxu0 0.0
    %538 = vmatprep.subr.mxu0 0.0
    %539 = vmatpush1.msra.mxu0 0.0
    %540 = vmatprep.subr.mxu0 0.0
    %541 = vmatpush1.msra.mxu0 0.0
    %542 = vmatprep.subr.mxu0 0.0
    %543 = vmatpush1.msra.mxu0 0.0
    %544 = vmatprep.subr.mxu0 0.0
    %545 = vmatpush1.msra.mxu0 0.0
    %546 = vmatprep.subr.mxu0 0.0
    %547 = vmatpush1.msra.mxu0 0.0
    %548 = vmatprep.subr.mxu0 0.0
    %549 = vmatpush1.msra.mxu0 0.0
    %550 = vmatprep.subr.mxu0 0.0
    %551 = vmatpush1.msra.mxu0 0.0
    %552 = vmatprep.subr.mxu0 0.0
    %553 = vmatpush1.msra.mxu0 0.0
    %554 = vmatprep.subr.mxu0 0.0
    %555 = vmatpush1.msra.mxu0 0.0
    %556 = vmatprep.subr.mxu0 0.0
    %557 = vmatpush1.msra.mxu0 0.0
    %558 = vmatprep.subr.mxu0 0.0
    %559 = vmatpush1.msra.mxu0 0.0
    %560 = vmatprep.subr.mxu0 0.0
    %561 = vmatpush1.msra.mxu0 0.0
    %562 = vmatprep.subr.mxu0 0.0
    %563 = vmatpush1.msra.mxu0 0.0
    %564 = vmatprep.subr.mxu0 0.0
    %565 = vmatpush1.msra.mxu0 0.0
    %566 = vmatprep.subr.mxu0 0.0
    %567 = vmatpush1.msra.mxu0 0.0
    %568 = vmatprep.subr.mxu0 0.0
    %569 = vmatpush1.msra.mxu0 0.0
    %570 = vmatprep.subr.mxu0 0.0
    %571 = vmatpush1.msra.mxu0 0.0
    %572 = vmatprep.subr.mxu0 0.0
    %573 = vmatpush1.msra.mxu0 0.0
    %574 = vmatprep.subr.mxu0 0.0
    %575 = vmatpush1.msra.mxu0 0.0
    %576 = vmatprep.subr.mxu0 0.0
    %577 = vmatpush1.msra.mxu0 0.0
    %578 = vmatprep.subr.mxu0 0.0
    %579 = vmatpush1.msra.mxu0 0.0
    %580 = vmatprep.subr.mxu0 0.0
    %581 = vmatpush1.msra.mxu0 0.0
    %582 = vmatprep.subr.mxu0 0.0
    %583 = vmatpush1.msra.mxu0 0.0
    %584 = vmatprep.subr.mxu0 0.0
    %585 = vmatpush1.msra.mxu0 0.0
    %586 = vmatprep.subr.mxu0 0.0
    %587 = vmatpush1.msra.mxu0 0.0
    %588 = vmatprep.subr.mxu0 0.0
    %589 = vmatpush1.msra.mxu0 0.0
    %590 = vmatprep.subr.mxu0 0.0
    %591 = vmatpush1.msra.mxu0 0.0
    %592 = vmatprep.subr.mxu0 0.0
    %593 = vmatpush1.msra.mxu0 0.0
    %594 = vmatprep.subr.mxu0 0.0
    %595 = vmatpush1.msra.mxu0 0.0
    %596 = vmatprep.mubr.f32.mxu0 0.0
    %597 = vmatmul.mubr.f32.gmra.mrb[0].mxu0 %v278
    %v598 = vpop.f32.mrb[0].mxu0
    %v599 = vadd.f32 %v527, %v598
    %v600 = vpop.f32.mrb[0].mxu0
    %601 = vdwg.mxu0
    %v603 = vlaneseq
    %v604 = vshrl.u32 %v603, 7
    %v605 = vsub.s32 0, %v604
    %v606 = vrot.slane %v160, %v605
    %608 = vmatprep.subr.mxu0 0.0
    %609 = vmatpush1.msra.mxu0 %v153
    %610 = vmatprep.subr.mxu0 0.0
    %611 = vmatpush1.msra.mxu0 %v154
    %612 = vmatprep.subr.mxu0 0.0
    %613 = vmatpush1.msra.mxu0 %v155
    %614 = vmatprep.subr.mxu0 0.0
    %615 = vmatpush1.msra.mxu0 %v156
    %616 = vmatprep.subr.mxu0 0.0
    %617 = vmatpush1.msra.mxu0 0.0
    %618 = vmatprep.subr.mxu0 0.0
    %619 = vmatpush1.msra.mxu0 0.0
    %620 = vmatprep.subr.mxu0 0.0
    %621 = vmatpush1.msra.mxu0 0.0
    %622 = vmatprep.subr.mxu0 0.0
    %623 = vmatpush1.msra.mxu0 0.0
    %624 = vmatprep.subr.mxu0 0.0
    %625 = vmatpush1.msra.mxu0 0.0
    %626 = vmatprep.subr.mxu0 0.0
    %627 = vmatpush1.msra.mxu0 0.0
    %628 = vmatprep.subr.mxu0 0.0
    %629 = vmatpush1.msra.mxu0 0.0
    %630 = vmatprep.subr.mxu0 0.0
    %631 = vmatpush1.msra.mxu0 0.0
    %632 = vmatprep.subr.mxu0 0.0
    %633 = vmatpush1.msra.mxu0 0.0
    %634 = vmatprep.subr.mxu0 0.0
    %635 = vmatpush1.msra.mxu0 0.0
    %636 = vmatprep.subr.mxu0 0.0
    %637 = vmatpush1.msra.mxu0 0.0
    %638 = vmatprep.subr.mxu0 0.0
    %639 = vmatpush1.msra.mxu0 0.0
    %640 = vmatprep.subr.mxu0 0.0
    %641 = vmatpush1.msra.mxu0 0.0
    %642 = vmatprep.subr.mxu0 0.0
    %643 = vmatpush1.msra.mxu0 0.0
    %644 = vmatprep.subr.mxu0 0.0
    %645 = vmatpush1.msra.mxu0 0.0
    %646 = vmatprep.subr.mxu0 0.0
    %647 = vmatpush1.msra.mxu0 0.0
    %648 = vmatprep.subr.mxu0 0.0
    %649 = vmatpush1.msra.mxu0 0.0
    %650 = vmatprep.subr.mxu0 0.0
    %651 = vmatpush1.msra.mxu0 0.0
    %652 = vmatprep.subr.mxu0 0.0
    %653 = vmatpush1.msra.mxu0 0.0
    %654 = vmatprep.subr.mxu0 0.0
    %655 = vmatpush1.msra.mxu0 0.0
    %656 = vmatprep.subr.mxu0 0.0
    %657 = vmatpush1.msra.mxu0 0.0
    %658 = vmatprep.subr.mxu0 0.0
    %659 = vmatpush1.msra.mxu0 0.0
    %660 = vmatprep.subr.mxu0 0.0
    %661 = vmatpush1.msra.mxu0 0.0
    %662 = vmatprep.subr.mxu0 0.0
    %663 = vmatpush1.msra.mxu0 0.0
    %664 = vmatprep.subr.mxu0 0.0
    %665 = vmatpush1.msra.mxu0 0.0
    %666 = vmatprep.subr.mxu0 0.0
    %667 = vmatpush1.msra.mxu0 0.0
    %668 = vmatprep.subr.mxu0 0.0
    %669 = vmatpush1.msra.mxu0 0.0
    %670 = vmatprep.subr.mxu0 0.0
    %671 = vmatpush1.msra.mxu0 0.0
    %672 = vmatprep.mubr.f32.mxu0 0.0
    %673 = vmatmul.mubr.f32.gmra.mrb[0].mxu0 %v204
    %v674 = vpop.f32.mrb[0].mxu0
    %v675 = vadd.f32 %v606, %v674
    %v676 = vpop.f32.mrb[0].mxu0
    %677 = vdwg.mxu0
    %v678 = vmul.f32 %v366, %v675
    %v679 = vadd.f32 %v599, %v678
    %v680 = vtanh.pop %v679
    %v681 = vsub.f32 1.0, %v522
    %v682 = vmul.f32 %v681, %v680
    %v683 = vmul.f32 %v522, 0.0
    %v684 = vadd.f32 %v682, %v683
    %s685 = scalar_lea.vmem %s0, 8
    %v686 = vld [vmem:[%s685] sm:$0xff]
    %v688 = vsel %vm202, %v684, 0
    %690 = vmatprep.subr.mxu0 0.0
    %691 = vmatpush1.msra.mxu0 %v143
    %692 = vmatprep.subr.mxu0 0.0
    %693 = vmatpush1.msra.mxu0 %v144
    %694 = vmatprep.subr.mxu0 0.0
    %695 = vmatpush1.msra.mxu0 %v145
    %696 = vmatprep.subr.mxu0 0.0
    %697 = vmatpush1.msra.mxu0 %v146
    %698 = vmatprep.subr.mxu0 0.0
    %699 = vmatpush1.msra.mxu0 0.0
    %700 = vmatprep.subr.mxu0 0.0
    %701 = vmatpush1.msra.mxu0 0.0
    %702 = vmatprep.subr.mxu0 0.0
    %703 = vmatpush1.msra.mxu0 0.0
    %704 = vmatprep.subr.mxu0 0.0
    %705 = vmatpush1.msra.mxu0 0.0
    %706 = vmatprep.subr.mxu0 0.0
    %707 = vmatpush1.msra.mxu0 0.0
    %708 = vmatprep.subr.mxu0 0.0
    %709 = vmatpush1.msra.mxu0 0.0
    %710 = vmatprep.subr.mxu0 0.0
    %711 = vmatpush1.msra.mxu0 0.0
    %712 = vmatprep.subr.mxu0 0.0
    %713 = vmatpush1.msra.mxu0 0.0
    %714 = vmatprep.subr.mxu0 0.0
    %715 = vmatpush1.msra.mxu0 0.0
    %716 = vmatprep.subr.mxu0 0.0
    %717 = vmatpush1.msra.mxu0 0.0
    %718 = vmatprep.subr.mxu0 0.0
    %719 = vmatpush1.msra.mxu0 0.0
    %720 = vmatprep.subr.mxu0 0.0
    %721 = vmatpush1.msra.mxu0 0.0
    %722 = vmatprep.subr.mxu0 0.0
    %723 = vmatpush1.msra.mxu0 0.0
    %724 = vmatprep.subr.mxu0 0.0
    %725 = vmatpush1.msra.mxu0 0.0
    %726 = vmatprep.subr.mxu0 0.0
    %727 = vmatpush1.msra.mxu0 0.0
    %728 = vmatprep.subr.mxu0 0.0
    %729 = vmatpush1.msra.mxu0 0.0
    %730 = vmatprep.subr.mxu0 0.0
    %731 = vmatpush1.msra.mxu0 0.0
    %732 = vmatprep.subr.mxu0 0.0
    %733 = vmatpush1.msra.mxu0 0.0
    %734 = vmatprep.subr.mxu0 0.0
    %735 = vmatpush1.msra.mxu0 0.0
    %736 = vmatprep.subr.mxu0 0.0
    %737 = vmatpush1.msra.mxu0 0.0
    %738 = vmatprep.subr.mxu0 0.0
    %739 = vmatpush1.msra.mxu0 0.0
    %740 = vmatprep.subr.mxu0 0.0
    %741 = vmatpush1.msra.mxu0 0.0
    %742 = vmatprep.subr.mxu0 0.0
    %743 = vmatpush1.msra.mxu0 0.0
    %744 = vmatprep.subr.mxu0 0.0
    %745 = vmatpush1.msra.mxu0 0.0
    %746 = vmatprep.subr.mxu0 0.0
    %747 = vmatpush1.msra.mxu0 0.0
    %748 = vmatprep.subr.mxu0 0.0
    %749 = vmatpush1.msra.mxu0 0.0
    %750 = vmatprep.subr.mxu0 0.0
    %751 = vmatpush1.msra.mxu0 0.0
    %752 = vmatprep.subr.mxu0 0.0
    %753 = vmatpush1.msra.mxu0 0.0
    %754 = vmatprep.mubr.f32.mxu0 0.0
    %755 = vmatmul.mubr.f32.gmra.mrb[0].mxu0 %v688
    %v756 = vpop.f32.mrb[0].mxu0
    %v757 = vadd.f32 0.0, %v756
    %v758 = vpop.f32.mrb[0].mxu0
    %759 = vdwg.mxu0
    %v761 = vsel %vm276, %v686, 0
    %763 = vmatprep.subr.mxu0 0.0
    %764 = vmatpush1.msra.mxu0 %v282
    %765 = vmatprep.subr.mxu0 0.0
    %766 = vmatpush1.msra.mxu0 0.0
    %767 = vmatprep.subr.mxu0 0.0
    %768 = vmatpush1.msra.mxu0 0.0
    %769 = vmatprep.subr.mxu0 0.0
    %770 = vmatpush1.msra.mxu0 0.0
    %771 = vmatprep.subr.mxu0 0.0
    %772 = vmatpush1.msra.mxu0 0.0
    %773 = vmatprep.subr.mxu0 0.0
    %774 = vmatpush1.msra.mxu0 0.0
    %775 = vmatprep.subr.mxu0 0.0
    %776 = vmatpush1.msra.mxu0 0.0
    %777 = vmatprep.subr.mxu0 0.0
    %778 = vmatpush1.msra.mxu0 0.0
    %779 = vmatprep.subr.mxu0 0.0
    %780 = vmatpush1.msra.mxu0 0.0
    %781 = vmatprep.subr.mxu0 0.0
    %782 = vmatpush1.msra.mxu0 0.0
    %783 = vmatprep.subr.mxu0 0.0
    %784 = vmatpush1.msra.mxu0 0.0
    %785 = vmatprep.subr.mxu0 0.0
    %786 = vmatpush1.msra.mxu0 0.0
    %787 = vmatprep.subr.mxu0 0.0
    %788 = vmatpush1.msra.mxu0 0.0
    %789 = vmatprep.subr.mxu0 0.0
    %790 = vmatpush1.msra.mxu0 0.0
    %791 = vmatprep.subr.mxu0 0.0
    %792 = vmatpush1.msra.mxu0 0.0
    %793 = vmatprep.subr.mxu0 0.0
    %794 = vmatpush1.msra.mxu0 0.0
    %795 = vmatprep.subr.mxu0 0.0
    %796 = vmatpush1.msra.mxu0 0.0
    %797 = vmatprep.subr.mxu0 0.0
    %798 = vmatpush1.msra.mxu0 0.0
    %799 = vmatprep.subr.mxu0 0.0
    %800 = vmatpush1.msra.mxu0 0.0
    %801 = vmatprep.subr.mxu0 0.0
    %802 = vmatpush1.msra.mxu0 0.0
    %803 = vmatprep.subr.mxu0 0.0
    %804 = vmatpush1.msra.mxu0 0.0
    %805 = vmatprep.subr.mxu0 0.0
    %806 = vmatpush1.msra.mxu0 0.0
    %807 = vmatprep.subr.mxu0 0.0
    %808 = vmatpush1.msra.mxu0 0.0
    %809 = vmatprep.subr.mxu0 0.0
    %810 = vmatpush1.msra.mxu0 0.0
    %811 = vmatprep.subr.mxu0 0.0
    %812 = vmatpush1.msra.mxu0 0.0
    %813 = vmatprep.subr.mxu0 0.0
    %814 = vmatpush1.msra.mxu0 0.0
    %815 = vmatprep.subr.mxu0 0.0
    %816 = vmatpush1.msra.mxu0 0.0
    %817 = vmatprep.subr.mxu0 0.0
    %818 = vmatpush1.msra.mxu0 0.0
    %819 = vmatprep.subr.mxu0 0.0
    %820 = vmatpush1.msra.mxu0 0.0
    %821 = vmatprep.subr.mxu0 0.0
    %822 = vmatpush1.msra.mxu0 0.0
    %823 = vmatprep.subr.mxu0 0.0
    %824 = vmatpush1.msra.mxu0 0.0
    %825 = vmatprep.subr.mxu0 0.0
    %826 = vmatpush1.msra.mxu0 0.0
    %827 = vmatprep.mubr.f32.mxu0 0.0
    %828 = vmatmul.mubr.f32.gmra.mrb[0].mxu0 %v761
    %v829 = vpop.f32.mrb[0].mxu0
    %v830 = vadd.f32 %v757, %v829
    %v831 = vpop.f32.mrb[0].mxu0
    %832 = vdwg.mxu0
    %v833 = vadd.f32 %v830, %v358
    %v834 = vxor.u32 %v833, 2147483648
    %v835 = vmul.f32 %v834, 1.442695
    %v836 = vpow.pop %v835
    %v837 = vadd.f32 %v836, 1.0
    %v838 = vrcp.pop %v837
    %v839 = vmul.f32 1.0, %v838
    %840 = vmatprep.subr.mxu0 0.0
    %841 = vmatpush1.msra.mxu0 %v148
    %842 = vmatprep.subr.mxu0 0.0
    %843 = vmatpush1.msra.mxu0 %v149
    %844 = vmatprep.subr.mxu0 0.0
    %845 = vmatpush1.msra.mxu0 %v150
    %846 = vmatprep.subr.mxu0 0.0
    %847 = vmatpush1.msra.mxu0 %v151
    %848 = vmatprep.subr.mxu0 0.0
    %849 = vmatpush1.msra.mxu0 0.0
    %850 = vmatprep.subr.mxu0 0.0
    %851 = vmatpush1.msra.mxu0 0.0
    %852 = vmatprep.subr.mxu0 0.0
    %853 = vmatpush1.msra.mxu0 0.0
    %854 = vmatprep.subr.mxu0 0.0
    %855 = vmatpush1.msra.mxu0 0.0
    %856 = vmatprep.subr.mxu0 0.0
    %857 = vmatpush1.msra.mxu0 0.0
    %858 = vmatprep.subr.mxu0 0.0
    %859 = vmatpush1.msra.mxu0 0.0
    %860 = vmatprep.subr.mxu0 0.0
    %861 = vmatpush1.msra.mxu0 0.0
    %862 = vmatprep.subr.mxu0 0.0
    %863 = vmatpush1.msra.mxu0 0.0
    %864 = vmatprep.subr.mxu0 0.0
    %865 = vmatpush1.msra.mxu0 0.0
    %866 = vmatprep.subr.mxu0 0.0
    %867 = vmatpush1.msra.mxu0 0.0
    %868 = vmatprep.subr.mxu0 0.0
    %869 = vmatpush1.msra.mxu0 0.0
    %870 = vmatprep.subr.mxu0 0.0
    %871 = vmatpush1.msra.mxu0 0.0
    %872 = vmatprep.subr.mxu0 0.0
    %873 = vmatpush1.msra.mxu0 0.0
    %874 = vmatprep.subr.mxu0 0.0
    %875 = vmatpush1.msra.mxu0 0.0
    %876 = vmatprep.subr.mxu0 0.0
    %877 = vmatpush1.msra.mxu0 0.0
    %878 = vmatprep.subr.mxu0 0.0
    %879 = vmatpush1.msra.mxu0 0.0
    %880 = vmatprep.subr.mxu0 0.0
    %881 = vmatpush1.msra.mxu0 0.0
    %882 = vmatprep.subr.mxu0 0.0
    %883 = vmatpush1.msra.mxu0 0.0
    %884 = vmatprep.subr.mxu0 0.0
    %885 = vmatpush1.msra.mxu0 0.0
    %886 = vmatprep.subr.mxu0 0.0
    %887 = vmatpush1.msra.mxu0 0.0
    %888 = vmatprep.subr.mxu0 0.0
    %889 = vmatpush1.msra.mxu0 0.0
    %890 = vmatprep.subr.mxu0 0.0
    %891 = vmatpush1.msra.mxu0 0.0
    %892 = vmatprep.subr.mxu0 0.0
    %893 = vmatpush1.msra.mxu0 0.0
    %894 = vmatprep.subr.mxu0 0.0
    %895 = vmatpush1.msra.mxu0 0.0
    %896 = vmatprep.subr.mxu0 0.0
    %897 = vmatpush1.msra.mxu0 0.0
    %898 = vmatprep.subr.mxu0 0.0
    %899 = vmatpush1.msra.mxu0 0.0
    %900 = vmatprep.subr.mxu0 0.0
    %901 = vmatpush1.msra.mxu0 0.0
    %902 = vmatprep.subr.mxu0 0.0
    %903 = vmatpush1.msra.mxu0 0.0
    %904 = vmatprep.mubr.f32.mxu0 0.0
    %905 = vmatmul.mubr.f32.gmra.mrb[0].mxu0 %v688
    %v906 = vpop.f32.mrb[0].mxu0
    %v907 = vadd.f32 0.0, %v906
    %v908 = vpop.f32.mrb[0].mxu0
    %909 = vdwg.mxu0
    %910 = vmatprep.subr.mxu0 0.0
    %911 = vmatpush1.msra.mxu0 %v438
    %912 = vmatprep.subr.mxu0 0.0
    %913 = vmatpush1.msra.mxu0 0.0
    %914 = vmatprep.subr.mxu0 0.0
    %915 = vmatpush1.msra.mxu0 0.0
    %916 = vmatprep.subr.mxu0 0.0
    %917 = vmatpush1.msra.mxu0 0.0
    %918 = vmatprep.subr.mxu0 0.0
    %919 = vmatpush1.msra.mxu0 0.0
    %920 = vmatprep.subr.mxu0 0.0
    %921 = vmatpush1.msra.mxu0 0.0
    %922 = vmatprep.subr.mxu0 0.0
    %923 = vmatpush1.msra.mxu0 0.0
    %924 = vmatprep.subr.mxu0 0.0
    %925 = vmatpush1.msra.mxu0 0.0
    %926 = vmatprep.subr.mxu0 0.0
    %927 = vmatpush1.msra.mxu0 0.0
    %928 = vmatprep.subr.mxu0 0.0
    %929 = vmatpush1.msra.mxu0 0.0
    %930 = vmatprep.subr.mxu0 0.0
    %931 = vmatpush1.msra.mxu0 0.0
    %932 = vmatprep.subr.mxu0 0.0
    %933 = vmatpush1.msra.mxu0 0.0
    %934 = vmatprep.subr.mxu0 0.0
    %935 = vmatpush1.msra.mxu0 0.0
    %936 = vmatprep.subr.mxu0 0.0
    %937 = vmatpush1.msra.mxu0 0.0
    %938 = vmatprep.subr.mxu0 0.0
    %939 = vmatpush1.msra.mxu0 0.0
    %940 = vmatprep.subr.mxu0 0.0
    %941 = vmatpush1.msra.mxu0 0.0
    %942 = vmatprep.subr.mxu0 0.0
    %943 = vmatpush1.msra.mxu0 0.0
    %944 = vmatprep.subr.mxu0 0.0
    %945 = vmatpush1.msra.mxu0 0.0
    %946 = vmatprep.subr.mxu0 0.0
    %947 = vmatpush1.msra.mxu0 0.0
    %948 = vmatprep.subr.mxu0 0.0
    %949 = vmatpush1.msra.mxu0 0.0
    %950 = vmatprep.subr.mxu0 0.0
    %951 = vmatpush1.msra.mxu0 0.0
    %952 = vmatprep.subr.mxu0 0.0
    %953 = vmatpush1.msra.mxu0 0.0
    %954 = vmatprep.subr.mxu0 0.0
    %955 = vmatpush1.msra.mxu0 0.0
    %956 = vmatprep.subr.mxu0 0.0
    %957 = vmatpush1.msra.mxu0 0.0
    %958 = vmatprep.subr.mxu0 0.0
    %959 = vmatpush1.msra.mxu0 0.0
    %960 = vmatprep.subr.mxu0 0.0
    %961 = vmatpush1.msra.mxu0 0.0
    %962 = vmatprep.subr.mxu0 0.0
    %963 = vmatpush1.msra.mxu0 0.0
    %964 = vmatprep.subr.mxu0 0.0
    %965 = vmatpush1.msra.mxu0 0.0
    %966 = vmatprep.subr.mxu0 0.0
    %967 = vmatpush1.msra.mxu0 0.0
    %968 = vmatprep.subr.mxu0 0.0
    %969 = vmatpush1.msra.mxu0 0.0
    %970 = vmatprep.subr.mxu0 0.0
    %971 = vmatpush1.msra.mxu0 0.0
    %972 = vmatprep.subr.mxu0 0.0
    %973 = vmatpush1.msra.mxu0 0.0
    %974 = vmatprep.mubr.f32.mxu0 0.0
    %975 = vmatmul.mubr.f32.gmra.mrb[0].mxu0 %v761
    %v976 = vpop.f32.mrb[0].mxu0
    %v977 = vadd.f32 %v907, %v976
    %v978 = vpop.f32.mrb[0].mxu0
    %979 = vdwg.mxu0
    %v980 = vadd.f32 %v977, %v514
    %v981 = vxor.u32 %v980, 2147483648
    %v982 = vmul.f32 %v981, 1.442695
    %v983 = vpow.pop %v982
    %v984 = vadd.f32 %v983, 1.0
    %v985 = vrcp.pop %v984
    %v986 = vmul.f32 1.0, %v985
    %987 = vmatprep.subr.mxu0 0.0
    %988 = vmatpush1.msra.mxu0 %v530
    %989 = vmatprep.subr.mxu0 0.0
    %990 = vmatpush1.msra.mxu0 0.0
    %991 = vmatprep.subr.mxu0 0.0
    %992 = vmatpush1.msra.mxu0 0.0
    %993 = vmatprep.subr.mxu0 0.0
    %994 = vmatpush1.msra.mxu0 0.0
    %995 = vmatprep.subr.mxu0 0.0
    %996 = vmatpush1.msra.mxu0 0.0
    %997 = vmatprep.subr.mxu0 0.0
    %998 = vmatpush1.msra.mxu0 0.0
    %999 = vmatprep.subr.mxu0 0.0
    %1000 = vmatpush1.msra.mxu0 0.0
    %1001 = vmatprep.subr.mxu0 0.0
    %1002 = vmatpush1.msra.mxu0 0.0
    %1003 = vmatprep.subr.mxu0 0.0
    %1004 = vmatpush1.msra.mxu0 0.0
    %1005 = vmatprep.subr.mxu0 0.0
    %1006 = vmatpush1.msra.mxu0 0.0
    %1007 = vmatprep.subr.mxu0 0.0
    %1008 = vmatpush1.msra.mxu0 0.0
    %1009 = vmatprep.subr.mxu0 0.0
    %1010 = vmatpush1.msra.mxu0 0.0
    %1011 = vmatprep.subr.mxu0 0.0
    %1012 = vmatpush1.msra.mxu0 0.0
    %1013 = vmatprep.subr.mxu0 0.0
    %1014 = vmatpush1.msra.mxu0 0.0
    %1015 = vmatprep.subr.mxu0 0.0
    %1016 = vmatpush1.msra.mxu0 0.0
    %1017 = vmatprep.subr.mxu0 0.0
    %1018 = vmatpush1.msra.mxu0 0.0
    %1019 = vmatprep.subr.mxu0 0.0
    %1020 = vmatpush1.msra.mxu0 0.0
    %1021 = vmatprep.subr.mxu0 0.0
    %1022 = vmatpush1.msra.mxu0 0.0
    %1023 = vmatprep.subr.mxu0 0.0
    %1024 = vmatpush1.msra.mxu0 0.0
    %1025 = vmatprep.subr.mxu0 0.0
    %1026 = vmatpush1.msra.mxu0 0.0
    %1027 = vmatprep.subr.mxu0 0.0
    %1028 = vmatpush1.msra.mxu0 0.0
    %1029 = vmatprep.subr.mxu0 0.0
    %1030 = vmatpush1.msra.mxu0 0.0
    %1031 = vmatprep.subr.mxu0 0.0
    %1032 = vmatpush1.msra.mxu0 0.0
    %1033 = vmatprep.subr.mxu0 0.0
    %1034 = vmatpush1.msra.mxu0 0.0
    %1035 = vmatprep.subr.mxu0 0.0
    %1036 = vmatpush1.msra.mxu0 0.0
    %1037 = vmatprep.subr.mxu0 0.0
    %1038 = vmatpush1.msra.mxu0 0.0
    %1039 = vmatprep.subr.mxu0 0.0
    %1040 = vmatpush1.msra.mxu0 0.0
    %1041 = vmatprep.subr.mxu0 0.0
    %1042 = vmatpush1.msra.mxu0 0.0
    %1043 = vmatprep.subr.mxu0 0.0
    %1044 = vmatpush1.msra.mxu0 0.0
    %1045 = vmatprep.subr.mxu0 0.0
    %1046 = vmatpush1.msra.mxu0 0.0
    %1047 = vmatprep.subr.mxu0 0.0
    %1048 = vmatpush1.msra.mxu0 0.0
    %1049 = vmatprep.subr.mxu0 0.0
    %1050 = vmatpush1.msra.mxu0 0.0
    %1051 = vmatprep.mubr.f32.mxu0 0.0
    %1052 = vmatmul.mubr.f32.gmra.mrb[0].mxu0 %v761
    %v1053 = vpop.f32.mrb[0].mxu0
    %v1054 = vadd.f32 %v527, %v1053
    %v1055 = vpop.f32.mrb[0].mxu0
    %1056 = vdwg.mxu0
    %1057 = vmatprep.subr.mxu0 0.0
    %1058 = vmatpush1.msra.mxu0 %v153
    %1059 = vmatprep.subr.mxu0 0.0
    %1060 = vmatpush1.msra.mxu0 %v154
    %1061 = vmatprep.subr.mxu0 0.0
    %1062 = vmatpush1.msra.mxu0 %v155
    %1063 = vmatprep.subr.mxu0 0.0
    %1064 = vmatpush1.msra.mxu0 %v156
    %1065 = vmatprep.subr.mxu0 0.0
    %1066 = vmatpush1.msra.mxu0 0.0
    %1067 = vmatprep.subr.mxu0 0.0
    %1068 = vmatpush1.msra.mxu0 0.0
    %1069 = vmatprep.subr.mxu0 0.0
    %1070 = vmatpush1.msra.mxu0 0.0
    %1071 = vmatprep.subr.mxu0 0.0
    %1072 = vmatpush1.msra.mxu0 0.0
    %1073 = vmatprep.subr.mxu0 0.0
    %1074 = vmatpush1.msra.mxu0 0.0
    %1075 = vmatprep.subr.mxu0 0.0
    %1076 = vmatpush1.msra.mxu0 0.0
    %1077 = vmatprep.subr.mxu0 0.0
    %1078 = vmatpush1.msra.mxu0 0.0
    %1079 = vmatprep.subr.mxu0 0.0
    %1080 = vmatpush1.msra.mxu0 0.0
    %1081 = vmatprep.subr.mxu0 0.0
    %1082 = vmatpush1.msra.mxu0 0.0
    %1083 = vmatprep.subr.mxu0 0.0
    %1084 = vmatpush1.msra.mxu0 0.0
    %1085 = vmatprep.subr.mxu0 0.0
    %1086 = vmatpush1.msra.mxu0 0.0
    %1087 = vmatprep.subr.mxu0 0.0
    %1088 = vmatpush1.msra.mxu0 0.0
    %1089 = vmatprep.subr.mxu0 0.0
    %1090 = vmatpush1.msra.mxu0 0.0
    %1091 = vmatprep.subr.mxu0 0.0
    %1092 = vmatpush1.msra.mxu0 0.0
    %1093 = vmatprep.subr.mxu0 0.0
    %1094 = vmatpush1.msra.mxu0 0.0
    %1095 = vmatprep.subr.mxu0 0.0
    %1096 = vmatpush1.msra.mxu0 0.0
    %1097 = vmatprep.subr.mxu0 0.0
    %1098 = vmatpush1.msra.mxu0 0.0
    %1099 = vmatprep.subr.mxu0 0.0
    %1100 = vmatpush1.msra.mxu0 0.0
    %1101 = vmatprep.subr.mxu0 0.0
    %1102 = vmatpush1.msra.mxu0 0.0
    %1103 = vmatprep.subr.mxu0 0.0
    %1104 = vmatpush1.msra.mxu0 0.0
    %1105 = vmatprep.subr.mxu0 0.0
    %1106 = vmatpush1.msra.mxu0 0.0
    %1107 = vmatprep.subr.mxu0 0.0
    %1108 = vmatpush1.msra.mxu0 0.0
    %1109 = vmatprep.subr.mxu0 0.0
    %1110 = vmatpush1.msra.mxu0 0.0
    %1111 = vmatprep.subr.mxu0 0.0
    %1112 = vmatpush1.msra.mxu0 0.0
    %1113 = vmatprep.subr.mxu0 0.0
    %1114 = vmatpush1.msra.mxu0 0.0
    %1115 = vmatprep.subr.mxu0 0.0
    %1116 = vmatpush1.msra.mxu0 0.0
    %1117 = vmatprep.subr.mxu0 0.0
    %1118 = vmatpush1.msra.mxu0 0.0
    %1119 = vmatprep.subr.mxu0 0.0
    %1120 = vmatpush1.msra.mxu0 0.0
    %1121 = vmatprep.mubr.f32.mxu0 0.0
    %1122 = vmatmul.mubr.f32.gmra.mrb[0].mxu0 %v688
    %v1123 = vpop.f32.mrb[0].mxu0
    %v1124 = vadd.f32 %v606, %v1123
    %v1125 = vpop.f32.mrb[0].mxu0
    %1126 = vdwg.mxu0
    %v1127 = vmul.f32 %v839, %v1124
    %v1128 = vadd.f32 %v1054, %v1127
    %v1129 = vtanh.pop %v1128
    %v1130 = vsub.f32 1.0, %v986
    %v1131 = vmul.f32 %v1130, %v1129
    %v1132 = vmul.f32 %v986, %v684
    %v1133 = vadd.f32 %v1131, %v1132
    %s1134 = scalar_lea.vmem %s0, 16
    %v1135 = vld [vmem:[%s1134] sm:$0xff]
    %v1137 = vsel %vm202, %v1133, 0
    %1139 = vmatprep.subr.mxu0 0.0
    %1140 = vmatpush1.msra.mxu0 %v143
    %1141 = vmatprep.subr.mxu0 0.0
    %1142 = vmatpush1.msra.mxu0 %v144
    %1143 = vmatprep.subr.mxu0 0.0
    %1144 = vmatpush1.msra.mxu0 %v145
    %1145 = vmatprep.subr.mxu0 0.0
    %1146 = vmatpush1.msra.mxu0 %v146
    %1147 = vmatprep.subr.mxu0 0.0
    %1148 = vmatpush1.msra.mxu0 0.0
    %1149 = vmatprep.subr.mxu0 0.0
    %1150 = vmatpush1.msra.mxu0 0.0
    %1151 = vmatprep.subr.mxu0 0.0
    %1152 = vmatpush1.msra.mxu0 0.0
    %1153 = vmatprep.subr.mxu0 0.0
    %1154 = vmatpush1.msra.mxu0 0.0
    %1155 = vmatprep.subr.mxu0 0.0
    %1156 = vmatpush1.msra.mxu0 0.0
    %1157 = vmatprep.subr.mxu0 0.0
    %1158 = vmatpush1.msra.mxu0 0.0
    %1159 = vmatprep.subr.mxu0 0.0
    %1160 = vmatpush1.msra.mxu0 0.0
    %1161 = vmatprep.subr.mxu0 0.0
    %1162 = vmatpush1.msra.mxu0 0.0
    %1163 = vmatprep.subr.mxu0 0.0
    %1164 = vmatpush1.msra.mxu0 0.0
    %1165 = vmatprep.subr.mxu0 0.0
    %1166 = vmatpush1.msra.mxu0 0.0
    %1167 = vmatprep.subr.mxu0 0.0
    %1168 = vmatpush1.msra.mxu0 0.0
    %1169 = vmatprep.subr.mxu0 0.0
    %1170 = vmatpush1.msra.mxu0 0.0
    %1171 = vmatprep.subr.mxu0 0.0
    %1172 = vmatpush1.msra.mxu0 0.0
    %1173 = vmatprep.subr.mxu0 0.0
    %1174 = vmatpush1.msra.mxu0 0.0
    %1175 = vmatprep.subr.mxu0 0.0
    %1176 = vmatpush1.msra.mxu0 0.0
    %1177 = vmatprep.subr.mxu0 0.0
    %1178 = vmatpush1.msra.mxu0 0.0
    %1179 = vmatprep.subr.mxu0 0.0
    %1180 = vmatpush1.msra.mxu0 0.0
    %1181 = vmatprep.subr.mxu0 0.0
    %1182 = vmatpush1.msra.mxu0 0.0
    %1183 = vmatprep.subr.mxu0 0.0
    %1184 = vmatpush1.msra.mxu0 0.0
    %1185 = vmatprep.subr.mxu0 0.0
    %1186 = vmatpush1.msra.mxu0 0.0
    %1187 = vmatprep.subr.mxu0 0.0
    %1188 = vmatpush1.msra.mxu0 0.0
    %1189 = vmatprep.subr.mxu0 0.0
    %1190 = vmatpush1.msra.mxu0 0.0
    %1191 = vmatprep.subr.mxu0 0.0
    %1192 = vmatpush1.msra.mxu0 0.0
    %1193 = vmatprep.subr.mxu0 0.0
    %1194 = vmatpush1.msra.mxu0 0.0
    %1195 = vmatprep.subr.mxu0 0.0
    %1196 = vmatpush1.msra.mxu0 0.0
    %1197 = vmatprep.subr.mxu0 0.0
    %1198 = vmatpush1.msra.mxu0 0.0
    %1199 = vmatprep.subr.mxu0 0.0
    %1200 = vmatpush1.msra.mxu0 0.0
    %1201 = vmatprep.subr.mxu0 0.0
    %1202 = vmatpush1.msra.mxu0 0.0
    %1203 = vmatprep.mubr.f32.mxu0 0.0
    %1204 = vmatmul.mubr.f32.gmra.mrb[0].mxu0 %v1137
    %v1205 = vpop.f32.mrb[0].mxu0
    %v1206 = vadd.f32 0.0, %v1205
    %v1207 = vpop.f32.mrb[0].mxu0
    %1208 = vdwg.mxu0
    %v1210 = vsel %vm276, %v1135, 0
    %1212 = vmatprep.subr.mxu0 0.0
    %1213 = vmatpush1.msra.mxu0 %v282
    %1214 = vmatprep.subr.mxu0 0.0
    %1215 = vmatpush1.msra.mxu0 0.0
    %1216 = vmatprep.subr.mxu0 0.0
    %1217 = vmatpush1.msra.mxu0 0.0
    %1218 = vmatprep.subr.mxu0 0.0
    %1219 = vmatpush1.msra.mxu0 0.0
    %1220 = vmatprep.subr.mxu0 0.0
    %1221 = vmatpush1.msra.mxu0 0.0
    %1222 = vmatprep.subr.mxu0 0.0
    %1223 = vmatpush1.msra.mxu0 0.0
    %1224 = vmatprep.subr.mxu0 0.0
    %1225 = vmatpush1.msra.mxu0 0.0
    %1226 = vmatprep.subr.mxu0 0.0
    %1227 = vmatpush1.msra.mxu0 0.0
    %1228 = vmatprep.subr.mxu0 0.0
    %1229 = vmatpush1.msra.mxu0 0.0
    %1230 = vmatprep.subr.mxu0 0.0
    %1231 = vmatpush1.msra.mxu0 0.0
    %1232 = vmatprep.subr.mxu0 0.0
    %1233 = vmatpush1.msra.mxu0 0.0
    %1234 = vmatprep.subr.mxu0 0.0
    %1235 = vmatpush1.msra.mxu0 0.0
    %1236 = vmatprep.subr.mxu0 0.0
    %1237 = vmatpush1.msra.mxu0 0.0
    %1238 = vmatprep.subr.mxu0 0.0
    %1239 = vmatpush1.msra.mxu0 0.0
    %1240 = vmatprep.subr.mxu0 0.0
    %1241 = vmatpush1.msra.mxu0 0.0
    %1242 = vmatprep.subr.mxu0 0.0
    %1243 = vmatpush1.msra.mxu0 0.0
    %1244 = vmatprep.subr.mxu0 0.0
    %1245 = vmatpush1.msra.mxu0 0.0
    %1246 = vmatprep.subr.mxu0 0.0
    %1247 = vmatpush1.msra.mxu0 0.0
    %1248 = vmatprep.subr.mxu0 0.0
    %1249 = vmatpush1.msra.mxu0 0.0
    %1250 = vmatprep.subr.mxu0 0.0
    %1251 = vmatpush1.msra.mxu0 0.0
    %1252 = vmatprep.subr.mxu0 0.0
    %1253 = vmatpush1.msra.mxu0 0.0
    %1254 = vmatprep.subr.mxu0 0.0
    %1255 = vmatpush1.msra.mxu0 0.0
    %1256 = vmatprep.subr.mxu0 0.0
    %1257 = vmatpush1.msra.mxu0 0.0
    %1258 = vmatprep.subr.mxu0 0.0
    %1259 = vmatpush1.msra.mxu0 0.0
    %1260 = vmatprep.subr.mxu0 0.0
    %1261 = vmatpush1.msra.mxu0 0.0
    %1262 = vmatprep.subr.mxu0 0.0
    %1263 = vmatpush1.msra.mxu0 0.0
    %1264 = vmatprep.subr.mxu0 0.0
    %1265 = vmatpush1.msra.mxu0 0.0
    %1266 = vmatprep.subr.mxu0 0.0
    %1267 = vmatpush1.msra.mxu0 0.0
    %1268 = vmatprep.subr.mxu0 0.0
    %1269 = vmatpush1.msra.mxu0 0.0
    %1270 = vmatprep.subr.mxu0 0.0
    %1271 = vmatpush1.msra.mxu0 0.0
    %1272 = vmatprep.subr.mxu0 0.0
    %1273 = vmatpush1.msra.mxu0 0.0
    %1274 = vmatprep.subr.mxu0 0.0
    %1275 = vmatpush1.msra.mxu0 0.0
    %1276 = vmatprep.mubr.f32.mxu0 0.0
    %1277 = vmatmul.mubr.f32.gmra.mrb[0].mxu0 %v1210
    %v1278 = vpop.f32.mrb[0].mxu0
    %v1279 = vadd.f32 %v1206, %v1278
    %v1280 = vpop.f32.mrb[0].mxu0
    %1281 = vdwg.mxu0
    %v1282 = vadd.f32 %v1279, %v358
    %v1283 = vxor.u32 %v1282, 2147483648
    %v1284 = vmul.f32 %v1283, 1.442695
    %v1285 = vpow.pop %v1284
    %v1286 = vadd.f32 %v1285, 1.0
    %v1287 = vrcp.pop %v1286
    %v1288 = vmul.f32 1.0, %v1287
    %1289 = vmatprep.subr.mxu0 0.0
    %1290 = vmatpush1.msra.mxu0 %v148
    %1291 = vmatprep.subr.mxu0 0.0
    %1292 = vmatpush1.msra.mxu0 %v149
    %1293 = vmatprep.subr.mxu0 0.0
    %1294 = vmatpush1.msra.mxu0 %v150
    %1295 = vmatprep.subr.mxu0 0.0
    %1296 = vmatpush1.msra.mxu0 %v151
    %1297 = vmatprep.subr.mxu0 0.0
    %1298 = vmatpush1.msra.mxu0 0.0
    %1299 = vmatprep.subr.mxu0 0.0
    %1300 = vmatpush1.msra.mxu0 0.0
    %1301 = vmatprep.subr.mxu0 0.0
    %1302 = vmatpush1.msra.mxu0 0.0
    %1303 = vmatprep.subr.mxu0 0.0
    %1304 = vmatpush1.msra.mxu0 0.0
    %1305 = vmatprep.subr.mxu0 0.0
    %1306 = vmatpush1.msra.mxu0 0.0
    %1307 = vmatprep.subr.mxu0 0.0
    %1308 = vmatpush1.msra.mxu0 0.0
    %1309 = vmatprep.subr.mxu0 0.0
    %1310 = vmatpush1.msra.mxu0 0.0
    %1311 = vmatprep.subr.mxu0 0.0
    %1312 = vmatpush1.msra.mxu0 0.0
    %1313 = vmatprep.subr.mxu0 0.0
    %1314 = vmatpush1.msra.mxu0 0.0
    %1315 = vmatprep.subr.mxu0 0.0
    %1316 = vmatpush1.msra.mxu0 0.0
    %1317 = vmatprep.subr.mxu0 0.0
    %1318 = vmatpush1.msra.mxu0 0.0
    %1319 = vmatprep.subr.mxu0 0.0
    %1320 = vmatpush1.msra.mxu0 0.0
    %1321 = vmatprep.subr.mxu0 0.0
    %1322 = vmatpush1.msra.mxu0 0.0
    %1323 = vmatprep.subr.mxu0 0.0
    %1324 = vmatpush1.msra.mxu0 0.0
    %1325 = vmatprep.subr.mxu0 0.0
    %1326 = vmatpush1.msra.mxu0 0.0
    %1327 = vmatprep.subr.mxu0 0.0
    %1328 = vmatpush1.msra.mxu0 0.0
    %1329 = vmatprep.subr.mxu0 0.0
    %1330 = vmatpush1.msra.mxu0 0.0
    %1331 = vmatprep.subr.mxu0 0.0
    %1332 = vmatpush1.msra.mxu0 0.0
    %1333 = vmatprep.subr.mxu0 0.0
    %1334 = vmatpush1.msra.mxu0 0.0
    %1335 = vmatprep.subr.mxu0 0.0
    %1336 = vmatpush1.msra.mxu0 0.0
    %1337 = vmatprep.subr.mxu0 0.0
    %1338 = vmatpush1.msra.mxu0 0.0
    %1339 = vmatprep.subr.mxu0 0.0
    %1340 = vmatpush1.msra.mxu0 0.0
    %1341 = vmatprep.subr.mxu0 0.0
    %1342 = vmatpush1.msra.mxu0 0.0
    %1343 = vmatprep.subr.mxu0 0.0
    %1344 = vmatpush1.msra.mxu0 0.0
    %1345 = vmatprep.subr.mxu0 0.0
    %1346 = vmatpush1.msra.mxu0 0.0
    %1347 = vmatprep.subr.mxu0 0.0
    %1348 = vmatpush1.msra.mxu0 0.0
    %1349 = vmatprep.subr.mxu0 0.0
    %1350 = vmatpush1.msra.mxu0 0.0
    %1351 = vmatprep.subr.mxu0 0.0
    %1352 = vmatpush1.msra.mxu0 0.0
    %1353 = vmatprep.mubr.f32.mxu0 0.0
    %1354 = vmatmul.mubr.f32.gmra.mrb[0].mxu0 %v1137
    %v1355 = vpop.f32.mrb[0].mxu0
    %v1356 = vadd.f32 0.0, %v1355
    %v1357 = vpop.f32.mrb[0].mxu0
    %1358 = vdwg.mxu0
    %1359 = vmatprep.subr.mxu0 0.0
    %1360 = vmatpush1.msra.mxu0 %v438
    %1361 = vmatprep.subr.mxu0 0.0
    %1362 = vmatpush1.msra.mxu0 0.0
    %1363 = vmatprep.subr.mxu0 0.0
    %1364 = vmatpush1.msra.mxu0 0.0
    %1365 = vmatprep.subr.mxu0 0.0
    %1366 = vmatpush1.msra.mxu0 0.0
    %1367 = vmatprep.subr.mxu0 0.0
    %1368 = vmatpush1.msra.mxu0 0.0
    %1369 = vmatprep.subr.mxu0 0.0
    %1370 = vmatpush1.msra.mxu0 0.0
    %1371 = vmatprep.subr.mxu0 0.0
    %1372 = vmatpush1.msra.mxu0 0.0
    %1373 = vmatprep.subr.mxu0 0.0
    %1374 = vmatpush1.msra.mxu0 0.0
    %1375 = vmatprep.subr.mxu0 0.0
    %1376 = vmatpush1.msra.mxu0 0.0
    %1377 = vmatprep.subr.mxu0 0.0
    %1378 = vmatpush1.msra.mxu0 0.0
    %1379 = vmatprep.subr.mxu0 0.0
    %1380 = vmatpush1.msra.mxu0 0.0
    %1381 = vmatprep.subr.mxu0 0.0
    %1382 = vmatpush1.msra.mxu0 0.0
    %1383 = vmatprep.subr.mxu0 0.0
    %1384 = vmatpush1.msra.mxu0 0.0
    %1385 = vmatprep.subr.mxu0 0.0
    %1386 = vmatpush1.msra.mxu0 0.0
    %1387 = vmatprep.subr.mxu0 0.0
    %1388 = vmatpush1.msra.mxu0 0.0
    %1389 = vmatprep.subr.mxu0 0.0
    %1390 = vmatpush1.msra.mxu0 0.0
    %1391 = vmatprep.subr.mxu0 0.0
    %1392 = vmatpush1.msra.mxu0 0.0
    %1393 = vmatprep.subr.mxu0 0.0
    %1394 = vmatpush1.msra.mxu0 0.0
    %1395 = vmatprep.subr.mxu0 0.0
    %1396 = vmatpush1.msra.mxu0 0.0
    %1397 = vmatprep.subr.mxu0 0.0
    %1398 = vmatpush1.msra.mxu0 0.0
    %1399 = vmatprep.subr.mxu0 0.0
    %1400 = vmatpush1.msra.mxu0 0.0
    %1401 = vmatprep.subr.mxu0 0.0
    %1402 = vmatpush1.msra.mxu0 0.0
    %1403 = vmatprep.subr.mxu0 0.0
    %1404 = vmatpush1.msra.mxu0 0.0
    %1405 = vmatprep.subr.mxu0 0.0
    %1406 = vmatpush1.msra.mxu0 0.0
    %1407 = vmatprep.subr.mxu0 0.0
    %1408 = vmatpush1.msra.mxu0 0.0
    %1409 = vmatprep.subr.mxu0 0.0
    %1410 = vmatpush1.msra.mxu0 0.0
    %1411 = vmatprep.subr.mxu0 0.0
    %1412 = vmatpush1.msra.mxu0 0.0
    %1413 = vmatprep.subr.mxu0 0.0
    %1414 = vmatpush1.msra.mxu0 0.0
    %1415 = vmatprep.subr.mxu0 0.0
    %1416 = vmatpush1.msra.mxu0 0.0
    %1417 = vmatprep.subr.mxu0 0.0
    %1418 = vmatpush1.msra.mxu0 0.0
    %1419 = vmatprep.subr.mxu0 0.0
    %1420 = vmatpush1.msra.mxu0 0.0
    %1421 = vmatprep.subr.mxu0 0.0
    %1422 = vmatpush1.msra.mxu0 0.0
    %1423 = vmatprep.mubr.f32.mxu0 0.0
    %1424 = vmatmul.mubr.f32.gmra.mrb[0].mxu0 %v1210
    %v1425 = vpop.f32.mrb[0].mxu0
    %v1426 = vadd.f32 %v1356, %v1425
    %v1427 = vpop.f32.mrb[0].mxu0
    %1428 = vdwg.mxu0
    %v1429 = vadd.f32 %v1426, %v514
    %v1430 = vxor.u32 %v1429, 2147483648
    %v1431 = vmul.f32 %v1430, 1.442695
    %v1432 = vpow.pop %v1431
    %v1433 = vadd.f32 %v1432, 1.0
    %v1434 = vrcp.pop %v1433
    %v1435 = vmul.f32 1.0, %v1434
    %1436 = vmatprep.subr.mxu0 0.0
    %1437 = vmatpush1.msra.mxu0 %v530
    %1438 = vmatprep.subr.mxu0 0.0
    %1439 = vmatpush1.msra.mxu0 0.0
    %1440 = vmatprep.subr.mxu0 0.0
    %1441 = vmatpush1.msra.mxu0 0.0
    %1442 = vmatprep.subr.mxu0 0.0
    %1443 = vmatpush1.msra.mxu0 0.0
    %1444 = vmatprep.subr.mxu0 0.0
    %1445 = vmatpush1.msra.mxu0 0.0
    %1446 = vmatprep.subr.mxu0 0.0
    %1447 = vmatpush1.msra.mxu0 0.0
    %1448 = vmatprep.subr.mxu0 0.0
    %1449 = vmatpush1.msra.mxu0 0.0
    %1450 = vmatprep.subr.mxu0 0.0
    %1451 = vmatpush1.msra.mxu0 0.0
    %1452 = vmatprep.subr.mxu0 0.0
    %1453 = vmatpush1.msra.mxu0 0.0
    %1454 = vmatprep.subr.mxu0 0.0
    %1455 = vmatpush1.msra.mxu0 0.0
    %1456 = vmatprep.subr.mxu0 0.0
    %1457 = vmatpush1.msra.mxu0 0.0
    %1458 = vmatprep.subr.mxu0 0.0
    %1459 = vmatpush1.msra.mxu0 0.0
    %1460 = vmatprep.subr.mxu0 0.0
    %1461 = vmatpush1.msra.mxu0 0.0
    %1462 = vmatprep.subr.mxu0 0.0
    %1463 = vmatpush1.msra.mxu0 0.0
    %1464 = vmatprep.subr.mxu0 0.0
    %1465 = vmatpush1.msra.mxu0 0.0
    %1466 = vmatprep.subr.mxu0 0.0
    %1467 = vmatpush1.msra.mxu0 0.0
    %1468 = vmatprep.subr.mxu0 0.0
    %1469 = vmatpush1.msra.mxu0 0.0
    %1470 = vmatprep.subr.mxu0 0.0
    %1471 = vmatpush1.msra.mxu0 0.0
    %1472 = vmatprep.subr.mxu0 0.0
    %1473 = vmatpush1.msra.mxu0 0.0
    %1474 = vmatprep.subr.mxu0 0.0
    %1475 = vmatpush1.msra.mxu0 0.0
    %1476 = vmatprep.subr.mxu0 0.0
    %1477 = vmatpush1.msra.mxu0 0.0
    %1478 = vmatprep.subr.mxu0 0.0
    %1479 = vmatpush1.msra.mxu0 0.0
    %1480 = vmatprep.subr.mxu0 0.0
    %1481 = vmatpush1.msra.mxu0 0.0
    %1482 = vmatprep.subr.mxu0 0.0
    %1483 = vmatpush1.msra.mxu0 0.0
    %1484 = vmatprep.subr.mxu0 0.0
    %1485 = vmatpush1.msra.mxu0 0.0
    %1486 = vmatprep.subr.mxu0 0.0
    %1487 = vmatpush1.msra.mxu0 0.0
    %1488 = vmatprep.subr.mxu0 0.0
    %1489 = vmatpush1.msra.mxu0 0.0
    %1490 = vmatprep.subr.mxu0 0.0
    %1491 = vmatpush1.msra.mxu0 0.0
    %1492 = vmatprep.subr.mxu0 0.0
    %1493 = vmatpush1.msra.mxu0 0.0
    %1494 = vmatprep.subr.mxu0 0.0
    %1495 = vmatpush1.msra.mxu0 0.0
    %1496 = vmatprep.subr.mxu0 0.0
    %1497 = vmatpush1.msra.mxu0 0.0
    %1498 = vmatprep.subr.mxu0 0.0
    %1499 = vmatpush1.msra.mxu0 0.0
    %1500 = vmatprep.mubr.f32.mxu0 0.0
    %1501 = vmatmul.mubr.f32.gmra.mrb[0].mxu0 %v1210
    %v1502 = vpop.f32.mrb[0].mxu0
    %v1503 = vadd.f32 %v527, %v1502
    %v1504 = vpop.f32.mrb[0].mxu0
    %1505 = vdwg.mxu0
    %1506 = vmatprep.subr.mxu0 0.0
    %1507 = vmatpush1.msra.mxu0 %v153
    %1508 = vmatprep.subr.mxu0 0.0
    %1509 = vmatpush1.msra.mxu0 %v154
    %1510 = vmatprep.subr.mxu0 0.0
    %1511 = vmatpush1.msra.mxu0 %v155
    %1512 = vmatprep.subr.mxu0 0.0
    %1513 = vmatpush1.msra.mxu0 %v156
    %1514 = vmatprep.subr.mxu0 0.0
    %1515 = vmatpush1.msra.mxu0 0.0
    %1516 = vmatprep.subr.mxu0 0.0
    %1517 = vmatpush1.msra.mxu0 0.0
    %1518 = vmatprep.subr.mxu0 0.0
    %1519 = vmatpush1.msra.mxu0 0.0
    %1520 = vmatprep.subr.mxu0 0.0
    %1521 = vmatpush1.msra.mxu0 0.0
    %1522 = vmatprep.subr.mxu0 0.0
    %1523 = vmatpush1.msra.mxu0 0.0
    %1524 = vmatprep.subr.mxu0 0.0
    %1525 = vmatpush1.msra.mxu0 0.0
    %1526 = vmatprep.subr.mxu0 0.0
    %1527 = vmatpush1.msra.mxu0 0.0
    %1528 = vmatprep.subr.mxu0 0.0
    %1529 = vmatpush1.msra.mxu0 0.0
    %1530 = vmatprep.subr.mxu0 0.0
    %1531 = vmatpush1.msra.mxu0 0.0
    %1532 = vmatprep.subr.mxu0 0.0
    %1533 = vmatpush1.msra.mxu0 0.0
    %1534 = vmatprep.subr.mxu0 0.0
    %1535 = vmatpush1.msra.mxu0 0.0
    %1536 = vmatprep.subr.mxu0 0.0
    %1537 = vmatpush1.msra.mxu0 0.0
    %1538 = vmatprep.subr.mxu0 0.0
    %1539 = vmatpush1.msra.mxu0 0.0
    %1540 = vmatprep.subr.mxu0 0.0
    %1541 = vmatpush1.msra.mxu0 0.0
    %1542 = vmatprep.subr.mxu0 0.0
    %1543 = vmatpush1.msra.mxu0 0.0
    %1544 = vmatprep.subr.mxu0 0.0
    %1545 = vmatpush1.msra.mxu0 0.0
    %1546 = vmatprep.subr.mxu0 0.0
    %1547 = vmatpush1.msra.mxu0 0.0
    %1548 = vmatprep.subr.mxu0 0.0
    %1549 = vmatpush1.msra.mxu0 0.0
    %1550 = vmatprep.subr.mxu0 0.0
    %1551 = vmatpush1.msra.mxu0 0.0
    %1552 = vmatprep.subr.mxu0 0.0
    %1553 = vmatpush1.msra.mxu0 0.0
    %1554 = vmatprep.subr.mxu0 0.0
    %1555 = vmatpush1.msra.mxu0 0.0
    %1556 = vmatprep.subr.mxu0 0.0
    %1557 = vmatpush1.msra.mxu0 0.0
    %1558 = vmatprep.subr.mxu0 0.0
    %1559 = vmatpush1.msra.mxu0 0.0
    %1560 = vmatprep.subr.mxu0 0.0
    %1561 = vmatpush1.msra.mxu0 0.0
    %1562 = vmatprep.subr.mxu0 0.0
    %1563 = vmatpush1.msra.mxu0 0.0
    %1564 = vmatprep.subr.mxu0 0.0
    %1565 = vmatpush1.msra.mxu0 0.0
    %1566 = vmatprep.subr.mxu0 0.0
    %1567 = vmatpush1.msra.mxu0 0.0
    %1568 = vmatprep.subr.mxu0 0.0
    %1569 = vmatpush1.msra.mxu0 0.0
    %1570 = vmatprep.mubr.f32.mxu0 0.0
    %1571 = vmatmul.mubr.f32.gmra.mrb[0].mxu0 %v1137
    %v1572 = vpop.f32.mrb[0].mxu0
    %v1573 = vadd.f32 %v606, %v1572
    %v1574 = vpop.f32.mrb[0].mxu0
    %1575 = vdwg.mxu0
    %v1576 = vmul.f32 %v1288, %v1573
    %v1577 = vadd.f32 %v1503, %v1576
    %v1578 = vtanh.pop %v1577
    %v1579 = vsub.f32 1.0, %v1435
    %v1580 = vmul.f32 %v1579, %v1578
    %v1581 = vmul.f32 %v1435, %v1133
    %v1582 = vadd.f32 %v1580, %v1581
    %s1583 = scalar_lea.vmem %s0, 24
    %v1584 = vld [vmem:[%s1583] sm:$0xff]
    %v1586 = vsel %vm202, %v1582, 0
    %1588 = vmatprep.subr.mxu0 0.0
    %1589 = vmatpush1.msra.mxu0 %v143
    %1590 = vmatprep.subr.mxu0 0.0
    %1591 = vmatpush1.msra.mxu0 %v144
    %1592 = vmatprep.subr.mxu0 0.0
    %1593 = vmatpush1.msra.mxu0 %v145
    %1594 = vmatprep.subr.mxu0 0.0
    %1595 = vmatpush1.msra.mxu0 %v146
    %1596 = vmatprep.subr.mxu0 0.0
    %1597 = vmatpush1.msra.mxu0 0.0
    %1598 = vmatprep.subr.mxu0 0.0
    %1599 = vmatpush1.msra.mxu0 0.0
    %1600 = vmatprep.subr.mxu0 0.0
    %1601 = vmatpush1.msra.mxu0 0.0
    %1602 = vmatprep.subr.mxu0 0.0
    %1603 = vmatpush1.msra.mxu0 0.0
    %1604 = vmatprep.subr.mxu0 0.0
    %1605 = vmatpush1.msra.mxu0 0.0
    %1606 = vmatprep.subr.mxu0 0.0
    %1607 = vmatpush1.msra.mxu0 0.0
    %1608 = vmatprep.subr.mxu0 0.0
    %1609 = vmatpush1.msra.mxu0 0.0
    %1610 = vmatprep.subr.mxu0 0.0
    %1611 = vmatpush1.msra.mxu0 0.0
    %1612 = vmatprep.subr.mxu0 0.0
    %1613 = vmatpush1.msra.mxu0 0.0
    %1614 = vmatprep.subr.mxu0 0.0
    %1615 = vmatpush1.msra.mxu0 0.0
    %1616 = vmatprep.subr.mxu0 0.0
    %1617 = vmatpush1.msra.mxu0 0.0
    %1618 = vmatprep.subr.mxu0 0.0
    %1619 = vmatpush1.msra.mxu0 0.0
    %1620 = vmatprep.subr.mxu0 0.0
    %1621 = vmatpush1.msra.mxu0 0.0
    %1622 = vmatprep.subr.mxu0 0.0
    %1623 = vmatpush1.msra.mxu0 0.0
    %1624 = vmatprep.subr.mxu0 0.0
    %1625 = vmatpush1.msra.mxu0 0.0
    %1626 = vmatprep.subr.mxu0 0.0
    %1627 = vmatpush1.msra.mxu0 0.0
    %1628 = vmatprep.subr.mxu0 0.0
    %1629 = vmatpush1.msra.mxu0 0.0
    %1630 = vmatprep.subr.mxu0 0.0
    %1631 = vmatpush1.msra.mxu0 0.0
    %1632 = vmatprep.subr.mxu0 0.0
    %1633 = vmatpush1.msra.mxu0 0.0
    %1634 = vmatprep.subr.mxu0 0.0
    %1635 = vmatpush1.msra.mxu0 0.0
    %1636 = vmatprep.subr.mxu0 0.0
    %1637 = vmatpush1.msra.mxu0 0.0
    %1638 = vmatprep.subr.mxu0 0.0
    %1639 = vmatpush1.msra.mxu0 0.0
    %1640 = vmatprep.subr.mxu0 0.0
    %1641 = vmatpush1.msra.mxu0 0.0
    %1642 = vmatprep.subr.mxu0 0.0
    %1643 = vmatpush1.msra.mxu0 0.0
    %1644 = vmatprep.subr.mxu0 0.0
    %1645 = vmatpush1.msra.mxu0 0.0
    %1646 = vmatprep.subr.mxu0 0.0
    %1647 = vmatpush1.msra.mxu0 0.0
    %1648 = vmatprep.subr.mxu0 0.0
    %1649 = vmatpush1.msra.mxu0 0.0
    %1650 = vmatprep.subr.mxu0 0.0
    %1651 = vmatpush1.msra.mxu0 0.0
    %1652 = vmatprep.mubr.f32.mxu0 0.0
    %1653 = vmatmul.mubr.f32.gmra.mrb[0].mxu0 %v1586
    %v1654 = vpop.f32.mrb[0].mxu0
    %v1655 = vadd.f32 0.0, %v1654
    %v1656 = vpop.f32.mrb[0].mxu0
    %1657 = vdwg.mxu0
    %v1659 = vsel %vm276, %v1584, 0
    %1661 = vmatprep.subr.mxu0 0.0
    %1662 = vmatpush1.msra.mxu0 %v282
    %1663 = vmatprep.subr.mxu0 0.0
    %1664 = vmatpush1.msra.mxu0 0.0
    %1665 = vmatprep.subr.mxu0 0.0
    %1666 = vmatpush1.msra.mxu0 0.0
    %1667 = vmatprep.subr.mxu0 0.0
    %1668 = vmatpush1.msra.mxu0 0.0
    %1669 = vmatprep.subr.mxu0 0.0
    %1670 = vmatpush1.msra.mxu0 0.0
    %1671 = vmatprep.subr.mxu0 0.0
    %1672 = vmatpush1.msra.mxu0 0.0
    %1673 = vmatprep.subr.mxu0 0.0
    %1674 = vmatpush1.msra.mxu0 0.0
    %1675 = vmatprep.subr.mxu0 0.0
    %1676 = vmatpush1.msra.mxu0 0.0
    %1677 = vmatprep.subr.mxu0 0.0
    %1678 = vmatpush1.msra.mxu0 0.0
    %1679 = vmatprep.subr.mxu0 0.0
    %1680 = vmatpush1.msra.mxu0 0.0
    %1681 = vmatprep.subr.mxu0 0.0
    %1682 = vmatpush1.msra.mxu0 0.0
    %1683 = vmatprep.subr.mxu0 0.0
    %1684 = vmatpush1.msra.mxu0 0.0
    %1685 = vmatprep.subr.mxu0 0.0
    %1686 = vmatpush1.msra.mxu0 0.0
    %1687 = vmatprep.subr.mxu0 0.0
    %1688 = vmatpush1.msra.mxu0 0.0
    %1689 = vmatprep.subr.mxu0 0.0
    %1690 = vmatpush1.msra.mxu0 0.0
    %1691 = vmatprep.subr.mxu0 0.0
    %1692 = vmatpush1.msra.mxu0 0.0
    %1693 = vmatprep.subr.mxu0 0.0
    %1694 = vmatpush1.msra.mxu0 0.0
    %1695 = vmatprep.subr.mxu0 0.0
    %1696 = vmatpush1.msra.mxu0 0.0
    %1697 = vmatprep.subr.mxu0 0.0
    %1698 = vmatpush1.msra.mxu0 0.0
    %1699 = vmatprep.subr.mxu0 0.0
    %1700 = vmatpush1.msra.mxu0 0.0
    %1701 = vmatprep.subr.mxu0 0.0
    %1702 = vmatpush1.msra.mxu0 0.0
    %1703 = vmatprep.subr.mxu0 0.0
    %1704 = vmatpush1.msra.mxu0 0.0
    %1705 = vmatprep.subr.mxu0 0.0
    %1706 = vmatpush1.msra.mxu0 0.0
    %1707 = vmatprep.subr.mxu0 0.0
    %1708 = vmatpush1.msra.mxu0 0.0
    %1709 = vmatprep.subr.mxu0 0.0
    %1710 = vmatpush1.msra.mxu0 0.0
    %1711 = vmatprep.subr.mxu0 0.0
    %1712 = vmatpush1.msra.mxu0 0.0
    %1713 = vmatprep.subr.mxu0 0.0
    %1714 = vmatpush1.msra.mxu0 0.0
    %1715 = vmatprep.subr.mxu0 0.0
    %1716 = vmatpush1.msra.mxu0 0.0
    %1717 = vmatprep.subr.mxu0 0.0
    %1718 = vmatpush1.msra.mxu0 0.0
    %1719 = vmatprep.subr.mxu0 0.0
    %1720 = vmatpush1.msra.mxu0 0.0
    %1721 = vmatprep.subr.mxu0 0.0
    %1722 = vmatpush1.msra.mxu0 0.0
    %1723 = vmatprep.subr.mxu0 0.0
    %1724 = vmatpush1.msra.mxu0 0.0
    %1725 = vmatprep.mubr.f32.mxu0 0.0
    %1726 = vmatmul.mubr.f32.gmra.mrb[0].mxu0 %v1659
    %v1727 = vpop.f32.mrb[0].mxu0
    %v1728 = vadd.f32 %v1655, %v1727
    %v1729 = vpop.f32.mrb[0].mxu0
    %1730 = vdwg.mxu0
    %v1731 = vadd.f32 %v1728, %v358
    %v1732 = vxor.u32 %v1731, 2147483648
    %v1733 = vmul.f32 %v1732, 1.442695
    %v1734 = vpow.pop %v1733
    %v1735 = vadd.f32 %v1734, 1.0
    %v1736 = vrcp.pop %v1735
    %v1737 = vmul.f32 1.0, %v1736
    %1738 = vmatprep.subr.mxu0 0.0
    %1739 = vmatpush1.msra.mxu0 %v148
    %1740 = vmatprep.subr.mxu0 0.0
    %1741 = vmatpush1.msra.mxu0 %v149
    %1742 = vmatprep.subr.mxu0 0.0
    %1743 = vmatpush1.msra.mxu0 %v150
    %1744 = vmatprep.subr.mxu0 0.0
    %1745 = vmatpush1.msra.mxu0 %v151
    %1746 = vmatprep.subr.mxu0 0.0
    %1747 = vmatpush1.msra.mxu0 0.0
    %1748 = vmatprep.subr.mxu0 0.0
    %1749 = vmatpush1.msra.mxu0 0.0
    %1750 = vmatprep.subr.mxu0 0.0
    %1751 = vmatpush1.msra.mxu0 0.0
    %1752 = vmatprep.subr.mxu0 0.0
    %1753 = vmatpush1.msra.mxu0 0.0
    %1754 = vmatprep.subr.mxu0 0.0
    %1755 = vmatpush1.msra.mxu0 0.0
    %1756 = vmatprep.subr.mxu0 0.0
    %1757 = vmatpush1.msra.mxu0 0.0
    %1758 = vmatprep.subr.mxu0 0.0
    %1759 = vmatpush1.msra.mxu0 0.0
    %1760 = vmatprep.subr.mxu0 0.0
    %1761 = vmatpush1.msra.mxu0 0.0
    %1762 = vmatprep.subr.mxu0 0.0
    %1763 = vmatpush1.msra.mxu0 0.0
    %1764 = vmatprep.subr.mxu0 0.0
    %1765 = vmatpush1.msra.mxu0 0.0
    %1766 = vmatprep.subr.mxu0 0.0
    %1767 = vmatpush1.msra.mxu0 0.0
    %1768 = vmatprep.subr.mxu0 0.0
    %1769 = vmatpush1.msra.mxu0 0.0
    %1770 = vmatprep.subr.mxu0 0.0
    %1771 = vmatpush1.msra.mxu0 0.0
    %1772 = vmatprep.subr.mxu0 0.0
    %1773 = vmatpush1.msra.mxu0 0.0
    %1774 = vmatprep.subr.mxu0 0.0
    %1775 = vmatpush1.msra.mxu0 0.0
    %1776 = vmatprep.subr.mxu0 0.0
    %1777 = vmatpush1.msra.mxu0 0.0
    %1778 = vmatprep.subr.mxu0 0.0
    %1779 = vmatpush1.msra.mxu0 0.0
    %1780 = vmatprep.subr.mxu0 0.0
    %1781 = vmatpush1.msra.mxu0 0.0
    %1782 = vmatprep.subr.mxu0 0.0
    %1783 = vmatpush1.msra.mxu0 0.0
    %1784 = vmatprep.subr.mxu0 0.0
    %1785 = vmatpush1.msra.mxu0 0.0
    %1786 = vmatprep.subr.mxu0 0.0
    %1787 = vmatpush1.msra.mxu0 0.0
    %1788 = vmatprep.subr.mxu0 0.0
    %1789 = vmatpush1.msra.mxu0 0.0
    %1790 = vmatprep.subr.mxu0 0.0
    %1791 = vmatpush1.msra.mxu0 0.0
    %1792 = vmatprep.subr.mxu0 0.0
    %1793 = vmatpush1.msra.mxu0 0.0
    %1794 = vmatprep.subr.mxu0 0.0
    %1795 = vmatpush1.msra.mxu0 0.0
    %1796 = vmatprep.subr.mxu0 0.0
    %1797 = vmatpush1.msra.mxu0 0.0
    %1798 = vmatprep.subr.mxu0 0.0
    %1799 = vmatpush1.msra.mxu0 0.0
    %1800 = vmatprep.subr.mxu0 0.0
    %1801 = vmatpush1.msra.mxu0 0.0
    %1802 = vmatprep.mubr.f32.mxu0 0.0
    %1803 = vmatmul.mubr.f32.gmra.mrb[0].mxu0 %v1586
    %v1804 = vpop.f32.mrb[0].mxu0
    %v1805 = vadd.f32 0.0, %v1804
    %v1806 = vpop.f32.mrb[0].mxu0
    %1807 = vdwg.mxu0
    %1808 = vmatprep.subr.mxu0 0.0
    %1809 = vmatpush1.msra.mxu0 %v438
    %1810 = vmatprep.subr.mxu0 0.0
    %1811 = vmatpush1.msra.mxu0 0.0
    %1812 = vmatprep.subr.mxu0 0.0
    %1813 = vmatpush1.msra.mxu0 0.0
    %1814 = vmatprep.subr.mxu0 0.0
    %1815 = vmatpush1.msra.mxu0 0.0
    %1816 = vmatprep.subr.mxu0 0.0
    %1817 = vmatpush1.msra.mxu0 0.0
    %1818 = vmatprep.subr.mxu0 0.0
    %1819 = vmatpush1.msra.mxu0 0.0
    %1820 = vmatprep.subr.mxu0 0.0
    %1821 = vmatpush1.msra.mxu0 0.0
    %1822 = vmatprep.subr.mxu0 0.0
    %1823 = vmatpush1.msra.mxu0 0.0
    %1824 = vmatprep.subr.mxu0 0.0
    %1825 = vmatpush1.msra.mxu0 0.0
    %1826 = vmatprep.subr.mxu0 0.0
    %1827 = vmatpush1.msra.mxu0 0.0
    %1828 = vmatprep.subr.mxu0 0.0
    %1829 = vmatpush1.msra.mxu0 0.0
    %1830 = vmatprep.subr.mxu0 0.0
    %1831 = vmatpush1.msra.mxu0 0.0
    %1832 = vmatprep.subr.mxu0 0.0
    %1833 = vmatpush1.msra.mxu0 0.0
    %1834 = vmatprep.subr.mxu0 0.0
    %1835 = vmatpush1.msra.mxu0 0.0
    %1836 = vmatprep.subr.mxu0 0.0
    %1837 = vmatpush1.msra.mxu0 0.0
    %1838 = vmatprep.subr.mxu0 0.0
    %1839 = vmatpush1.msra.mxu0 0.0
    %1840 = vmatprep.subr.mxu0 0.0
    %1841 = vmatpush1.msra.mxu0 0.0
    %1842 = vmatprep.subr.mxu0 0.0
    %1843 = vmatpush1.msra.mxu0 0.0
    %1844 = vmatprep.subr.mxu0 0.0
    %1845 = vmatpush1.msra.mxu0 0.0
    %1846 = vmatprep.subr.mxu0 0.0
    %1847 = vmatpush1.msra.mxu0 0.0
    %1848 = vmatprep.subr.mxu0 0.0
    %1849 = vmatpush1.msra.mxu0 0.0
    %1850 = vmatprep.subr.mxu0 0.0
    %1851 = vmatpush1.msra.mxu0 0.0
    %1852 = vmatprep.subr.mxu0 0.0
    %1853 = vmatpush1.msra.mxu0 0.0
    %1854 = vmatprep.subr.mxu0 0.0
    %1855 = vmatpush1.msra.mxu0 0.0
    %1856 = vmatprep.subr.mxu0 0.0
    %1857 = vmatpush1.msra.mxu0 0.0
    %1858 = vmatprep.subr.mxu0 0.0
    %1859 = vmatpush1.msra.mxu0 0.0
    %1860 = vmatprep.subr.mxu0 0.0
    %1861 = vmatpush1.msra.mxu0 0.0
    %1862 = vmatprep.subr.mxu0 0.0
    %1863 = vmatpush1.msra.mxu0 0.0
    %1864 = vmatprep.subr.mxu0 0.0
    %1865 = vmatpush1.msra.mxu0 0.0
    %1866 = vmatprep.subr.mxu0 0.0
    %1867 = vmatpush1.msra.mxu0 0.0
    %1868 = vmatprep.subr.mxu0 0.0
    %1869 = vmatpush1.msra.mxu0 0.0
    %1870 = vmatprep.subr.mxu0 0.0
    %1871 = vmatpush1.msra.mxu0 0.0
    %1872 = vmatprep.mubr.f32.mxu0 0.0
    %1873 = vmatmul.mubr.f32.gmra.mrb[0].mxu0 %v1659
    %v1874 = vpop.f32.mrb[0].mxu0
    %v1875 = vadd.f32 %v1805, %v1874
    %v1876 = vpop.f32.mrb[0].mxu0
    %1877 = vdwg.mxu0
    %v1878 = vadd.f32 %v1875, %v514
    %v1879 = vxor.u32 %v1878, 2147483648
    %v1880 = vmul.f32 %v1879, 1.442695
    %v1881 = vpow.pop %v1880
    %v1882 = vadd.f32 %v1881, 1.0
    %v1883 = vrcp.pop %v1882
    %v1884 = vmul.f32 1.0, %v1883
    %1885 = vmatprep.subr.mxu0 0.0
    %1886 = vmatpush1.msra.mxu0 %v530
    %1887 = vmatprep.subr.mxu0 0.0
    %1888 = vmatpush1.msra.mxu0 0.0
    %1889 = vmatprep.subr.mxu0 0.0
    %1890 = vmatpush1.msra.mxu0 0.0
    %1891 = vmatprep.subr.mxu0 0.0
    %1892 = vmatpush1.msra.mxu0 0.0
    %1893 = vmatprep.subr.mxu0 0.0
    %1894 = vmatpush1.msra.mxu0 0.0
    %1895 = vmatprep.subr.mxu0 0.0
    %1896 = vmatpush1.msra.mxu0 0.0
    %1897 = vmatprep.subr.mxu0 0.0
    %1898 = vmatpush1.msra.mxu0 0.0
    %1899 = vmatprep.subr.mxu0 0.0
    %1900 = vmatpush1.msra.mxu0 0.0
    %1901 = vmatprep.subr.mxu0 0.0
    %1902 = vmatpush1.msra.mxu0 0.0
    %1903 = vmatprep.subr.mxu0 0.0
    %1904 = vmatpush1.msra.mxu0 0.0
    %1905 = vmatprep.subr.mxu0 0.0
    %1906 = vmatpush1.msra.mxu0 0.0
    %1907 = vmatprep.subr.mxu0 0.0
    %1908 = vmatpush1.msra.mxu0 0.0
    %1909 = vmatprep.subr.mxu0 0.0
    %1910 = vmatpush1.msra.mxu0 0.0
    %1911 = vmatprep.subr.mxu0 0.0
    %1912 = vmatpush1.msra.mxu0 0.0
    %1913 = vmatprep.subr.mxu0 0.0
    %1914 = vmatpush1.msra.mxu0 0.0
    %1915 = vmatprep.subr.mxu0 0.0
    %1916 = vmatpush1.msra.mxu0 0.0
    %1917 = vmatprep.subr.mxu0 0.0
    %1918 = vmatpush1.msra.mxu0 0.0
    %1919 = vmatprep.subr.mxu0 0.0
    %1920 = vmatpush1.msra.mxu0 0.0
    %1921 = vmatprep.subr.mxu0 0.0
    %1922 = vmatpush1.msra.mxu0 0.0
    %1923 = vmatprep.subr.mxu0 0.0
    %1924 = vmatpush1.msra.mxu0 0.0
    %1925 = vmatprep.subr.mxu0 0.0
    %1926 = vmatpush1.msra.mxu0 0.0
    %1927 = vmatprep.subr.mxu0 0.0
    %1928 = vmatpush1.msra.mxu0 0.0
    %1929 = vmatprep.subr.mxu0 0.0
    %1930 = vmatpush1.msra.mxu0 0.0
    %1931 = vmatprep.subr.mxu0 0.0
    %1932 = vmatpush1.msra.mxu0 0.0
    %1933 = vmatprep.subr.mxu0 0.0
    %1934 = vmatpush1.msra.mxu0 0.0
    %1935 = vmatprep.subr.mxu0 0.0
    %1936 = vmatpush1.msra.mxu0 0.0
    %1937 = vmatprep.subr.mxu0 0.0
    %1938 = vmatpush1.msra.mxu0 0.0
    %1939 = vmatprep.subr.mxu0 0.0
    %1940 = vmatpush1.msra.mxu0 0.0
    %1941 = vmatprep.subr.mxu0 0.0
    %1942 = vmatpush1.msra.mxu0 0.0
    %1943 = vmatprep.subr.mxu0 0.0
    %1944 = vmatpush1.msra.mxu0 0.0
    %1945 = vmatprep.subr.mxu0 0.0
    %1946 = vmatpush1.msra.mxu0 0.0
    %1947 = vmatprep.subr.mxu0 0.0
    %1948 = vmatpush1.msra.mxu0 0.0
    %1949 = vmatprep.mubr.f32.mxu0 0.0
    %1950 = vmatmul.mubr.f32.gmra.mrb[0].mxu0 %v1659
    %v1951 = vpop.f32.mrb[0].mxu0
    %v1952 = vadd.f32 %v527, %v1951
    %v1953 = vpop.f32.mrb[0].mxu0
    %1954 = vdwg.mxu0
    %1955 = vmatprep.subr.mxu0 0.0
    %1956 = vmatpush1.msra.mxu0 %v153
    %1957 = vmatprep.subr.mxu0 0.0
    %1958 = vmatpush1.msra.mxu0 %v154
    %1959 = vmatprep.subr.mxu0 0.0
    %1960 = vmatpush1.msra.mxu0 %v155
    %1961 = vmatprep.subr.mxu0 0.0
    %1962 = vmatpush1.msra.mxu0 %v156
    %1963 = vmatprep.subr.mxu0 0.0
    %1964 = vmatpush1.msra.mxu0 0.0
    %1965 = vmatprep.subr.mxu0 0.0
    %1966 = vmatpush1.msra.mxu0 0.0
    %1967 = vmatprep.subr.mxu0 0.0
    %1968 = vmatpush1.msra.mxu0 0.0
    %1969 = vmatprep.subr.mxu0 0.0
    %1970 = vmatpush1.msra.mxu0 0.0
    %1971 = vmatprep.subr.mxu0 0.0
    %1972 = vmatpush1.msra.mxu0 0.0
    %1973 = vmatprep.subr.mxu0 0.0
    %1974 = vmatpush1.msra.mxu0 0.0
    %1975 = vmatprep.subr.mxu0 0.0
    %1976 = vmatpush1.msra.mxu0 0.0
    %1977 = vmatprep.subr.mxu0 0.0
    %1978 = vmatpush1.msra.mxu0 0.0
    %1979 = vmatprep.subr.mxu0 0.0
    %1980 = vmatpush1.msra.mxu0 0.0
    %1981 = vmatprep.subr.mxu0 0.0
    %1982 = vmatpush1.msra.mxu0 0.0
    %1983 = vmatprep.subr.mxu0 0.0
    %1984 = vmatpush1.msra.mxu0 0.0
    %1985 = vmatprep.subr.mxu0 0.0
    %1986 = vmatpush1.msra.mxu0 0.0
    %1987 = vmatprep.subr.mxu0 0.0
    %1988 = vmatpush1.msra.mxu0 0.0
    %1989 = vmatprep.subr.mxu0 0.0
    %1990 = vmatpush1.msra.mxu0 0.0
    %1991 = vmatprep.subr.mxu0 0.0
    %1992 = vmatpush1.msra.mxu0 0.0
    %1993 = vmatprep.subr.mxu0 0.0
    %1994 = vmatpush1.msra.mxu0 0.0
    %1995 = vmatprep.subr.mxu0 0.0
    %1996 = vmatpush1.msra.mxu0 0.0
    %1997 = vmatprep.subr.mxu0 0.0
    %1998 = vmatpush1.msra.mxu0 0.0
    %1999 = vmatprep.subr.mxu0 0.0
    %2000 = vmatpush1.msra.mxu0 0.0
    %2001 = vmatprep.subr.mxu0 0.0
    %2002 = vmatpush1.msra.mxu0 0.0
    %2003 = vmatprep.subr.mxu0 0.0
    %2004 = vmatpush1.msra.mxu0 0.0
    %2005 = vmatprep.subr.mxu0 0.0
    %2006 = vmatpush1.msra.mxu0 0.0
    %2007 = vmatprep.subr.mxu0 0.0
    %2008 = vmatpush1.msra.mxu0 0.0
    %2009 = vmatprep.subr.mxu0 0.0
    %2010 = vmatpush1.msra.mxu0 0.0
    %2011 = vmatprep.subr.mxu0 0.0
    %2012 = vmatpush1.msra.mxu0 0.0
    %2013 = vmatprep.subr.mxu0 0.0
    %2014 = vmatpush1.msra.mxu0 0.0
    %2015 = vmatprep.subr.mxu0 0.0
    %2016 = vmatpush1.msra.mxu0 0.0
    %2017 = vmatprep.subr.mxu0 0.0
    %2018 = vmatpush1.msra.mxu0 0.0
    %2019 = vmatprep.mubr.f32.mxu0 0.0
    %2020 = vmatmul.mubr.f32.gmra.mrb[0].mxu0 %v1586
    %v2021 = vpop.f32.mrb[0].mxu0
    %v2022 = vadd.f32 %v606, %v2021
    %v2023 = vpop.f32.mrb[0].mxu0
    %2024 = vdwg.mxu0
    %v2025 = vmul.f32 %v1737, %v2022
    %v2026 = vadd.f32 %v1952, %v2025
    %v2027 = vtanh.pop %v2026
    %v2028 = vsub.f32 1.0, %v1884
    %v2029 = vmul.f32 %v2028, %v2027
    %v2030 = vmul.f32 %v1884, %v1582
    %v2031 = vadd.f32 %v2029, %v2030
    %s2032 = scalar_lea.vmem %s0, 32
    %v2033 = vld [vmem:[%s2032] sm:$0xff]
    %v2035 = vsel %vm202, %v2031, 0
    %2037 = vmatprep.subr.mxu0 0.0
    %2038 = vmatpush1.msra.mxu0 %v143
    %2039 = vmatprep.subr.mxu0 0.0
    %2040 = vmatpush1.msra.mxu0 %v144
    %2041 = vmatprep.subr.mxu0 0.0
    %2042 = vmatpush1.msra.mxu0 %v145
    %2043 = vmatprep.subr.mxu0 0.0
    %2044 = vmatpush1.msra.mxu0 %v146
    %2045 = vmatprep.subr.mxu0 0.0
    %2046 = vmatpush1.msra.mxu0 0.0
    %2047 = vmatprep.subr.mxu0 0.0
    %2048 = vmatpush1.msra.mxu0 0.0
    %2049 = vmatprep.subr.mxu0 0.0
    %2050 = vmatpush1.msra.mxu0 0.0
    %2051 = vmatprep.subr.mxu0 0.0
    %2052 = vmatpush1.msra.mxu0 0.0
    %2053 = vmatprep.subr.mxu0 0.0
    %2054 = vmatpush1.msra.mxu0 0.0
    %2055 = vmatprep.subr.mxu0 0.0
    %2056 = vmatpush1.msra.mxu0 0.0
    %2057 = vmatprep.subr.mxu0 0.0
    %2058 = vmatpush1.msra.mxu0 0.0
    %2059 = vmatprep.subr.mxu0 0.0
    %2060 = vmatpush1.msra.mxu0 0.0
    %2061 = vmatprep.subr.mxu0 0.0
    %2062 = vmatpush1.msra.mxu0 0.0
    %2063 = vmatprep.subr.mxu0 0.0
    %2064 = vmatpush1.msra.mxu0 0.0
    %2065 = vmatprep.subr.mxu0 0.0
    %2066 = vmatpush1.msra.mxu0 0.0
    %2067 = vmatprep.subr.mxu0 0.0
    %2068 = vmatpush1.msra.mxu0 0.0
    %2069 = vmatprep.subr.mxu0 0.0
    %2070 = vmatpush1.msra.mxu0 0.0
    %2071 = vmatprep.subr.mxu0 0.0
    %2072 = vmatpush1.msra.mxu0 0.0
    %2073 = vmatprep.subr.mxu0 0.0
    %2074 = vmatpush1.msra.mxu0 0.0
    %2075 = vmatprep.subr.mxu0 0.0
    %2076 = vmatpush1.msra.mxu0 0.0
    %2077 = vmatprep.subr.mxu0 0.0
    %2078 = vmatpush1.msra.mxu0 0.0
    %2079 = vmatprep.subr.mxu0 0.0
    %2080 = vmatpush1.msra.mxu0 0.0
    %2081 = vmatprep.subr.mxu0 0.0
    %2082 = vmatpush1.msra.mxu0 0.0
    %2083 = vmatprep.subr.mxu0 0.0
    %2084 = vmatpush1.msra.mxu0 0.0
    %2085 = vmatprep.subr.mxu0 0.0
    %2086 = vmatpush1.msra.mxu0 0.0
    %2087 = vmatprep.subr.mxu0 0.0
    %2088 = vmatpush1.msra.mxu0 0.0
    %2089 = vmatprep.subr.mxu0 0.0
    %2090 = vmatpush1.msra.mxu0 0.0
    %2091 = vmatprep.subr.mxu0 0.0
    %2092 = vmatpush1.msra.mxu0 0.0
    %2093 = vmatprep.subr.mxu0 0.0
    %2094 = vmatpush1.msra.mxu0 0.0
    %2095 = vmatprep.subr.mxu0 0.0
    %2096 = vmatpush1.msra.mxu0 0.0
    %2097 = vmatprep.subr.mxu0 0.0
    %2098 = vmatpush1.msra.mxu0 0.0
    %2099 = vmatprep.subr.mxu0 0.0
    %2100 = vmatpush1.msra.mxu0 0.0
    %2101 = vmatprep.mubr.f32.mxu0 0.0
    %2102 = vmatmul.mubr.f32.gmra.mrb[0].mxu0 %v2035
    %v2103 = vpop.f32.mrb[0].mxu0
    %v2104 = vadd.f32 0.0, %v2103
    %v2105 = vpop.f32.mrb[0].mxu0
    %2106 = vdwg.mxu0
    %v2108 = vsel %vm276, %v2033, 0
    %2110 = vmatprep.subr.mxu0 0.0
    %2111 = vmatpush1.msra.mxu0 %v282
    %2112 = vmatprep.subr.mxu0 0.0
    %2113 = vmatpush1.msra.mxu0 0.0
    %2114 = vmatprep.subr.mxu0 0.0
    %2115 = vmatpush1.msra.mxu0 0.0
    %2116 = vmatprep.subr.mxu0 0.0
    %2117 = vmatpush1.msra.mxu0 0.0
    %2118 = vmatprep.subr.mxu0 0.0
    %2119 = vmatpush1.msra.mxu0 0.0
    %2120 = vmatprep.subr.mxu0 0.0
    %2121 = vmatpush1.msra.mxu0 0.0
    %2122 = vmatprep.subr.mxu0 0.0
    %2123 = vmatpush1.msra.mxu0 0.0
    %2124 = vmatprep.subr.mxu0 0.0
    %2125 = vmatpush1.msra.mxu0 0.0
    %2126 = vmatprep.subr.mxu0 0.0
    %2127 = vmatpush1.msra.mxu0 0.0
    %2128 = vmatprep.subr.mxu0 0.0
    %2129 = vmatpush1.msra.mxu0 0.0
    %2130 = vmatprep.subr.mxu0 0.0
    %2131 = vmatpush1.msra.mxu0 0.0
    %2132 = vmatprep.subr.mxu0 0.0
    %2133 = vmatpush1.msra.mxu0 0.0
    %2134 = vmatprep.subr.mxu0 0.0
    %2135 = vmatpush1.msra.mxu0 0.0
    %2136 = vmatprep.subr.mxu0 0.0
    %2137 = vmatpush1.msra.mxu0 0.0
    %2138 = vmatprep.subr.mxu0 0.0
    %2139 = vmatpush1.msra.mxu0 0.0
    %2140 = vmatprep.subr.mxu0 0.0
    %2141 = vmatpush1.msra.mxu0 0.0
    %2142 = vmatprep.subr.mxu0 0.0
    %2143 = vmatpush1.msra.mxu0 0.0
    %2144 = vmatprep.subr.mxu0 0.0
    %2145 = vmatpush1.msra.mxu0 0.0
    %2146 = vmatprep.subr.mxu0 0.0
    %2147 = vmatpush1.msra.mxu0 0.0
    %2148 = vmatprep.subr.mxu0 0.0
    %2149 = vmatpush1.msra.mxu0 0.0
    %2150 = vmatprep.subr.mxu0 0.0
    %2151 = vmatpush1.msra.mxu0 0.0
    %2152 = vmatprep.subr.mxu0 0.0
    %2153 = vmatpush1.msra.mxu0 0.0
    %2154 = vmatprep.subr.mxu0 0.0
    %2155 = vmatpush1.msra.mxu0 0.0
    %2156 = vmatprep.subr.mxu0 0.0
    %2157 = vmatpush1.msra.mxu0 0.0
    %2158 = vmatprep.subr.mxu0 0.0
    %2159 = vmatpush1.msra.mxu0 0.0
    %2160 = vmatprep.subr.mxu0 0.0
    %2161 = vmatpush1.msra.mxu0 0.0
    %2162 = vmatprep.subr.mxu0 0.0
    %2163 = vmatpush1.msra.mxu0 0.0
    %2164 = vmatprep.subr.mxu0 0.0
    %2165 = vmatpush1.msra.mxu0 0.0
    %2166 = vmatprep.subr.mxu0 0.0
    %2167 = vmatpush1.msra.mxu0 0.0
    %2168 = vmatprep.subr.mxu0 0.0
    %2169 = vmatpush1.msra.mxu0 0.0
    %2170 = vmatprep.subr.mxu0 0.0
    %2171 = vmatpush1.msra.mxu0 0.0
    %2172 = vmatprep.subr.mxu0 0.0
    %2173 = vmatpush1.msra.mxu0 0.0
    %2174 = vmatprep.mubr.f32.mxu0 0.0
    %2175 = vmatmul.mubr.f32.gmra.mrb[0].mxu0 %v2108
    %v2176 = vpop.f32.mrb[0].mxu0
    %v2177 = vadd.f32 %v2104, %v2176
    %v2178 = vpop.f32.mrb[0].mxu0
    %2179 = vdwg.mxu0
    %v2180 = vadd.f32 %v2177, %v358
    %v2181 = vxor.u32 %v2180, 2147483648
    %v2182 = vmul.f32 %v2181, 1.442695
    %v2183 = vpow.pop %v2182
    %v2184 = vadd.f32 %v2183, 1.0
    %v2185 = vrcp.pop %v2184
    %v2186 = vmul.f32 1.0, %v2185
    %2187 = vmatprep.subr.mxu0 0.0
    %2188 = vmatpush1.msra.mxu0 %v148
    %2189 = vmatprep.subr.mxu0 0.0
    %2190 = vmatpush1.msra.mxu0 %v149
    %2191 = vmatprep.subr.mxu0 0.0
    %2192 = vmatpush1.msra.mxu0 %v150
    %2193 = vmatprep.subr.mxu0 0.0
    %2194 = vmatpush1.msra.mxu0 %v151
    %2195 = vmatprep.subr.mxu0 0.0
    %2196 = vmatpush1.msra.mxu0 0.0
    %2197 = vmatprep.subr.mxu0 0.0
    %2198 = vmatpush1.msra.mxu0 0.0
    %2199 = vmatprep.subr.mxu0 0.0
    %2200 = vmatpush1.msra.mxu0 0.0
    %2201 = vmatprep.subr.mxu0 0.0
    %2202 = vmatpush1.msra.mxu0 0.0
    %2203 = vmatprep.subr.mxu0 0.0
    %2204 = vmatpush1.msra.mxu0 0.0
    %2205 = vmatprep.subr.mxu0 0.0
    %2206 = vmatpush1.msra.mxu0 0.0
    %2207 = vmatprep.subr.mxu0 0.0
    %2208 = vmatpush1.msra.mxu0 0.0
    %2209 = vmatprep.subr.mxu0 0.0
    %2210 = vmatpush1.msra.mxu0 0.0
    %2211 = vmatprep.subr.mxu0 0.0
    %2212 = vmatpush1.msra.mxu0 0.0
    %2213 = vmatprep.subr.mxu0 0.0
    %2214 = vmatpush1.msra.mxu0 0.0
    %2215 = vmatprep.subr.mxu0 0.0
    %2216 = vmatpush1.msra.mxu0 0.0
    %2217 = vmatprep.subr.mxu0 0.0
    %2218 = vmatpush1.msra.mxu0 0.0
    %2219 = vmatprep.subr.mxu0 0.0
    %2220 = vmatpush1.msra.mxu0 0.0
    %2221 = vmatprep.subr.mxu0 0.0
    %2222 = vmatpush1.msra.mxu0 0.0
    %2223 = vmatprep.subr.mxu0 0.0
    %2224 = vmatpush1.msra.mxu0 0.0
    %2225 = vmatprep.subr.mxu0 0.0
    %2226 = vmatpush1.msra.mxu0 0.0
    %2227 = vmatprep.subr.mxu0 0.0
    %2228 = vmatpush1.msra.mxu0 0.0
    %2229 = vmatprep.subr.mxu0 0.0
    %2230 = vmatpush1.msra.mxu0 0.0
    %2231 = vmatprep.subr.mxu0 0.0
    %2232 = vmatpush1.msra.mxu0 0.0
    %2233 = vmatprep.subr.mxu0 0.0
    %2234 = vmatpush1.msra.mxu0 0.0
    %2235 = vmatprep.subr.mxu0 0.0
    %2236 = vmatpush1.msra.mxu0 0.0
    %2237 = vmatprep.subr.mxu0 0.0
    %2238 = vmatpush1.msra.mxu0 0.0
    %2239 = vmatprep.subr.mxu0 0.0
    %2240 = vmatpush1.msra.mxu0 0.0
    %2241 = vmatprep.subr.mxu0 0.0
    %2242 = vmatpush1.msra.mxu0 0.0
    %2243 = vmatprep.subr.mxu0 0.0
    %2244 = vmatpush1.msra.mxu0 0.0
    %2245 = vmatprep.subr.mxu0 0.0
    %2246 = vmatpush1.msra.mxu0 0.0
    %2247 = vmatprep.subr.mxu0 0.0
    %2248 = vmatpush1.msra.mxu0 0.0
    %2249 = vmatprep.subr.mxu0 0.0
    %2250 = vmatpush1.msra.mxu0 0.0
    %2251 = vmatprep.mubr.f32.mxu0 0.0
    %2252 = vmatmul.mubr.f32.gmra.mrb[0].mxu0 %v2035
    %v2253 = vpop.f32.mrb[0].mxu0
    %v2254 = vadd.f32 0.0, %v2253
    %v2255 = vpop.f32.mrb[0].mxu0
    %2256 = vdwg.mxu0
    %2257 = vmatprep.subr.mxu0 0.0
    %2258 = vmatpush1.msra.mxu0 %v438
    %2259 = vmatprep.subr.mxu0 0.0
    %2260 = vmatpush1.msra.mxu0 0.0
    %2261 = vmatprep.subr.mxu0 0.0
    %2262 = vmatpush1.msra.mxu0 0.0
    %2263 = vmatprep.subr.mxu0 0.0
    %2264 = vmatpush1.msra.mxu0 0.0
    %2265 = vmatprep.subr.mxu0 0.0
    %2266 = vmatpush1.msra.mxu0 0.0
    %2267 = vmatprep.subr.mxu0 0.0
    %2268 = vmatpush1.msra.mxu0 0.0
    %2269 = vmatprep.subr.mxu0 0.0
    %2270 = vmatpush1.msra.mxu0 0.0
    %2271 = vmatprep.subr.mxu0 0.0
    %2272 = vmatpush1.msra.mxu0 0.0
    %2273 = vmatprep.subr.mxu0 0.0
    %2274 = vmatpush1.msra.mxu0 0.0
    %2275 = vmatprep.subr.mxu0 0.0
    %2276 = vmatpush1.msra.mxu0 0.0
    %2277 = vmatprep.subr.mxu0 0.0
    %2278 = vmatpush1.msra.mxu0 0.0
    %2279 = vmatprep.subr.mxu0 0.0
    %2280 = vmatpush1.msra.mxu0 0.0
    %2281 = vmatprep.subr.mxu0 0.0
    %2282 = vmatpush1.msra.mxu0 0.0
    %2283 = vmatprep.subr.mxu0 0.0
    %2284 = vmatpush1.msra.mxu0 0.0
    %2285 = vmatprep.subr.mxu0 0.0
    %2286 = vmatpush1.msra.mxu0 0.0
    %2287 = vmatprep.subr.mxu0 0.0
    %2288 = vmatpush1.msra.mxu0 0.0
    %2289 = vmatprep.subr.mxu0 0.0
    %2290 = vmatpush1.msra.mxu0 0.0
    %2291 = vmatprep.subr.mxu0 0.0
    %2292 = vmatpush1.msra.mxu0 0.0
    %2293 = vmatprep.subr.mxu0 0.0
    %2294 = vmatpush1.msra.mxu0 0.0
    %2295 = vmatprep.subr.mxu0 0.0
    %2296 = vmatpush1.msra.mxu0 0.0
    %2297 = vmatprep.subr.mxu0 0.0
    %2298 = vmatpush1.msra.mxu0 0.0
    %2299 = vmatprep.subr.mxu0 0.0
    %2300 = vmatpush1.msra.mxu0 0.0
    %2301 = vmatprep.subr.mxu0 0.0
    %2302 = vmatpush1.msra.mxu0 0.0
    %2303 = vmatprep.subr.mxu0 0.0
    %2304 = vmatpush1.msra.mxu0 0.0
    %2305 = vmatprep.subr.mxu0 0.0
    %2306 = vmatpush1.msra.mxu0 0.0
    %2307 = vmatprep.subr.mxu0 0.0
    %2308 = vmatpush1.msra.mxu0 0.0
    %2309 = vmatprep.subr.mxu0 0.0
    %2310 = vmatpush1.msra.mxu0 0.0
    %2311 = vmatprep.subr.mxu0 0.0
    %2312 = vmatpush1.msra.mxu0 0.0
    %2313 = vmatprep.subr.mxu0 0.0
    %2314 = vmatpush1.msra.mxu0 0.0
    %2315 = vmatprep.subr.mxu0 0.0
    %2316 = vmatpush1.msra.mxu0 0.0
    %2317 = vmatprep.subr.mxu0 0.0
    %2318 = vmatpush1.msra.mxu0 0.0
    %2319 = vmatprep.subr.mxu0 0.0
    %2320 = vmatpush1.msra.mxu0 0.0
    %2321 = vmatprep.mubr.f32.mxu0 0.0
    %2322 = vmatmul.mubr.f32.gmra.mrb[0].mxu0 %v2108
    %v2323 = vpop.f32.mrb[0].mxu0
    %v2324 = vadd.f32 %v2254, %v2323
    %v2325 = vpop.f32.mrb[0].mxu0
    %2326 = vdwg.mxu0
    %v2327 = vadd.f32 %v2324, %v514
    %v2328 = vxor.u32 %v2327, 2147483648
    %v2329 = vmul.f32 %v2328, 1.442695
    %v2330 = vpow.pop %v2329
    %v2331 = vadd.f32 %v2330, 1.0
    %v2332 = vrcp.pop %v2331
    %v2333 = vmul.f32 1.0, %v2332
    %2334 = vmatprep.subr.mxu0 0.0
    %2335 = vmatpush1.msra.mxu0 %v530
    %2336 = vmatprep.subr.mxu0 0.0
    %2337 = vmatpush1.msra.mxu0 0.0
    %2338 = vmatprep.subr.mxu0 0.0
    %2339 = vmatpush1.msra.mxu0 0.0
    %2340 = vmatprep.subr.mxu0 0.0
    %2341 = vmatpush1.msra.mxu0 0.0
    %2342 = vmatprep.subr.mxu0 0.0
    %2343 = vmatpush1.msra.mxu0 0.0
    %2344 = vmatprep.subr.mxu0 0.0
    %2345 = vmatpush1.msra.mxu0 0.0
    %2346 = vmatprep.subr.mxu0 0.0
    %2347 = vmatpush1.msra.mxu0 0.0
    %2348 = vmatprep.subr.mxu0 0.0
    %2349 = vmatpush1.msra.mxu0 0.0
    %2350 = vmatprep.subr.mxu0 0.0
    %2351 = vmatpush1.msra.mxu0 0.0
    %2352 = vmatprep.subr.mxu0 0.0
    %2353 = vmatpush1.msra.mxu0 0.0
    %2354 = vmatprep.subr.mxu0 0.0
    %2355 = vmatpush1.msra.mxu0 0.0
    %2356 = vmatprep.subr.mxu0 0.0
    %2357 = vmatpush1.msra.mxu0 0.0
    %2358 = vmatprep.subr.mxu0 0.0
    %2359 = vmatpush1.msra.mxu0 0.0
    %2360 = vmatprep.subr.mxu0 0.0
    %2361 = vmatpush1.msra.mxu0 0.0
    %2362 = vmatprep.subr.mxu0 0.0
    %2363 = vmatpush1.msra.mxu0 0.0
    %2364 = vmatprep.subr.mxu0 0.0
    %2365 = vmatpush1.msra.mxu0 0.0
    %2366 = vmatprep.subr.mxu0 0.0
    %2367 = vmatpush1.msra.mxu0 0.0
    %2368 = vmatprep.subr.mxu0 0.0
    %2369 = vmatpush1.msra.mxu0 0.0
    %2370 = vmatprep.subr.mxu0 0.0
    %2371 = vmatpush1.msra.mxu0 0.0
    %2372 = vmatprep.subr.mxu0 0.0
    %2373 = vmatpush1.msra.mxu0 0.0
    %2374 = vmatprep.subr.mxu0 0.0
    %2375 = vmatpush1.msra.mxu0 0.0
    %2376 = vmatprep.subr.mxu0 0.0
    %2377 = vmatpush1.msra.mxu0 0.0
    %2378 = vmatprep.subr.mxu0 0.0
    %2379 = vmatpush1.msra.mxu0 0.0
    %2380 = vmatprep.subr.mxu0 0.0
    %2381 = vmatpush1.msra.mxu0 0.0
    %2382 = vmatprep.subr.mxu0 0.0
    %2383 = vmatpush1.msra.mxu0 0.0
    %2384 = vmatprep.subr.mxu0 0.0
    %2385 = vmatpush1.msra.mxu0 0.0
    %2386 = vmatprep.subr.mxu0 0.0
    %2387 = vmatpush1.msra.mxu0 0.0
    %2388 = vmatprep.subr.mxu0 0.0
    %2389 = vmatpush1.msra.mxu0 0.0
    %2390 = vmatprep.subr.mxu0 0.0
    %2391 = vmatpush1.msra.mxu0 0.0
    %2392 = vmatprep.subr.mxu0 0.0
    %2393 = vmatpush1.msra.mxu0 0.0
    %2394 = vmatprep.subr.mxu0 0.0
    %2395 = vmatpush1.msra.mxu0 0.0
    %2396 = vmatprep.subr.mxu0 0.0
    %2397 = vmatpush1.msra.mxu0 0.0
    %2398 = vmatprep.mubr.f32.mxu0 0.0
    %2399 = vmatmul.mubr.f32.gmra.mrb[0].mxu0 %v2108
    %v2400 = vpop.f32.mrb[0].mxu0
    %v2401 = vadd.f32 %v527, %v2400
    %v2402 = vpop.f32.mrb[0].mxu0
    %2403 = vdwg.mxu0
    %2404 = vmatprep.subr.mxu0 0.0
    %2405 = vmatpush1.msra.mxu0 %v153
    %2406 = vmatprep.subr.mxu0 0.0
    %2407 = vmatpush1.msra.mxu0 %v154
    %2408 = vmatprep.subr.mxu0 0.0
    %2409 = vmatpush1.msra.mxu0 %v155
    %2410 = vmatprep.subr.mxu0 0.0
    %2411 = vmatpush1.msra.mxu0 %v156
    %2412 = vmatprep.subr.mxu0 0.0
    %2413 = vmatpush1.msra.mxu0 0.0
    %2414 = vmatprep.subr.mxu0 0.0
    %2415 = vmatpush1.msra.mxu0 0.0
    %2416 = vmatprep.subr.mxu0 0.0
    %2417 = vmatpush1.msra.mxu0 0.0
    %2418 = vmatprep.subr.mxu0 0.0
    %2419 = vmatpush1.msra.mxu0 0.0
    %2420 = vmatprep.subr.mxu0 0.0
    %2421 = vmatpush1.msra.mxu0 0.0
    %2422 = vmatprep.subr.mxu0 0.0
    %2423 = vmatpush1.msra.mxu0 0.0
    %2424 = vmatprep.subr.mxu0 0.0
    %2425 = vmatpush1.msra.mxu0 0.0
    %2426 = vmatprep.subr.mxu0 0.0
    %2427 = vmatpush1.msra.mxu0 0.0
    %2428 = vmatprep.subr.mxu0 0.0
    %2429 = vmatpush1.msra.mxu0 0.0
    %2430 = vmatprep.subr.mxu0 0.0
    %2431 = vmatpush1.msra.mxu0 0.0
    %2432 = vmatprep.subr.mxu0 0.0
    %2433 = vmatpush1.msra.mxu0 0.0
    %2434 = vmatprep.subr.mxu0 0.0
    %2435 = vmatpush1.msra.mxu0 0.0
    %2436 = vmatprep.subr.mxu0 0.0
    %2437 = vmatpush1.msra.mxu0 0.0
    %2438 = vmatprep.subr.mxu0 0.0
    %2439 = vmatpush1.msra.mxu0 0.0
    %2440 = vmatprep.subr.mxu0 0.0
    %2441 = vmatpush1.msra.mxu0 0.0
    %2442 = vmatprep.subr.mxu0 0.0
    %2443 = vmatpush1.msra.mxu0 0.0
    %2444 = vmatprep.subr.mxu0 0.0
    %2445 = vmatpush1.msra.mxu0 0.0
    %2446 = vmatprep.subr.mxu0 0.0
    %2447 = vmatpush1.msra.mxu0 0.0
    %2448 = vmatprep.subr.mxu0 0.0
    %2449 = vmatpush1.msra.mxu0 0.0
    %2450 = vmatprep.subr.mxu0 0.0
    %2451 = vmatpush1.msra.mxu0 0.0
    %2452 = vmatprep.subr.mxu0 0.0
    %2453 = vmatpush1.msra.mxu0 0.0
    %2454 = vmatprep.subr.mxu0 0.0
    %2455 = vmatpush1.msra.mxu0 0.0
    %2456 = vmatprep.subr.mxu0 0.0
    %2457 = vmatpush1.msra.mxu0 0.0
    %2458 = vmatprep.subr.mxu0 0.0
    %2459 = vmatpush1.msra.mxu0 0.0
    %2460 = vmatprep.subr.mxu0 0.0
    %2461 = vmatpush1.msra.mxu0 0.0
    %2462 = vmatprep.subr.mxu0 0.0
    %2463 = vmatpush1.msra.mxu0 0.0
    %2464 = vmatprep.subr.mxu0 0.0
    %2465 = vmatpush1.msra.mxu0 0.0
    %2466 = vmatprep.subr.mxu0 0.0
    %2467 = vmatpush1.msra.mxu0 0.0
    %2468 = vmatprep.mubr.f32.mxu0 0.0
    %2469 = vmatmul.mubr.f32.gmra.mrb[0].mxu0 %v2035
    %v2470 = vpop.f32.mrb[0].mxu0
    %v2471 = vadd.f32 %v606, %v2470
    %v2472 = vpop.f32.mrb[0].mxu0
    %2473 = vdwg.mxu0
    %v2474 = vmul.f32 %v2186, %v2471
    %v2475 = vadd.f32 %v2401, %v2474
    %v2476 = vtanh.pop %v2475
    %v2477 = vsub.f32 1.0, %v2333
    %v2478 = vmul.f32 %v2477, %v2476
    %v2479 = vmul.f32 %v2333, %v2031
    %v2480 = vadd.f32 %v2478, %v2479
    %s2481 = scalar_lea.vmem %s0, 40
    %v2482 = vld [vmem:[%s2481] sm:$0xff]
    %v2484 = vsel %vm202, %v2480, 0
    %2486 = vmatprep.subr.mxu0 0.0
    %2487 = vmatpush1.msra.mxu0 %v143
    %2488 = vmatprep.subr.mxu0 0.0
    %2489 = vmatpush1.msra.mxu0 %v144
    %2490 = vmatprep.subr.mxu0 0.0
    %2491 = vmatpush1.msra.mxu0 %v145
    %2492 = vmatprep.subr.mxu0 0.0
    %2493 = vmatpush1.msra.mxu0 %v146
    %2494 = vmatprep.subr.mxu0 0.0
    %2495 = vmatpush1.msra.mxu0 0.0
    %2496 = vmatprep.subr.mxu0 0.0
    %2497 = vmatpush1.msra.mxu0 0.0
    %2498 = vmatprep.subr.mxu0 0.0
    %2499 = vmatpush1.msra.mxu0 0.0
    %2500 = vmatprep.subr.mxu0 0.0
    %2501 = vmatpush1.msra.mxu0 0.0
    %2502 = vmatprep.subr.mxu0 0.0
    %2503 = vmatpush1.msra.mxu0 0.0
    %2504 = vmatprep.subr.mxu0 0.0
    %2505 = vmatpush1.msra.mxu0 0.0
    %2506 = vmatprep.subr.mxu0 0.0
    %2507 = vmatpush1.msra.mxu0 0.0
    %2508 = vmatprep.subr.mxu0 0.0
    %2509 = vmatpush1.msra.mxu0 0.0
    %2510 = vmatprep.subr.mxu0 0.0
    %2511 = vmatpush1.msra.mxu0 0.0
    %2512 = vmatprep.subr.mxu0 0.0
    %2513 = vmatpush1.msra.mxu0 0.0
    %2514 = vmatprep.subr.mxu0 0.0
    %2515 = vmatpush1.msra.mxu0 0.0
    %2516 = vmatprep.subr.mxu0 0.0
    %2517 = vmatpush1.msra.mxu0 0.0
    %2518 = vmatprep.subr.mxu0 0.0
    %2519 = vmatpush1.msra.mxu0 0.0
    %2520 = vmatprep.subr.mxu0 0.0
    %2521 = vmatpush1.msra.mxu0 0.0
    %2522 = vmatprep.subr.mxu0 0.0
    %2523 = vmatpush1.msra.mxu0 0.0
    %2524 = vmatprep.subr.mxu0 0.0
    %2525 = vmatpush1.msra.mxu0 0.0
    %2526 = vmatprep.subr.mxu0 0.0
    %2527 = vmatpush1.msra.mxu0 0.0
    %2528 = vmatprep.subr.mxu0 0.0
    %2529 = vmatpush1.msra.mxu0 0.0
    %2530 = vmatprep.subr.mxu0 0.0
    %2531 = vmatpush1.msra.mxu0 0.0
    %2532 = vmatprep.subr.mxu0 0.0
    %2533 = vmatpush1.msra.mxu0 0.0
    %2534 = vmatprep.subr.mxu0 0.0
    %2535 = vmatpush1.msra.mxu0 0.0
    %2536 = vmatprep.subr.mxu0 0.0
    %2537 = vmatpush1.msra.mxu0 0.0
    %2538 = vmatprep.subr.mxu0 0.0
    %2539 = vmatpush1.msra.mxu0 0.0
    %2540 = vmatprep.subr.mxu0 0.0
    %2541 = vmatpush1.msra.mxu0 0.0
    %2542 = vmatprep.subr.mxu0 0.0
    %2543 = vmatpush1.msra.mxu0 0.0
    %2544 = vmatprep.subr.mxu0 0.0
    %2545 = vmatpush1.msra.mxu0 0.0
    %2546 = vmatprep.subr.mxu0 0.0
    %2547 = vmatpush1.msra.mxu0 0.0
    %2548 = vmatprep.subr.mxu0 0.0
    %2549 = vmatpush1.msra.mxu0 0.0
    %2550 = vmatprep.mubr.f32.mxu0 0.0
    %2551 = vmatmul.mubr.f32.gmra.mrb[0].mxu0 %v2484
    %v2552 = vpop.f32.mrb[0].mxu0
    %v2553 = vadd.f32 0.0, %v2552
    %v2554 = vpop.f32.mrb[0].mxu0
    %2555 = vdwg.mxu0
    %v2557 = vsel %vm276, %v2482, 0
    %2559 = vmatprep.subr.mxu0 0.0
    %2560 = vmatpush1.msra.mxu0 %v282
    %2561 = vmatprep.subr.mxu0 0.0
    %2562 = vmatpush1.msra.mxu0 0.0
    %2563 = vmatprep.subr.mxu0 0.0
    %2564 = vmatpush1.msra.mxu0 0.0
    %2565 = vmatprep.subr.mxu0 0.0
    %2566 = vmatpush1.msra.mxu0 0.0
    %2567 = vmatprep.subr.mxu0 0.0
    %2568 = vmatpush1.msra.mxu0 0.0
    %2569 = vmatprep.subr.mxu0 0.0
    %2570 = vmatpush1.msra.mxu0 0.0
    %2571 = vmatprep.subr.mxu0 0.0
    %2572 = vmatpush1.msra.mxu0 0.0
    %2573 = vmatprep.subr.mxu0 0.0
    %2574 = vmatpush1.msra.mxu0 0.0
    %2575 = vmatprep.subr.mxu0 0.0
    %2576 = vmatpush1.msra.mxu0 0.0
    %2577 = vmatprep.subr.mxu0 0.0
    %2578 = vmatpush1.msra.mxu0 0.0
    %2579 = vmatprep.subr.mxu0 0.0
    %2580 = vmatpush1.msra.mxu0 0.0
    %2581 = vmatprep.subr.mxu0 0.0
    %2582 = vmatpush1.msra.mxu0 0.0
    %2583 = vmatprep.subr.mxu0 0.0
    %2584 = vmatpush1.msra.mxu0 0.0
    %2585 = vmatprep.subr.mxu0 0.0
    %2586 = vmatpush1.msra.mxu0 0.0
    %2587 = vmatprep.subr.mxu0 0.0
    %2588 = vmatpush1.msra.mxu0 0.0
    %2589 = vmatprep.subr.mxu0 0.0
    %2590 = vmatpush1.msra.mxu0 0.0
    %2591 = vmatprep.subr.mxu0 0.0
    %2592 = vmatpush1.msra.mxu0 0.0
    %2593 = vmatprep.subr.mxu0 0.0
    %2594 = vmatpush1.msra.mxu0 0.0
    %2595 = vmatprep.subr.mxu0 0.0
    %2596 = vmatpush1.msra.mxu0 0.0
    %2597 = vmatprep.subr.mxu0 0.0
    %2598 = vmatpush1.msra.mxu0 0.0
    %2599 = vmatprep.subr.mxu0 0.0
    %2600 = vmatpush1.msra.mxu0 0.0
    %2601 = vmatprep.subr.mxu0 0.0
    %2602 = vmatpush1.msra.mxu0 0.0
    %2603 = vmatprep.subr.mxu0 0.0
    %2604 = vmatpush1.msra.mxu0 0.0
    %2605 = vmatprep.subr.mxu0 0.0
    %2606 = vmatpush1.msra.mxu0 0.0
    %2607 = vmatprep.subr.mxu0 0.0
    %2608 = vmatpush1.msra.mxu0 0.0
    %2609 = vmatprep.subr.mxu0 0.0
    %2610 = vmatpush1.msra.mxu0 0.0
    %2611 = vmatprep.subr.mxu0 0.0
    %2612 = vmatpush1.msra.mxu0 0.0
    %2613 = vmatprep.subr.mxu0 0.0
    %2614 = vmatpush1.msra.mxu0 0.0
    %2615 = vmatprep.subr.mxu0 0.0
    %2616 = vmatpush1.msra.mxu0 0.0
    %2617 = vmatprep.subr.mxu0 0.0
    %2618 = vmatpush1.msra.mxu0 0.0
    %2619 = vmatprep.subr.mxu0 0.0
    %2620 = vmatpush1.msra.mxu0 0.0
    %2621 = vmatprep.subr.mxu0 0.0
    %2622 = vmatpush1.msra.mxu0 0.0
    %2623 = vmatprep.mubr.f32.mxu0 0.0
    %2624 = vmatmul.mubr.f32.gmra.mrb[0].mxu0 %v2557
    %v2625 = vpop.f32.mrb[0].mxu0
    %v2626 = vadd.f32 %v2553, %v2625
    %v2627 = vpop.f32.mrb[0].mxu0
    %2628 = vdwg.mxu0
    %v2629 = vadd.f32 %v2626, %v358
    %v2630 = vxor.u32 %v2629, 2147483648
    %v2631 = vmul.f32 %v2630, 1.442695
    %v2632 = vpow.pop %v2631
    %v2633 = vadd.f32 %v2632, 1.0
    %v2634 = vrcp.pop %v2633
    %v2635 = vmul.f32 1.0, %v2634
    %2636 = vmatprep.subr.mxu0 0.0
    %2637 = vmatpush1.msra.mxu0 %v148
    %2638 = vmatprep.subr.mxu0 0.0
    %2639 = vmatpush1.msra.mxu0 %v149
    %2640 = vmatprep.subr.mxu0 0.0
    %2641 = vmatpush1.msra.mxu0 %v150
    %2642 = vmatprep.subr.mxu0 0.0
    %2643 = vmatpush1.msra.mxu0 %v151
    %2644 = vmatprep.subr.mxu0 0.0
    %2645 = vmatpush1.msra.mxu0 0.0
    %2646 = vmatprep.subr.mxu0 0.0
    %2647 = vmatpush1.msra.mxu0 0.0
    %2648 = vmatprep.subr.mxu0 0.0
    %2649 = vmatpush1.msra.mxu0 0.0
    %2650 = vmatprep.subr.mxu0 0.0
    %2651 = vmatpush1.msra.mxu0 0.0
    %2652 = vmatprep.subr.mxu0 0.0
    %2653 = vmatpush1.msra.mxu0 0.0
    %2654 = vmatprep.subr.mxu0 0.0
    %2655 = vmatpush1.msra.mxu0 0.0
    %2656 = vmatprep.subr.mxu0 0.0
    %2657 = vmatpush1.msra.mxu0 0.0
    %2658 = vmatprep.subr.mxu0 0.0
    %2659 = vmatpush1.msra.mxu0 0.0
    %2660 = vmatprep.subr.mxu0 0.0
    %2661 = vmatpush1.msra.mxu0 0.0
    %2662 = vmatprep.subr.mxu0 0.0
    %2663 = vmatpush1.msra.mxu0 0.0
    %2664 = vmatprep.subr.mxu0 0.0
    %2665 = vmatpush1.msra.mxu0 0.0
    %2666 = vmatprep.subr.mxu0 0.0
    %2667 = vmatpush1.msra.mxu0 0.0
    %2668 = vmatprep.subr.mxu0 0.0
    %2669 = vmatpush1.msra.mxu0 0.0
    %2670 = vmatprep.subr.mxu0 0.0
    %2671 = vmatpush1.msra.mxu0 0.0
    %2672 = vmatprep.subr.mxu0 0.0
    %2673 = vmatpush1.msra.mxu0 0.0
    %2674 = vmatprep.subr.mxu0 0.0
    %2675 = vmatpush1.msra.mxu0 0.0
    %2676 = vmatprep.subr.mxu0 0.0
    %2677 = vmatpush1.msra.mxu0 0.0
    %2678 = vmatprep.subr.mxu0 0.0
    %2679 = vmatpush1.msra.mxu0 0.0
    %2680 = vmatprep.subr.mxu0 0.0
    %2681 = vmatpush1.msra.mxu0 0.0
    %2682 = vmatprep.subr.mxu0 0.0
    %2683 = vmatpush1.msra.mxu0 0.0
    %2684 = vmatprep.subr.mxu0 0.0
    %2685 = vmatpush1.msra.mxu0 0.0
    %2686 = vmatprep.subr.mxu0 0.0
    %2687 = vmatpush1.msra.mxu0 0.0
    %2688 = vmatprep.subr.mxu0 0.0
    %2689 = vmatpush1.msra.mxu0 0.0
    %2690 = vmatprep.subr.mxu0 0.0
    %2691 = vmatpush1.msra.mxu0 0.0
    %2692 = vmatprep.subr.mxu0 0.0
    %2693 = vmatpush1.msra.mxu0 0.0
    %2694 = vmatprep.subr.mxu0 0.0
    %2695 = vmatpush1.msra.mxu0 0.0
    %2696 = vmatprep.subr.mxu0 0.0
    %2697 = vmatpush1.msra.mxu0 0.0
    %2698 = vmatprep.subr.mxu0 0.0
    %2699 = vmatpush1.msra.mxu0 0.0
    %2700 = vmatprep.mubr.f32.mxu0 0.0
    %2701 = vmatmul.mubr.f32.gmra.mrb[0].mxu0 %v2484
    %v2702 = vpop.f32.mrb[0].mxu0
    %v2703 = vadd.f32 0.0, %v2702
    %v2704 = vpop.f32.mrb[0].mxu0
    %2705 = vdwg.mxu0
    %2706 = vmatprep.subr.mxu0 0.0
    %2707 = vmatpush1.msra.mxu0 %v438
    %2708 = vmatprep.subr.mxu0 0.0
    %2709 = vmatpush1.msra.mxu0 0.0
    %2710 = vmatprep.subr.mxu0 0.0
    %2711 = vmatpush1.msra.mxu0 0.0
    %2712 = vmatprep.subr.mxu0 0.0
    %2713 = vmatpush1.msra.mxu0 0.0
    %2714 = vmatprep.subr.mxu0 0.0
    %2715 = vmatpush1.msra.mxu0 0.0
    %2716 = vmatprep.subr.mxu0 0.0
    %2717 = vmatpush1.msra.mxu0 0.0
    %2718 = vmatprep.subr.mxu0 0.0
    %2719 = vmatpush1.msra.mxu0 0.0
    %2720 = vmatprep.subr.mxu0 0.0
    %2721 = vmatpush1.msra.mxu0 0.0
    %2722 = vmatprep.subr.mxu0 0.0
    %2723 = vmatpush1.msra.mxu0 0.0
    %2724 = vmatprep.subr.mxu0 0.0
    %2725 = vmatpush1.msra.mxu0 0.0
    %2726 = vmatprep.subr.mxu0 0.0
    %2727 = vmatpush1.msra.mxu0 0.0
    %2728 = vmatprep.subr.mxu0 0.0
    %2729 = vmatpush1.msra.mxu0 0.0
    %2730 = vmatprep.subr.mxu0 0.0
    %2731 = vmatpush1.msra.mxu0 0.0
    %2732 = vmatprep.subr.mxu0 0.0
    %2733 = vmatpush1.msra.mxu0 0.0
    %2734 = vmatprep.subr.mxu0 0.0
    %2735 = vmatpush1.msra.mxu0 0.0
    %2736 = vmatprep.subr.mxu0 0.0
    %2737 = vmatpush1.msra.mxu0 0.0
    %2738 = vmatprep.subr.mxu0 0.0
    %2739 = vmatpush1.msra.mxu0 0.0
    %2740 = vmatprep.subr.mxu0 0.0
    %2741 = vmatpush1.msra.mxu0 0.0
    %2742 = vmatprep.subr.mxu0 0.0
    %2743 = vmatpush1.msra.mxu0 0.0
    %2744 = vmatprep.subr.mxu0 0.0
    %2745 = vmatpush1.msra.mxu0 0.0
    %2746 = vmatprep.subr.mxu0 0.0
    %2747 = vmatpush1.msra.mxu0 0.0
    %2748 = vmatprep.subr.mxu0 0.0
    %2749 = vmatpush1.msra.mxu0 0.0
    %2750 = vmatprep.subr.mxu0 0.0
    %2751 = vmatpush1.msra.mxu0 0.0
    %2752 = vmatprep.subr.mxu0 0.0
    %2753 = vmatpush1.msra.mxu0 0.0
    %2754 = vmatprep.subr.mxu0 0.0
    %2755 = vmatpush1.msra.mxu0 0.0
    %2756 = vmatprep.subr.mxu0 0.0
    %2757 = vmatpush1.msra.mxu0 0.0
    %2758 = vmatprep.subr.mxu0 0.0
    %2759 = vmatpush1.msra.mxu0 0.0
    %2760 = vmatprep.subr.mxu0 0.0
    %2761 = vmatpush1.msra.mxu0 0.0
    %2762 = vmatprep.subr.mxu0 0.0
    %2763 = vmatpush1.msra.mxu0 0.0
    %2764 = vmatprep.subr.mxu0 0.0
    %2765 = vmatpush1.msra.mxu0 0.0
    %2766 = vmatprep.subr.mxu0 0.0
    %2767 = vmatpush1.msra.mxu0 0.0
    %2768 = vmatprep.subr.mxu0 0.0
    %2769 = vmatpush1.msra.mxu0 0.0
    %2770 = vmatprep.mubr.f32.mxu0 0.0
    %2771 = vmatmul.mubr.f32.gmra.mrb[0].mxu0 %v2557
    %v2772 = vpop.f32.mrb[0].mxu0
    %v2773 = vadd.f32 %v2703, %v2772
    %v2774 = vpop.f32.mrb[0].mxu0
    %2775 = vdwg.mxu0
    %v2776 = vadd.f32 %v2773, %v514
    %v2777 = vxor.u32 %v2776, 2147483648
    %v2778 = vmul.f32 %v2777, 1.442695
    %v2779 = vpow.pop %v2778
    %v2780 = vadd.f32 %v2779, 1.0
    %v2781 = vrcp.pop %v2780
    %v2782 = vmul.f32 1.0, %v2781
    %2783 = vmatprep.subr.mxu0 0.0
    %2784 = vmatpush1.msra.mxu0 %v530
    %2785 = vmatprep.subr.mxu0 0.0
    %2786 = vmatpush1.msra.mxu0 0.0
    %2787 = vmatprep.subr.mxu0 0.0
    %2788 = vmatpush1.msra.mxu0 0.0
    %2789 = vmatprep.subr.mxu0 0.0
    %2790 = vmatpush1.msra.mxu0 0.0
    %2791 = vmatprep.subr.mxu0 0.0
    %2792 = vmatpush1.msra.mxu0 0.0
    %2793 = vmatprep.subr.mxu0 0.0
    %2794 = vmatpush1.msra.mxu0 0.0
    %2795 = vmatprep.subr.mxu0 0.0
    %2796 = vmatpush1.msra.mxu0 0.0
    %2797 = vmatprep.subr.mxu0 0.0
    %2798 = vmatpush1.msra.mxu0 0.0
    %2799 = vmatprep.subr.mxu0 0.0
    %2800 = vmatpush1.msra.mxu0 0.0
    %2801 = vmatprep.subr.mxu0 0.0
    %2802 = vmatpush1.msra.mxu0 0.0
    %2803 = vmatprep.subr.mxu0 0.0
    %2804 = vmatpush1.msra.mxu0 0.0
    %2805 = vmatprep.subr.mxu0 0.0
    %2806 = vmatpush1.msra.mxu0 0.0
    %2807 = vmatprep.subr.mxu0 0.0
    %2808 = vmatpush1.msra.mxu0 0.0
    %2809 = vmatprep.subr.mxu0 0.0
    %2810 = vmatpush1.msra.mxu0 0.0
    %2811 = vmatprep.subr.mxu0 0.0
    %2812 = vmatpush1.msra.mxu0 0.0
    %2813 = vmatprep.subr.mxu0 0.0
    %2814 = vmatpush1.msra.mxu0 0.0
    %2815 = vmatprep.subr.mxu0 0.0
    %2816 = vmatpush1.msra.mxu0 0.0
    %2817 = vmatprep.subr.mxu0 0.0
    %2818 = vmatpush1.msra.mxu0 0.0
    %2819 = vmatprep.subr.mxu0 0.0
    %2820 = vmatpush1.msra.mxu0 0.0
    %2821 = vmatprep.subr.mxu0 0.0
    %2822 = vmatpush1.msra.mxu0 0.0
    %2823 = vmatprep.subr.mxu0 0.0
    %2824 = vmatpush1.msra.mxu0 0.0
    %2825 = vmatprep.subr.mxu0 0.0
    %2826 = vmatpush1.msra.mxu0 0.0
    %2827 = vmatprep.subr.mxu0 0.0
    %2828 = vmatpush1.msra.mxu0 0.0
    %2829 = vmatprep.subr.mxu0 0.0
    %2830 = vmatpush1.msra.mxu0 0.0
    %2831 = vmatprep.subr.mxu0 0.0
    %2832 = vmatpush1.msra.mxu0 0.0
    %2833 = vmatprep.subr.mxu0 0.0
    %2834 = vmatpush1.msra.mxu0 0.0
    %2835 = vmatprep.subr.mxu0 0.0
    %2836 = vmatpush1.msra.mxu0 0.0
    %2837 = vmatprep.subr.mxu0 0.0
    %2838 = vmatpush1.msra.mxu0 0.0
    %2839 = vmatprep.subr.mxu0 0.0
    %2840 = vmatpush1.msra.mxu0 0.0
    %2841 = vmatprep.subr.mxu0 0.0
    %2842 = vmatpush1.msra.mxu0 0.0
    %2843 = vmatprep.subr.mxu0 0.0
    %2844 = vmatpush1.msra.mxu0 0.0
    %2845 = vmatprep.subr.mxu0 0.0
    %2846 = vmatpush1.msra.mxu0 0.0
    %2847 = vmatprep.mubr.f32.mxu0 0.0
    %2848 = vmatmul.mubr.f32.gmra.mrb[0].mxu0 %v2557
    %v2849 = vpop.f32.mrb[0].mxu0
    %v2850 = vadd.f32 %v527, %v2849
    %v2851 = vpop.f32.mrb[0].mxu0
    %2852 = vdwg.mxu0
    %2853 = vmatprep.subr.mxu0 0.0
    %2854 = vmatpush1.msra.mxu0 %v153
    %2855 = vmatprep.subr.mxu0 0.0
    %2856 = vmatpush1.msra.mxu0 %v154
    %2857 = vmatprep.subr.mxu0 0.0
    %2858 = vmatpush1.msra.mxu0 %v155
    %2859 = vmatprep.subr.mxu0 0.0
    %2860 = vmatpush1.msra.mxu0 %v156
    %2861 = vmatprep.subr.mxu0 0.0
    %2862 = vmatpush1.msra.mxu0 0.0
    %2863 = vmatprep.subr.mxu0 0.0
    %2864 = vmatpush1.msra.mxu0 0.0
    %2865 = vmatprep.subr.mxu0 0.0
    %2866 = vmatpush1.msra.mxu0 0.0
    %2867 = vmatprep.subr.mxu0 0.0
    %2868 = vmatpush1.msra.mxu0 0.0
    %2869 = vmatprep.subr.mxu0 0.0
    %2870 = vmatpush1.msra.mxu0 0.0
    %2871 = vmatprep.subr.mxu0 0.0
    %2872 = vmatpush1.msra.mxu0 0.0
    %2873 = vmatprep.subr.mxu0 0.0
    %2874 = vmatpush1.msra.mxu0 0.0
    %2875 = vmatprep.subr.mxu0 0.0
    %2876 = vmatpush1.msra.mxu0 0.0
    %2877 = vmatprep.subr.mxu0 0.0
    %2878 = vmatpush1.msra.mxu0 0.0
    %2879 = vmatprep.subr.mxu0 0.0
    %2880 = vmatpush1.msra.mxu0 0.0
    %2881 = vmatprep.subr.mxu0 0.0
    %2882 = vmatpush1.msra.mxu0 0.0
    %2883 = vmatprep.subr.mxu0 0.0
    %2884 = vmatpush1.msra.mxu0 0.0
    %2885 = vmatprep.subr.mxu0 0.0
    %2886 = vmatpush1.msra.mxu0 0.0
    %2887 = vmatprep.subr.mxu0 0.0
    %2888 = vmatpush1.msra.mxu0 0.0
    %2889 = vmatprep.subr.mxu0 0.0
    %2890 = vmatpush1.msra.mxu0 0.0
    %2891 = vmatprep.subr.mxu0 0.0
    %2892 = vmatpush1.msra.mxu0 0.0
    %2893 = vmatprep.subr.mxu0 0.0
    %2894 = vmatpush1.msra.mxu0 0.0
    %2895 = vmatprep.subr.mxu0 0.0
    %2896 = vmatpush1.msra.mxu0 0.0
    %2897 = vmatprep.subr.mxu0 0.0
    %2898 = vmatpush1.msra.mxu0 0.0
    %2899 = vmatprep.subr.mxu0 0.0
    %2900 = vmatpush1.msra.mxu0 0.0
    %2901 = vmatprep.subr.mxu0 0.0
    %2902 = vmatpush1.msra.mxu0 0.0
    %2903 = vmatprep.subr.mxu0 0.0
    %2904 = vmatpush1.msra.mxu0 0.0
    %2905 = vmatprep.subr.mxu0 0.0
    %2906 = vmatpush1.msra.mxu0 0.0
    %2907 = vmatprep.subr.mxu0 0.0
    %2908 = vmatpush1.msra.mxu0 0.0
    %2909 = vmatprep.subr.mxu0 0.0
    %2910 = vmatpush1.msra.mxu0 0.0
    %2911 = vmatprep.subr.mxu0 0.0
    %2912 = vmatpush1.msra.mxu0 0.0
    %2913 = vmatprep.subr.mxu0 0.0
    %2914 = vmatpush1.msra.mxu0 0.0
    %2915 = vmatprep.subr.mxu0 0.0
    %2916 = vmatpush1.msra.mxu0 0.0
    %2917 = vmatprep.mubr.f32.mxu0 0.0
    %2918 = vmatmul.mubr.f32.gmra.mrb[0].mxu0 %v2484
    %v2919 = vpop.f32.mrb[0].mxu0
    %v2920 = vadd.f32 %v606, %v2919
    %v2921 = vpop.f32.mrb[0].mxu0
    %2922 = vdwg.mxu0
    %v2923 = vmul.f32 %v2635, %v2920
    %v2924 = vadd.f32 %v2850, %v2923
    %v2925 = vtanh.pop %v2924
    %v2926 = vsub.f32 1.0, %v2782
    %v2927 = vmul.f32 %v2926, %v2925
    %v2928 = vmul.f32 %v2782, %v2480
    %v2929 = vadd.f32 %v2927, %v2928
    %s2930 = scalar_lea.vmem %s0, 48
    %v2931 = vld [vmem:[%s2930] sm:$0xff]
    %v2933 = vsel %vm202, %v2929, 0
    %2935 = vmatprep.subr.mxu0 0.0
    %2936 = vmatpush1.msra.mxu0 %v143
    %2937 = vmatprep.subr.mxu0 0.0
    %2938 = vmatpush1.msra.mxu0 %v144
    %2939 = vmatprep.subr.mxu0 0.0
    %2940 = vmatpush1.msra.mxu0 %v145
    %2941 = vmatprep.subr.mxu0 0.0
    %2942 = vmatpush1.msra.mxu0 %v146
    %2943 = vmatprep.subr.mxu0 0.0
    %2944 = vmatpush1.msra.mxu0 0.0
    %2945 = vmatprep.subr.mxu0 0.0
    %2946 = vmatpush1.msra.mxu0 0.0
    %2947 = vmatprep.subr.mxu0 0.0
    %2948 = vmatpush1.msra.mxu0 0.0
    %2949 = vmatprep.subr.mxu0 0.0
    %2950 = vmatpush1.msra.mxu0 0.0
    %2951 = vmatprep.subr.mxu0 0.0
    %2952 = vmatpush1.msra.mxu0 0.0
    %2953 = vmatprep.subr.mxu0 0.0
    %2954 = vmatpush1.msra.mxu0 0.0
    %2955 = vmatprep.subr.mxu0 0.0
    %2956 = vmatpush1.msra.mxu0 0.0
    %2957 = vmatprep.subr.mxu0 0.0
    %2958 = vmatpush1.msra.mxu0 0.0
    %2959 = vmatprep.subr.mxu0 0.0
    %2960 = vmatpush1.msra.mxu0 0.0
    %2961 = vmatprep.subr.mxu0 0.0
    %2962 = vmatpush1.msra.mxu0 0.0
    %2963 = vmatprep.subr.mxu0 0.0
    %2964 = vmatpush1.msra.mxu0 0.0
    %2965 = vmatprep.subr.mxu0 0.0
    %2966 = vmatpush1.msra.mxu0 0.0
    %2967 = vmatprep.subr.mxu0 0.0
    %2968 = vmatpush1.msra.mxu0 0.0
    %2969 = vmatprep.subr.mxu0 0.0
    %2970 = vmatpush1.msra.mxu0 0.0
    %2971 = vmatprep.subr.mxu0 0.0
    %2972 = vmatpush1.msra.mxu0 0.0
    %2973 = vmatprep.subr.mxu0 0.0
    %2974 = vmatpush1.msra.mxu0 0.0
    %2975 = vmatprep.subr.mxu0 0.0
    %2976 = vmatpush1.msra.mxu0 0.0
    %2977 = vmatprep.subr.mxu0 0.0
    %2978 = vmatpush1.msra.mxu0 0.0
    %2979 = vmatprep.subr.mxu0 0.0
    %2980 = vmatpush1.msra.mxu0 0.0
    %2981 = vmatprep.subr.mxu0 0.0
    %2982 = vmatpush1.msra.mxu0 0.0
    %2983 = vmatprep.subr.mxu0 0.0
    %2984 = vmatpush1.msra.mxu0 0.0
    %2985 = vmatprep.subr.mxu0 0.0
    %2986 = vmatpush1.msra.mxu0 0.0
    %2987 = vmatprep.subr.mxu0 0.0
    %2988 = vmatpush1.msra.mxu0 0.0
    %2989 = vmatprep.subr.mxu0 0.0
    %2990 = vmatpush1.msra.mxu0 0.0
    %2991 = vmatprep.subr.mxu0 0.0
    %2992 = vmatpush1.msra.mxu0 0.0
    %2993 = vmatprep.subr.mxu0 0.0
    %2994 = vmatpush1.msra.mxu0 0.0
    %2995 = vmatprep.subr.mxu0 0.0
    %2996 = vmatpush1.msra.mxu0 0.0
    %2997 = vmatprep.subr.mxu0 0.0
    %2998 = vmatpush1.msra.mxu0 0.0
    %2999 = vmatprep.mubr.f32.mxu0 0.0
    %3000 = vmatmul.mubr.f32.gmra.mrb[0].mxu0 %v2933
    %v3001 = vpop.f32.mrb[0].mxu0
    %v3002 = vadd.f32 0.0, %v3001
    %v3003 = vpop.f32.mrb[0].mxu0
    %3004 = vdwg.mxu0
    %v3006 = vsel %vm276, %v2931, 0
    %3008 = vmatprep.subr.mxu0 0.0
    %3009 = vmatpush1.msra.mxu0 %v282
    %3010 = vmatprep.subr.mxu0 0.0
    %3011 = vmatpush1.msra.mxu0 0.0
    %3012 = vmatprep.subr.mxu0 0.0
    %3013 = vmatpush1.msra.mxu0 0.0
    %3014 = vmatprep.subr.mxu0 0.0
    %3015 = vmatpush1.msra.mxu0 0.0
    %3016 = vmatprep.subr.mxu0 0.0
    %3017 = vmatpush1.msra.mxu0 0.0
    %3018 = vmatprep.subr.mxu0 0.0
    %3019 = vmatpush1.msra.mxu0 0.0
    %3020 = vmatprep.subr.mxu0 0.0
    %3021 = vmatpush1.msra.mxu0 0.0
    %3022 = vmatprep.subr.mxu0 0.0
    %3023 = vmatpush1.msra.mxu0 0.0
    %3024 = vmatprep.subr.mxu0 0.0
    %3025 = vmatpush1.msra.mxu0 0.0
    %3026 = vmatprep.subr.mxu0 0.0
    %3027 = vmatpush1.msra.mxu0 0.0
    %3028 = vmatprep.subr.mxu0 0.0
    %3029 = vmatpush1.msra.mxu0 0.0
    %3030 = vmatprep.subr.mxu0 0.0
    %3031 = vmatpush1.msra.mxu0 0.0
    %3032 = vmatprep.subr.mxu0 0.0
    %3033 = vmatpush1.msra.mxu0 0.0
    %3034 = vmatprep.subr.mxu0 0.0
    %3035 = vmatpush1.msra.mxu0 0.0
    %3036 = vmatprep.subr.mxu0 0.0
    %3037 = vmatpush1.msra.mxu0 0.0
    %3038 = vmatprep.subr.mxu0 0.0
    %3039 = vmatpush1.msra.mxu0 0.0
    %3040 = vmatprep.subr.mxu0 0.0
    %3041 = vmatpush1.msra.mxu0 0.0
    %3042 = vmatprep.subr.mxu0 0.0
    %3043 = vmatpush1.msra.mxu0 0.0
    %3044 = vmatprep.subr.mxu0 0.0
    %3045 = vmatpush1.msra.mxu0 0.0
    %3046 = vmatprep.subr.mxu0 0.0
    %3047 = vmatpush1.msra.mxu0 0.0
    %3048 = vmatprep.subr.mxu0 0.0
    %3049 = vmatpush1.msra.mxu0 0.0
    %3050 = vmatprep.subr.mxu0 0.0
    %3051 = vmatpush1.msra.mxu0 0.0
    %3052 = vmatprep.subr.mxu0 0.0
    %3053 = vmatpush1.msra.mxu0 0.0
    %3054 = vmatprep.subr.mxu0 0.0
    %3055 = vmatpush1.msra.mxu0 0.0
    %3056 = vmatprep.subr.mxu0 0.0
    %3057 = vmatpush1.msra.mxu0 0.0
    %3058 = vmatprep.subr.mxu0 0.0
    %3059 = vmatpush1.msra.mxu0 0.0
    %3060 = vmatprep.subr.mxu0 0.0
    %3061 = vmatpush1.msra.mxu0 0.0
    %3062 = vmatprep.subr.mxu0 0.0
    %3063 = vmatpush1.msra.mxu0 0.0
    %3064 = vmatprep.subr.mxu0 0.0
    %3065 = vmatpush1.msra.mxu0 0.0
    %3066 = vmatprep.subr.mxu0 0.0
    %3067 = vmatpush1.msra.mxu0 0.0
    %3068 = vmatprep.subr.mxu0 0.0
    %3069 = vmatpush1.msra.mxu0 0.0
    %3070 = vmatprep.subr.mxu0 0.0
    %3071 = vmatpush1.msra.mxu0 0.0
    %3072 = vmatprep.mubr.f32.mxu0 0.0
    %3073 = vmatmul.mubr.f32.gmra.mrb[0].mxu0 %v3006
    %v3074 = vpop.f32.mrb[0].mxu0
    %v3075 = vadd.f32 %v3002, %v3074
    %v3076 = vpop.f32.mrb[0].mxu0
    %3077 = vdwg.mxu0
    %v3078 = vadd.f32 %v3075, %v358
    %v3079 = vxor.u32 %v3078, 2147483648
    %v3080 = vmul.f32 %v3079, 1.442695
    %v3081 = vpow.pop %v3080
    %v3082 = vadd.f32 %v3081, 1.0
    %v3083 = vrcp.pop %v3082
    %v3084 = vmul.f32 1.0, %v3083
    %3085 = vmatprep.subr.mxu0 0.0
    %3086 = vmatpush1.msra.mxu0 %v148
    %3087 = vmatprep.subr.mxu0 0.0
    %3088 = vmatpush1.msra.mxu0 %v149
    %3089 = vmatprep.subr.mxu0 0.0
    %3090 = vmatpush1.msra.mxu0 %v150
    %3091 = vmatprep.subr.mxu0 0.0
    %3092 = vmatpush1.msra.mxu0 %v151
    %3093 = vmatprep.subr.mxu0 0.0
    %3094 = vmatpush1.msra.mxu0 0.0
    %3095 = vmatprep.subr.mxu0 0.0
    %3096 = vmatpush1.msra.mxu0 0.0
    %3097 = vmatprep.subr.mxu0 0.0
    %3098 = vmatpush1.msra.mxu0 0.0
    %3099 = vmatprep.subr.mxu0 0.0
    %3100 = vmatpush1.msra.mxu0 0.0
    %3101 = vmatprep.subr.mxu0 0.0
    %3102 = vmatpush1.msra.mxu0 0.0
    %3103 = vmatprep.subr.mxu0 0.0
    %3104 = vmatpush1.msra.mxu0 0.0
    %3105 = vmatprep.subr.mxu0 0.0
    %3106 = vmatpush1.msra.mxu0 0.0
    %3107 = vmatprep.subr.mxu0 0.0
    %3108 = vmatpush1.msra.mxu0 0.0
    %3109 = vmatprep.subr.mxu0 0.0
    %3110 = vmatpush1.msra.mxu0 0.0
    %3111 = vmatprep.subr.mxu0 0.0
    %3112 = vmatpush1.msra.mxu0 0.0
    %3113 = vmatprep.subr.mxu0 0.0
    %3114 = vmatpush1.msra.mxu0 0.0
    %3115 = vmatprep.subr.mxu0 0.0
    %3116 = vmatpush1.msra.mxu0 0.0
    %3117 = vmatprep.subr.mxu0 0.0
    %3118 = vmatpush1.msra.mxu0 0.0
    %3119 = vmatprep.subr.mxu0 0.0
    %3120 = vmatpush1.msra.mxu0 0.0
    %3121 = vmatprep.subr.mxu0 0.0
    %3122 = vmatpush1.msra.mxu0 0.0
    %3123 = vmatprep.subr.mxu0 0.0
    %3124 = vmatpush1.msra.mxu0 0.0
    %3125 = vmatprep.subr.mxu0 0.0
    %3126 = vmatpush1.msra.mxu0 0.0
    %3127 = vmatprep.subr.mxu0 0.0
    %3128 = vmatpush1.msra.mxu0 0.0
    %3129 = vmatprep.subr.mxu0 0.0
    %3130 = vmatpush1.msra.mxu0 0.0
    %3131 = vmatprep.subr.mxu0 0.0
    %3132 = vmatpush1.msra.mxu0 0.0
    %3133 = vmatprep.subr.mxu0 0.0
    %3134 = vmatpush1.msra.mxu0 0.0
    %3135 = vmatprep.subr.mxu0 0.0
    %3136 = vmatpush1.msra.mxu0 0.0
    %3137 = vmatprep.subr.mxu0 0.0
    %3138 = vmatpush1.msra.mxu0 0.0
    %3139 = vmatprep.subr.mxu0 0.0
    %3140 = vmatpush1.msra.mxu0 0.0
    %3141 = vmatprep.subr.mxu0 0.0
    %3142 = vmatpush1.msra.mxu0 0.0
    %3143 = vmatprep.subr.mxu0 0.0
    %3144 = vmatpush1.msra.mxu0 0.0
    %3145 = vmatprep.subr.mxu0 0.0
    %3146 = vmatpush1.msra.mxu0 0.0
    %3147 = vmatprep.subr.mxu0 0.0
    %3148 = vmatpush1.msra.mxu0 0.0
    %3149 = vmatprep.mubr.f32.mxu0 0.0
    %3150 = vmatmul.mubr.f32.gmra.mrb[0].mxu0 %v2933
    %v3151 = vpop.f32.mrb[0].mxu0
    %v3152 = vadd.f32 0.0, %v3151
    %v3153 = vpop.f32.mrb[0].mxu0
    %3154 = vdwg.mxu0
    %3155 = vmatprep.subr.mxu0 0.0
    %3156 = vmatpush1.msra.mxu0 %v438
    %3157 = vmatprep.subr.mxu0 0.0
    %3158 = vmatpush1.msra.mxu0 0.0
    %3159 = vmatprep.subr.mxu0 0.0
    %3160 = vmatpush1.msra.mxu0 0.0
    %3161 = vmatprep.subr.mxu0 0.0
    %3162 = vmatpush1.msra.mxu0 0.0
    %3163 = vmatprep.subr.mxu0 0.0
    %3164 = vmatpush1.msra.mxu0 0.0
    %3165 = vmatprep.subr.mxu0 0.0
    %3166 = vmatpush1.msra.mxu0 0.0
    %3167 = vmatprep.subr.mxu0 0.0
    %3168 = vmatpush1.msra.mxu0 0.0
    %3169 = vmatprep.subr.mxu0 0.0
    %3170 = vmatpush1.msra.mxu0 0.0
    %3171 = vmatprep.subr.mxu0 0.0
    %3172 = vmatpush1.msra.mxu0 0.0
    %3173 = vmatprep.subr.mxu0 0.0
    %3174 = vmatpush1.msra.mxu0 0.0
    %3175 = vmatprep.subr.mxu0 0.0
    %3176 = vmatpush1.msra.mxu0 0.0
    %3177 = vmatprep.subr.mxu0 0.0
    %3178 = vmatpush1.msra.mxu0 0.0
    %3179 = vmatprep.subr.mxu0 0.0
    %3180 = vmatpush1.msra.mxu0 0.0
    %3181 = vmatprep.subr.mxu0 0.0
    %3182 = vmatpush1.msra.mxu0 0.0
    %3183 = vmatprep.subr.mxu0 0.0
    %3184 = vmatpush1.msra.mxu0 0.0
    %3185 = vmatprep.subr.mxu0 0.0
    %3186 = vmatpush1.msra.mxu0 0.0
    %3187 = vmatprep.subr.mxu0 0.0
    %3188 = vmatpush1.msra.mxu0 0.0
    %3189 = vmatprep.subr.mxu0 0.0
    %3190 = vmatpush1.msra.mxu0 0.0
    %3191 = vmatprep.subr.mxu0 0.0
    %3192 = vmatpush1.msra.mxu0 0.0
    %3193 = vmatprep.subr.mxu0 0.0
    %3194 = vmatpush1.msra.mxu0 0.0
    %3195 = vmatprep.subr.mxu0 0.0
    %3196 = vmatpush1.msra.mxu0 0.0
    %3197 = vmatprep.subr.mxu0 0.0
    %3198 = vmatpush1.msra.mxu0 0.0
    %3199 = vmatprep.subr.mxu0 0.0
    %3200 = vmatpush1.msra.mxu0 0.0
    %3201 = vmatprep.subr.mxu0 0.0
    %3202 = vmatpush1.msra.mxu0 0.0
    %3203 = vmatprep.subr.mxu0 0.0
    %3204 = vmatpush1.msra.mxu0 0.0
    %3205 = vmatprep.subr.mxu0 0.0
    %3206 = vmatpush1.msra.mxu0 0.0
    %3207 = vmatprep.subr.mxu0 0.0
    %3208 = vmatpush1.msra.mxu0 0.0
    %3209 = vmatprep.subr.mxu0 0.0
    %3210 = vmatpush1.msra.mxu0 0.0
    %3211 = vmatprep.subr.mxu0 0.0
    %3212 = vmatpush1.msra.mxu0 0.0
    %3213 = vmatprep.subr.mxu0 0.0
    %3214 = vmatpush1.msra.mxu0 0.0
    %3215 = vmatprep.subr.mxu0 0.0
    %3216 = vmatpush1.msra.mxu0 0.0
    %3217 = vmatprep.subr.mxu0 0.0
    %3218 = vmatpush1.msra.mxu0 0.0
    %3219 = vmatprep.mubr.f32.mxu0 0.0
    %3220 = vmatmul.mubr.f32.gmra.mrb[0].mxu0 %v3006
    %v3221 = vpop.f32.mrb[0].mxu0
    %v3222 = vadd.f32 %v3152, %v3221
    %v3223 = vpop.f32.mrb[0].mxu0
    %3224 = vdwg.mxu0
    %v3225 = vadd.f32 %v3222, %v514
    %v3226 = vxor.u32 %v3225, 2147483648
    %v3227 = vmul.f32 %v3226, 1.442695
    %v3228 = vpow.pop %v3227
    %v3229 = vadd.f32 %v3228, 1.0
    %v3230 = vrcp.pop %v3229
    %v3231 = vmul.f32 1.0, %v3230
    %3232 = vmatprep.subr.mxu0 0.0
    %3233 = vmatpush1.msra.mxu0 %v530
    %3234 = vmatprep.subr.mxu0 0.0
    %3235 = vmatpush1.msra.mxu0 0.0
    %3236 = vmatprep.subr.mxu0 0.0
    %3237 = vmatpush1.msra.mxu0 0.0
    %3238 = vmatprep.subr.mxu0 0.0
    %3239 = vmatpush1.msra.mxu0 0.0
    %3240 = vmatprep.subr.mxu0 0.0
    %3241 = vmatpush1.msra.mxu0 0.0
    %3242 = vmatprep.subr.mxu0 0.0
    %3243 = vmatpush1.msra.mxu0 0.0
    %3244 = vmatprep.subr.mxu0 0.0
    %3245 = vmatpush1.msra.mxu0 0.0
    %3246 = vmatprep.subr.mxu0 0.0
    %3247 = vmatpush1.msra.mxu0 0.0
    %3248 = vmatprep.subr.mxu0 0.0
    %3249 = vmatpush1.msra.mxu0 0.0
    %3250 = vmatprep.subr.mxu0 0.0
    %3251 = vmatpush1.msra.mxu0 0.0
    %3252 = vmatprep.subr.mxu0 0.0
    %3253 = vmatpush1.msra.mxu0 0.0
    %3254 = vmatprep.subr.mxu0 0.0
    %3255 = vmatpush1.msra.mxu0 0.0
    %3256 = vmatprep.subr.mxu0 0.0
    %3257 = vmatpush1.msra.mxu0 0.0
    %3258 = vmatprep.subr.mxu0 0.0
    %3259 = vmatpush1.msra.mxu0 0.0
    %3260 = vmatprep.subr.mxu0 0.0
    %3261 = vmatpush1.msra.mxu0 0.0
    %3262 = vmatprep.subr.mxu0 0.0
    %3263 = vmatpush1.msra.mxu0 0.0
    %3264 = vmatprep.subr.mxu0 0.0
    %3265 = vmatpush1.msra.mxu0 0.0
    %3266 = vmatprep.subr.mxu0 0.0
    %3267 = vmatpush1.msra.mxu0 0.0
    %3268 = vmatprep.subr.mxu0 0.0
    %3269 = vmatpush1.msra.mxu0 0.0
    %3270 = vmatprep.subr.mxu0 0.0
    %3271 = vmatpush1.msra.mxu0 0.0
    %3272 = vmatprep.subr.mxu0 0.0
    %3273 = vmatpush1.msra.mxu0 0.0
    %3274 = vmatprep.subr.mxu0 0.0
    %3275 = vmatpush1.msra.mxu0 0.0
    %3276 = vmatprep.subr.mxu0 0.0
    %3277 = vmatpush1.msra.mxu0 0.0
    %3278 = vmatprep.subr.mxu0 0.0
    %3279 = vmatpush1.msra.mxu0 0.0
    %3280 = vmatprep.subr.mxu0 0.0
    %3281 = vmatpush1.msra.mxu0 0.0
    %3282 = vmatprep.subr.mxu0 0.0
    %3283 = vmatpush1.msra.mxu0 0.0
    %3284 = vmatprep.subr.mxu0 0.0
    %3285 = vmatpush1.msra.mxu0 0.0
    %3286 = vmatprep.subr.mxu0 0.0
    %3287 = vmatpush1.msra.mxu0 0.0
    %3288 = vmatprep.subr.mxu0 0.0
    %3289 = vmatpush1.msra.mxu0 0.0
    %3290 = vmatprep.subr.mxu0 0.0
    %3291 = vmatpush1.msra.mxu0 0.0
    %3292 = vmatprep.subr.mxu0 0.0
    %3293 = vmatpush1.msra.mxu0 0.0
    %3294 = vmatprep.subr.mxu0 0.0
    %3295 = vmatpush1.msra.mxu0 0.0
    %3296 = vmatprep.mubr.f32.mxu0 0.0
    %3297 = vmatmul.mubr.f32.gmra.mrb[0].mxu0 %v3006
    %v3298 = vpop.f32.mrb[0].mxu0
    %v3299 = vadd.f32 %v527, %v3298
    %v3300 = vpop.f32.mrb[0].mxu0
    %3301 = vdwg.mxu0
    %3302 = vmatprep.subr.mxu0 0.0
    %3303 = vmatpush1.msra.mxu0 %v153
    %3304 = vmatprep.subr.mxu0 0.0
    %3305 = vmatpush1.msra.mxu0 %v154
    %3306 = vmatprep.subr.mxu0 0.0
    %3307 = vmatpush1.msra.mxu0 %v155
    %3308 = vmatprep.subr.mxu0 0.0
    %3309 = vmatpush1.msra.mxu0 %v156
    %3310 = vmatprep.subr.mxu0 0.0
    %3311 = vmatpush1.msra.mxu0 0.0
    %3312 = vmatprep.subr.mxu0 0.0
    %3313 = vmatpush1.msra.mxu0 0.0
    %3314 = vmatprep.subr.mxu0 0.0
    %3315 = vmatpush1.msra.mxu0 0.0
    %3316 = vmatprep.subr.mxu0 0.0
    %3317 = vmatpush1.msra.mxu0 0.0
    %3318 = vmatprep.subr.mxu0 0.0
    %3319 = vmatpush1.msra.mxu0 0.0
    %3320 = vmatprep.subr.mxu0 0.0
    %3321 = vmatpush1.msra.mxu0 0.0
    %3322 = vmatprep.subr.mxu0 0.0
    %3323 = vmatpush1.msra.mxu0 0.0
    %3324 = vmatprep.subr.mxu0 0.0
    %3325 = vmatpush1.msra.mxu0 0.0
    %3326 = vmatprep.subr.mxu0 0.0
    %3327 = vmatpush1.msra.mxu0 0.0
    %3328 = vmatprep.subr.mxu0 0.0
    %3329 = vmatpush1.msra.mxu0 0.0
    %3330 = vmatprep.subr.mxu0 0.0
    %3331 = vmatpush1.msra.mxu0 0.0
    %3332 = vmatprep.subr.mxu0 0.0
    %3333 = vmatpush1.msra.mxu0 0.0
    %3334 = vmatprep.subr.mxu0 0.0
    %3335 = vmatpush1.msra.mxu0 0.0
    %3336 = vmatprep.subr.mxu0 0.0
    %3337 = vmatpush1.msra.mxu0 0.0
    %3338 = vmatprep.subr.mxu0 0.0
    %3339 = vmatpush1.msra.mxu0 0.0
    %3340 = vmatprep.subr.mxu0 0.0
    %3341 = vmatpush1.msra.mxu0 0.0
    %3342 = vmatprep.subr.mxu0 0.0
    %3343 = vmatpush1.msra.mxu0 0.0
    %3344 = vmatprep.subr.mxu0 0.0
    %3345 = vmatpush1.msra.mxu0 0.0
    %3346 = vmatprep.subr.mxu0 0.0
    %3347 = vmatpush1.msra.mxu0 0.0
    %3348 = vmatprep.subr.mxu0 0.0
    %3349 = vmatpush1.msra.mxu0 0.0
    %3350 = vmatprep.subr.mxu0 0.0
    %3351 = vmatpush1.msra.mxu0 0.0
    %3352 = vmatprep.subr.mxu0 0.0
    %3353 = vmatpush1.msra.mxu0 0.0
    %3354 = vmatprep.subr.mxu0 0.0
    %3355 = vmatpush1.msra.mxu0 0.0
    %3356 = vmatprep.subr.mxu0 0.0
    %3357 = vmatpush1.msra.mxu0 0.0
    %3358 = vmatprep.subr.mxu0 0.0
    %3359 = vmatpush1.msra.mxu0 0.0
    %3360 = vmatprep.subr.mxu0 0.0
    %3361 = vmatpush1.msra.mxu0 0.0
    %3362 = vmatprep.subr.mxu0 0.0
    %3363 = vmatpush1.msra.mxu0 0.0
    %3364 = vmatprep.subr.mxu0 0.0
    %3365 = vmatpush1.msra.mxu0 0.0
    %3366 = vmatprep.mubr.f32.mxu0 0.0
    %3367 = vmatmul.mubr.f32.gmra.mrb[0].mxu0 %v2933
    %v3368 = vpop.f32.mrb[0].mxu0
    %v3369 = vadd.f32 %v606, %v3368
    %v3370 = vpop.f32.mrb[0].mxu0
    %3371 = vdwg.mxu0
    %v3372 = vmul.f32 %v3084, %v3369
    %v3373 = vadd.f32 %v3299, %v3372
    %v3374 = vtanh.pop %v3373
    %v3375 = vsub.f32 1.0, %v3231
    %v3376 = vmul.f32 %v3375, %v3374
    %v3377 = vmul.f32 %v3231, %v2929
    %v3378 = vadd.f32 %v3376, %v3377
    %s3379 = scalar_lea.vmem %s0, 56
    %v3380 = vld [vmem:[%s3379] sm:$0xff]
    %v3382 = vsel %vm202, %v3378, 0
    %3384 = vmatprep.subr.mxu0 0.0
    %3385 = vmatpush1.msra.mxu0 %v143
    %3386 = vmatprep.subr.mxu0 0.0
    %3387 = vmatpush1.msra.mxu0 %v144
    %3388 = vmatprep.subr.mxu0 0.0
    %3389 = vmatpush1.msra.mxu0 %v145
    %3390 = vmatprep.subr.mxu0 0.0
    %3391 = vmatpush1.msra.mxu0 %v146
    %3392 = vmatprep.subr.mxu0 0.0
    %3393 = vmatpush1.msra.mxu0 0.0
    %3394 = vmatprep.subr.mxu0 0.0
    %3395 = vmatpush1.msra.mxu0 0.0
    %3396 = vmatprep.subr.mxu0 0.0
    %3397 = vmatpush1.msra.mxu0 0.0
    %3398 = vmatprep.subr.mxu0 0.0
    %3399 = vmatpush1.msra.mxu0 0.0
    %3400 = vmatprep.subr.mxu0 0.0
    %3401 = vmatpush1.msra.mxu0 0.0
    %3402 = vmatprep.subr.mxu0 0.0
    %3403 = vmatpush1.msra.mxu0 0.0
    %3404 = vmatprep.subr.mxu0 0.0
    %3405 = vmatpush1.msra.mxu0 0.0
    %3406 = vmatprep.subr.mxu0 0.0
    %3407 = vmatpush1.msra.mxu0 0.0
    %3408 = vmatprep.subr.mxu0 0.0
    %3409 = vmatpush1.msra.mxu0 0.0
    %3410 = vmatprep.subr.mxu0 0.0
    %3411 = vmatpush1.msra.mxu0 0.0
    %3412 = vmatprep.subr.mxu0 0.0
    %3413 = vmatpush1.msra.mxu0 0.0
    %3414 = vmatprep.subr.mxu0 0.0
    %3415 = vmatpush1.msra.mxu0 0.0
    %3416 = vmatprep.subr.mxu0 0.0
    %3417 = vmatpush1.msra.mxu0 0.0
    %3418 = vmatprep.subr.mxu0 0.0
    %3419 = vmatpush1.msra.mxu0 0.0
    %3420 = vmatprep.subr.mxu0 0.0
    %3421 = vmatpush1.msra.mxu0 0.0
    %3422 = vmatprep.subr.mxu0 0.0
    %3423 = vmatpush1.msra.mxu0 0.0
    %3424 = vmatprep.subr.mxu0 0.0
    %3425 = vmatpush1.msra.mxu0 0.0
    %3426 = vmatprep.subr.mxu0 0.0
    %3427 = vmatpush1.msra.mxu0 0.0
    %3428 = vmatprep.subr.mxu0 0.0
    %3429 = vmatpush1.msra.mxu0 0.0
    %3430 = vmatprep.subr.mxu0 0.0
    %3431 = vmatpush1.msra.mxu0 0.0
    %3432 = vmatprep.subr.mxu0 0.0
    %3433 = vmatpush1.msra.mxu0 0.0
    %3434 = vmatprep.subr.mxu0 0.0
    %3435 = vmatpush1.msra.mxu0 0.0
    %3436 = vmatprep.subr.mxu0 0.0
    %3437 = vmatpush1.msra.mxu0 0.0
    %3438 = vmatprep.subr.mxu0 0.0
    %3439 = vmatpush1.msra.mxu0 0.0
    %3440 = vmatprep.subr.mxu0 0.0
    %3441 = vmatpush1.msra.mxu0 0.0
    %3442 = vmatprep.subr.mxu0 0.0
    %3443 = vmatpush1.msra.mxu0 0.0
    %3444 = vmatprep.subr.mxu0 0.0
    %3445 = vmatpush1.msra.mxu0 0.0
    %3446 = vmatprep.subr.mxu0 0.0
    %3447 = vmatpush1.msra.mxu0 0.0
    %3448 = vmatprep.mubr.f32.mxu0 0.0
    %3449 = vmatmul.mubr.f32.gmra.mrb[0].mxu0 %v3382
    %v3450 = vpop.f32.mrb[0].mxu0
    %v3451 = vadd.f32 0.0, %v3450
    %v3452 = vpop.f32.mrb[0].mxu0
    %3453 = vdwg.mxu0
    %v3455 = vsel %vm276, %v3380, 0
    %3457 = vmatprep.subr.mxu0 0.0
    %3458 = vmatpush1.msra.mxu0 %v282
    %3459 = vmatprep.subr.mxu0 0.0
    %3460 = vmatpush1.msra.mxu0 0.0
    %3461 = vmatprep.subr.mxu0 0.0
    %3462 = vmatpush1.msra.mxu0 0.0
    %3463 = vmatprep.subr.mxu0 0.0
    %3464 = vmatpush1.msra.mxu0 0.0
    %3465 = vmatprep.subr.mxu0 0.0
    %3466 = vmatpush1.msra.mxu0 0.0
    %3467 = vmatprep.subr.mxu0 0.0
    %3468 = vmatpush1.msra.mxu0 0.0
    %3469 = vmatprep.subr.mxu0 0.0
    %3470 = vmatpush1.msra.mxu0 0.0
    %3471 = vmatprep.subr.mxu0 0.0
    %3472 = vmatpush1.msra.mxu0 0.0
    %3473 = vmatprep.subr.mxu0 0.0
    %3474 = vmatpush1.msra.mxu0 0.0
    %3475 = vmatprep.subr.mxu0 0.0
    %3476 = vmatpush1.msra.mxu0 0.0
    %3477 = vmatprep.subr.mxu0 0.0
    %3478 = vmatpush1.msra.mxu0 0.0
    %3479 = vmatprep.subr.mxu0 0.0
    %3480 = vmatpush1.msra.mxu0 0.0
    %3481 = vmatprep.subr.mxu0 0.0
    %3482 = vmatpush1.msra.mxu0 0.0
    %3483 = vmatprep.subr.mxu0 0.0
    %3484 = vmatpush1.msra.mxu0 0.0
    %3485 = vmatprep.subr.mxu0 0.0
    %3486 = vmatpush1.msra.mxu0 0.0
    %3487 = vmatprep.subr.mxu0 0.0
    %3488 = vmatpush1.msra.mxu0 0.0
    %3489 = vmatprep.subr.mxu0 0.0
    %3490 = vmatpush1.msra.mxu0 0.0
    %3491 = vmatprep.subr.mxu0 0.0
    %3492 = vmatpush1.msra.mxu0 0.0
    %3493 = vmatprep.subr.mxu0 0.0
    %3494 = vmatpush1.msra.mxu0 0.0
    %3495 = vmatprep.subr.mxu0 0.0
    %3496 = vmatpush1.msra.mxu0 0.0
    %3497 = vmatprep.subr.mxu0 0.0
    %3498 = vmatpush1.msra.mxu0 0.0
    %3499 = vmatprep.subr.mxu0 0.0
    %3500 = vmatpush1.msra.mxu0 0.0
    %3501 = vmatprep.subr.mxu0 0.0
    %3502 = vmatpush1.msra.mxu0 0.0
    %3503 = vmatprep.subr.mxu0 0.0
    %3504 = vmatpush1.msra.mxu0 0.0
    %3505 = vmatprep.subr.mxu0 0.0
    %3506 = vmatpush1.msra.mxu0 0.0
    %3507 = vmatprep.subr.mxu0 0.0
    %3508 = vmatpush1.msra.mxu0 0.0
    %3509 = vmatprep.subr.mxu0 0.0
    %3510 = vmatpush1.msra.mxu0 0.0
    %3511 = vmatprep.subr.mxu0 0.0
    %3512 = vmatpush1.msra.mxu0 0.0
    %3513 = vmatprep.subr.mxu0 0.0
    %3514 = vmatpush1.msra.mxu0 0.0
    %3515 = vmatprep.subr.mxu0 0.0
    %3516 = vmatpush1.msra.mxu0 0.0
    %3517 = vmatprep.subr.mxu0 0.0
    %3518 = vmatpush1.msra.mxu0 0.0
    %3519 = vmatprep.subr.mxu0 0.0
    %3520 = vmatpush1.msra.mxu0 0.0
    %3521 = vmatprep.mubr.f32.mxu0 0.0
    %3522 = vmatmul.mubr.f32.gmra.mrb[0].mxu0 %v3455
    %v3523 = vpop.f32.mrb[0].mxu0
    %v3524 = vadd.f32 %v3451, %v3523
    %v3525 = vpop.f32.mrb[0].mxu0
    %3526 = vdwg.mxu0
    %v3527 = vadd.f32 %v3524, %v358
    %v3528 = vxor.u32 %v3527, 2147483648
    %v3529 = vmul.f32 %v3528, 1.442695
    %v3530 = vpow.pop %v3529
    %v3531 = vadd.f32 %v3530, 1.0
    %v3532 = vrcp.pop %v3531
    %v3533 = vmul.f32 1.0, %v3532
    %3534 = vmatprep.subr.mxu0 0.0
    %3535 = vmatpush1.msra.mxu0 %v148
    %3536 = vmatprep.subr.mxu0 0.0
    %3537 = vmatpush1.msra.mxu0 %v149
    %3538 = vmatprep.subr.mxu0 0.0
    %3539 = vmatpush1.msra.mxu0 %v150
    %3540 = vmatprep.subr.mxu0 0.0
    %3541 = vmatpush1.msra.mxu0 %v151
    %3542 = vmatprep.subr.mxu0 0.0
    %3543 = vmatpush1.msra.mxu0 0.0
    %3544 = vmatprep.subr.mxu0 0.0
    %3545 = vmatpush1.msra.mxu0 0.0
    %3546 = vmatprep.subr.mxu0 0.0
    %3547 = vmatpush1.msra.mxu0 0.0
    %3548 = vmatprep.subr.mxu0 0.0
    %3549 = vmatpush1.msra.mxu0 0.0
    %3550 = vmatprep.subr.mxu0 0.0
    %3551 = vmatpush1.msra.mxu0 0.0
    %3552 = vmatprep.subr.mxu0 0.0
    %3553 = vmatpush1.msra.mxu0 0.0
    %3554 = vmatprep.subr.mxu0 0.0
    %3555 = vmatpush1.msra.mxu0 0.0
    %3556 = vmatprep.subr.mxu0 0.0
    %3557 = vmatpush1.msra.mxu0 0.0
    %3558 = vmatprep.subr.mxu0 0.0
    %3559 = vmatpush1.msra.mxu0 0.0
    %3560 = vmatprep.subr.mxu0 0.0
    %3561 = vmatpush1.msra.mxu0 0.0
    %3562 = vmatprep.subr.mxu0 0.0
    %3563 = vmatpush1.msra.mxu0 0.0
    %3564 = vmatprep.subr.mxu0 0.0
    %3565 = vmatpush1.msra.mxu0 0.0
    %3566 = vmatprep.subr.mxu0 0.0
    %3567 = vmatpush1.msra.mxu0 0.0
    %3568 = vmatprep.subr.mxu0 0.0
    %3569 = vmatpush1.msra.mxu0 0.0
    %3570 = vmatprep.subr.mxu0 0.0
    %3571 = vmatpush1.msra.mxu0 0.0
    %3572 = vmatprep.subr.mxu0 0.0
    %3573 = vmatpush1.msra.mxu0 0.0
    %3574 = vmatprep.subr.mxu0 0.0
    %3575 = vmatpush1.msra.mxu0 0.0
    %3576 = vmatprep.subr.mxu0 0.0
    %3577 = vmatpush1.msra.mxu0 0.0
    %3578 = vmatprep.subr.mxu0 0.0
    %3579 = vmatpush1.msra.mxu0 0.0
    %3580 = vmatprep.subr.mxu0 0.0
    %3581 = vmatpush1.msra.mxu0 0.0
    %3582 = vmatprep.subr.mxu0 0.0
    %3583 = vmatpush1.msra.mxu0 0.0
    %3584 = vmatprep.subr.mxu0 0.0
    %3585 = vmatpush1.msra.mxu0 0.0
    %3586 = vmatprep.subr.mxu0 0.0
    %3587 = vmatpush1.msra.mxu0 0.0
    %3588 = vmatprep.subr.mxu0 0.0
    %3589 = vmatpush1.msra.mxu0 0.0
    %3590 = vmatprep.subr.mxu0 0.0
    %3591 = vmatpush1.msra.mxu0 0.0
    %3592 = vmatprep.subr.mxu0 0.0
    %3593 = vmatpush1.msra.mxu0 0.0
    %3594 = vmatprep.subr.mxu0 0.0
    %3595 = vmatpush1.msra.mxu0 0.0
    %3596 = vmatprep.subr.mxu0 0.0
    %3597 = vmatpush1.msra.mxu0 0.0
    %3598 = vmatprep.mubr.f32.mxu0 0.0
    %3599 = vmatmul.mubr.f32.gmra.mrb[0].mxu0 %v3382
    %v3600 = vpop.f32.mrb[0].mxu0
    %v3601 = vadd.f32 0.0, %v3600
    %v3602 = vpop.f32.mrb[0].mxu0
    %3603 = vdwg.mxu0
    %3604 = vmatprep.subr.mxu0 0.0
    %3605 = vmatpush1.msra.mxu0 %v438
    %3606 = vmatprep.subr.mxu0 0.0
    %3607 = vmatpush1.msra.mxu0 0.0
    %3608 = vmatprep.subr.mxu0 0.0
    %3609 = vmatpush1.msra.mxu0 0.0
    %3610 = vmatprep.subr.mxu0 0.0
    %3611 = vmatpush1.msra.mxu0 0.0
    %3612 = vmatprep.subr.mxu0 0.0
    %3613 = vmatpush1.msra.mxu0 0.0
    %3614 = vmatprep.subr.mxu0 0.0
    %3615 = vmatpush1.msra.mxu0 0.0
    %3616 = vmatprep.subr.mxu0 0.0
    %3617 = vmatpush1.msra.mxu0 0.0
    %3618 = vmatprep.subr.mxu0 0.0
    %3619 = vmatpush1.msra.mxu0 0.0
    %3620 = vmatprep.subr.mxu0 0.0
    %3621 = vmatpush1.msra.mxu0 0.0
    %3622 = vmatprep.subr.mxu0 0.0
    %3623 = vmatpush1.msra.mxu0 0.0
    %3624 = vmatprep.subr.mxu0 0.0
    %3625 = vmatpush1.msra.mxu0 0.0
    %3626 = vmatprep.subr.mxu0 0.0
    %3627 = vmatpush1.msra.mxu0 0.0
    %3628 = vmatprep.subr.mxu0 0.0
    %3629 = vmatpush1.msra.mxu0 0.0
    %3630 = vmatprep.subr.mxu0 0.0
    %3631 = vmatpush1.msra.mxu0 0.0
    %3632 = vmatprep.subr.mxu0 0.0
    %3633 = vmatpush1.msra.mxu0 0.0
    %3634 = vmatprep.subr.mxu0 0.0
    %3635 = vmatpush1.msra.mxu0 0.0
    %3636 = vmatprep.subr.mxu0 0.0
    %3637 = vmatpush1.msra.mxu0 0.0
    %3638 = vmatprep.subr.mxu0 0.0
    %3639 = vmatpush1.msra.mxu0 0.0
    %3640 = vmatprep.subr.mxu0 0.0
    %3641 = vmatpush1.msra.mxu0 0.0
    %3642 = vmatprep.subr.mxu0 0.0
    %3643 = vmatpush1.msra.mxu0 0.0
    %3644 = vmatprep.subr.mxu0 0.0
    %3645 = vmatpush1.msra.mxu0 0.0
    %3646 = vmatprep.subr.mxu0 0.0
    %3647 = vmatpush1.msra.mxu0 0.0
    %3648 = vmatprep.subr.mxu0 0.0
    %3649 = vmatpush1.msra.mxu0 0.0
    %3650 = vmatprep.subr.mxu0 0.0
    %3651 = vmatpush1.msra.mxu0 0.0
    %3652 = vmatprep.subr.mxu0 0.0
    %3653 = vmatpush1.msra.mxu0 0.0
    %3654 = vmatprep.subr.mxu0 0.0
    %3655 = vmatpush1.msra.mxu0 0.0
    %3656 = vmatprep.subr.mxu0 0.0
    %3657 = vmatpush1.msra.mxu0 0.0
    %3658 = vmatprep.subr.mxu0 0.0
    %3659 = vmatpush1.msra.mxu0 0.0
    %3660 = vmatprep.subr.mxu0 0.0
    %3661 = vmatpush1.msra.mxu0 0.0
    %3662 = vmatprep.subr.mxu0 0.0
    %3663 = vmatpush1.msra.mxu0 0.0
    %3664 = vmatprep.subr.mxu0 0.0
    %3665 = vmatpush1.msra.mxu0 0.0
    %3666 = vmatprep.subr.mxu0 0.0
    %3667 = vmatpush1.msra.mxu0 0.0
    %3668 = vmatprep.mubr.f32.mxu0 0.0
    %3669 = vmatmul.mubr.f32.gmra.mrb[0].mxu0 %v3455
    %v3670 = vpop.f32.mrb[0].mxu0
    %v3671 = vadd.f32 %v3601, %v3670
    %v3672 = vpop.f32.mrb[0].mxu0
    %3673 = vdwg.mxu0
    %v3674 = vadd.f32 %v3671, %v514
    %v3675 = vxor.u32 %v3674, 2147483648
    %v3676 = vmul.f32 %v3675, 1.442695
    %v3677 = vpow.pop %v3676
    %v3678 = vadd.f32 %v3677, 1.0
    %v3679 = vrcp.pop %v3678
    %v3680 = vmul.f32 1.0, %v3679
    %3681 = vmatprep.subr.mxu0 0.0
    %3682 = vmatpush1.msra.mxu0 %v530
    %3683 = vmatprep.subr.mxu0 0.0
    %3684 = vmatpush1.msra.mxu0 0.0
    %3685 = vmatprep.subr.mxu0 0.0
    %3686 = vmatpush1.msra.mxu0 0.0
    %3687 = vmatprep.subr.mxu0 0.0
    %3688 = vmatpush1.msra.mxu0 0.0
    %3689 = vmatprep.subr.mxu0 0.0
    %3690 = vmatpush1.msra.mxu0 0.0
    %3691 = vmatprep.subr.mxu0 0.0
    %3692 = vmatpush1.msra.mxu0 0.0
    %3693 = vmatprep.subr.mxu0 0.0
    %3694 = vmatpush1.msra.mxu0 0.0
    %3695 = vmatprep.subr.mxu0 0.0
    %3696 = vmatpush1.msra.mxu0 0.0
    %3697 = vmatprep.subr.mxu0 0.0
    %3698 = vmatpush1.msra.mxu0 0.0
    %3699 = vmatprep.subr.mxu0 0.0
    %3700 = vmatpush1.msra.mxu0 0.0
    %3701 = vmatprep.subr.mxu0 0.0
    %3702 = vmatpush1.msra.mxu0 0.0
    %3703 = vmatprep.subr.mxu0 0.0
    %3704 = vmatpush1.msra.mxu0 0.0
    %3705 = vmatprep.subr.mxu0 0.0
    %3706 = vmatpush1.msra.mxu0 0.0
    %3707 = vmatprep.subr.mxu0 0.0
    %3708 = vmatpush1.msra.mxu0 0.0
    %3709 = vmatprep.subr.mxu0 0.0
    %3710 = vmatpush1.msra.mxu0 0.0
    %3711 = vmatprep.subr.mxu0 0.0
    %3712 = vmatpush1.msra.mxu0 0.0
    %3713 = vmatprep.subr.mxu0 0.0
    %3714 = vmatpush1.msra.mxu0 0.0
    %3715 = vmatprep.subr.mxu0 0.0
    %3716 = vmatpush1.msra.mxu0 0.0
    %3717 = vmatprep.subr.mxu0 0.0
    %3718 = vmatpush1.msra.mxu0 0.0
    %3719 = vmatprep.subr.mxu0 0.0
    %3720 = vmatpush1.msra.mxu0 0.0
    %3721 = vmatprep.subr.mxu0 0.0
    %3722 = vmatpush1.msra.mxu0 0.0
    %3723 = vmatprep.subr.mxu0 0.0
    %3724 = vmatpush1.msra.mxu0 0.0
    %3725 = vmatprep.subr.mxu0 0.0
    %3726 = vmatpush1.msra.mxu0 0.0
    %3727 = vmatprep.subr.mxu0 0.0
    %3728 = vmatpush1.msra.mxu0 0.0
    %3729 = vmatprep.subr.mxu0 0.0
    %3730 = vmatpush1.msra.mxu0 0.0
    %3731 = vmatprep.subr.mxu0 0.0
    %3732 = vmatpush1.msra.mxu0 0.0
    %3733 = vmatprep.subr.mxu0 0.0
    %3734 = vmatpush1.msra.mxu0 0.0
    %3735 = vmatprep.subr.mxu0 0.0
    %3736 = vmatpush1.msra.mxu0 0.0
    %3737 = vmatprep.subr.mxu0 0.0
    %3738 = vmatpush1.msra.mxu0 0.0
    %3739 = vmatprep.subr.mxu0 0.0
    %3740 = vmatpush1.msra.mxu0 0.0
    %3741 = vmatprep.subr.mxu0 0.0
    %3742 = vmatpush1.msra.mxu0 0.0
    %3743 = vmatprep.subr.mxu0 0.0
    %3744 = vmatpush1.msra.mxu0 0.0
    %3745 = vmatprep.mubr.f32.mxu0 0.0
    %3746 = vmatmul.mubr.f32.gmra.mrb[0].mxu0 %v3455
    %v3747 = vpop.f32.mrb[0].mxu0
    %v3748 = vadd.f32 %v527, %v3747
    %v3749 = vpop.f32.mrb[0].mxu0
    %3750 = vdwg.mxu0
    %3751 = vmatprep.subr.mxu0 0.0
    %3752 = vmatpush1.msra.mxu0 %v153
    %3753 = vmatprep.subr.mxu0 0.0
    %3754 = vmatpush1.msra.mxu0 %v154
    %3755 = vmatprep.subr.mxu0 0.0
    %3756 = vmatpush1.msra.mxu0 %v155
    %3757 = vmatprep.subr.mxu0 0.0
    %3758 = vmatpush1.msra.mxu0 %v156
    %3759 = vmatprep.subr.mxu0 0.0
    %3760 = vmatpush1.msra.mxu0 0.0
    %3761 = vmatprep.subr.mxu0 0.0
    %3762 = vmatpush1.msra.mxu0 0.0
    %3763 = vmatprep.subr.mxu0 0.0
    %3764 = vmatpush1.msra.mxu0 0.0
    %3765 = vmatprep.subr.mxu0 0.0
    %3766 = vmatpush1.msra.mxu0 0.0
    %3767 = vmatprep.subr.mxu0 0.0
    %3768 = vmatpush1.msra.mxu0 0.0
    %3769 = vmatprep.subr.mxu0 0.0
    %3770 = vmatpush1.msra.mxu0 0.0
    %3771 = vmatprep.subr.mxu0 0.0
    %3772 = vmatpush1.msra.mxu0 0.0
    %3773 = vmatprep.subr.mxu0 0.0
    %3774 = vmatpush1.msra.mxu0 0.0
    %3775 = vmatprep.subr.mxu0 0.0
    %3776 = vmatpush1.msra.mxu0 0.0
    %3777 = vmatprep.subr.mxu0 0.0
    %3778 = vmatpush1.msra.mxu0 0.0
    %3779 = vmatprep.subr.mxu0 0.0
    %3780 = vmatpush1.msra.mxu0 0.0
    %3781 = vmatprep.subr.mxu0 0.0
    %3782 = vmatpush1.msra.mxu0 0.0
    %3783 = vmatprep.subr.mxu0 0.0
    %3784 = vmatpush1.msra.mxu0 0.0
    %3785 = vmatprep.subr.mxu0 0.0
    %3786 = vmatpush1.msra.mxu0 0.0
    %3787 = vmatprep.subr.mxu0 0.0
    %3788 = vmatpush1.msra.mxu0 0.0
    %3789 = vmatprep.subr.mxu0 0.0
    %3790 = vmatpush1.msra.mxu0 0.0
    %3791 = vmatprep.subr.mxu0 0.0
    %3792 = vmatpush1.msra.mxu0 0.0
    %3793 = vmatprep.subr.mxu0 0.0
    %3794 = vmatpush1.msra.mxu0 0.0
    %3795 = vmatprep.subr.mxu0 0.0
    %3796 = vmatpush1.msra.mxu0 0.0
    %3797 = vmatprep.subr.mxu0 0.0
    %3798 = vmatpush1.msra.mxu0 0.0
    %3799 = vmatprep.subr.mxu0 0.0
    %3800 = vmatpush1.msra.mxu0 0.0
    %3801 = vmatprep.subr.mxu0 0.0
    %3802 = vmatpush1.msra.mxu0 0.0
    %3803 = vmatprep.subr.mxu0 0.0
    %3804 = vmatpush1.msra.mxu0 0.0
    %3805 = vmatprep.subr.mxu0 0.0
    %3806 = vmatpush1.msra.mxu0 0.0
    %3807 = vmatprep.subr.mxu0 0.0
    %3808 = vmatpush1.msra.mxu0 0.0
    %3809 = vmatprep.subr.mxu0 0.0
    %3810 = vmatpush1.msra.mxu0 0.0
    %3811 = vmatprep.subr.mxu0 0.0
    %3812 = vmatpush1.msra.mxu0 0.0
    %3813 = vmatprep.subr.mxu0 0.0
    %3814 = vmatpush1.msra.mxu0 0.0
    %3815 = vmatprep.mubr.f32.mxu0 0.0
    %3816 = vmatmul.mubr.f32.gmra.mrb[0].mxu0 %v3382
    %v3817 = vpop.f32.mrb[0].mxu0
    %v3818 = vadd.f32 %v606, %v3817
    %v3819 = vpop.f32.mrb[0].mxu0
    %3820 = vdwg.mxu0
    %v3821 = vmul.f32 %v3533, %v3818
    %v3822 = vadd.f32 %v3748, %v3821
    %v3823 = vtanh.pop %v3822
    %v3824 = vsub.f32 1.0, %v3680
    %v3825 = vmul.f32 %v3824, %v3823
    %v3826 = vmul.f32 %v3680, %v3378
    %v3827 = vadd.f32 %v3825, %v3826
    %3828 = vst.msk [vmem:[#allocation2] sm:$0xff] %vm202, %v3827
    %v3829 = vld [vmem:[#allocation5] sm:$0xff]
    %3831 = vrot.lane.b32.xlu0 %v3829, 32
    %v3832 = vpop.permute.xlu0 %3831
    %vm3834 = vcmask 523520
    %3835 = vst.msk [vmem:[#allocation2] sm:$0xff] %vm3834, %v3832
    %v3836 = vld [vmem:[#allocation2] sm:$0xff]
    %v3837 = vld [vmem:[%s3379] sm:$0xff]
    %vm3838 = vcmask 523264
    %v3840 = vsel %vm3838, %v3836, 0
    %3842 = vmatprep.subr.mxu0 0.0
    %3843 = vmatpush1.msra.mxu0 %v162
    %3844 = vmatprep.subr.mxu0 0.0
    %3845 = vmatpush1.msra.mxu0 %v163
    %3846 = vmatprep.subr.mxu0 0.0
    %3847 = vmatpush1.msra.mxu0 %v164
    %3848 = vmatprep.subr.mxu0 0.0
    %3849 = vmatpush1.msra.mxu0 %v165
    %3850 = vmatprep.subr.mxu0 0.0
    %3851 = vmatpush1.msra.mxu0 %v166
    %3852 = vmatprep.subr.mxu0 0.0
    %3853 = vmatpush1.msra.mxu0 %v167
    %3854 = vmatprep.subr.mxu0 0.0
    %3855 = vmatpush1.msra.mxu0 %v168
    %3856 = vmatprep.subr.mxu0 0.0
    %3857 = vmatpush1.msra.mxu0 %v169
    %3858 = vmatprep.subr.mxu0 0.0
    %3859 = vmatpush1.msra.mxu0 0.0
    %3860 = vmatprep.subr.mxu0 0.0
    %3861 = vmatpush1.msra.mxu0 0.0
    %3862 = vmatprep.subr.mxu0 0.0
    %3863 = vmatpush1.msra.mxu0 0.0
    %3864 = vmatprep.subr.mxu0 0.0
    %3865 = vmatpush1.msra.mxu0 0.0
    %3866 = vmatprep.subr.mxu0 0.0
    %3867 = vmatpush1.msra.mxu0 0.0
    %3868 = vmatprep.subr.mxu0 0.0
    %3869 = vmatpush1.msra.mxu0 0.0
    %3870 = vmatprep.subr.mxu0 0.0
    %3871 = vmatpush1.msra.mxu0 0.0
    %3872 = vmatprep.subr.mxu0 0.0
    %3873 = vmatpush1.msra.mxu0 0.0
    %3874 = vmatprep.subr.mxu0 0.0
    %3875 = vmatpush1.msra.mxu0 0.0
    %3876 = vmatprep.subr.mxu0 0.0
    %3877 = vmatpush1.msra.mxu0 0.0
    %3878 = vmatprep.subr.mxu0 0.0
    %3879 = vmatpush1.msra.mxu0 0.0
    %3880 = vmatprep.subr.mxu0 0.0
    %3881 = vmatpush1.msra.mxu0 0.0
    %3882 = vmatprep.subr.mxu0 0.0
    %3883 = vmatpush1.msra.mxu0 0.0
    %3884 = vmatprep.subr.mxu0 0.0
    %3885 = vmatpush1.msra.mxu0 0.0
    %3886 = vmatprep.subr.mxu0 0.0
    %3887 = vmatpush1.msra.mxu0 0.0
    %3888 = vmatprep.subr.mxu0 0.0
    %3889 = vmatpush1.msra.mxu0 0.0
    %3890 = vmatprep.subr.mxu0 0.0
    %3891 = vmatpush1.msra.mxu0 0.0
    %3892 = vmatprep.subr.mxu0 0.0
    %3893 = vmatpush1.msra.mxu0 0.0
    %3894 = vmatprep.subr.mxu0 0.0
    %3895 = vmatpush1.msra.mxu0 0.0
    %3896 = vmatprep.subr.mxu0 0.0
    %3897 = vmatpush1.msra.mxu0 0.0
    %3898 = vmatprep.subr.mxu0 0.0
    %3899 = vmatpush1.msra.mxu0 0.0
    %3900 = vmatprep.subr.mxu0 0.0
    %3901 = vmatpush1.msra.mxu0 0.0
    %3902 = vmatprep.subr.mxu0 0.0
    %3903 = vmatpush1.msra.mxu0 0.0
    %3904 = vmatprep.subr.mxu0 0.0
    %3905 = vmatpush1.msra.mxu0 0.0
    %3906 = vmatprep.mubr.f32.mxu0 0.0
    %3907 = vmatmul.mubr.f32.gmra.mrb[0].mxu0 %v3840
    %v3908 = vpop.f32.mrb[0].mxu0
    %v3909 = vadd.f32 0.0, %v3908
    %v3910 = vpop.f32.mrb[0].mxu0
    %3911 = vdwg.mxu0
    %v3913 = vsel %vm276, %v3837, 0
    %v3916 = vsel %vm280, %v161, 0
    %3918 = vmatprep.subr.mxu0 0.0
    %3919 = vmatpush1.msra.mxu0 %v3916
    %3920 = vmatprep.subr.mxu0 0.0
    %3921 = vmatpush1.msra.mxu0 0.0
    %3922 = vmatprep.subr.mxu0 0.0
    %3923 = vmatpush1.msra.mxu0 0.0
    %3924 = vmatprep.subr.mxu0 0.0
    %3925 = vmatpush1.msra.mxu0 0.0
    %3926 = vmatprep.subr.mxu0 0.0
    %3927 = vmatpush1.msra.mxu0 0.0
    %3928 = vmatprep.subr.mxu0 0.0
    %3929 = vmatpush1.msra.mxu0 0.0
    %3930 = vmatprep.subr.mxu0 0.0
    %3931 = vmatpush1.msra.mxu0 0.0
    %3932 = vmatprep.subr.mxu0 0.0
    %3933 = vmatpush1.msra.mxu0 0.0
    %3934 = vmatprep.subr.mxu0 0.0
    %3935 = vmatpush1.msra.mxu0 0.0
    %3936 = vmatprep.subr.mxu0 0.0
    %3937 = vmatpush1.msra.mxu0 0.0
    %3938 = vmatprep.subr.mxu0 0.0
    %3939 = vmatpush1.msra.mxu0 0.0
    %3940 = vmatprep.subr.mxu0 0.0
    %3941 = vmatpush1.msra.mxu0 0.0
    %3942 = vmatprep.subr.mxu0 0.0
    %3943 = vmatpush1.msra.mxu0 0.0
    %3944 = vmatprep.subr.mxu0 0.0
    %3945 = vmatpush1.msra.mxu0 0.0
    %3946 = vmatprep.subr.mxu0 0.0
    %3947 = vmatpush1.msra.mxu0 0.0
    %3948 = vmatprep.subr.mxu0 0.0
    %3949 = vmatpush1.msra.mxu0 0.0
    %3950 = vmatprep.subr.mxu0 0.0
    %3951 = vmatpush1.msra.mxu0 0.0
    %3952 = vmatprep.subr.mxu0 0.0
    %3953 = vmatpush1.msra.mxu0 0.0
    %3954 = vmatprep.subr.mxu0 0.0
    %3955 = vmatpush1.msra.mxu0 0.0
    %3956 = vmatprep.subr.mxu0 0.0
    %3957 = vmatpush1.msra.mxu0 0.0
    %3958 = vmatprep.subr.mxu0 0.0
    %3959 = vmatpush1.msra.mxu0 0.0
    %3960 = vmatprep.subr.mxu0 0.0
    %3961 = vmatpush1.msra.mxu0 0.0
    %3962 = vmatprep.subr.mxu0 0.0
    %3963 = vmatpush1.msra.mxu0 0.0
    %3964 = vmatprep.subr.mxu0 0.0
    %3965 = vmatpush1.msra.mxu0 0.0
    %3966 = vmatprep.subr.mxu0 0.0
    %3967 = vmatpush1.msra.mxu0 0.0
    %3968 = vmatprep.subr.mxu0 0.0
    %3969 = vmatpush1.msra.mxu0 0.0
    %3970 = vmatprep.subr.mxu0 0.0
    %3971 = vmatpush1.msra.mxu0 0.0
    %3972 = vmatprep.subr.mxu0 0.0
    %3973 = vmatpush1.msra.mxu0 0.0
    %3974 = vmatprep.subr.mxu0 0.0
    %3975 = vmatpush1.msra.mxu0 0.0
    %3976 = vmatprep.subr.mxu0 0.0
    %3977 = vmatpush1.msra.mxu0 0.0
    %3978 = vmatprep.subr.mxu0 0.0
    %3979 = vmatpush1.msra.mxu0 0.0
    %3980 = vmatprep.subr.mxu0 0.0
    %3981 = vmatpush1.msra.mxu0 0.0
    %3982 = vmatprep.mubr.f32.mxu0 0.0
    %3983 = vmatmul.mubr.f32.gmra.mrb[0].mxu0 %v3913
    %v3984 = vpop.f32.mrb[0].mxu0
    %v3985 = vadd.f32 %v3909, %v3984
    %v3986 = vpop.f32.mrb[0].mxu0
    %3987 = vdwg.mxu0
    %v3989 = vlaneseq
    %v3990 = vshrl.u32 %v3989, 7
    %v3991 = vsub.s32 0, %v3990
    %v3992 = vrot.slane %v188, %v3991
    %v3994 = vadd.f32 %v3985, %v3992
    %v3995 = vxor.u32 %v3994, 2147483648
    %v3996 = vmul.f32 %v3995, 1.442695
    %v3997 = vpow.pop %v3996
    %v3998 = vadd.f32 %v3997, 1.0
    %v3999 = vrcp.pop %v3998
    %v4000 = vmul.f32 1.0, %v3999
    %4001 = vmatprep.subr.mxu0 0.0
    %4002 = vmatpush1.msra.mxu0 %v171
    %4003 = vmatprep.subr.mxu0 0.0
    %4004 = vmatpush1.msra.mxu0 %v172
    %4005 = vmatprep.subr.mxu0 0.0
    %4006 = vmatpush1.msra.mxu0 %v173
    %4007 = vmatprep.subr.mxu0 0.0
    %4008 = vmatpush1.msra.mxu0 %v174
    %4009 = vmatprep.subr.mxu0 0.0
    %4010 = vmatpush1.msra.mxu0 %v175
    %4011 = vmatprep.subr.mxu0 0.0
    %4012 = vmatpush1.msra.mxu0 %v176
    %4013 = vmatprep.subr.mxu0 0.0
    %4014 = vmatpush1.msra.mxu0 %v177
    %4015 = vmatprep.subr.mxu0 0.0
    %4016 = vmatpush1.msra.mxu0 %v178
    %4017 = vmatprep.subr.mxu0 0.0
    %4018 = vmatpush1.msra.mxu0 0.0
    %4019 = vmatprep.subr.mxu0 0.0
    %4020 = vmatpush1.msra.mxu0 0.0
    %4021 = vmatprep.subr.mxu0 0.0
    %4022 = vmatpush1.msra.mxu0 0.0
    %4023 = vmatprep.subr.mxu0 0.0
    %4024 = vmatpush1.msra.mxu0 0.0
    %4025 = vmatprep.subr.mxu0 0.0
    %4026 = vmatpush1.msra.mxu0 0.0
    %4027 = vmatprep.subr.mxu0 0.0
    %4028 = vmatpush1.msra.mxu0 0.0
    %4029 = vmatprep.subr.mxu0 0.0
    %4030 = vmatpush1.msra.mxu0 0.0
    %4031 = vmatprep.subr.mxu0 0.0
    %4032 = vmatpush1.msra.mxu0 0.0
    %4033 = vmatprep.subr.mxu0 0.0
    %4034 = vmatpush1.msra.mxu0 0.0
    %4035 = vmatprep.subr.mxu0 0.0
    %4036 = vmatpush1.msra.mxu0 0.0
    %4037 = vmatprep.subr.mxu0 0.0
    %4038 = vmatpush1.msra.mxu0 0.0
    %4039 = vmatprep.subr.mxu0 0.0
    %4040 = vmatpush1.msra.mxu0 0.0
    %4041 = vmatprep.subr.mxu0 0.0
    %4042 = vmatpush1.msra.mxu0 0.0
    %4043 = vmatprep.subr.mxu0 0.0
    %4044 = vmatpush1.msra.mxu0 0.0
    %4045 = vmatprep.subr.mxu0 0.0
    %4046 = vmatpush1.msra.mxu0 0.0
    %4047 = vmatprep.subr.mxu0 0.0
    %4048 = vmatpush1.msra.mxu0 0.0
    %4049 = vmatprep.subr.mxu0 0.0
    %4050 = vmatpush1.msra.mxu0 0.0
    %4051 = vmatprep.subr.mxu0 0.0
    %4052 = vmatpush1.msra.mxu0 0.0
    %4053 = vmatprep.subr.mxu0 0.0
    %4054 = vmatpush1.msra.mxu0 0.0
    %4055 = vmatprep.subr.mxu0 0.0
    %4056 = vmatpush1.msra.mxu0 0.0
    %4057 = vmatprep.subr.mxu0 0.0
    %4058 = vmatpush1.msra.mxu0 0.0
    %4059 = vmatprep.subr.mxu0 0.0
    %4060 = vmatpush1.msra.mxu0 0.0
    %4061 = vmatprep.subr.mxu0 0.0
    %4062 = vmatpush1.msra.mxu0 0.0
    %4063 = vmatprep.subr.mxu0 0.0
    %4064 = vmatpush1.msra.mxu0 0.0
    %4065 = vmatprep.mubr.f32.mxu0 0.0
    %4066 = vmatmul.mubr.f32.gmra.mrb[0].mxu0 %v3840
    %v4067 = vpop.f32.mrb[0].mxu0
    %v4068 = vadd.f32 0.0, %v4067
    %v4069 = vpop.f32.mrb[0].mxu0
    %4070 = vdwg.mxu0
    %v4072 = vsel %vm280, %v170, 0
    %4074 = vmatprep.subr.mxu0 0.0
    %4075 = vmatpush1.msra.mxu0 %v4072
    %4076 = vmatprep.subr.mxu0 0.0
    %4077 = vmatpush1.msra.mxu0 0.0
    %4078 = vmatprep.subr.mxu0 0.0
    %4079 = vmatpush1.msra.mxu0 0.0
    %4080 = vmatprep.subr.mxu0 0.0
    %4081 = vmatpush1.msra.mxu0 0.0
    %4082 = vmatprep.subr.mxu0 0.0
    %4083 = vmatpush1.msra.mxu0 0.0
    %4084 = vmatprep.subr.mxu0 0.0
    %4085 = vmatpush1.msra.mxu0 0.0
    %4086 = vmatprep.subr.mxu0 0.0
    %4087 = vmatpush1.msra.mxu0 0.0
    %4088 = vmatprep.subr.mxu0 0.0
    %4089 = vmatpush1.msra.mxu0 0.0
    %4090 = vmatprep.subr.mxu0 0.0
    %4091 = vmatpush1.msra.mxu0 0.0
    %4092 = vmatprep.subr.mxu0 0.0
    %4093 = vmatpush1.msra.mxu0 0.0
    %4094 = vmatprep.subr.mxu0 0.0
    %4095 = vmatpush1.msra.mxu0 0.0
    %4096 = vmatprep.subr.mxu0 0.0
    %4097 = vmatpush1.msra.mxu0 0.0
    %4098 = vmatprep.subr.mxu0 0.0
    %4099 = vmatpush1.msra.mxu0 0.0
    %4100 = vmatprep.subr.mxu0 0.0
    %4101 = vmatpush1.msra.mxu0 0.0
    %4102 = vmatprep.subr.mxu0 0.0
    %4103 = vmatpush1.msra.mxu0 0.0
    %4104 = vmatprep.subr.mxu0 0.0
    %4105 = vmatpush1.msra.mxu0 0.0
    %4106 = vmatprep.subr.mxu0 0.0
    %4107 = vmatpush1.msra.mxu0 0.0
    %4108 = vmatprep.subr.mxu0 0.0
    %4109 = vmatpush1.msra.mxu0 0.0
    %4110 = vmatprep.subr.mxu0 0.0
    %4111 = vmatpush1.msra.mxu0 0.0
    %4112 = vmatprep.subr.mxu0 0.0
    %4113 = vmatpush1.msra.mxu0 0.0
    %4114 = vmatprep.subr.mxu0 0.0
    %4115 = vmatpush1.msra.mxu0 0.0
    %4116 = vmatprep.subr.mxu0 0.0
    %4117 = vmatpush1.msra.mxu0 0.0
    %4118 = vmatprep.subr.mxu0 0.0
    %4119 = vmatpush1.msra.mxu0 0.0
    %4120 = vmatprep.subr.mxu0 0.0
    %4121 = vmatpush1.msra.mxu0 0.0
    %4122 = vmatprep.subr.mxu0 0.0
    %4123 = vmatpush1.msra.mxu0 0.0
    %4124 = vmatprep.subr.mxu0 0.0
    %4125 = vmatpush1.msra.mxu0 0.0
    %4126 = vmatprep.subr.mxu0 0.0
    %4127 = vmatpush1.msra.mxu0 0.0
    %4128 = vmatprep.subr.mxu0 0.0
    %4129 = vmatpush1.msra.mxu0 0.0
    %4130 = vmatprep.subr.mxu0 0.0
    %4131 = vmatpush1.msra.mxu0 0.0
    %4132 = vmatprep.subr.mxu0 0.0
    %4133 = vmatpush1.msra.mxu0 0.0
    %4134 = vmatprep.subr.mxu0 0.0
    %4135 = vmatpush1.msra.mxu0 0.0
    %4136 = vmatprep.subr.mxu0 0.0
    %4137 = vmatpush1.msra.mxu0 0.0
    %4138 = vmatprep.mubr.f32.mxu0 0.0
    %4139 = vmatmul.mubr.f32.gmra.mrb[0].mxu0 %v3913
    %v4140 = vpop.f32.mrb[0].mxu0
    %v4141 = vadd.f32 %v4068, %v4140
    %v4142 = vpop.f32.mrb[0].mxu0
    %4143 = vdwg.mxu0
    %v4145 = vlaneseq
    %v4146 = vshrl.u32 %v4145, 7
    %v4147 = vsub.s32 0, %v4146
    %v4148 = vrot.slane %v189, %v4147
    %v4150 = vadd.f32 %v4141, %v4148
    %v4151 = vxor.u32 %v4150, 2147483648
    %v4152 = vmul.f32 %v4151, 1.442695
    %v4153 = vpow.pop %v4152
    %v4154 = vadd.f32 %v4153, 1.0
    %v4155 = vrcp.pop %v4154
    %v4156 = vmul.f32 1.0, %v4155
    %v4158 = vlaneseq
    %v4159 = vshrl.u32 %v4158, 7
    %v4160 = vsub.s32 0, %v4159
    %v4161 = vrot.slane %v190, %v4160
    %v4164 = vsel %vm280, %v179, 0
    %4166 = vmatprep.subr.mxu0 0.0
    %4167 = vmatpush1.msra.mxu0 %v4164
    %4168 = vmatprep.subr.mxu0 0.0
    %4169 = vmatpush1.msra.mxu0 0.0
    %4170 = vmatprep.subr.mxu0 0.0
    %4171 = vmatpush1.msra.mxu0 0.0
    %4172 = vmatprep.subr.mxu0 0.0
    %4173 = vmatpush1.msra.mxu0 0.0
    %4174 = vmatprep.subr.mxu0 0.0
    %4175 = vmatpush1.msra.mxu0 0.0
    %4176 = vmatprep.subr.mxu0 0.0
    %4177 = vmatpush1.msra.mxu0 0.0
    %4178 = vmatprep.subr.mxu0 0.0
    %4179 = vmatpush1.msra.mxu0 0.0
    %4180 = vmatprep.subr.mxu0 0.0
    %4181 = vmatpush1.msra.mxu0 0.0
    %4182 = vmatprep.subr.mxu0 0.0
    %4183 = vmatpush1.msra.mxu0 0.0
    %4184 = vmatprep.subr.mxu0 0.0
    %4185 = vmatpush1.msra.mxu0 0.0
    %4186 = vmatprep.subr.mxu0 0.0
    %4187 = vmatpush1.msra.mxu0 0.0
    %4188 = vmatprep.subr.mxu0 0.0
    %4189 = vmatpush1.msra.mxu0 0.0
    %4190 = vmatprep.subr.mxu0 0.0
    %4191 = vmatpush1.msra.mxu0 0.0
    %4192 = vmatprep.subr.mxu0 0.0
    %4193 = vmatpush1.msra.mxu0 0.0
    %4194 = vmatprep.subr.mxu0 0.0
    %4195 = vmatpush1.msra.mxu0 0.0
    %4196 = vmatprep.subr.mxu0 0.0
    %4197 = vmatpush1.msra.mxu0 0.0
    %4198 = vmatprep.subr.mxu0 0.0
    %4199 = vmatpush1.msra.mxu0 0.0
    %4200 = vmatprep.subr.mxu0 0.0
    %4201 = vmatpush1.msra.mxu0 0.0
    %4202 = vmatprep.subr.mxu0 0.0
    %4203 = vmatpush1.msra.mxu0 0.0
    %4204 = vmatprep.subr.mxu0 0.0
    %4205 = vmatpush1.msra.mxu0 0.0
    %4206 = vmatprep.subr.mxu0 0.0
    %4207 = vmatpush1.msra.mxu0 0.0
    %4208 = vmatprep.subr.mxu0 0.0
    %4209 = vmatpush1.msra.mxu0 0.0
    %4210 = vmatprep.subr.mxu0 0.0
    %4211 = vmatpush1.msra.mxu0 0.0
    %4212 = vmatprep.subr.mxu0 0.0
    %4213 = vmatpush1.msra.mxu0 0.0
    %4214 = vmatprep.subr.mxu0 0.0
    %4215 = vmatpush1.msra.mxu0 0.0
    %4216 = vmatprep.subr.mxu0 0.0
    %4217 = vmatpush1.msra.mxu0 0.0
    %4218 = vmatprep.subr.mxu0 0.0
    %4219 = vmatpush1.msra.mxu0 0.0
    %4220 = vmatprep.subr.mxu0 0.0
    %4221 = vmatpush1.msra.mxu0 0.0
    %4222 = vmatprep.subr.mxu0 0.0
    %4223 = vmatpush1.msra.mxu0 0.0
    %4224 = vmatprep.subr.mxu0 0.0
    %4225 = vmatpush1.msra.mxu0 0.0
    %4226 = vmatprep.subr.mxu0 0.0
    %4227 = vmatpush1.msra.mxu0 0.0
    %4228 = vmatprep.subr.mxu0 0.0
    %4229 = vmatpush1.msra.mxu0 0.0
    %4230 = vmatprep.mubr.f32.mxu0 0.0
    %4231 = vmatmul.mubr.f32.gmra.mrb[0].mxu0 %v3913
    %v4232 = vpop.f32.mrb[0].mxu0
    %v4233 = vadd.f32 %v4161, %v4232
    %v4234 = vpop.f32.mrb[0].mxu0
    %4235 = vdwg.mxu0
    %v4237 = vlaneseq
    %v4238 = vshrl.u32 %v4237, 7
    %v4239 = vsub.s32 0, %v4238
    %v4240 = vrot.slane %v191, %v4239
    %4242 = vmatprep.subr.mxu0 0.0
    %4243 = vmatpush1.msra.mxu0 %v180
    %4244 = vmatprep.subr.mxu0 0.0
    %4245 = vmatpush1.msra.mxu0 %v181
    %4246 = vmatprep.subr.mxu0 0.0
    %4247 = vmatpush1.msra.mxu0 %v182
    %4248 = vmatprep.subr.mxu0 0.0
    %4249 = vmatpush1.msra.mxu0 %v183
    %4250 = vmatprep.subr.mxu0 0.0
    %4251 = vmatpush1.msra.mxu0 %v184
    %4252 = vmatprep.subr.mxu0 0.0
    %4253 = vmatpush1.msra.mxu0 %v185
    %4254 = vmatprep.subr.mxu0 0.0
    %4255 = vmatpush1.msra.mxu0 %v186
    %4256 = vmatprep.subr.mxu0 0.0
    %4257 = vmatpush1.msra.mxu0 %v187
    %4258 = vmatprep.subr.mxu0 0.0
    %4259 = vmatpush1.msra.mxu0 0.0
    %4260 = vmatprep.subr.mxu0 0.0
    %4261 = vmatpush1.msra.mxu0 0.0
    %4262 = vmatprep.subr.mxu0 0.0
    %4263 = vmatpush1.msra.mxu0 0.0
    %4264 = vmatprep.subr.mxu0 0.0
    %4265 = vmatpush1.msra.mxu0 0.0
    %4266 = vmatprep.subr.mxu0 0.0
    %4267 = vmatpush1.msra.mxu0 0.0
    %4268 = vmatprep.subr.mxu0 0.0
    %4269 = vmatpush1.msra.mxu0 0.0
    %4270 = vmatprep.subr.mxu0 0.0
    %4271 = vmatpush1.msra.mxu0 0.0
    %4272 = vmatprep.subr.mxu0 0.0
    %4273 = vmatpush1.msra.mxu0 0.0
    %4274 = vmatprep.subr.mxu0 0.0
    %4275 = vmatpush1.msra.mxu0 0.0
    %4276 = vmatprep.subr.mxu0 0.0
    %4277 = vmatpush1.msra.mxu0 0.0
    %4278 = vmatprep.subr.mxu0 0.0
    %4279 = vmatpush1.msra.mxu0 0.0
    %4280 = vmatprep.subr.mxu0 0.0
    %4281 = vmatpush1.msra.mxu0 0.0
    %4282 = vmatprep.subr.mxu0 0.0
    %4283 = vmatpush1.msra.mxu0 0.0
    %4284 = vmatprep.subr.mxu0 0.0
    %4285 = vmatpush1.msra.mxu0 0.0
    %4286 = vmatprep.subr.mxu0 0.0
    %4287 = vmatpush1.msra.mxu0 0.0
    %4288 = vmatprep.subr.mxu0 0.0
    %4289 = vmatpush1.msra.mxu0 0.0
    %4290 = vmatprep.subr.mxu0 0.0
    %4291 = vmatpush1.msra.mxu0 0.0
    %4292 = vmatprep.subr.mxu0 0.0
    %4293 = vmatpush1.msra.mxu0 0.0
    %4294 = vmatprep.subr.mxu0 0.0
    %4295 = vmatpush1.msra.mxu0 0.0
    %4296 = vmatprep.subr.mxu0 0.0
    %4297 = vmatpush1.msra.mxu0 0.0
    %4298 = vmatprep.subr.mxu0 0.0
    %4299 = vmatpush1.msra.mxu0 0.0
    %4300 = vmatprep.subr.mxu0 0.0
    %4301 = vmatpush1.msra.mxu0 0.0
    %4302 = vmatprep.subr.mxu0 0.0
    %4303 = vmatpush1.msra.mxu0 0.0
    %4304 = vmatprep.subr.mxu0 0.0
    %4305 = vmatpush1.msra.mxu0 0.0
    %4306 = vmatprep.mubr.f32.mxu0 0.0
    %4307 = vmatmul.mubr.f32.gmra.mrb[0].mxu0 %v3840
    %v4308 = vpop.f32.mrb[0].mxu0
    %v4309 = vadd.f32 %v4240, %v4308
    %v4310 = vpop.f32.mrb[0].mxu0
    %4311 = vdwg.mxu0
    %v4312 = vmul.f32 %v4000, %v4309
    %v4313 = vadd.f32 %v4233, %v4312
    %v4314 = vtanh.pop %v4313
    %v4315 = vsub.f32 1.0, %v4156
    %v4316 = vmul.f32 %v4315, %v4314
    %v4317 = vmul.f32 %v4156, %v3836
    %v4318 = vadd.f32 %v4316, %v4317
    %v4320 = vlaneseq
    %v4321 = vshrl.u32 %v4320, 7
    %v4322 = vsub.s32 0, %v4321
    %v4323 = vrot.slane %v200, %v4322
    %v4326 = vsel %vm3838, %v4318, 0
    %4328 = vmatprep.subr.mxu0 0.0
    %4329 = vmatpush1.msra.mxu0 %v192
    %4330 = vmatprep.subr.mxu0 0.0
    %4331 = vmatpush1.msra.mxu0 %v193
    %4332 = vmatprep.subr.mxu0 0.0
    %4333 = vmatpush1.msra.mxu0 %v194
    %4334 = vmatprep.subr.mxu0 0.0
    %4335 = vmatpush1.msra.mxu0 %v195
    %4336 = vmatprep.subr.mxu0 0.0
    %4337 = vmatpush1.msra.mxu0 %v196
    %4338 = vmatprep.subr.mxu0 0.0
    %4339 = vmatpush1.msra.mxu0 %v197
    %4340 = vmatprep.subr.mxu0 0.0
    %4341 = vmatpush1.msra.mxu0 %v198
    %4342 = vmatprep.subr.mxu0 0.0
    %4343 = vmatpush1.msra.mxu0 %v199
    %4344 = vmatprep.subr.mxu0 0.0
    %4345 = vmatpush1.msra.mxu0 0.0
    %4346 = vmatprep.subr.mxu0 0.0
    %4347 = vmatpush1.msra.mxu0 0.0
    %4348 = vmatprep.subr.mxu0 0.0
    %4349 = vmatpush1.msra.mxu0 0.0
    %4350 = vmatprep.subr.mxu0 0.0
    %4351 = vmatpush1.msra.mxu0 0.0
    %4352 = vmatprep.subr.mxu0 0.0
    %4353 = vmatpush1.msra.mxu0 0.0
    %4354 = vmatprep.subr.mxu0 0.0
    %4355 = vmatpush1.msra.mxu0 0.0
    %4356 = vmatprep.subr.mxu0 0.0
    %4357 = vmatpush1.msra.mxu0 0.0
    %4358 = vmatprep.subr.mxu0 0.0
    %4359 = vmatpush1.msra.mxu0 0.0
    %4360 = vmatprep.subr.mxu0 0.0
    %4361 = vmatpush1.msra.mxu0 0.0
    %4362 = vmatprep.subr.mxu0 0.0
    %4363 = vmatpush1.msra.mxu0 0.0
    %4364 = vmatprep.subr.mxu0 0.0
    %4365 = vmatpush1.msra.mxu0 0.0
    %4366 = vmatprep.subr.mxu0 0.0
    %4367 = vmatpush1.msra.mxu0 0.0
    %4368 = vmatprep.subr.mxu0 0.0
    %4369 = vmatpush1.msra.mxu0 0.0
    %4370 = vmatprep.subr.mxu0 0.0
    %4371 = vmatpush1.msra.mxu0 0.0
    %4372 = vmatprep.subr.mxu0 0.0
    %4373 = vmatpush1.msra.mxu0 0.0
    %4374 = vmatprep.subr.mxu0 0.0
    %4375 = vmatpush1.msra.mxu0 0.0
    %4376 = vmatprep.subr.mxu0 0.0
    %4377 = vmatpush1.msra.mxu0 0.0
    %4378 = vmatprep.subr.mxu0 0.0
    %4379 = vmatpush1.msra.mxu0 0.0
    %4380 = vmatprep.subr.mxu0 0.0
    %4381 = vmatpush1.msra.mxu0 0.0
    %4382 = vmatprep.subr.mxu0 0.0
    %4383 = vmatpush1.msra.mxu0 0.0
    %4384 = vmatprep.subr.mxu0 0.0
    %4385 = vmatpush1.msra.mxu0 0.0
    %4386 = vmatprep.subr.mxu0 0.0
    %4387 = vmatpush1.msra.mxu0 0.0
    %4388 = vmatprep.subr.mxu0 0.0
    %4389 = vmatpush1.msra.mxu0 0.0
    %4390 = vmatprep.subr.mxu0 0.0
    %4391 = vmatpush1.msra.mxu0 0.0
    %4392 = vmatprep.mubr.f32.mxu0 0.0
    %4393 = vmatmul.mubr.f32.gmra.mrb[0].mxu0 %v4326
    %v4394 = vpop.f32.mrb[0].mxu0
    %v4395 = vadd.f32 %v4323, %v4394
    %v4396 = vpop.f32.mrb[0].mxu0
    %4397 = vdwg.mxu0
    %vm4398 = vcmask 7168
    %4399 = vst.msk [vmem:[%s25] sm:$0xff] %vm4398, %v4395
    %4400 = vst.msk [vmem:[#allocation3] sm:$0xff] %vm4398, %v4395
    %v4401 = vld [vmem:[%s1] sm:$0xff]
    %4403 = vrot.lane.b32.xlu0 %v4401, 1
    %v4404 = vpop.permute.xlu0 %4403
    %vm4406 = vcmask 23560
    %4407 = vst.msk [vmem:[#allocation3] sm:$0xff] %vm4406, %v4404
    %v4408 = vld [vmem:[#allocation3] sm:$0xff]
    %4409 = vmatprep.subr.mxu0 0.0
    %4410 = vmatpush1.msra.mxu0 %v162
    %4411 = vmatprep.subr.mxu0 0.0
    %4412 = vmatpush1.msra.mxu0 %v163
    %4413 = vmatprep.subr.mxu0 0.0
    %4414 = vmatpush1.msra.mxu0 %v164
    %4415 = vmatprep.subr.mxu0 0.0
    %4416 = vmatpush1.msra.mxu0 %v165
    %4417 = vmatprep.subr.mxu0 0.0
    %4418 = vmatpush1.msra.mxu0 %v166
    %4419 = vmatprep.subr.mxu0 0.0
    %4420 = vmatpush1.msra.mxu0 %v167
    %4421 = vmatprep.subr.mxu0 0.0
    %4422 = vmatpush1.msra.mxu0 %v168
    %4423 = vmatprep.subr.mxu0 0.0
    %4424 = vmatpush1.msra.mxu0 %v169
    %4425 = vmatprep.subr.mxu0 0.0
    %4426 = vmatpush1.msra.mxu0 0.0
    %4427 = vmatprep.subr.mxu0 0.0
    %4428 = vmatpush1.msra.mxu0 0.0
    %4429 = vmatprep.subr.mxu0 0.0
    %4430 = vmatpush1.msra.mxu0 0.0
    %4431 = vmatprep.subr.mxu0 0.0
    %4432 = vmatpush1.msra.mxu0 0.0
    %4433 = vmatprep.subr.mxu0 0.0
    %4434 = vmatpush1.msra.mxu0 0.0
    %4435 = vmatprep.subr.mxu0 0.0
    %4436 = vmatpush1.msra.mxu0 0.0
    %4437 = vmatprep.subr.mxu0 0.0
    %4438 = vmatpush1.msra.mxu0 0.0
    %4439 = vmatprep.subr.mxu0 0.0
    %4440 = vmatpush1.msra.mxu0 0.0
    %4441 = vmatprep.subr.mxu0 0.0
    %4442 = vmatpush1.msra.mxu0 0.0
    %4443 = vmatprep.subr.mxu0 0.0
    %4444 = vmatpush1.msra.mxu0 0.0
    %4445 = vmatprep.subr.mxu0 0.0
    %4446 = vmatpush1.msra.mxu0 0.0
    %4447 = vmatprep.subr.mxu0 0.0
    %4448 = vmatpush1.msra.mxu0 0.0
    %4449 = vmatprep.subr.mxu0 0.0
    %4450 = vmatpush1.msra.mxu0 0.0
    %4451 = vmatprep.subr.mxu0 0.0
    %4452 = vmatpush1.msra.mxu0 0.0
    %4453 = vmatprep.subr.mxu0 0.0
    %4454 = vmatpush1.msra.mxu0 0.0
    %4455 = vmatprep.subr.mxu0 0.0
    %4456 = vmatpush1.msra.mxu0 0.0
    %4457 = vmatprep.subr.mxu0 0.0
    %4458 = vmatpush1.msra.mxu0 0.0
    %4459 = vmatprep.subr.mxu0 0.0
    %4460 = vmatpush1.msra.mxu0 0.0
    %4461 = vmatprep.subr.mxu0 0.0
    %4462 = vmatpush1.msra.mxu0 0.0
    %4463 = vmatprep.subr.mxu0 0.0
    %4464 = vmatpush1.msra.mxu0 0.0
    %4465 = vmatprep.subr.mxu0 0.0
    %4466 = vmatpush1.msra.mxu0 0.0
    %4467 = vmatprep.subr.mxu0 0.0
    %4468 = vmatpush1.msra.mxu0 0.0
    %4469 = vmatprep.subr.mxu0 0.0
    %4470 = vmatpush1.msra.mxu0 0.0
    %4471 = vmatprep.subr.mxu0 0.0
    %4472 = vmatpush1.msra.mxu0 0.0
    %4473 = vmatprep.mubr.f32.mxu0 0.0
    %4474 = vmatmul.mubr.f32.gmra.mrb[0].mxu0 %v4326
    %v4475 = vpop.f32.mrb[0].mxu0
    %v4476 = vadd.f32 0.0, %v4475
    %v4477 = vpop.f32.mrb[0].mxu0
    %4478 = vdwg.mxu0
    %v4480 = vsel %vm276, %v4408, 0
    %4482 = vmatprep.subr.mxu0 0.0
    %4483 = vmatpush1.msra.mxu0 %v3916
    %4484 = vmatprep.subr.mxu0 0.0
    %4485 = vmatpush1.msra.mxu0 0.0
    %4486 = vmatprep.subr.mxu0 0.0
    %4487 = vmatpush1.msra.mxu0 0.0
    %4488 = vmatprep.subr.mxu0 0.0
    %4489 = vmatpush1.msra.mxu0 0.0
    %4490 = vmatprep.subr.mxu0 0.0
    %4491 = vmatpush1.msra.mxu0 0.0
    %4492 = vmatprep.subr.mxu0 0.0
    %4493 = vmatpush1.msra.mxu0 0.0
    %4494 = vmatprep.subr.mxu0 0.0
    %4495 = vmatpush1.msra.mxu0 0.0
    %4496 = vmatprep.subr.mxu0 0.0
    %4497 = vmatpush1.msra.mxu0 0.0
    %4498 = vmatprep.subr.mxu0 0.0
    %4499 = vmatpush1.msra.mxu0 0.0
    %4500 = vmatprep.subr.mxu0 0.0
    %4501 = vmatpush1.msra.mxu0 0.0
    %4502 = vmatprep.subr.mxu0 0.0
    %4503 = vmatpush1.msra.mxu0 0.0
    %4504 = vmatprep.subr.mxu0 0.0
    %4505 = vmatpush1.msra.mxu0 0.0
    %4506 = vmatprep.subr.mxu0 0.0
    %4507 = vmatpush1.msra.mxu0 0.0
    %4508 = vmatprep.subr.mxu0 0.0
    %4509 = vmatpush1.msra.mxu0 0.0
    %4510 = vmatprep.subr.mxu0 0.0
    %4511 = vmatpush1.msra.mxu0 0.0
    %4512 = vmatprep.subr.mxu0 0.0
    %4513 = vmatpush1.msra.mxu0 0.0
    %4514 = vmatprep.subr.mxu0 0.0
    %4515 = vmatpush1.msra.mxu0 0.0
    %4516 = vmatprep.subr.mxu0 0.0
    %4517 = vmatpush1.msra.mxu0 0.0
    %4518 = vmatprep.subr.mxu0 0.0
    %4519 = vmatpush1.msra.mxu0 0.0
    %4520 = vmatprep.subr.mxu0 0.0
    %4521 = vmatpush1.msra.mxu0 0.0
    %4522 = vmatprep.subr.mxu0 0.0
    %4523 = vmatpush1.msra.mxu0 0.0
    %4524 = vmatprep.subr.mxu0 0.0
    %4525 = vmatpush1.msra.mxu0 0.0
    %4526 = vmatprep.subr.mxu0 0.0
    %4527 = vmatpush1.msra.mxu0 0.0
    %4528 = vmatprep.subr.mxu0 0.0
    %4529 = vmatpush1.msra.mxu0 0.0
    %4530 = vmatprep.subr.mxu0 0.0
    %4531 = vmatpush1.msra.mxu0 0.0
    %4532 = vmatprep.subr.mxu0 0.0
    %4533 = vmatpush1.msra.mxu0 0.0
    %4534 = vmatprep.subr.mxu0 0.0
    %4535 = vmatpush1.msra.mxu0 0.0
    %4536 = vmatprep.subr.mxu0 0.0
    %4537 = vmatpush1.msra.mxu0 0.0
    %4538 = vmatprep.subr.mxu0 0.0
    %4539 = vmatpush1.msra.mxu0 0.0
    %4540 = vmatprep.subr.mxu0 0.0
    %4541 = vmatpush1.msra.mxu0 0.0
    %4542 = vmatprep.subr.mxu0 0.0
    %4543 = vmatpush1.msra.mxu0 0.0
    %4544 = vmatprep.subr.mxu0 0.0
    %4545 = vmatpush1.msra.mxu0 0.0
    %4546 = vmatprep.mubr.f32.mxu0 0.0
    %4547 = vmatmul.mubr.f32.gmra.mrb[0].mxu0 %v4480
    %v4548 = vpop.f32.mrb[0].mxu0
    %v4549 = vadd.f32 %v4476, %v4548
    %v4550 = vpop.f32.mrb[0].mxu0
    %4551 = vdwg.mxu0
    %v4552 = vadd.f32 %v4549, %v3992
    %v4553 = vxor.u32 %v4552, 2147483648
    %v4554 = vmul.f32 %v4553, 1.442695
    %v4555 = vpow.pop %v4554
    %v4556 = vadd.f32 %v4555, 1.0
    %v4557 = vrcp.pop %v4556
    %v4558 = vmul.f32 1.0, %v4557
    %4559 = vmatprep.subr.mxu0 0.0
    %4560 = vmatpush1.msra.mxu0 %v171
    %4561 = vmatprep.subr.mxu0 0.0
    %4562 = vmatpush1.msra.mxu0 %v172
    %4563 = vmatprep.subr.mxu0 0.0
    %4564 = vmatpush1.msra.mxu0 %v173
    %4565 = vmatprep.subr.mxu0 0.0
    %4566 = vmatpush1.msra.mxu0 %v174
    %4567 = vmatprep.subr.mxu0 0.0
    %4568 = vmatpush1.msra.mxu0 %v175
    %4569 = vmatprep.subr.mxu0 0.0
    %4570 = vmatpush1.msra.mxu0 %v176
    %4571 = vmatprep.subr.mxu0 0.0
    %4572 = vmatpush1.msra.mxu0 %v177
    %4573 = vmatprep.subr.mxu0 0.0
    %4574 = vmatpush1.msra.mxu0 %v178
    %4575 = vmatprep.subr.mxu0 0.0
    %4576 = vmatpush1.msra.mxu0 0.0
    %4577 = vmatprep.subr.mxu0 0.0
    %4578 = vmatpush1.msra.mxu0 0.0
    %4579 = vmatprep.subr.mxu0 0.0
    %4580 = vmatpush1.msra.mxu0 0.0
    %4581 = vmatprep.subr.mxu0 0.0
    %4582 = vmatpush1.msra.mxu0 0.0
    %4583 = vmatprep.subr.mxu0 0.0
    %4584 = vmatpush1.msra.mxu0 0.0
    %4585 = vmatprep.subr.mxu0 0.0
    %4586 = vmatpush1.msra.mxu0 0.0
    %4587 = vmatprep.subr.mxu0 0.0
    %4588 = vmatpush1.msra.mxu0 0.0
    %4589 = vmatprep.subr.mxu0 0.0
    %4590 = vmatpush1.msra.mxu0 0.0
    %4591 = vmatprep.subr.mxu0 0.0
    %4592 = vmatpush1.msra.mxu0 0.0
    %4593 = vmatprep.subr.mxu0 0.0
    %4594 = vmatpush1.msra.mxu0 0.0
    %4595 = vmatprep.subr.mxu0 0.0
    %4596 = vmatpush1.msra.mxu0 0.0
    %4597 = vmatprep.subr.mxu0 0.0
    %4598 = vmatpush1.msra.mxu0 0.0
    %4599 = vmatprep.subr.mxu0 0.0
    %4600 = vmatpush1.msra.mxu0 0.0
    %4601 = vmatprep.subr.mxu0 0.0
    %4602 = vmatpush1.msra.mxu0 0.0
    %4603 = vmatprep.subr.mxu0 0.0
    %4604 = vmatpush1.msra.mxu0 0.0
    %4605 = vmatprep.subr.mxu0 0.0
    %4606 = vmatpush1.msra.mxu0 0.0
    %4607 = vmatprep.subr.mxu0 0.0
    %4608 = vmatpush1.msra.mxu0 0.0
    %4609 = vmatprep.subr.mxu0 0.0
    %4610 = vmatpush1.msra.mxu0 0.0
    %4611 = vmatprep.subr.mxu0 0.0
    %4612 = vmatpush1.msra.mxu0 0.0
    %4613 = vmatprep.subr.mxu0 0.0
    %4614 = vmatpush1.msra.mxu0 0.0
    %4615 = vmatprep.subr.mxu0 0.0
    %4616 = vmatpush1.msra.mxu0 0.0
    %4617 = vmatprep.subr.mxu0 0.0
    %4618 = vmatpush1.msra.mxu0 0.0
    %4619 = vmatprep.subr.mxu0 0.0
    %4620 = vmatpush1.msra.mxu0 0.0
    %4621 = vmatprep.subr.mxu0 0.0
    %4622 = vmatpush1.msra.mxu0 0.0
    %4623 = vmatprep.mubr.f32.mxu0 0.0
    %4624 = vmatmul.mubr.f32.gmra.mrb[0].mxu0 %v4326
    %v4625 = vpop.f32.mrb[0].mxu0
    %v4626 = vadd.f32 0.0, %v4625
    %v4627 = vpop.f32.mrb[0].mxu0
    %4628 = vdwg.mxu0
    %4629 = vmatprep.subr.mxu0 0.0
    %4630 = vmatpush1.msra.mxu0 %v4072
    %4631 = vmatprep.subr.mxu0 0.0
    %4632 = vmatpush1.msra.mxu0 0.0
    %4633 = vmatprep.subr.mxu0 0.0
    %4634 = vmatpush1.msra.mxu0 0.0
    %4635 = vmatprep.subr.mxu0 0.0
    %4636 = vmatpush1.msra.mxu0 0.0
    %4637 = vmatprep.subr.mxu0 0.0
    %4638 = vmatpush1.msra.mxu0 0.0
    %4639 = vmatprep.subr.mxu0 0.0
    %4640 = vmatpush1.msra.mxu0 0.0
    %4641 = vmatprep.subr.mxu0 0.0
    %4642 = vmatpush1.msra.mxu0 0.0
    %4643 = vmatprep.subr.mxu0 0.0
    %4644 = vmatpush1.msra.mxu0 0.0
    %4645 = vmatprep.subr.mxu0 0.0
    %4646 = vmatpush1.msra.mxu0 0.0
    %4647 = vmatprep.subr.mxu0 0.0
    %4648 = vmatpush1.msra.mxu0 0.0
    %4649 = vmatprep.subr.mxu0 0.0
    %4650 = vmatpush1.msra.mxu0 0.0
    %4651 = vmatprep.subr.mxu0 0.0
    %4652 = vmatpush1.msra.mxu0 0.0
    %4653 = vmatprep.subr.mxu0 0.0
    %4654 = vmatpush1.msra.mxu0 0.0
    %4655 = vmatprep.subr.mxu0 0.0
    %4656 = vmatpush1.msra.mxu0 0.0
    %4657 = vmatprep.subr.mxu0 0.0
    %4658 = vmatpush1.msra.mxu0 0.0
    %4659 = vmatprep.subr.mxu0 0.0
    %4660 = vmatpush1.msra.mxu0 0.0
    %4661 = vmatprep.subr.mxu0 0.0
    %4662 = vmatpush1.msra.mxu0 0.0
    %4663 = vmatprep.subr.mxu0 0.0
    %4664 = vmatpush1.msra.mxu0 0.0
    %4665 = vmatprep.subr.mxu0 0.0
    %4666 = vmatpush1.msra.mxu0 0.0
    %4667 = vmatprep.subr.mxu0 0.0
    %4668 = vmatpush1.msra.mxu0 0.0
    %4669 = vmatprep.subr.mxu0 0.0
    %4670 = vmatpush1.msra.mxu0 0.0
    %4671 = vmatprep.subr.mxu0 0.0
    %4672 = vmatpush1.msra.mxu0 0.0
    %4673 = vmatprep.subr.mxu0 0.0
    %4674 = vmatpush1.msra.mxu0 0.0
    %4675 = vmatprep.subr.mxu0 0.0
    %4676 = vmatpush1.msra.mxu0 0.0
    %4677 = vmatprep.subr.mxu0 0.0
    %4678 = vmatpush1.msra.mxu0 0.0
    %4679 = vmatprep.subr.mxu0 0.0
    %4680 = vmatpush1.msra.mxu0 0.0
    %4681 = vmatprep.subr.mxu0 0.0
    %4682 = vmatpush1.msra.mxu0 0.0
    %4683 = vmatprep.subr.mxu0 0.0
    %4684 = vmatpush1.msra.mxu0 0.0
    %4685 = vmatprep.subr.mxu0 0.0
    %4686 = vmatpush1.msra.mxu0 0.0
    %4687 = vmatprep.subr.mxu0 0.0
    %4688 = vmatpush1.msra.mxu0 0.0
    %4689 = vmatprep.subr.mxu0 0.0
    %4690 = vmatpush1.msra.mxu0 0.0
    %4691 = vmatprep.subr.mxu0 0.0
    %4692 = vmatpush1.msra.mxu0 0.0
    %4693 = vmatprep.mubr.f32.mxu0 0.0
    %4694 = vmatmul.mubr.f32.gmra.mrb[0].mxu0 %v4480
    %v4695 = vpop.f32.mrb[0].mxu0
    %v4696 = vadd.f32 %v4626, %v4695
    %v4697 = vpop.f32.mrb[0].mxu0
    %4698 = vdwg.mxu0
    %v4699 = vadd.f32 %v4696, %v4148
    %v4700 = vxor.u32 %v4699, 2147483648
    %v4701 = vmul.f32 %v4700, 1.442695
    %v4702 = vpow.pop %v4701
    %v4703 = vadd.f32 %v4702, 1.0
    %v4704 = vrcp.pop %v4703
    %v4705 = vmul.f32 1.0, %v4704
    %4706 = vmatprep.subr.mxu0 0.0
    %4707 = vmatpush1.msra.mxu0 %v4164
    %4708 = vmatprep.subr.mxu0 0.0
    %4709 = vmatpush1.msra.mxu0 0.0
    %4710 = vmatprep.subr.mxu0 0.0
    %4711 = vmatpush1.msra.mxu0 0.0
    %4712 = vmatprep.subr.mxu0 0.0
    %4713 = vmatpush1.msra.mxu0 0.0
    %4714 = vmatprep.subr.mxu0 0.0
    %4715 = vmatpush1.msra.mxu0 0.0
    %4716 = vmatprep.subr.mxu0 0.0
    %4717 = vmatpush1.msra.mxu0 0.0
    %4718 = vmatprep.subr.mxu0 0.0
    %4719 = vmatpush1.msra.mxu0 0.0
    %4720 = vmatprep.subr.mxu0 0.0
    %4721 = vmatpush1.msra.mxu0 0.0
    %4722 = vmatprep.subr.mxu0 0.0
    %4723 = vmatpush1.msra.mxu0 0.0
    %4724 = vmatprep.subr.mxu0 0.0
    %4725 = vmatpush1.msra.mxu0 0.0
    %4726 = vmatprep.subr.mxu0 0.0
    %4727 = vmatpush1.msra.mxu0 0.0
    %4728 = vmatprep.subr.mxu0 0.0
    %4729 = vmatpush1.msra.mxu0 0.0
    %4730 = vmatprep.subr.mxu0 0.0
    %4731 = vmatpush1.msra.mxu0 0.0
    %4732 = vmatprep.subr.mxu0 0.0
    %4733 = vmatpush1.msra.mxu0 0.0
    %4734 = vmatprep.subr.mxu0 0.0
    %4735 = vmatpush1.msra.mxu0 0.0
    %4736 = vmatprep.subr.mxu0 0.0
    %4737 = vmatpush1.msra.mxu0 0.0
    %4738 = vmatprep.subr.mxu0 0.0
    %4739 = vmatpush1.msra.mxu0 0.0
    %4740 = vmatprep.subr.mxu0 0.0
    %4741 = vmatpush1.msra.mxu0 0.0
    %4742 = vmatprep.subr.mxu0 0.0
    %4743 = vmatpush1.msra.mxu0 0.0
    %4744 = vmatprep.subr.mxu0 0.0
    %4745 = vmatpush1.msra.mxu0 0.0
    %4746 = vmatprep.subr.mxu0 0.0
    %4747 = vmatpush1.msra.mxu0 0.0
    %4748 = vmatprep.subr.mxu0 0.0
    %4749 = vmatpush1.msra.mxu0 0.0
    %4750 = vmatprep.subr.mxu0 0.0
    %4751 = vmatpush1.msra.mxu0 0.0
    %4752 = vmatprep.subr.mxu0 0.0
    %4753 = vmatpush1.msra.mxu0 0.0
    %4754 = vmatprep.subr.mxu0 0.0
    %4755 = vmatpush1.msra.mxu0 0.0
    %4756 = vmatprep.subr.mxu0 0.0
    %4757 = vmatpush1.msra.mxu0 0.0
    %4758 = vmatprep.subr.mxu0 0.0
    %4759 = vmatpush1.msra.mxu0 0.0
    %4760 = vmatprep.subr.mxu0 0.0
    %4761 = vmatpush1.msra.mxu0 0.0
    %4762 = vmatprep.subr.mxu0 0.0
    %4763 = vmatpush1.msra.mxu0 0.0
    %4764 = vmatprep.subr.mxu0 0.0
    %4765 = vmatpush1.msra.mxu0 0.0
    %4766 = vmatprep.subr.mxu0 0.0
    %4767 = vmatpush1.msra.mxu0 0.0
    %4768 = vmatprep.subr.mxu0 0.0
    %4769 = vmatpush1.msra.mxu0 0.0
    %4770 = vmatprep.mubr.f32.mxu0 0.0
    %4771 = vmatmul.mubr.f32.gmra.mrb[0].mxu0 %v4480
    %v4772 = vpop.f32.mrb[0].mxu0
    %v4773 = vadd.f32 %v4161, %v4772
    %v4774 = vpop.f32.mrb[0].mxu0
    %4775 = vdwg.mxu0
    %4776 = vmatprep.subr.mxu0 0.0
    %4777 = vmatpush1.msra.mxu0 %v180
    %4778 = vmatprep.subr.mxu0 0.0
    %4779 = vmatpush1.msra.mxu0 %v181
    %4780 = vmatprep.subr.mxu0 0.0
    %4781 = vmatpush1.msra.mxu0 %v182
    %4782 = vmatprep.subr.mxu0 0.0
    %4783 = vmatpush1.msra.mxu0 %v183
    %4784 = vmatprep.subr.mxu0 0.0
    %4785 = vmatpush1.msra.mxu0 %v184
    %4786 = vmatprep.subr.mxu0 0.0
    %4787 = vmatpush1.msra.mxu0 %v185
    %4788 = vmatprep.subr.mxu0 0.0
    %4789 = vmatpush1.msra.mxu0 %v186
    %4790 = vmatprep.subr.mxu0 0.0
    %4791 = vmatpush1.msra.mxu0 %v187
    %4792 = vmatprep.subr.mxu0 0.0
    %4793 = vmatpush1.msra.mxu0 0.0
    %4794 = vmatprep.subr.mxu0 0.0
    %4795 = vmatpush1.msra.mxu0 0.0
    %4796 = vmatprep.subr.mxu0 0.0
    %4797 = vmatpush1.msra.mxu0 0.0
    %4798 = vmatprep.subr.mxu0 0.0
    %4799 = vmatpush1.msra.mxu0 0.0
    %4800 = vmatprep.subr.mxu0 0.0
    %4801 = vmatpush1.msra.mxu0 0.0
    %4802 = vmatprep.subr.mxu0 0.0
    %4803 = vmatpush1.msra.mxu0 0.0
    %4804 = vmatprep.subr.mxu0 0.0
    %4805 = vmatpush1.msra.mxu0 0.0
    %4806 = vmatprep.subr.mxu0 0.0
    %4807 = vmatpush1.msra.mxu0 0.0
    %4808 = vmatprep.subr.mxu0 0.0
    %4809 = vmatpush1.msra.mxu0 0.0
    %4810 = vmatprep.subr.mxu0 0.0
    %4811 = vmatpush1.msra.mxu0 0.0
    %4812 = vmatprep.subr.mxu0 0.0
    %4813 = vmatpush1.msra.mxu0 0.0
    %4814 = vmatprep.subr.mxu0 0.0
    %4815 = vmatpush1.msra.mxu0 0.0
    %4816 = vmatprep.subr.mxu0 0.0
    %4817 = vmatpush1.msra.mxu0 0.0
    %4818 = vmatprep.subr.mxu0 0.0
    %4819 = vmatpush1.msra.mxu0 0.0
    %4820 = vmatprep.subr.mxu0 0.0
    %4821 = vmatpush1.msra.mxu0 0.0
    %4822 = vmatprep.subr.mxu0 0.0
    %4823 = vmatpush1.msra.mxu0 0.0
    %4824 = vmatprep.subr.mxu0 0.0
    %4825 = vmatpush1.msra.mxu0 0.0
    %4826 = vmatprep.subr.mxu0 0.0
    %4827 = vmatpush1.msra.mxu0 0.0
    %4828 = vmatprep.subr.mxu0 0.0
    %4829 = vmatpush1.msra.mxu0 0.0
    %4830 = vmatprep.subr.mxu0 0.0
    %4831 = vmatpush1.msra.mxu0 0.0
    %4832 = vmatprep.subr.mxu0 0.0
    %4833 = vmatpush1.msra.mxu0 0.0
    %4834 = vmatprep.subr.mxu0 0.0
    %4835 = vmatpush1.msra.mxu0 0.0
    %4836 = vmatprep.subr.mxu0 0.0
    %4837 = vmatpush1.msra.mxu0 0.0
    %4838 = vmatprep.subr.mxu0 0.0
    %4839 = vmatpush1.msra.mxu0 0.0
    %4840 = vmatprep.mubr.f32.mxu0 0.0
    %4841 = vmatmul.mubr.f32.gmra.mrb[0].mxu0 %v4326
    %v4842 = vpop.f32.mrb[0].mxu0
    %v4843 = vadd.f32 %v4240, %v4842
    %v4844 = vpop.f32.mrb[0].mxu0
    %4845 = vdwg.mxu0
    %v4846 = vmul.f32 %v4558, %v4843
    %v4847 = vadd.f32 %v4773, %v4846
    %v4848 = vtanh.pop %v4847
    %v4849 = vsub.f32 1.0, %v4705
    %v4850 = vmul.f32 %v4849, %v4848
    %v4851 = vmul.f32 %v4705, %v4318
    %v4852 = vadd.f32 %v4850, %v4851
    %v4854 = vsel %vm3838, %v4852, 0
    %4856 = vmatprep.subr.mxu0 0.0
    %4857 = vmatpush1.msra.mxu0 %v192
    %4858 = vmatprep.subr.mxu0 0.0
    %4859 = vmatpush1.msra.mxu0 %v193
    %4860 = vmatprep.subr.mxu0 0.0
    %4861 = vmatpush1.msra.mxu0 %v194
    %4862 = vmatprep.subr.mxu0 0.0
    %4863 = vmatpush1.msra.mxu0 %v195
    %4864 = vmatprep.subr.mxu0 0.0
    %4865 = vmatpush1.msra.mxu0 %v196
    %4866 = vmatprep.subr.mxu0 0.0
    %4867 = vmatpush1.msra.mxu0 %v197
    %4868 = vmatprep.subr.mxu0 0.0
    %4869 = vmatpush1.msra.mxu0 %v198
    %4870 = vmatprep.subr.mxu0 0.0
    %4871 = vmatpush1.msra.mxu0 %v199
    %4872 = vmatprep.subr.mxu0 0.0
    %4873 = vmatpush1.msra.mxu0 0.0
    %4874 = vmatprep.subr.mxu0 0.0
    %4875 = vmatpush1.msra.mxu0 0.0
    %4876 = vmatprep.subr.mxu0 0.0
    %4877 = vmatpush1.msra.mxu0 0.0
    %4878 = vmatprep.subr.mxu0 0.0
    %4879 = vmatpush1.msra.mxu0 0.0
    %4880 = vmatprep.subr.mxu0 0.0
    %4881 = vmatpush1.msra.mxu0 0.0
    %4882 = vmatprep.subr.mxu0 0.0
    %4883 = vmatpush1.msra.mxu0 0.0
    %4884 = vmatprep.subr.mxu0 0.0
    %4885 = vmatpush1.msra.mxu0 0.0
    %4886 = vmatprep.subr.mxu0 0.0
    %4887 = vmatpush1.msra.mxu0 0.0
    %4888 = vmatprep.subr.mxu0 0.0
    %4889 = vmatpush1.msra.mxu0 0.0
    %4890 = vmatprep.subr.mxu0 0.0
    %4891 = vmatpush1.msra.mxu0 0.0
    %4892 = vmatprep.subr.mxu0 0.0
    %4893 = vmatpush1.msra.mxu0 0.0
    %4894 = vmatprep.subr.mxu0 0.0
    %4895 = vmatpush1.msra.mxu0 0.0
    %4896 = vmatprep.subr.mxu0 0.0
    %4897 = vmatpush1.msra.mxu0 0.0
    %4898 = vmatprep.subr.mxu0 0.0
    %4899 = vmatpush1.msra.mxu0 0.0
    %4900 = vmatprep.subr.mxu0 0.0
    %4901 = vmatpush1.msra.mxu0 0.0
    %4902 = vmatprep.subr.mxu0 0.0
    %4903 = vmatpush1.msra.mxu0 0.0
    %4904 = vmatprep.subr.mxu0 0.0
    %4905 = vmatpush1.msra.mxu0 0.0
    %4906 = vmatprep.subr.mxu0 0.0
    %4907 = vmatpush1.msra.mxu0 0.0
    %4908 = vmatprep.subr.mxu0 0.0
    %4909 = vmatpush1.msra.mxu0 0.0
    %4910 = vmatprep.subr.mxu0 0.0
    %4911 = vmatpush1.msra.mxu0 0.0
    %4912 = vmatprep.subr.mxu0 0.0
    %4913 = vmatpush1.msra.mxu0 0.0
    %4914 = vmatprep.subr.mxu0 0.0
    %4915 = vmatpush1.msra.mxu0 0.0
    %4916 = vmatprep.subr.mxu0 0.0
    %4917 = vmatpush1.msra.mxu0 0.0
    %4918 = vmatprep.subr.mxu0 0.0
    %4919 = vmatpush1.msra.mxu0 0.0
    %4920 = vmatprep.mubr.f32.mxu0 0.0
    %4921 = vmatmul.mubr.f32.gmra.mrb[0].mxu0 %v4854
    %v4922 = vpop.f32.mrb[0].mxu0
    %v4923 = vadd.f32 %v4323, %v4922
    %v4924 = vpop.f32.mrb[0].mxu0
    %4925 = vdwg.mxu0
    %s4926 = scalar_lea.vmem %s25, 8
    %4927 = vst.msk [vmem:[%s4926] sm:$0xff] %vm4398, %v4923
    %4928 = vst.msk [vmem:[#allocation3] sm:$0xff] %vm4398, %v4923
    %s4929 = scalar_lea.vmem %s1, 8
    %v4930 = vld [vmem:[%s4929] sm:$0xff]
    %4932 = vrot.lane.b32.xlu0 %v4930, 1
    %v4933 = vpop.permute.xlu0 %4932
    %4935 = vst.msk [vmem:[#allocation3] sm:$0xff] %vm4406, %v4933
    %v4936 = vld [vmem:[#allocation3] sm:$0xff]
    %4937 = vmatprep.subr.mxu0 0.0
    %4938 = vmatpush1.msra.mxu0 %v162
    %4939 = vmatprep.subr.mxu0 0.0
    %4940 = vmatpush1.msra.mxu0 %v163
    %4941 = vmatprep.subr.mxu0 0.0
    %4942 = vmatpush1.msra.mxu0 %v164
    %4943 = vmatprep.subr.mxu0 0.0
    %4944 = vmatpush1.msra.mxu0 %v165
    %4945 = vmatprep.subr.mxu0 0.0
    %4946 = vmatpush1.msra.mxu0 %v166
    %4947 = vmatprep.subr.mxu0 0.0
    %4948 = vmatpush1.msra.mxu0 %v167
    %4949 = vmatprep.subr.mxu0 0.0
    %4950 = vmatpush1.msra.mxu0 %v168
    %4951 = vmatprep.subr.mxu0 0.0
    %4952 = vmatpush1.msra.mxu0 %v169
    %4953 = vmatprep.subr.mxu0 0.0
    %4954 = vmatpush1.msra.mxu0 0.0
    %4955 = vmatprep.subr.mxu0 0.0
    %4956 = vmatpush1.msra.mxu0 0.0
    %4957 = vmatprep.subr.mxu0 0.0
    %4958 = vmatpush1.msra.mxu0 0.0
    %4959 = vmatprep.subr.mxu0 0.0
    %4960 = vmatpush1.msra.mxu0 0.0
    %4961 = vmatprep.subr.mxu0 0.0
    %4962 = vmatpush1.msra.mxu0 0.0
    %4963 = vmatprep.subr.mxu0 0.0
    %4964 = vmatpush1.msra.mxu0 0.0
    %4965 = vmatprep.subr.mxu0 0.0
    %4966 = vmatpush1.msra.mxu0 0.0
    %4967 = vmatprep.subr.mxu0 0.0
    %4968 = vmatpush1.msra.mxu0 0.0
    %4969 = vmatprep.subr.mxu0 0.0
    %4970 = vmatpush1.msra.mxu0 0.0
    %4971 = vmatprep.subr.mxu0 0.0
    %4972 = vmatpush1.msra.mxu0 0.0
    %4973 = vmatprep.subr.mxu0 0.0
    %4974 = vmatpush1.msra.mxu0 0.0
    %4975 = vmatprep.subr.mxu0 0.0
    %4976 = vmatpush1.msra.mxu0 0.0
    %4977 = vmatprep.subr.mxu0 0.0
    %4978 = vmatpush1.msra.mxu0 0.0
    %4979 = vmatprep.subr.mxu0 0.0
    %4980 = vmatpush1.msra.mxu0 0.0
    %4981 = vmatprep.subr.mxu0 0.0
    %4982 = vmatpush1.msra.mxu0 0.0
    %4983 = vmatprep.subr.mxu0 0.0
    %4984 = vmatpush1.msra.mxu0 0.0
    %4985 = vmatprep.subr.mxu0 0.0
    %4986 = vmatpush1.msra.mxu0 0.0
    %4987 = vmatprep.subr.mxu0 0.0
    %4988 = vmatpush1.msra.mxu0 0.0
    %4989 = vmatprep.subr.mxu0 0.0
    %4990 = vmatpush1.msra.mxu0 0.0
    %4991 = vmatprep.subr.mxu0 0.0
    %4992 = vmatpush1.msra.mxu0 0.0
    %4993 = vmatprep.subr.mxu0 0.0
    %4994 = vmatpush1.msra.mxu0 0.0
    %4995 = vmatprep.subr.mxu0 0.0
    %4996 = vmatpush1.msra.mxu0 0.0
    %4997 = vmatprep.subr.mxu0 0.0
    %4998 = vmatpush1.msra.mxu0 0.0
    %4999 = vmatprep.subr.mxu0 0.0
    %5000 = vmatpush1.msra.mxu0 0.0
    %5001 = vmatprep.mubr.f32.mxu0 0.0
    %5002 = vmatmul.mubr.f32.gmra.mrb[0].mxu0 %v4854
    %v5003 = vpop.f32.mrb[0].mxu0
    %v5004 = vadd.f32 0.0, %v5003
    %v5005 = vpop.f32.mrb[0].mxu0
    %5006 = vdwg.mxu0
    %v5008 = vsel %vm276, %v4936, 0
    %5010 = vmatprep.subr.mxu0 0.0
    %5011 = vmatpush1.msra.mxu0 %v3916
    %5012 = vmatprep.subr.mxu0 0.0
    %5013 = vmatpush1.msra.mxu0 0.0
    %5014 = vmatprep.subr.mxu0 0.0
    %5015 = vmatpush1.msra.mxu0 0.0
    %5016 = vmatprep.subr.mxu0 0.0
    %5017 = vmatpush1.msra.mxu0 0.0
    %5018 = vmatprep.subr.mxu0 0.0
    %5019 = vmatpush1.msra.mxu0 0.0
    %5020 = vmatprep.subr.mxu0 0.0
    %5021 = vmatpush1.msra.mxu0 0.0
    %5022 = vmatprep.subr.mxu0 0.0
    %5023 = vmatpush1.msra.mxu0 0.0
    %5024 = vmatprep.subr.mxu0 0.0
    %5025 = vmatpush1.msra.mxu0 0.0
    %5026 = vmatprep.subr.mxu0 0.0
    %5027 = vmatpush1.msra.mxu0 0.0
    %5028 = vmatprep.subr.mxu0 0.0
    %5029 = vmatpush1.msra.mxu0 0.0
    %5030 = vmatprep.subr.mxu0 0.0
    %5031 = vmatpush1.msra.mxu0 0.0
    %5032 = vmatprep.subr.mxu0 0.0
    %5033 = vmatpush1.msra.mxu0 0.0
    %5034 = vmatprep.subr.mxu0 0.0
    %5035 = vmatpush1.msra.mxu0 0.0
    %5036 = vmatprep.subr.mxu0 0.0
    %5037 = vmatpush1.msra.mxu0 0.0
    %5038 = vmatprep.subr.mxu0 0.0
    %5039 = vmatpush1.msra.mxu0 0.0
    %5040 = vmatprep.subr.mxu0 0.0
    %5041 = vmatpush1.msra.mxu0 0.0
    %5042 = vmatprep.subr.mxu0 0.0
    %5043 = vmatpush1.msra.mxu0 0.0
    %5044 = vmatprep.subr.mxu0 0.0
    %5045 = vmatpush1.msra.mxu0 0.0
    %5046 = vmatprep.subr.mxu0 0.0
    %5047 = vmatpush1.msra.mxu0 0.0
    %5048 = vmatprep.subr.mxu0 0.0
    %5049 = vmatpush1.msra.mxu0 0.0
    %5050 = vmatprep.subr.mxu0 0.0
    %5051 = vmatpush1.msra.mxu0 0.0
    %5052 = vmatprep.subr.mxu0 0.0
    %5053 = vmatpush1.msra.mxu0 0.0
    %5054 = vmatprep.subr.mxu0 0.0
    %5055 = vmatpush1.msra.mxu0 0.0
    %5056 = vmatprep.subr.mxu0 0.0
    %5057 = vmatpush1.msra.mxu0 0.0
    %5058 = vmatprep.subr.mxu0 0.0
    %5059 = vmatpush1.msra.mxu0 0.0
    %5060 = vmatprep.subr.mxu0 0.0
    %5061 = vmatpush1.msra.mxu0 0.0
    %5062 = vmatprep.subr.mxu0 0.0
    %5063 = vmatpush1.msra.mxu0 0.0
    %5064 = vmatprep.subr.mxu0 0.0
    %5065 = vmatpush1.msra.mxu0 0.0
    %5066 = vmatprep.subr.mxu0 0.0
    %5067 = vmatpush1.msra.mxu0 0.0
    %5068 = vmatprep.subr.mxu0 0.0
    %5069 = vmatpush1.msra.mxu0 0.0
    %5070 = vmatprep.subr.mxu0 0.0
    %5071 = vmatpush1.msra.mxu0 0.0
    %5072 = vmatprep.subr.mxu0 0.0
    %5073 = vmatpush1.msra.mxu0 0.0
    %5074 = vmatprep.mubr.f32.mxu0 0.0
    %5075 = vmatmul.mubr.f32.gmra.mrb[0].mxu0 %v5008
    %v5076 = vpop.f32.mrb[0].mxu0
    %v5077 = vadd.f32 %v5004, %v5076
    %v5078 = vpop.f32.mrb[0].mxu0
    %5079 = vdwg.mxu0
    %v5080 = vadd.f32 %v5077, %v3992
    %v5081 = vxor.u32 %v5080, 2147483648
    %v5082 = vmul.f32 %v5081, 1.442695
    %v5083 = vpow.pop %v5082
    %v5084 = vadd.f32 %v5083, 1.0
    %v5085 = vrcp.pop %v5084
    %v5086 = vmul.f32 1.0, %v5085
    %5087 = vmatprep.subr.mxu0 0.0
    %5088 = vmatpush1.msra.mxu0 %v171
    %5089 = vmatprep.subr.mxu0 0.0
    %5090 = vmatpush1.msra.mxu0 %v172
    %5091 = vmatprep.subr.mxu0 0.0
    %5092 = vmatpush1.msra.mxu0 %v173
    %5093 = vmatprep.subr.mxu0 0.0
    %5094 = vmatpush1.msra.mxu0 %v174
    %5095 = vmatprep.subr.mxu0 0.0
    %5096 = vmatpush1.msra.mxu0 %v175
    %5097 = vmatprep.subr.mxu0 0.0
    %5098 = vmatpush1.msra.mxu0 %v176
    %5099 = vmatprep.subr.mxu0 0.0
    %5100 = vmatpush1.msra.mxu0 %v177
    %5101 = vmatprep.subr.mxu0 0.0
    %5102 = vmatpush1.msra.mxu0 %v178
    %5103 = vmatprep.subr.mxu0 0.0
    %5104 = vmatpush1.msra.mxu0 0.0
    %5105 = vmatprep.subr.mxu0 0.0
    %5106 = vmatpush1.msra.mxu0 0.0
    %5107 = vmatprep.subr.mxu0 0.0
    %5108 = vmatpush1.msra.mxu0 0.0
    %5109 = vmatprep.subr.mxu0 0.0
    %5110 = vmatpush1.msra.mxu0 0.0
    %5111 = vmatprep.subr.mxu0 0.0
    %5112 = vmatpush1.msra.mxu0 0.0
    %5113 = vmatprep.subr.mxu0 0.0
    %5114 = vmatpush1.msra.mxu0 0.0
    %5115 = vmatprep.subr.mxu0 0.0
    %5116 = vmatpush1.msra.mxu0 0.0
    %5117 = vmatprep.subr.mxu0 0.0
    %5118 = vmatpush1.msra.mxu0 0.0
    %5119 = vmatprep.subr.mxu0 0.0
    %5120 = vmatpush1.msra.mxu0 0.0
    %5121 = vmatprep.subr.mxu0 0.0
    %5122 = vmatpush1.msra.mxu0 0.0
    %5123 = vmatprep.subr.mxu0 0.0
    %5124 = vmatpush1.msra.mxu0 0.0
    %5125 = vmatprep.subr.mxu0 0.0
    %5126 = vmatpush1.msra.mxu0 0.0
    %5127 = vmatprep.subr.mxu0 0.0
    %5128 = vmatpush1.msra.mxu0 0.0
    %5129 = vmatprep.subr.mxu0 0.0
    %5130 = vmatpush1.msra.mxu0 0.0
    %5131 = vmatprep.subr.mxu0 0.0
    %5132 = vmatpush1.msra.mxu0 0.0
    %5133 = vmatprep.subr.mxu0 0.0
    %5134 = vmatpush1.msra.mxu0 0.0
    %5135 = vmatprep.subr.mxu0 0.0
    %5136 = vmatpush1.msra.mxu0 0.0
    %5137 = vmatprep.subr.mxu0 0.0
    %5138 = vmatpush1.msra.mxu0 0.0
    %5139 = vmatprep.subr.mxu0 0.0
    %5140 = vmatpush1.msra.mxu0 0.0
    %5141 = vmatprep.subr.mxu0 0.0
    %5142 = vmatpush1.msra.mxu0 0.0
    %5143 = vmatprep.subr.mxu0 0.0
    %5144 = vmatpush1.msra.mxu0 0.0
    %5145 = vmatprep.subr.mxu0 0.0
    %5146 = vmatpush1.msra.mxu0 0.0
    %5147 = vmatprep.subr.mxu0 0.0
    %5148 = vmatpush1.msra.mxu0 0.0
    %5149 = vmatprep.subr.mxu0 0.0
    %5150 = vmatpush1.msra.mxu0 0.0
    %5151 = vmatprep.mubr.f32.mxu0 0.0
    %5152 = vmatmul.mubr.f32.gmra.mrb[0].mxu0 %v4854
    %v5153 = vpop.f32.mrb[0].mxu0
    %v5154 = vadd.f32 0.0, %v5153
    %v5155 = vpop.f32.mrb[0].mxu0
    %5156 = vdwg.mxu0
    %5157 = vmatprep.subr.mxu0 0.0
    %5158 = vmatpush1.msra.mxu0 %v4072
    %5159 = vmatprep.subr.mxu0 0.0
    %5160 = vmatpush1.msra.mxu0 0.0
    %5161 = vmatprep.subr.mxu0 0.0
    %5162 = vmatpush1.msra.mxu0 0.0
    %5163 = vmatprep.subr.mxu0 0.0
    %5164 = vmatpush1.msra.mxu0 0.0
    %5165 = vmatprep.subr.mxu0 0.0
    %5166 = vmatpush1.msra.mxu0 0.0
    %5167 = vmatprep.subr.mxu0 0.0
    %5168 = vmatpush1.msra.mxu0 0.0
    %5169 = vmatprep.subr.mxu0 0.0
    %5170 = vmatpush1.msra.mxu0 0.0
    %5171 = vmatprep.subr.mxu0 0.0
    %5172 = vmatpush1.msra.mxu0 0.0
    %5173 = vmatprep.subr.mxu0 0.0
    %5174 = vmatpush1.msra.mxu0 0.0
    %5175 = vmatprep.subr.mxu0 0.0
    %5176 = vmatpush1.msra.mxu0 0.0
    %5177 = vmatprep.subr.mxu0 0.0
    %5178 = vmatpush1.msra.mxu0 0.0
    %5179 = vmatprep.subr.mxu0 0.0
    %5180 = vmatpush1.msra.mxu0 0.0
    %5181 = vmatprep.subr.mxu0 0.0
    %5182 = vmatpush1.msra.mxu0 0.0
    %5183 = vmatprep.subr.mxu0 0.0
    %5184 = vmatpush1.msra.mxu0 0.0
    %5185 = vmatprep.subr.mxu0 0.0
    %5186 = vmatpush1.msra.mxu0 0.0
    %5187 = vmatprep.subr.mxu0 0.0
    %5188 = vmatpush1.msra.mxu0 0.0
    %5189 = vmatprep.subr.mxu0 0.0
    %5190 = vmatpush1.msra.mxu0 0.0
    %5191 = vmatprep.subr.mxu0 0.0
    %5192 = vmatpush1.msra.mxu0 0.0
    %5193 = vmatprep.subr.mxu0 0.0
    %5194 = vmatpush1.msra.mxu0 0.0
    %5195 = vmatprep.subr.mxu0 0.0
    %5196 = vmatpush1.msra.mxu0 0.0
    %5197 = vmatprep.subr.mxu0 0.0
    %5198 = vmatpush1.msra.mxu0 0.0
    %5199 = vmatprep.subr.mxu0 0.0
    %5200 = vmatpush1.msra.mxu0 0.0
    %5201 = vmatprep.subr.mxu0 0.0
    %5202 = vmatpush1.msra.mxu0 0.0
    %5203 = vmatprep.subr.mxu0 0.0
    %5204 = vmatpush1.msra.mxu0 0.0
    %5205 = vmatprep.subr.mxu0 0.0
    %5206 = vmatpush1.msra.mxu0 0.0
    %5207 = vmatprep.subr.mxu0 0.0
    %5208 = vmatpush1.msra.mxu0 0.0
    %5209 = vmatprep.subr.mxu0 0.0
    %5210 = vmatpush1.msra.mxu0 0.0
    %5211 = vmatprep.subr.mxu0 0.0
    %5212 = vmatpush1.msra.mxu0 0.0
    %5213 = vmatprep.subr.mxu0 0.0
    %5214 = vmatpush1.msra.mxu0 0.0
    %5215 = vmatprep.subr.mxu0 0.0
    %5216 = vmatpush1.msra.mxu0 0.0
    %5217 = vmatprep.subr.mxu0 0.0
    %5218 = vmatpush1.msra.mxu0 0.0
    %5219 = vmatprep.subr.mxu0 0.0
    %5220 = vmatpush1.msra.mxu0 0.0
    %5221 = vmatprep.mubr.f32.mxu0 0.0
    %5222 = vmatmul.mubr.f32.gmra.mrb[0].mxu0 %v5008
    %v5223 = vpop.f32.mrb[0].mxu0
    %v5224 = vadd.f32 %v5154, %v5223
    %v5225 = vpop.f32.mrb[0].mxu0
    %5226 = vdwg.mxu0
    %v5227 = vadd.f32 %v5224, %v4148
    %v5228 = vxor.u32 %v5227, 2147483648
    %v5229 = vmul.f32 %v5228, 1.442695
    %v5230 = vpow.pop %v5229
    %v5231 = vadd.f32 %v5230, 1.0
    %v5232 = vrcp.pop %v5231
    %v5233 = vmul.f32 1.0, %v5232
    %5234 = vmatprep.subr.mxu0 0.0
    %5235 = vmatpush1.msra.mxu0 %v4164
    %5236 = vmatprep.subr.mxu0 0.0
    %5237 = vmatpush1.msra.mxu0 0.0
    %5238 = vmatprep.subr.mxu0 0.0
    %5239 = vmatpush1.msra.mxu0 0.0
    %5240 = vmatprep.subr.mxu0 0.0
    %5241 = vmatpush1.msra.mxu0 0.0
    %5242 = vmatprep.subr.mxu0 0.0
    %5243 = vmatpush1.msra.mxu0 0.0
    %5244 = vmatprep.subr.mxu0 0.0
    %5245 = vmatpush1.msra.mxu0 0.0
    %5246 = vmatprep.subr.mxu0 0.0
    %5247 = vmatpush1.msra.mxu0 0.0
    %5248 = vmatprep.subr.mxu0 0.0
    %5249 = vmatpush1.msra.mxu0 0.0
    %5250 = vmatprep.subr.mxu0 0.0
    %5251 = vmatpush1.msra.mxu0 0.0
    %5252 = vmatprep.subr.mxu0 0.0
    %5253 = vmatpush1.msra.mxu0 0.0
    %5254 = vmatprep.subr.mxu0 0.0
    %5255 = vmatpush1.msra.mxu0 0.0
    %5256 = vmatprep.subr.mxu0 0.0
    %5257 = vmatpush1.msra.mxu0 0.0
    %5258 = vmatprep.subr.mxu0 0.0
    %5259 = vmatpush1.msra.mxu0 0.0
    %5260 = vmatprep.subr.mxu0 0.0
    %5261 = vmatpush1.msra.mxu0 0.0
    %5262 = vmatprep.subr.mxu0 0.0
    %5263 = vmatpush1.msra.mxu0 0.0
    %5264 = vmatprep.subr.mxu0 0.0
    %5265 = vmatpush1.msra.mxu0 0.0
    %5266 = vmatprep.subr.mxu0 0.0
    %5267 = vmatpush1.msra.mxu0 0.0
    %5268 = vmatprep.subr.mxu0 0.0
    %5269 = vmatpush1.msra.mxu0 0.0
    %5270 = vmatprep.subr.mxu0 0.0
    %5271 = vmatpush1.msra.mxu0 0.0
    %5272 = vmatprep.subr.mxu0 0.0
    %5273 = vmatpush1.msra.mxu0 0.0
    %5274 = vmatprep.subr.mxu0 0.0
    %5275 = vmatpush1.msra.mxu0 0.0
    %5276 = vmatprep.subr.mxu0 0.0
    %5277 = vmatpush1.msra.mxu0 0.0
    %5278 = vmatprep.subr.mxu0 0.0
    %5279 = vmatpush1.msra.mxu0 0.0
    %5280 = vmatprep.subr.mxu0 0.0
    %5281 = vmatpush1.msra.mxu0 0.0
    %5282 = vmatprep.subr.mxu0 0.0
    %5283 = vmatpush1.msra.mxu0 0.0
    %5284 = vmatprep.subr.mxu0 0.0
    %5285 = vmatpush1.msra.mxu0 0.0
    %5286 = vmatprep.subr.mxu0 0.0
    %5287 = vmatpush1.msra.mxu0 0.0
    %5288 = vmatprep.subr.mxu0 0.0
    %5289 = vmatpush1.msra.mxu0 0.0
    %5290 = vmatprep.subr.mxu0 0.0
    %5291 = vmatpush1.msra.mxu0 0.0
    %5292 = vmatprep.subr.mxu0 0.0
    %5293 = vmatpush1.msra.mxu0 0.0
    %5294 = vmatprep.subr.mxu0 0.0
    %5295 = vmatpush1.msra.mxu0 0.0
    %5296 = vmatprep.subr.mxu0 0.0
    %5297 = vmatpush1.msra.mxu0 0.0
    %5298 = vmatprep.mubr.f32.mxu0 0.0
    %5299 = vmatmul.mubr.f32.gmra.mrb[0].mxu0 %v5008
    %v5300 = vpop.f32.mrb[0].mxu0
    %v5301 = vadd.f32 %v4161, %v5300
    %v5302 = vpop.f32.mrb[0].mxu0
    %5303 = vdwg.mxu0
    %5304 = vmatprep.subr.mxu0 0.0
    %5305 = vmatpush1.msra.mxu0 %v180
    %5306 = vmatprep.subr.mxu0 0.0
    %5307 = vmatpush1.msra.mxu0 %v181
    %5308 = vmatprep.subr.mxu0 0.0
    %5309 = vmatpush1.msra.mxu0 %v182
    %5310 = vmatprep.subr.mxu0 0.0
    %5311 = vmatpush1.msra.mxu0 %v183
    %5312 = vmatprep.subr.mxu0 0.0
    %5313 = vmatpush1.msra.mxu0 %v184
    %5314 = vmatprep.subr.mxu0 0.0
    %5315 = vmatpush1.msra.mxu0 %v185
    %5316 = vmatprep.subr.mxu0 0.0
    %5317 = vmatpush1.msra.mxu0 %v186
    %5318 = vmatprep.subr.mxu0 0.0
    %5319 = vmatpush1.msra.mxu0 %v187
    %5320 = vmatprep.subr.mxu0 0.0
    %5321 = vmatpush1.msra.mxu0 0.0
    %5322 = vmatprep.subr.mxu0 0.0
    %5323 = vmatpush1.msra.mxu0 0.0
    %5324 = vmatprep.subr.mxu0 0.0
    %5325 = vmatpush1.msra.mxu0 0.0
    %5326 = vmatprep.subr.mxu0 0.0
    %5327 = vmatpush1.msra.mxu0 0.0
    %5328 = vmatprep.subr.mxu0 0.0
    %5329 = vmatpush1.msra.mxu0 0.0
    %5330 = vmatprep.subr.mxu0 0.0
    %5331 = vmatpush1.msra.mxu0 0.0
    %5332 = vmatprep.subr.mxu0 0.0
    %5333 = vmatpush1.msra.mxu0 0.0
    %5334 = vmatprep.subr.mxu0 0.0
    %5335 = vmatpush1.msra.mxu0 0.0
    %5336 = vmatprep.subr.mxu0 0.0
    %5337 = vmatpush1.msra.mxu0 0.0
    %5338 = vmatprep.subr.mxu0 0.0
    %5339 = vmatpush1.msra.mxu0 0.0
    %5340 = vmatprep.subr.mxu0 0.0
    %5341 = vmatpush1.msra.mxu0 0.0
    %5342 = vmatprep.subr.mxu0 0.0
    %5343 = vmatpush1.msra.mxu0 0.0
    %5344 = vmatprep.subr.mxu0 0.0
    %5345 = vmatpush1.msra.mxu0 0.0
    %5346 = vmatprep.subr.mxu0 0.0
    %5347 = vmatpush1.msra.mxu0 0.0
    %5348 = vmatprep.subr.mxu0 0.0
    %5349 = vmatpush1.msra.mxu0 0.0
    %5350 = vmatprep.subr.mxu0 0.0
    %5351 = vmatpush1.msra.mxu0 0.0
    %5352 = vmatprep.subr.mxu0 0.0
    %5353 = vmatpush1.msra.mxu0 0.0
    %5354 = vmatprep.subr.mxu0 0.0
    %5355 = vmatpush1.msra.mxu0 0.0
    %5356 = vmatprep.subr.mxu0 0.0
    %5357 = vmatpush1.msra.mxu0 0.0
    %5358 = vmatprep.subr.mxu0 0.0
    %5359 = vmatpush1.msra.mxu0 0.0
    %5360 = vmatprep.subr.mxu0 0.0
    %5361 = vmatpush1.msra.mxu0 0.0
    %5362 = vmatprep.subr.mxu0 0.0
    %5363 = vmatpush1.msra.mxu0 0.0
    %5364 = vmatprep.subr.mxu0 0.0
    %5365 = vmatpush1.msra.mxu0 0.0
    %5366 = vmatprep.subr.mxu0 0.0
    %5367 = vmatpush1.msra.mxu0 0.0
    %5368 = vmatprep.mubr.f32.mxu0 0.0
    %5369 = vmatmul.mubr.f32.gmra.mrb[0].mxu0 %v4854
    %v5370 = vpop.f32.mrb[0].mxu0
    %v5371 = vadd.f32 %v4240, %v5370
    %v5372 = vpop.f32.mrb[0].mxu0
    %5373 = vdwg.mxu0
    %v5374 = vmul.f32 %v5086, %v5371
    %v5375 = vadd.f32 %v5301, %v5374
    %v5376 = vtanh.pop %v5375
    %v5377 = vsub.f32 1.0, %v5233
    %v5378 = vmul.f32 %v5377, %v5376
    %v5379 = vmul.f32 %v5233, %v4852
    %v5380 = vadd.f32 %v5378, %v5379
    %v5382 = vsel %vm3838, %v5380, 0
    %5384 = vmatprep.subr.mxu0 0.0
    %5385 = vmatpush1.msra.mxu0 %v192
    %5386 = vmatprep.subr.mxu0 0.0
    %5387 = vmatpush1.msra.mxu0 %v193
    %5388 = vmatprep.subr.mxu0 0.0
    %5389 = vmatpush1.msra.mxu0 %v194
    %5390 = vmatprep.subr.mxu0 0.0
    %5391 = vmatpush1.msra.mxu0 %v195
    %5392 = vmatprep.subr.mxu0 0.0
    %5393 = vmatpush1.msra.mxu0 %v196
    %5394 = vmatprep.subr.mxu0 0.0
    %5395 = vmatpush1.msra.mxu0 %v197
    %5396 = vmatprep.subr.mxu0 0.0
    %5397 = vmatpush1.msra.mxu0 %v198
    %5398 = vmatprep.subr.mxu0 0.0
    %5399 = vmatpush1.msra.mxu0 %v199
    %5400 = vmatprep.subr.mxu0 0.0
    %5401 = vmatpush1.msra.mxu0 0.0
    %5402 = vmatprep.subr.mxu0 0.0
    %5403 = vmatpush1.msra.mxu0 0.0
    %5404 = vmatprep.subr.mxu0 0.0
    %5405 = vmatpush1.msra.mxu0 0.0
    %5406 = vmatprep.subr.mxu0 0.0
    %5407 = vmatpush1.msra.mxu0 0.0
    %5408 = vmatprep.subr.mxu0 0.0
    %5409 = vmatpush1.msra.mxu0 0.0
    %5410 = vmatprep.subr.mxu0 0.0
    %5411 = vmatpush1.msra.mxu0 0.0
    %5412 = vmatprep.subr.mxu0 0.0
    %5413 = vmatpush1.msra.mxu0 0.0
    %5414 = vmatprep.subr.mxu0 0.0
    %5415 = vmatpush1.msra.mxu0 0.0
    %5416 = vmatprep.subr.mxu0 0.0
    %5417 = vmatpush1.msra.mxu0 0.0
    %5418 = vmatprep.subr.mxu0 0.0
    %5419 = vmatpush1.msra.mxu0 0.0
    %5420 = vmatprep.subr.mxu0 0.0
    %5421 = vmatpush1.msra.mxu0 0.0
    %5422 = vmatprep.subr.mxu0 0.0
    %5423 = vmatpush1.msra.mxu0 0.0
    %5424 = vmatprep.subr.mxu0 0.0
    %5425 = vmatpush1.msra.mxu0 0.0
    %5426 = vmatprep.subr.mxu0 0.0
    %5427 = vmatpush1.msra.mxu0 0.0
    %5428 = vmatprep.subr.mxu0 0.0
    %5429 = vmatpush1.msra.mxu0 0.0
    %5430 = vmatprep.subr.mxu0 0.0
    %5431 = vmatpush1.msra.mxu0 0.0
    %5432 = vmatprep.subr.mxu0 0.0
    %5433 = vmatpush1.msra.mxu0 0.0
    %5434 = vmatprep.subr.mxu0 0.0
    %5435 = vmatpush1.msra.mxu0 0.0
    %5436 = vmatprep.subr.mxu0 0.0
    %5437 = vmatpush1.msra.mxu0 0.0
    %5438 = vmatprep.subr.mxu0 0.0
    %5439 = vmatpush1.msra.mxu0 0.0
    %5440 = vmatprep.subr.mxu0 0.0
    %5441 = vmatpush1.msra.mxu0 0.0
    %5442 = vmatprep.subr.mxu0 0.0
    %5443 = vmatpush1.msra.mxu0 0.0
    %5444 = vmatprep.subr.mxu0 0.0
    %5445 = vmatpush1.msra.mxu0 0.0
    %5446 = vmatprep.subr.mxu0 0.0
    %5447 = vmatpush1.msra.mxu0 0.0
    %5448 = vmatprep.mubr.f32.mxu0 0.0
    %5449 = vmatmul.mubr.f32.gmra.mrb[0].mxu0 %v5382
    %v5450 = vpop.f32.mrb[0].mxu0
    %v5451 = vadd.f32 %v4323, %v5450
    %v5452 = vpop.f32.mrb[0].mxu0
    %5453 = vdwg.mxu0
    %s5454 = scalar_lea.vmem %s25, 16
    %5455 = vst.msk [vmem:[%s5454] sm:$0xff] %vm4398, %v5451
    %5456 = vst.msk [vmem:[#allocation3] sm:$0xff] %vm4398, %v5451
    %s5457 = scalar_lea.vmem %s1, 16
    %v5458 = vld [vmem:[%s5457] sm:$0xff]
    %5460 = vrot.lane.b32.xlu0 %v5458, 1
    %v5461 = vpop.permute.xlu0 %5460
    %5463 = vst.msk [vmem:[#allocation3] sm:$0xff] %vm4406, %v5461
    %v5464 = vld [vmem:[#allocation3] sm:$0xff]
    %5465 = vmatprep.subr.mxu0 0.0
    %5466 = vmatpush1.msra.mxu0 %v162
    %5467 = vmatprep.subr.mxu0 0.0
    %5468 = vmatpush1.msra.mxu0 %v163
    %5469 = vmatprep.subr.mxu0 0.0
    %5470 = vmatpush1.msra.mxu0 %v164
    %5471 = vmatprep.subr.mxu0 0.0
    %5472 = vmatpush1.msra.mxu0 %v165
    %5473 = vmatprep.subr.mxu0 0.0
    %5474 = vmatpush1.msra.mxu0 %v166
    %5475 = vmatprep.subr.mxu0 0.0
    %5476 = vmatpush1.msra.mxu0 %v167
    %5477 = vmatprep.subr.mxu0 0.0
    %5478 = vmatpush1.msra.mxu0 %v168
    %5479 = vmatprep.subr.mxu0 0.0
    %5480 = vmatpush1.msra.mxu0 %v169
    %5481 = vmatprep.subr.mxu0 0.0
    %5482 = vmatpush1.msra.mxu0 0.0
    %5483 = vmatprep.subr.mxu0 0.0
    %5484 = vmatpush1.msra.mxu0 0.0
    %5485 = vmatprep.subr.mxu0 0.0
    %5486 = vmatpush1.msra.mxu0 0.0
    %5487 = vmatprep.subr.mxu0 0.0
    %5488 = vmatpush1.msra.mxu0 0.0
    %5489 = vmatprep.subr.mxu0 0.0
    %5490 = vmatpush1.msra.mxu0 0.0
    %5491 = vmatprep.subr.mxu0 0.0
    %5492 = vmatpush1.msra.mxu0 0.0
    %5493 = vmatprep.subr.mxu0 0.0
    %5494 = vmatpush1.msra.mxu0 0.0
    %5495 = vmatprep.subr.mxu0 0.0
    %5496 = vmatpush1.msra.mxu0 0.0
    %5497 = vmatprep.subr.mxu0 0.0
    %5498 = vmatpush1.msra.mxu0 0.0
    %5499 = vmatprep.subr.mxu0 0.0
    %5500 = vmatpush1.msra.mxu0 0.0
    %5501 = vmatprep.subr.mxu0 0.0
    %5502 = vmatpush1.msra.mxu0 0.0
    %5503 = vmatprep.subr.mxu0 0.0
    %5504 = vmatpush1.msra.mxu0 0.0
    %5505 = vmatprep.subr.mxu0 0.0
    %5506 = vmatpush1.msra.mxu0 0.0
    %5507 = vmatprep.subr.mxu0 0.0
    %5508 = vmatpush1.msra.mxu0 0.0
    %5509 = vmatprep.subr.mxu0 0.0
    %5510 = vmatpush1.msra.mxu0 0.0
    %5511 = vmatprep.subr.mxu0 0.0
    %5512 = vmatpush1.msra.mxu0 0.0
    %5513 = vmatprep.subr.mxu0 0.0
    %5514 = vmatpush1.msra.mxu0 0.0
    %5515 = vmatprep.subr.mxu0 0.0
    %5516 = vmatpush1.msra.mxu0 0.0
    %5517 = vmatprep.subr.mxu0 0.0
    %5518 = vmatpush1.msra.mxu0 0.0
    %5519 = vmatprep.subr.mxu0 0.0
    %5520 = vmatpush1.msra.mxu0 0.0
    %5521 = vmatprep.subr.mxu0 0.0
    %5522 = vmatpush1.msra.mxu0 0.0
    %5523 = vmatprep.subr.mxu0 0.0
    %5524 = vmatpush1.msra.mxu0 0.0
    %5525 = vmatprep.subr.mxu0 0.0
    %5526 = vmatpush1.msra.mxu0 0.0
    %5527 = vmatprep.subr.mxu0 0.0
    %5528 = vmatpush1.msra.mxu0 0.0
    %5529 = vmatprep.mubr.f32.mxu0 0.0
    %5530 = vmatmul.mubr.f32.gmra.mrb[0].mxu0 %v5382
    %v5531 = vpop.f32.mrb[0].mxu0
    %v5532 = vadd.f32 0.0, %v5531
    %v5533 = vpop.f32.mrb[0].mxu0
    %5534 = vdwg.mxu0
    %v5536 = vsel %vm276, %v5464, 0
    %5538 = vmatprep.subr.mxu0 0.0
    %5539 = vmatpush1.msra.mxu0 %v3916
    %5540 = vmatprep.subr.mxu0 0.0
    %5541 = vmatpush1.msra.mxu0 0.0
    %5542 = vmatprep.subr.mxu0 0.0
    %5543 = vmatpush1.msra.mxu0 0.0
    %5544 = vmatprep.subr.mxu0 0.0
    %5545 = vmatpush1.msra.mxu0 0.0
    %5546 = vmatprep.subr.mxu0 0.0
    %5547 = vmatpush1.msra.mxu0 0.0
    %5548 = vmatprep.subr.mxu0 0.0
    %5549 = vmatpush1.msra.mxu0 0.0
    %5550 = vmatprep.subr.mxu0 0.0
    %5551 = vmatpush1.msra.mxu0 0.0
    %5552 = vmatprep.subr.mxu0 0.0
    %5553 = vmatpush1.msra.mxu0 0.0
    %5554 = vmatprep.subr.mxu0 0.0
    %5555 = vmatpush1.msra.mxu0 0.0
    %5556 = vmatprep.subr.mxu0 0.0
    %5557 = vmatpush1.msra.mxu0 0.0
    %5558 = vmatprep.subr.mxu0 0.0
    %5559 = vmatpush1.msra.mxu0 0.0
    %5560 = vmatprep.subr.mxu0 0.0
    %5561 = vmatpush1.msra.mxu0 0.0
    %5562 = vmatprep.subr.mxu0 0.0
    %5563 = vmatpush1.msra.mxu0 0.0
    %5564 = vmatprep.subr.mxu0 0.0
    %5565 = vmatpush1.msra.mxu0 0.0
    %5566 = vmatprep.subr.mxu0 0.0
    %5567 = vmatpush1.msra.mxu0 0.0
    %5568 = vmatprep.subr.mxu0 0.0
    %5569 = vmatpush1.msra.mxu0 0.0
    %5570 = vmatprep.subr.mxu0 0.0
    %5571 = vmatpush1.msra.mxu0 0.0
    %5572 = vmatprep.subr.mxu0 0.0
    %5573 = vmatpush1.msra.mxu0 0.0
    %5574 = vmatprep.subr.mxu0 0.0
    %5575 = vmatpush1.msra.mxu0 0.0
    %5576 = vmatprep.subr.mxu0 0.0
    %5577 = vmatpush1.msra.mxu0 0.0
    %5578 = vmatprep.subr.mxu0 0.0
    %5579 = vmatpush1.msra.mxu0 0.0
    %5580 = vmatprep.subr.mxu0 0.0
    %5581 = vmatpush1.msra.mxu0 0.0
    %5582 = vmatprep.subr.mxu0 0.0
    %5583 = vmatpush1.msra.mxu0 0.0
    %5584 = vmatprep.subr.mxu0 0.0
    %5585 = vmatpush1.msra.mxu0 0.0
    %5586 = vmatprep.subr.mxu0 0.0
    %5587 = vmatpush1.msra.mxu0 0.0
    %5588 = vmatprep.subr.mxu0 0.0
    %5589 = vmatpush1.msra.mxu0 0.0
    %5590 = vmatprep.subr.mxu0 0.0
    %5591 = vmatpush1.msra.mxu0 0.0
    %5592 = vmatprep.subr.mxu0 0.0
    %5593 = vmatpush1.msra.mxu0 0.0
    %5594 = vmatprep.subr.mxu0 0.0
    %5595 = vmatpush1.msra.mxu0 0.0
    %5596 = vmatprep.subr.mxu0 0.0
    %5597 = vmatpush1.msra.mxu0 0.0
    %5598 = vmatprep.subr.mxu0 0.0
    %5599 = vmatpush1.msra.mxu0 0.0
    %5600 = vmatprep.subr.mxu0 0.0
    %5601 = vmatpush1.msra.mxu0 0.0
    %5602 = vmatprep.mubr.f32.mxu0 0.0
    %5603 = vmatmul.mubr.f32.gmra.mrb[0].mxu0 %v5536
    %v5604 = vpop.f32.mrb[0].mxu0
    %v5605 = vadd.f32 %v5532, %v5604
    %v5606 = vpop.f32.mrb[0].mxu0
    %5607 = vdwg.mxu0
    %v5608 = vadd.f32 %v5605, %v3992
    %v5609 = vxor.u32 %v5608, 2147483648
    %v5610 = vmul.f32 %v5609, 1.442695
    %v5611 = vpow.pop %v5610
    %v5612 = vadd.f32 %v5611, 1.0
    %v5613 = vrcp.pop %v5612
    %v5614 = vmul.f32 1.0, %v5613
    %5615 = vmatprep.subr.mxu0 0.0
    %5616 = vmatpush1.msra.mxu0 %v171
    %5617 = vmatprep.subr.mxu0 0.0
    %5618 = vmatpush1.msra.mxu0 %v172
    %5619 = vmatprep.subr.mxu0 0.0
    %5620 = vmatpush1.msra.mxu0 %v173
    %5621 = vmatprep.subr.mxu0 0.0
    %5622 = vmatpush1.msra.mxu0 %v174
    %5623 = vmatprep.subr.mxu0 0.0
    %5624 = vmatpush1.msra.mxu0 %v175
    %5625 = vmatprep.subr.mxu0 0.0
    %5626 = vmatpush1.msra.mxu0 %v176
    %5627 = vmatprep.subr.mxu0 0.0
    %5628 = vmatpush1.msra.mxu0 %v177
    %5629 = vmatprep.subr.mxu0 0.0
    %5630 = vmatpush1.msra.mxu0 %v178
    %5631 = vmatprep.subr.mxu0 0.0
    %5632 = vmatpush1.msra.mxu0 0.0
    %5633 = vmatprep.subr.mxu0 0.0
    %5634 = vmatpush1.msra.mxu0 0.0
    %5635 = vmatprep.subr.mxu0 0.0
    %5636 = vmatpush1.msra.mxu0 0.0
    %5637 = vmatprep.subr.mxu0 0.0
    %5638 = vmatpush1.msra.mxu0 0.0
    %5639 = vmatprep.subr.mxu0 0.0
    %5640 = vmatpush1.msra.mxu0 0.0
    %5641 = vmatprep.subr.mxu0 0.0
    %5642 = vmatpush1.msra.mxu0 0.0
    %5643 = vmatprep.subr.mxu0 0.0
    %5644 = vmatpush1.msra.mxu0 0.0
    %5645 = vmatprep.subr.mxu0 0.0
    %5646 = vmatpush1.msra.mxu0 0.0
    %5647 = vmatprep.subr.mxu0 0.0
    %5648 = vmatpush1.msra.mxu0 0.0
    %5649 = vmatprep.subr.mxu0 0.0
    %5650 = vmatpush1.msra.mxu0 0.0
    %5651 = vmatprep.subr.mxu0 0.0
    %5652 = vmatpush1.msra.mxu0 0.0
    %5653 = vmatprep.subr.mxu0 0.0
    %5654 = vmatpush1.msra.mxu0 0.0
    %5655 = vmatprep.subr.mxu0 0.0
    %5656 = vmatpush1.msra.mxu0 0.0
    %5657 = vmatprep.subr.mxu0 0.0
    %5658 = vmatpush1.msra.mxu0 0.0
    %5659 = vmatprep.subr.mxu0 0.0
    %5660 = vmatpush1.msra.mxu0 0.0
    %5661 = vmatprep.subr.mxu0 0.0
    %5662 = vmatpush1.msra.mxu0 0.0
    %5663 = vmatprep.subr.mxu0 0.0
    %5664 = vmatpush1.msra.mxu0 0.0
    %5665 = vmatprep.subr.mxu0 0.0
    %5666 = vmatpush1.msra.mxu0 0.0
    %5667 = vmatprep.subr.mxu0 0.0
    %5668 = vmatpush1.msra.mxu0 0.0
    %5669 = vmatprep.subr.mxu0 0.0
    %5670 = vmatpush1.msra.mxu0 0.0
    %5671 = vmatprep.subr.mxu0 0.0
    %5672 = vmatpush1.msra.mxu0 0.0
    %5673 = vmatprep.subr.mxu0 0.0
    %5674 = vmatpush1.msra.mxu0 0.0
    %5675 = vmatprep.subr.mxu0 0.0
    %5676 = vmatpush1.msra.mxu0 0.0
    %5677 = vmatprep.subr.mxu0 0.0
    %5678 = vmatpush1.msra.mxu0 0.0
    %5679 = vmatprep.mubr.f32.mxu0 0.0
    %5680 = vmatmul.mubr.f32.gmra.mrb[0].mxu0 %v5382
    %v5681 = vpop.f32.mrb[0].mxu0
    %v5682 = vadd.f32 0.0, %v5681
    %v5683 = vpop.f32.mrb[0].mxu0
    %5684 = vdwg.mxu0
    %5685 = vmatprep.subr.mxu0 0.0
    %5686 = vmatpush1.msra.mxu0 %v4072
    %5687 = vmatprep.subr.mxu0 0.0
    %5688 = vmatpush1.msra.mxu0 0.0
    %5689 = vmatprep.subr.mxu0 0.0
    %5690 = vmatpush1.msra.mxu0 0.0
    %5691 = vmatprep.subr.mxu0 0.0
    %5692 = vmatpush1.msra.mxu0 0.0
    %5693 = vmatprep.subr.mxu0 0.0
    %5694 = vmatpush1.msra.mxu0 0.0
    %5695 = vmatprep.subr.mxu0 0.0
    %5696 = vmatpush1.msra.mxu0 0.0
    %5697 = vmatprep.subr.mxu0 0.0
    %5698 = vmatpush1.msra.mxu0 0.0
    %5699 = vmatprep.subr.mxu0 0.0
    %5700 = vmatpush1.msra.mxu0 0.0
    %5701 = vmatprep.subr.mxu0 0.0
    %5702 = vmatpush1.msra.mxu0 0.0
    %5703 = vmatprep.subr.mxu0 0.0
    %5704 = vmatpush1.msra.mxu0 0.0
    %5705 = vmatprep.subr.mxu0 0.0
    %5706 = vmatpush1.msra.mxu0 0.0
    %5707 = vmatprep.subr.mxu0 0.0
    %5708 = vmatpush1.msra.mxu0 0.0
    %5709 = vmatprep.subr.mxu0 0.0
    %5710 = vmatpush1.msra.mxu0 0.0
    %5711 = vmatprep.subr.mxu0 0.0
    %5712 = vmatpush1.msra.mxu0 0.0
    %5713 = vmatprep.subr.mxu0 0.0
    %5714 = vmatpush1.msra.mxu0 0.0
    %5715 = vmatprep.subr.mxu0 0.0
    %5716 = vmatpush1.msra.mxu0 0.0
    %5717 = vmatprep.subr.mxu0 0.0
    %5718 = vmatpush1.msra.mxu0 0.0
    %5719 = vmatprep.subr.mxu0 0.0
    %5720 = vmatpush1.msra.mxu0 0.0
    %5721 = vmatprep.subr.mxu0 0.0
    %5722 = vmatpush1.msra.mxu0 0.0
    %5723 = vmatprep.subr.mxu0 0.0
    %5724 = vmatpush1.msra.mxu0 0.0
    %5725 = vmatprep.subr.mxu0 0.0
    %5726 = vmatpush1.msra.mxu0 0.0
    %5727 = vmatprep.subr.mxu0 0.0
    %5728 = vmatpush1.msra.mxu0 0.0
    %5729 = vmatprep.subr.mxu0 0.0
    %5730 = vmatpush1.msra.mxu0 0.0
    %5731 = vmatprep.subr.mxu0 0.0
    %5732 = vmatpush1.msra.mxu0 0.0
    %5733 = vmatprep.subr.mxu0 0.0
    %5734 = vmatpush1.msra.mxu0 0.0
    %5735 = vmatprep.subr.mxu0 0.0
    %5736 = vmatpush1.msra.mxu0 0.0
    %5737 = vmatprep.subr.mxu0 0.0
    %5738 = vmatpush1.msra.mxu0 0.0
    %5739 = vmatprep.subr.mxu0 0.0
    %5740 = vmatpush1.msra.mxu0 0.0
    %5741 = vmatprep.subr.mxu0 0.0
    %5742 = vmatpush1.msra.mxu0 0.0
    %5743 = vmatprep.subr.mxu0 0.0
    %5744 = vmatpush1.msra.mxu0 0.0
    %5745 = vmatprep.subr.mxu0 0.0
    %5746 = vmatpush1.msra.mxu0 0.0
    %5747 = vmatprep.subr.mxu0 0.0
    %5748 = vmatpush1.msra.mxu0 0.0
    %5749 = vmatprep.mubr.f32.mxu0 0.0
    %5750 = vmatmul.mubr.f32.gmra.mrb[0].mxu0 %v5536
    %v5751 = vpop.f32.mrb[0].mxu0
    %v5752 = vadd.f32 %v5682, %v5751
    %v5753 = vpop.f32.mrb[0].mxu0
    %5754 = vdwg.mxu0
    %v5755 = vadd.f32 %v5752, %v4148
    %v5756 = vxor.u32 %v5755, 2147483648
    %v5757 = vmul.f32 %v5756, 1.442695
    %v5758 = vpow.pop %v5757
    %v5759 = vadd.f32 %v5758, 1.0
    %v5760 = vrcp.pop %v5759
    %v5761 = vmul.f32 1.0, %v5760
    %5762 = vmatprep.subr.mxu0 0.0
    %5763 = vmatpush1.msra.mxu0 %v4164
    %5764 = vmatprep.subr.mxu0 0.0
    %5765 = vmatpush1.msra.mxu0 0.0
    %5766 = vmatprep.subr.mxu0 0.0
    %5767 = vmatpush1.msra.mxu0 0.0
    %5768 = vmatprep.subr.mxu0 0.0
    %5769 = vmatpush1.msra.mxu0 0.0
    %5770 = vmatprep.subr.mxu0 0.0
    %5771 = vmatpush1.msra.mxu0 0.0
    %5772 = vmatprep.subr.mxu0 0.0
    %5773 = vmatpush1.msra.mxu0 0.0
    %5774 = vmatprep.subr.mxu0 0.0
    %5775 = vmatpush1.msra.mxu0 0.0
    %5776 = vmatprep.subr.mxu0 0.0
    %5777 = vmatpush1.msra.mxu0 0.0
    %5778 = vmatprep.subr.mxu0 0.0
    %5779 = vmatpush1.msra.mxu0 0.0
    %5780 = vmatprep.subr.mxu0 0.0
    %5781 = vmatpush1.msra.mxu0 0.0
    %5782 = vmatprep.subr.mxu0 0.0
    %5783 = vmatpush1.msra.mxu0 0.0
    %5784 = vmatprep.subr.mxu0 0.0
    %5785 = vmatpush1.msra.mxu0 0.0
    %5786 = vmatprep.subr.mxu0 0.0
    %5787 = vmatpush1.msra.mxu0 0.0
    %5788 = vmatprep.subr.mxu0 0.0
    %5789 = vmatpush1.msra.mxu0 0.0
    %5790 = vmatprep.subr.mxu0 0.0
    %5791 = vmatpush1.msra.mxu0 0.0
    %5792 = vmatprep.subr.mxu0 0.0
    %5793 = vmatpush1.msra.mxu0 0.0
    %5794 = vmatprep.subr.mxu0 0.0
    %5795 = vmatpush1.msra.mxu0 0.0
    %5796 = vmatprep.subr.mxu0 0.0
    %5797 = vmatpush1.msra.mxu0 0.0
    %5798 = vmatprep.subr.mxu0 0.0
    %5799 = vmatpush1.msra.mxu0 0.0
    %5800 = vmatprep.subr.mxu0 0.0
    %5801 = vmatpush1.msra.mxu0 0.0
    %5802 = vmatprep.subr.mxu0 0.0
    %5803 = vmatpush1.msra.mxu0 0.0
    %5804 = vmatprep.subr.mxu0 0.0
    %5805 = vmatpush1.msra.mxu0 0.0
    %5806 = vmatprep.subr.mxu0 0.0
    %5807 = vmatpush1.msra.mxu0 0.0
    %5808 = vmatprep.subr.mxu0 0.0
    %5809 = vmatpush1.msra.mxu0 0.0
    %5810 = vmatprep.subr.mxu0 0.0
    %5811 = vmatpush1.msra.mxu0 0.0
    %5812 = vmatprep.subr.mxu0 0.0
    %5813 = vmatpush1.msra.mxu0 0.0
    %5814 = vmatprep.subr.mxu0 0.0
    %5815 = vmatpush1.msra.mxu0 0.0
    %5816 = vmatprep.subr.mxu0 0.0
    %5817 = vmatpush1.msra.mxu0 0.0
    %5818 = vmatprep.subr.mxu0 0.0
    %5819 = vmatpush1.msra.mxu0 0.0
    %5820 = vmatprep.subr.mxu0 0.0
    %5821 = vmatpush1.msra.mxu0 0.0
    %5822 = vmatprep.subr.mxu0 0.0
    %5823 = vmatpush1.msra.mxu0 0.0
    %5824 = vmatprep.subr.mxu0 0.0
    %5825 = vmatpush1.msra.mxu0 0.0
    %5826 = vmatprep.mubr.f32.mxu0 0.0
    %5827 = vmatmul.mubr.f32.gmra.mrb[0].mxu0 %v5536
    %v5828 = vpop.f32.mrb[0].mxu0
    %v5829 = vadd.f32 %v4161, %v5828
    %v5830 = vpop.f32.mrb[0].mxu0
    %5831 = vdwg.mxu0
    %5832 = vmatprep.subr.mxu0 0.0
    %5833 = vmatpush1.msra.mxu0 %v180
    %5834 = vmatprep.subr.mxu0 0.0
    %5835 = vmatpush1.msra.mxu0 %v181
    %5836 = vmatprep.subr.mxu0 0.0
    %5837 = vmatpush1.msra.mxu0 %v182
    %5838 = vmatprep.subr.mxu0 0.0
    %5839 = vmatpush1.msra.mxu0 %v183
    %5840 = vmatprep.subr.mxu0 0.0
    %5841 = vmatpush1.msra.mxu0 %v184
    %5842 = vmatprep.subr.mxu0 0.0
    %5843 = vmatpush1.msra.mxu0 %v185
    %5844 = vmatprep.subr.mxu0 0.0
    %5845 = vmatpush1.msra.mxu0 %v186
    %5846 = vmatprep.subr.mxu0 0.0
    %5847 = vmatpush1.msra.mxu0 %v187
    %5848 = vmatprep.subr.mxu0 0.0
    %5849 = vmatpush1.msra.mxu0 0.0
    %5850 = vmatprep.subr.mxu0 0.0
    %5851 = vmatpush1.msra.mxu0 0.0
    %5852 = vmatprep.subr.mxu0 0.0
    %5853 = vmatpush1.msra.mxu0 0.0
    %5854 = vmatprep.subr.mxu0 0.0
    %5855 = vmatpush1.msra.mxu0 0.0
    %5856 = vmatprep.subr.mxu0 0.0
    %5857 = vmatpush1.msra.mxu0 0.0
    %5858 = vmatprep.subr.mxu0 0.0
    %5859 = vmatpush1.msra.mxu0 0.0
    %5860 = vmatprep.subr.mxu0 0.0
    %5861 = vmatpush1.msra.mxu0 0.0
    %5862 = vmatprep.subr.mxu0 0.0
    %5863 = vmatpush1.msra.mxu0 0.0
    %5864 = vmatprep.subr.mxu0 0.0
    %5865 = vmatpush1.msra.mxu0 0.0
    %5866 = vmatprep.subr.mxu0 0.0
    %5867 = vmatpush1.msra.mxu0 0.0
    %5868 = vmatprep.subr.mxu0 0.0
    %5869 = vmatpush1.msra.mxu0 0.0
    %5870 = vmatprep.subr.mxu0 0.0
    %5871 = vmatpush1.msra.mxu0 0.0
    %5872 = vmatprep.subr.mxu0 0.0
    %5873 = vmatpush1.msra.mxu0 0.0
    %5874 = vmatprep.subr.mxu0 0.0
    %5875 = vmatpush1.msra.mxu0 0.0
    %5876 = vmatprep.subr.mxu0 0.0
    %5877 = vmatpush1.msra.mxu0 0.0
    %5878 = vmatprep.subr.mxu0 0.0
    %5879 = vmatpush1.msra.mxu0 0.0
    %5880 = vmatprep.subr.mxu0 0.0
    %5881 = vmatpush1.msra.mxu0 0.0
    %5882 = vmatprep.subr.mxu0 0.0
    %5883 = vmatpush1.msra.mxu0 0.0
    %5884 = vmatprep.subr.mxu0 0.0
    %5885 = vmatpush1.msra.mxu0 0.0
    %5886 = vmatprep.subr.mxu0 0.0
    %5887 = vmatpush1.msra.mxu0 0.0
    %5888 = vmatprep.subr.mxu0 0.0
    %5889 = vmatpush1.msra.mxu0 0.0
    %5890 = vmatprep.subr.mxu0 0.0
    %5891 = vmatpush1.msra.mxu0 0.0
    %5892 = vmatprep.subr.mxu0 0.0
    %5893 = vmatpush1.msra.mxu0 0.0
    %5894 = vmatprep.subr.mxu0 0.0
    %5895 = vmatpush1.msra.mxu0 0.0
    %5896 = vmatprep.mubr.f32.mxu0 0.0
    %5897 = vmatmul.mubr.f32.gmra.mrb[0].mxu0 %v5382
    %v5898 = vpop.f32.mrb[0].mxu0
    %v5899 = vadd.f32 %v4240, %v5898
    %v5900 = vpop.f32.mrb[0].mxu0
    %5901 = vdwg.mxu0
    %v5902 = vmul.f32 %v5614, %v5899
    %v5903 = vadd.f32 %v5829, %v5902
    %v5904 = vtanh.pop %v5903
    %v5905 = vsub.f32 1.0, %v5761
    %v5906 = vmul.f32 %v5905, %v5904
    %v5907 = vmul.f32 %v5761, %v5380
    %v5908 = vadd.f32 %v5906, %v5907
    %v5910 = vsel %vm3838, %v5908, 0
    %5912 = vmatprep.subr.mxu0 0.0
    %5913 = vmatpush1.msra.mxu0 %v192
    %5914 = vmatprep.subr.mxu0 0.0
    %5915 = vmatpush1.msra.mxu0 %v193
    %5916 = vmatprep.subr.mxu0 0.0
    %5917 = vmatpush1.msra.mxu0 %v194
    %5918 = vmatprep.subr.mxu0 0.0
    %5919 = vmatpush1.msra.mxu0 %v195
    %5920 = vmatprep.subr.mxu0 0.0
    %5921 = vmatpush1.msra.mxu0 %v196
    %5922 = vmatprep.subr.mxu0 0.0
    %5923 = vmatpush1.msra.mxu0 %v197
    %5924 = vmatprep.subr.mxu0 0.0
    %5925 = vmatpush1.msra.mxu0 %v198
    %5926 = vmatprep.subr.mxu0 0.0
    %5927 = vmatpush1.msra.mxu0 %v199
    %5928 = vmatprep.subr.mxu0 0.0
    %5929 = vmatpush1.msra.mxu0 0.0
    %5930 = vmatprep.subr.mxu0 0.0
    %5931 = vmatpush1.msra.mxu0 0.0
    %5932 = vmatprep.subr.mxu0 0.0
    %5933 = vmatpush1.msra.mxu0 0.0
    %5934 = vmatprep.subr.mxu0 0.0
    %5935 = vmatpush1.msra.mxu0 0.0
    %5936 = vmatprep.subr.mxu0 0.0
    %5937 = vmatpush1.msra.mxu0 0.0
    %5938 = vmatprep.subr.mxu0 0.0
    %5939 = vmatpush1.msra.mxu0 0.0
    %5940 = vmatprep.subr.mxu0 0.0
    %5941 = vmatpush1.msra.mxu0 0.0
    %5942 = vmatprep.subr.mxu0 0.0
    %5943 = vmatpush1.msra.mxu0 0.0
    %5944 = vmatprep.subr.mxu0 0.0
    %5945 = vmatpush1.msra.mxu0 0.0
    %5946 = vmatprep.subr.mxu0 0.0
    %5947 = vmatpush1.msra.mxu0 0.0
    %5948 = vmatprep.subr.mxu0 0.0
    %5949 = vmatpush1.msra.mxu0 0.0
    %5950 = vmatprep.subr.mxu0 0.0
    %5951 = vmatpush1.msra.mxu0 0.0
    %5952 = vmatprep.subr.mxu0 0.0
    %5953 = vmatpush1.msra.mxu0 0.0
    %5954 = vmatprep.subr.mxu0 0.0
    %5955 = vmatpush1.msra.mxu0 0.0
    %5956 = vmatprep.subr.mxu0 0.0
    %5957 = vmatpush1.msra.mxu0 0.0
    %5958 = vmatprep.subr.mxu0 0.0
    %5959 = vmatpush1.msra.mxu0 0.0
    %5960 = vmatprep.subr.mxu0 0.0
    %5961 = vmatpush1.msra.mxu0 0.0
    %5962 = vmatprep.subr.mxu0 0.0
    %5963 = vmatpush1.msra.mxu0 0.0
    %5964 = vmatprep.subr.mxu0 0.0
    %5965 = vmatpush1.msra.mxu0 0.0
    %5966 = vmatprep.subr.mxu0 0.0
    %5967 = vmatpush1.msra.mxu0 0.0
    %5968 = vmatprep.subr.mxu0 0.0
    %5969 = vmatpush1.msra.mxu0 0.0
    %5970 = vmatprep.subr.mxu0 0.0
    %5971 = vmatpush1.msra.mxu0 0.0
    %5972 = vmatprep.subr.mxu0 0.0
    %5973 = vmatpush1.msra.mxu0 0.0
    %5974 = vmatprep.subr.mxu0 0.0
    %5975 = vmatpush1.msra.mxu0 0.0
    %5976 = vmatprep.mubr.f32.mxu0 0.0
    %5977 = vmatmul.mubr.f32.gmra.mrb[0].mxu0 %v5910
    %v5978 = vpop.f32.mrb[0].mxu0
    %v5979 = vadd.f32 %v4323, %v5978
    %v5980 = vpop.f32.mrb[0].mxu0
    %5981 = vdwg.mxu0
    %s5982 = scalar_lea.vmem %s25, 24
    %5983 = vst.msk [vmem:[%s5982] sm:$0xff] %vm4398, %v5979
    %5984 = vst.msk [vmem:[#allocation3] sm:$0xff] %vm4398, %v5979
    %s5985 = scalar_lea.vmem %s1, 24
    %v5986 = vld [vmem:[%s5985] sm:$0xff]
    %5988 = vrot.lane.b32.xlu0 %v5986, 1
    %v5989 = vpop.permute.xlu0 %5988
    %5991 = vst.msk [vmem:[#allocation3] sm:$0xff] %vm4406, %v5989
    %v5992 = vld [vmem:[#allocation3] sm:$0xff]
    %5993 = vmatprep.subr.mxu0 0.0
    %5994 = vmatpush1.msra.mxu0 %v162
    %5995 = vmatprep.subr.mxu0 0.0
    %5996 = vmatpush1.msra.mxu0 %v163
    %5997 = vmatprep.subr.mxu0 0.0
    %5998 = vmatpush1.msra.mxu0 %v164
    %5999 = vmatprep.subr.mxu0 0.0
    %6000 = vmatpush1.msra.mxu0 %v165
    %6001 = vmatprep.subr.mxu0 0.0
    %6002 = vmatpush1.msra.mxu0 %v166
    %6003 = vmatprep.subr.mxu0 0.0
    %6004 = vmatpush1.msra.mxu0 %v167
    %6005 = vmatprep.subr.mxu0 0.0
    %6006 = vmatpush1.msra.mxu0 %v168
    %6007 = vmatprep.subr.mxu0 0.0
    %6008 = vmatpush1.msra.mxu0 %v169
    %6009 = vmatprep.subr.mxu0 0.0
    %6010 = vmatpush1.msra.mxu0 0.0
    %6011 = vmatprep.subr.mxu0 0.0
    %6012 = vmatpush1.msra.mxu0 0.0
    %6013 = vmatprep.subr.mxu0 0.0
    %6014 = vmatpush1.msra.mxu0 0.0
    %6015 = vmatprep.subr.mxu0 0.0
    %6016 = vmatpush1.msra.mxu0 0.0
    %6017 = vmatprep.subr.mxu0 0.0
    %6018 = vmatpush1.msra.mxu0 0.0
    %6019 = vmatprep.subr.mxu0 0.0
    %6020 = vmatpush1.msra.mxu0 0.0
    %6021 = vmatprep.subr.mxu0 0.0
    %6022 = vmatpush1.msra.mxu0 0.0
    %6023 = vmatprep.subr.mxu0 0.0
    %6024 = vmatpush1.msra.mxu0 0.0
    %6025 = vmatprep.subr.mxu0 0.0
    %6026 = vmatpush1.msra.mxu0 0.0
    %6027 = vmatprep.subr.mxu0 0.0
    %6028 = vmatpush1.msra.mxu0 0.0
    %6029 = vmatprep.subr.mxu0 0.0
    %6030 = vmatpush1.msra.mxu0 0.0
    %6031 = vmatprep.subr.mxu0 0.0
    %6032 = vmatpush1.msra.mxu0 0.0
    %6033 = vmatprep.subr.mxu0 0.0
    %6034 = vmatpush1.msra.mxu0 0.0
    %6035 = vmatprep.subr.mxu0 0.0
    %6036 = vmatpush1.msra.mxu0 0.0
    %6037 = vmatprep.subr.mxu0 0.0
    %6038 = vmatpush1.msra.mxu0 0.0
    %6039 = vmatprep.subr.mxu0 0.0
    %6040 = vmatpush1.msra.mxu0 0.0
    %6041 = vmatprep.subr.mxu0 0.0
    %6042 = vmatpush1.msra.mxu0 0.0
    %6043 = vmatprep.subr.mxu0 0.0
    %6044 = vmatpush1.msra.mxu0 0.0
    %6045 = vmatprep.subr.mxu0 0.0
    %6046 = vmatpush1.msra.mxu0 0.0
    %6047 = vmatprep.subr.mxu0 0.0
    %6048 = vmatpush1.msra.mxu0 0.0
    %6049 = vmatprep.subr.mxu0 0.0
    %6050 = vmatpush1.msra.mxu0 0.0
    %6051 = vmatprep.subr.mxu0 0.0
    %6052 = vmatpush1.msra.mxu0 0.0
    %6053 = vmatprep.subr.mxu0 0.0
    %6054 = vmatpush1.msra.mxu0 0.0
    %6055 = vmatprep.subr.mxu0 0.0
    %6056 = vmatpush1.msra.mxu0 0.0
    %6057 = vmatprep.mubr.f32.mxu0 0.0
    %6058 = vmatmul.mubr.f32.gmra.mrb[0].mxu0 %v5910
    %v6059 = vpop.f32.mrb[0].mxu0
    %v6060 = vadd.f32 0.0, %v6059
    %v6061 = vpop.f32.mrb[0].mxu0
    %6062 = vdwg.mxu0
    %v6064 = vsel %vm276, %v5992, 0
    %6066 = vmatprep.subr.mxu0 0.0
    %6067 = vmatpush1.msra.mxu0 %v3916
    %6068 = vmatprep.subr.mxu0 0.0
    %6069 = vmatpush1.msra.mxu0 0.0
    %6070 = vmatprep.subr.mxu0 0.0
    %6071 = vmatpush1.msra.mxu0 0.0
    %6072 = vmatprep.subr.mxu0 0.0
    %6073 = vmatpush1.msra.mxu0 0.0
    %6074 = vmatprep.subr.mxu0 0.0
    %6075 = vmatpush1.msra.mxu0 0.0
    %6076 = vmatprep.subr.mxu0 0.0
    %6077 = vmatpush1.msra.mxu0 0.0
    %6078 = vmatprep.subr.mxu0 0.0
    %6079 = vmatpush1.msra.mxu0 0.0
    %6080 = vmatprep.subr.mxu0 0.0
    %6081 = vmatpush1.msra.mxu0 0.0
    %6082 = vmatprep.subr.mxu0 0.0
    %6083 = vmatpush1.msra.mxu0 0.0
    %6084 = vmatprep.subr.mxu0 0.0
    %6085 = vmatpush1.msra.mxu0 0.0
    %6086 = vmatprep.subr.mxu0 0.0
    %6087 = vmatpush1.msra.mxu0 0.0
    %6088 = vmatprep.subr.mxu0 0.0
    %6089 = vmatpush1.msra.mxu0 0.0
    %6090 = vmatprep.subr.mxu0 0.0
    %6091 = vmatpush1.msra.mxu0 0.0
    %6092 = vmatprep.subr.mxu0 0.0
    %6093 = vmatpush1.msra.mxu0 0.0
    %6094 = vmatprep.subr.mxu0 0.0
    %6095 = vmatpush1.msra.mxu0 0.0
    %6096 = vmatprep.subr.mxu0 0.0
    %6097 = vmatpush1.msra.mxu0 0.0
    %6098 = vmatprep.subr.mxu0 0.0
    %6099 = vmatpush1.msra.mxu0 0.0
    %6100 = vmatprep.subr.mxu0 0.0
    %6101 = vmatpush1.msra.mxu0 0.0
    %6102 = vmatprep.subr.mxu0 0.0
    %6103 = vmatpush1.msra.mxu0 0.0
    %6104 = vmatprep.subr.mxu0 0.0
    %6105 = vmatpush1.msra.mxu0 0.0
    %6106 = vmatprep.subr.mxu0 0.0
    %6107 = vmatpush1.msra.mxu0 0.0
    %6108 = vmatprep.subr.mxu0 0.0
    %6109 = vmatpush1.msra.mxu0 0.0
    %6110 = vmatprep.subr.mxu0 0.0
    %6111 = vmatpush1.msra.mxu0 0.0
    %6112 = vmatprep.subr.mxu0 0.0
    %6113 = vmatpush1.msra.mxu0 0.0
    %6114 = vmatprep.subr.mxu0 0.0
    %6115 = vmatpush1.msra.mxu0 0.0
    %6116 = vmatprep.subr.mxu0 0.0
    %6117 = vmatpush1.msra.mxu0 0.0
    %6118 = vmatprep.subr.mxu0 0.0
    %6119 = vmatpush1.msra.mxu0 0.0
    %6120 = vmatprep.subr.mxu0 0.0
    %6121 = vmatpush1.msra.mxu0 0.0
    %6122 = vmatprep.subr.mxu0 0.0
    %6123 = vmatpush1.msra.mxu0 0.0
    %6124 = vmatprep.subr.mxu0 0.0
    %6125 = vmatpush1.msra.mxu0 0.0
    %6126 = vmatprep.subr.mxu0 0.0
    %6127 = vmatpush1.msra.mxu0 0.0
    %6128 = vmatprep.subr.mxu0 0.0
    %6129 = vmatpush1.msra.mxu0 0.0
    %6130 = vmatprep.mubr.f32.mxu0 0.0
    %6131 = vmatmul.mubr.f32.gmra.mrb[0].mxu0 %v6064
    %v6132 = vpop.f32.mrb[0].mxu0
    %v6133 = vadd.f32 %v6060, %v6132
    %v6134 = vpop.f32.mrb[0].mxu0
    %6135 = vdwg.mxu0
    %v6136 = vadd.f32 %v6133, %v3992
    %v6137 = vxor.u32 %v6136, 2147483648
    %v6138 = vmul.f32 %v6137, 1.442695
    %v6139 = vpow.pop %v6138
    %v6140 = vadd.f32 %v6139, 1.0
    %v6141 = vrcp.pop %v6140
    %v6142 = vmul.f32 1.0, %v6141
    %6143 = vmatprep.subr.mxu0 0.0
    %6144 = vmatpush1.msra.mxu0 %v171
    %6145 = vmatprep.subr.mxu0 0.0
    %6146 = vmatpush1.msra.mxu0 %v172
    %6147 = vmatprep.subr.mxu0 0.0
    %6148 = vmatpush1.msra.mxu0 %v173
    %6149 = vmatprep.subr.mxu0 0.0
    %6150 = vmatpush1.msra.mxu0 %v174
    %6151 = vmatprep.subr.mxu0 0.0
    %6152 = vmatpush1.msra.mxu0 %v175
    %6153 = vmatprep.subr.mxu0 0.0
    %6154 = vmatpush1.msra.mxu0 %v176
    %6155 = vmatprep.subr.mxu0 0.0
    %6156 = vmatpush1.msra.mxu0 %v177
    %6157 = vmatprep.subr.mxu0 0.0
    %6158 = vmatpush1.msra.mxu0 %v178
    %6159 = vmatprep.subr.mxu0 0.0
    %6160 = vmatpush1.msra.mxu0 0.0
    %6161 = vmatprep.subr.mxu0 0.0
    %6162 = vmatpush1.msra.mxu0 0.0
    %6163 = vmatprep.subr.mxu0 0.0
    %6164 = vmatpush1.msra.mxu0 0.0
    %6165 = vmatprep.subr.mxu0 0.0
    %6166 = vmatpush1.msra.mxu0 0.0
    %6167 = vmatprep.subr.mxu0 0.0
    %6168 = vmatpush1.msra.mxu0 0.0
    %6169 = vmatprep.subr.mxu0 0.0
    %6170 = vmatpush1.msra.mxu0 0.0
    %6171 = vmatprep.subr.mxu0 0.0
    %6172 = vmatpush1.msra.mxu0 0.0
    %6173 = vmatprep.subr.mxu0 0.0
    %6174 = vmatpush1.msra.mxu0 0.0
    %6175 = vmatprep.subr.mxu0 0.0
    %6176 = vmatpush1.msra.mxu0 0.0
    %6177 = vmatprep.subr.mxu0 0.0
    %6178 = vmatpush1.msra.mxu0 0.0
    %6179 = vmatprep.subr.mxu0 0.0
    %6180 = vmatpush1.msra.mxu0 0.0
    %6181 = vmatprep.subr.mxu0 0.0
    %6182 = vmatpush1.msra.mxu0 0.0
    %6183 = vmatprep.subr.mxu0 0.0
    %6184 = vmatpush1.msra.mxu0 0.0
    %6185 = vmatprep.subr.mxu0 0.0
    %6186 = vmatpush1.msra.mxu0 0.0
    %6187 = vmatprep.subr.mxu0 0.0
    %6188 = vmatpush1.msra.mxu0 0.0
    %6189 = vmatprep.subr.mxu0 0.0
    %6190 = vmatpush1.msra.mxu0 0.0
    %6191 = vmatprep.subr.mxu0 0.0
    %6192 = vmatpush1.msra.mxu0 0.0
    %6193 = vmatprep.subr.mxu0 0.0
    %6194 = vmatpush1.msra.mxu0 0.0
    %6195 = vmatprep.subr.mxu0 0.0
    %6196 = vmatpush1.msra.mxu0 0.0
    %6197 = vmatprep.subr.mxu0 0.0
    %6198 = vmatpush1.msra.mxu0 0.0
    %6199 = vmatprep.subr.mxu0 0.0
    %6200 = vmatpush1.msra.mxu0 0.0
    %6201 = vmatprep.subr.mxu0 0.0
    %6202 = vmatpush1.msra.mxu0 0.0
    %6203 = vmatprep.subr.mxu0 0.0
    %6204 = vmatpush1.msra.mxu0 0.0
    %6205 = vmatprep.subr.mxu0 0.0
    %6206 = vmatpush1.msra.mxu0 0.0
    %6207 = vmatprep.mubr.f32.mxu0 0.0
    %6208 = vmatmul.mubr.f32.gmra.mrb[0].mxu0 %v5910
    %v6209 = vpop.f32.mrb[0].mxu0
    %v6210 = vadd.f32 0.0, %v6209
    %v6211 = vpop.f32.mrb[0].mxu0
    %6212 = vdwg.mxu0
    %6213 = vmatprep.subr.mxu0 0.0
    %6214 = vmatpush1.msra.mxu0 %v4072
    %6215 = vmatprep.subr.mxu0 0.0
    %6216 = vmatpush1.msra.mxu0 0.0
    %6217 = vmatprep.subr.mxu0 0.0
    %6218 = vmatpush1.msra.mxu0 0.0
    %6219 = vmatprep.subr.mxu0 0.0
    %6220 = vmatpush1.msra.mxu0 0.0
    %6221 = vmatprep.subr.mxu0 0.0
    %6222 = vmatpush1.msra.mxu0 0.0
    %6223 = vmatprep.subr.mxu0 0.0
    %6224 = vmatpush1.msra.mxu0 0.0
    %6225 = vmatprep.subr.mxu0 0.0
    %6226 = vmatpush1.msra.mxu0 0.0
    %6227 = vmatprep.subr.mxu0 0.0
    %6228 = vmatpush1.msra.mxu0 0.0
    %6229 = vmatprep.subr.mxu0 0.0
    %6230 = vmatpush1.msra.mxu0 0.0
    %6231 = vmatprep.subr.mxu0 0.0
    %6232 = vmatpush1.msra.mxu0 0.0
    %6233 = vmatprep.subr.mxu0 0.0
    %6234 = vmatpush1.msra.mxu0 0.0
    %6235 = vmatprep.subr.mxu0 0.0
    %6236 = vmatpush1.msra.mxu0 0.0
    %6237 = vmatprep.subr.mxu0 0.0
    %6238 = vmatpush1.msra.mxu0 0.0
    %6239 = vmatprep.subr.mxu0 0.0
    %6240 = vmatpush1.msra.mxu0 0.0
    %6241 = vmatprep.subr.mxu0 0.0
    %6242 = vmatpush1.msra.mxu0 0.0
    %6243 = vmatprep.subr.mxu0 0.0
    %6244 = vmatpush1.msra.mxu0 0.0
    %6245 = vmatprep.subr.mxu0 0.0
    %6246 = vmatpush1.msra.mxu0 0.0
    %6247 = vmatprep.subr.mxu0 0.0
    %6248 = vmatpush1.msra.mxu0 0.0
    %6249 = vmatprep.subr.mxu0 0.0
    %6250 = vmatpush1.msra.mxu0 0.0
    %6251 = vmatprep.subr.mxu0 0.0
    %6252 = vmatpush1.msra.mxu0 0.0
    %6253 = vmatprep.subr.mxu0 0.0
    %6254 = vmatpush1.msra.mxu0 0.0
    %6255 = vmatprep.subr.mxu0 0.0
    %6256 = vmatpush1.msra.mxu0 0.0
    %6257 = vmatprep.subr.mxu0 0.0
    %6258 = vmatpush1.msra.mxu0 0.0
    %6259 = vmatprep.subr.mxu0 0.0
    %6260 = vmatpush1.msra.mxu0 0.0
    %6261 = vmatprep.subr.mxu0 0.0
    %6262 = vmatpush1.msra.mxu0 0.0
    %6263 = vmatprep.subr.mxu0 0.0
    %6264 = vmatpush1.msra.mxu0 0.0
    %6265 = vmatprep.subr.mxu0 0.0
    %6266 = vmatpush1.msra.mxu0 0.0
    %6267 = vmatprep.subr.mxu0 0.0
    %6268 = vmatpush1.msra.mxu0 0.0
    %6269 = vmatprep.subr.mxu0 0.0
    %6270 = vmatpush1.msra.mxu0 0.0
    %6271 = vmatprep.subr.mxu0 0.0
    %6272 = vmatpush1.msra.mxu0 0.0
    %6273 = vmatprep.subr.mxu0 0.0
    %6274 = vmatpush1.msra.mxu0 0.0
    %6275 = vmatprep.subr.mxu0 0.0
    %6276 = vmatpush1.msra.mxu0 0.0
    %6277 = vmatprep.mubr.f32.mxu0 0.0
    %6278 = vmatmul.mubr.f32.gmra.mrb[0].mxu0 %v6064
    %v6279 = vpop.f32.mrb[0].mxu0
    %v6280 = vadd.f32 %v6210, %v6279
    %v6281 = vpop.f32.mrb[0].mxu0
    %6282 = vdwg.mxu0
    %v6283 = vadd.f32 %v6280, %v4148
    %v6284 = vxor.u32 %v6283, 2147483648
    %v6285 = vmul.f32 %v6284, 1.442695
    %v6286 = vpow.pop %v6285
    %v6287 = vadd.f32 %v6286, 1.0
    %v6288 = vrcp.pop %v6287
    %v6289 = vmul.f32 1.0, %v6288
    %6290 = vmatprep.subr.mxu0 0.0
    %6291 = vmatpush1.msra.mxu0 %v4164
    %6292 = vmatprep.subr.mxu0 0.0
    %6293 = vmatpush1.msra.mxu0 0.0
    %6294 = vmatprep.subr.mxu0 0.0
    %6295 = vmatpush1.msra.mxu0 0.0
    %6296 = vmatprep.subr.mxu0 0.0
    %6297 = vmatpush1.msra.mxu0 0.0
    %6298 = vmatprep.subr.mxu0 0.0
    %6299 = vmatpush1.msra.mxu0 0.0
    %6300 = vmatprep.subr.mxu0 0.0
    %6301 = vmatpush1.msra.mxu0 0.0
    %6302 = vmatprep.subr.mxu0 0.0
    %6303 = vmatpush1.msra.mxu0 0.0
    %6304 = vmatprep.subr.mxu0 0.0
    %6305 = vmatpush1.msra.mxu0 0.0
    %6306 = vmatprep.subr.mxu0 0.0
    %6307 = vmatpush1.msra.mxu0 0.0
    %6308 = vmatprep.subr.mxu0 0.0
    %6309 = vmatpush1.msra.mxu0 0.0
    %6310 = vmatprep.subr.mxu0 0.0
    %6311 = vmatpush1.msra.mxu0 0.0
    %6312 = vmatprep.subr.mxu0 0.0
    %6313 = vmatpush1.msra.mxu0 0.0
    %6314 = vmatprep.subr.mxu0 0.0
    %6315 = vmatpush1.msra.mxu0 0.0
    %6316 = vmatprep.subr.mxu0 0.0
    %6317 = vmatpush1.msra.mxu0 0.0
    %6318 = vmatprep.subr.mxu0 0.0
    %6319 = vmatpush1.msra.mxu0 0.0
    %6320 = vmatprep.subr.mxu0 0.0
    %6321 = vmatpush1.msra.mxu0 0.0
    %6322 = vmatprep.subr.mxu0 0.0
    %6323 = vmatpush1.msra.mxu0 0.0
    %6324 = vmatprep.subr.mxu0 0.0
    %6325 = vmatpush1.msra.mxu0 0.0
    %6326 = vmatprep.subr.mxu0 0.0
    %6327 = vmatpush1.msra.mxu0 0.0
    %6328 = vmatprep.subr.mxu0 0.0
    %6329 = vmatpush1.msra.mxu0 0.0
    %6330 = vmatprep.subr.mxu0 0.0
    %6331 = vmatpush1.msra.mxu0 0.0
    %6332 = vmatprep.subr.mxu0 0.0
    %6333 = vmatpush1.msra.mxu0 0.0
    %6334 = vmatprep.subr.mxu0 0.0
    %6335 = vmatpush1.msra.mxu0 0.0
    %6336 = vmatprep.subr.mxu0 0.0
    %6337 = vmatpush1.msra.mxu0 0.0
    %6338 = vmatprep.subr.mxu0 0.0
    %6339 = vmatpush1.msra.mxu0 0.0
    %6340 = vmatprep.subr.mxu0 0.0
    %6341 = vmatpush1.msra.mxu0 0.0
    %6342 = vmatprep.subr.mxu0 0.0
    %6343 = vmatpush1.msra.mxu0 0.0
    %6344 = vmatprep.subr.mxu0 0.0
    %6345 = vmatpush1.msra.mxu0 0.0
    %6346 = vmatprep.subr.mxu0 0.0
    %6347 = vmatpush1.msra.mxu0 0.0
    %6348 = vmatprep.subr.mxu0 0.0
    %6349 = vmatpush1.msra.mxu0 0.0
    %6350 = vmatprep.subr.mxu0 0.0
    %6351 = vmatpush1.msra.mxu0 0.0
    %6352 = vmatprep.subr.mxu0 0.0
    %6353 = vmatpush1.msra.mxu0 0.0
    %6354 = vmatprep.mubr.f32.mxu0 0.0
    %6355 = vmatmul.mubr.f32.gmra.mrb[0].mxu0 %v6064
    %v6356 = vpop.f32.mrb[0].mxu0
    %v6357 = vadd.f32 %v4161, %v6356
    %v6358 = vpop.f32.mrb[0].mxu0
    %6359 = vdwg.mxu0
    %6360 = vmatprep.subr.mxu0 0.0
    %6361 = vmatpush1.msra.mxu0 %v180
    %6362 = vmatprep.subr.mxu0 0.0
    %6363 = vmatpush1.msra.mxu0 %v181
    %6364 = vmatprep.subr.mxu0 0.0
    %6365 = vmatpush1.msra.mxu0 %v182
    %6366 = vmatprep.subr.mxu0 0.0
    %6367 = vmatpush1.msra.mxu0 %v183
    %6368 = vmatprep.subr.mxu0 0.0
    %6369 = vmatpush1.msra.mxu0 %v184
    %6370 = vmatprep.subr.mxu0 0.0
    %6371 = vmatpush1.msra.mxu0 %v185
    %6372 = vmatprep.subr.mxu0 0.0
    %6373 = vmatpush1.msra.mxu0 %v186
    %6374 = vmatprep.subr.mxu0 0.0
    %6375 = vmatpush1.msra.mxu0 %v187
    %6376 = vmatprep.subr.mxu0 0.0
    %6377 = vmatpush1.msra.mxu0 0.0
    %6378 = vmatprep.subr.mxu0 0.0
    %6379 = vmatpush1.msra.mxu0 0.0
    %6380 = vmatprep.subr.mxu0 0.0
    %6381 = vmatpush1.msra.mxu0 0.0
    %6382 = vmatprep.subr.mxu0 0.0
    %6383 = vmatpush1.msra.mxu0 0.0
    %6384 = vmatprep.subr.mxu0 0.0
    %6385 = vmatpush1.msra.mxu0 0.0
    %6386 = vmatprep.subr.mxu0 0.0
    %6387 = vmatpush1.msra.mxu0 0.0
    %6388 = vmatprep.subr.mxu0 0.0
    %6389 = vmatpush1.msra.mxu0 0.0
    %6390 = vmatprep.subr.mxu0 0.0
    %6391 = vmatpush1.msra.mxu0 0.0
    %6392 = vmatprep.subr.mxu0 0.0
    %6393 = vmatpush1.msra.mxu0 0.0
    %6394 = vmatprep.subr.mxu0 0.0
    %6395 = vmatpush1.msra.mxu0 0.0
    %6396 = vmatprep.subr.mxu0 0.0
    %6397 = vmatpush1.msra.mxu0 0.0
    %6398 = vmatprep.subr.mxu0 0.0
    %6399 = vmatpush1.msra.mxu0 0.0
    %6400 = vmatprep.subr.mxu0 0.0
    %6401 = vmatpush1.msra.mxu0 0.0
    %6402 = vmatprep.subr.mxu0 0.0
    %6403 = vmatpush1.msra.mxu0 0.0
    %6404 = vmatprep.subr.mxu0 0.0
    %6405 = vmatpush1.msra.mxu0 0.0
    %6406 = vmatprep.subr.mxu0 0.0
    %6407 = vmatpush1.msra.mxu0 0.0
    %6408 = vmatprep.subr.mxu0 0.0
    %6409 = vmatpush1.msra.mxu0 0.0
    %6410 = vmatprep.subr.mxu0 0.0
    %6411 = vmatpush1.msra.mxu0 0.0
    %6412 = vmatprep.subr.mxu0 0.0
    %6413 = vmatpush1.msra.mxu0 0.0
    %6414 = vmatprep.subr.mxu0 0.0
    %6415 = vmatpush1.msra.mxu0 0.0
    %6416 = vmatprep.subr.mxu0 0.0
    %6417 = vmatpush1.msra.mxu0 0.0
    %6418 = vmatprep.subr.mxu0 0.0
    %6419 = vmatpush1.msra.mxu0 0.0
    %6420 = vmatprep.subr.mxu0 0.0
    %6421 = vmatpush1.msra.mxu0 0.0
    %6422 = vmatprep.subr.mxu0 0.0
    %6423 = vmatpush1.msra.mxu0 0.0
    %6424 = vmatprep.mubr.f32.mxu0 0.0
    %6425 = vmatmul.mubr.f32.gmra.mrb[0].mxu0 %v5910
    %v6426 = vpop.f32.mrb[0].mxu0
    %v6427 = vadd.f32 %v4240, %v6426
    %v6428 = vpop.f32.mrb[0].mxu0
    %6429 = vdwg.mxu0
    %v6430 = vmul.f32 %v6142, %v6427
    %v6431 = vadd.f32 %v6357, %v6430
    %v6432 = vtanh.pop %v6431
    %v6433 = vsub.f32 1.0, %v6289
    %v6434 = vmul.f32 %v6433, %v6432
    %v6435 = vmul.f32 %v6289, %v5908
    %v6436 = vadd.f32 %v6434, %v6435
    %v6438 = vsel %vm3838, %v6436, 0
    %6440 = vmatprep.subr.mxu0 0.0
    %6441 = vmatpush1.msra.mxu0 %v192
    %6442 = vmatprep.subr.mxu0 0.0
    %6443 = vmatpush1.msra.mxu0 %v193
    %6444 = vmatprep.subr.mxu0 0.0
    %6445 = vmatpush1.msra.mxu0 %v194
    %6446 = vmatprep.subr.mxu0 0.0
    %6447 = vmatpush1.msra.mxu0 %v195
    %6448 = vmatprep.subr.mxu0 0.0
    %6449 = vmatpush1.msra.mxu0 %v196
    %6450 = vmatprep.subr.mxu0 0.0
    %6451 = vmatpush1.msra.mxu0 %v197
    %6452 = vmatprep.subr.mxu0 0.0
    %6453 = vmatpush1.msra.mxu0 %v198
    %6454 = vmatprep.subr.mxu0 0.0
    %6455 = vmatpush1.msra.mxu0 %v199
    %6456 = vmatprep.subr.mxu0 0.0
    %6457 = vmatpush1.msra.mxu0 0.0
    %6458 = vmatprep.subr.mxu0 0.0
    %6459 = vmatpush1.msra.mxu0 0.0
    %6460 = vmatprep.subr.mxu0 0.0
    %6461 = vmatpush1.msra.mxu0 0.0
    %6462 = vmatprep.subr.mxu0 0.0
    %6463 = vmatpush1.msra.mxu0 0.0
    %6464 = vmatprep.subr.mxu0 0.0
    %6465 = vmatpush1.msra.mxu0 0.0
    %6466 = vmatprep.subr.mxu0 0.0
    %6467 = vmatpush1.msra.mxu0 0.0
    %6468 = vmatprep.subr.mxu0 0.0
    %6469 = vmatpush1.msra.mxu0 0.0
    %6470 = vmatprep.subr.mxu0 0.0
    %6471 = vmatpush1.msra.mxu0 0.0
    %6472 = vmatprep.subr.mxu0 0.0
    %6473 = vmatpush1.msra.mxu0 0.0
    %6474 = vmatprep.subr.mxu0 0.0
    %6475 = vmatpush1.msra.mxu0 0.0
    %6476 = vmatprep.subr.mxu0 0.0
    %6477 = vmatpush1.msra.mxu0 0.0
    %6478 = vmatprep.subr.mxu0 0.0
    %6479 = vmatpush1.msra.mxu0 0.0
    %6480 = vmatprep.subr.mxu0 0.0
    %6481 = vmatpush1.msra.mxu0 0.0
    %6482 = vmatprep.subr.mxu0 0.0
    %6483 = vmatpush1.msra.mxu0 0.0
    %6484 = vmatprep.subr.mxu0 0.0
    %6485 = vmatpush1.msra.mxu0 0.0
    %6486 = vmatprep.subr.mxu0 0.0
    %6487 = vmatpush1.msra.mxu0 0.0
    %6488 = vmatprep.subr.mxu0 0.0
    %6489 = vmatpush1.msra.mxu0 0.0
    %6490 = vmatprep.subr.mxu0 0.0
    %6491 = vmatpush1.msra.mxu0 0.0
    %6492 = vmatprep.subr.mxu0 0.0
    %6493 = vmatpush1.msra.mxu0 0.0
    %6494 = vmatprep.subr.mxu0 0.0
    %6495 = vmatpush1.msra.mxu0 0.0
    %6496 = vmatprep.subr.mxu0 0.0
    %6497 = vmatpush1.msra.mxu0 0.0
    %6498 = vmatprep.subr.mxu0 0.0
    %6499 = vmatpush1.msra.mxu0 0.0
    %6500 = vmatprep.subr.mxu0 0.0
    %6501 = vmatpush1.msra.mxu0 0.0
    %6502 = vmatprep.subr.mxu0 0.0
    %6503 = vmatpush1.msra.mxu0 0.0
    %6504 = vmatprep.mubr.f32.mxu0 0.0
    %6505 = vmatmul.mubr.f32.gmra.mrb[0].mxu0 %v6438
    %v6506 = vpop.f32.mrb[0].mxu0
    %v6507 = vadd.f32 %v4323, %v6506
    %v6508 = vpop.f32.mrb[0].mxu0
    %6509 = vdwg.mxu0
    %s6510 = scalar_lea.vmem %s25, 32
    %6511 = vst.msk [vmem:[%s6510] sm:$0xff] %vm4398, %v6507
    %6512 = vst.msk [vmem:[#allocation3] sm:$0xff] %vm4398, %v6507
    %s6513 = scalar_lea.vmem %s1, 32
    %v6514 = vld [vmem:[%s6513] sm:$0xff]
    %6516 = vrot.lane.b32.xlu0 %v6514, 1
    %v6517 = vpop.permute.xlu0 %6516
    %6519 = vst.msk [vmem:[#allocation3] sm:$0xff] %vm4406, %v6517
    %v6520 = vld [vmem:[#allocation3] sm:$0xff]
    %6521 = vmatprep.subr.mxu0 0.0
    %6522 = vmatpush1.msra.mxu0 %v162
    %6523 = vmatprep.subr.mxu0 0.0
    %6524 = vmatpush1.msra.mxu0 %v163
    %6525 = vmatprep.subr.mxu0 0.0
    %6526 = vmatpush1.msra.mxu0 %v164
    %6527 = vmatprep.subr.mxu0 0.0
    %6528 = vmatpush1.msra.mxu0 %v165
    %6529 = vmatprep.subr.mxu0 0.0
    %6530 = vmatpush1.msra.mxu0 %v166
    %6531 = vmatprep.subr.mxu0 0.0
    %6532 = vmatpush1.msra.mxu0 %v167
    %6533 = vmatprep.subr.mxu0 0.0
    %6534 = vmatpush1.msra.mxu0 %v168
    %6535 = vmatprep.subr.mxu0 0.0
    %6536 = vmatpush1.msra.mxu0 %v169
    %6537 = vmatprep.subr.mxu0 0.0
    %6538 = vmatpush1.msra.mxu0 0.0
    %6539 = vmatprep.subr.mxu0 0.0
    %6540 = vmatpush1.msra.mxu0 0.0
    %6541 = vmatprep.subr.mxu0 0.0
    %6542 = vmatpush1.msra.mxu0 0.0
    %6543 = vmatprep.subr.mxu0 0.0
    %6544 = vmatpush1.msra.mxu0 0.0
    %6545 = vmatprep.subr.mxu0 0.0
    %6546 = vmatpush1.msra.mxu0 0.0
    %6547 = vmatprep.subr.mxu0 0.0
    %6548 = vmatpush1.msra.mxu0 0.0
    %6549 = vmatprep.subr.mxu0 0.0
    %6550 = vmatpush1.msra.mxu0 0.0
    %6551 = vmatprep.subr.mxu0 0.0
    %6552 = vmatpush1.msra.mxu0 0.0
    %6553 = vmatprep.subr.mxu0 0.0
    %6554 = vmatpush1.msra.mxu0 0.0
    %6555 = vmatprep.subr.mxu0 0.0
    %6556 = vmatpush1.msra.mxu0 0.0
    %6557 = vmatprep.subr.mxu0 0.0
    %6558 = vmatpush1.msra.mxu0 0.0
    %6559 = vmatprep.subr.mxu0 0.0
    %6560 = vmatpush1.msra.mxu0 0.0
    %6561 = vmatprep.subr.mxu0 0.0
    %6562 = vmatpush1.msra.mxu0 0.0
    %6563 = vmatprep.subr.mxu0 0.0
    %6564 = vmatpush1.msra.mxu0 0.0
    %6565 = vmatprep.subr.mxu0 0.0
    %6566 = vmatpush1.msra.mxu0 0.0
    %6567 = vmatprep.subr.mxu0 0.0
    %6568 = vmatpush1.msra.mxu0 0.0
    %6569 = vmatprep.subr.mxu0 0.0
    %6570 = vmatpush1.msra.mxu0 0.0
    %6571 = vmatprep.subr.mxu0 0.0
    %6572 = vmatpush1.msra.mxu0 0.0
    %6573 = vmatprep.subr.mxu0 0.0
    %6574 = vmatpush1.msra.mxu0 0.0
    %6575 = vmatprep.subr.mxu0 0.0
    %6576 = vmatpush1.msra.mxu0 0.0
    %6577 = vmatprep.subr.mxu0 0.0
    %6578 = vmatpush1.msra.mxu0 0.0
    %6579 = vmatprep.subr.mxu0 0.0
    %6580 = vmatpush1.msra.mxu0 0.0
    %6581 = vmatprep.subr.mxu0 0.0
    %6582 = vmatpush1.msra.mxu0 0.0
    %6583 = vmatprep.subr.mxu0 0.0
    %6584 = vmatpush1.msra.mxu0 0.0
    %6585 = vmatprep.mubr.f32.mxu0 0.0
    %6586 = vmatmul.mubr.f32.gmra.mrb[0].mxu0 %v6438
    %v6587 = vpop.f32.mrb[0].mxu0
    %v6588 = vadd.f32 0.0, %v6587
    %v6589 = vpop.f32.mrb[0].mxu0
    %6590 = vdwg.mxu0
    %v6592 = vsel %vm276, %v6520, 0
    %6594 = vmatprep.subr.mxu0 0.0
    %6595 = vmatpush1.msra.mxu0 %v3916
    %6596 = vmatprep.subr.mxu0 0.0
    %6597 = vmatpush1.msra.mxu0 0.0
    %6598 = vmatprep.subr.mxu0 0.0
    %6599 = vmatpush1.msra.mxu0 0.0
    %6600 = vmatprep.subr.mxu0 0.0
    %6601 = vmatpush1.msra.mxu0 0.0
    %6602 = vmatprep.subr.mxu0 0.0
    %6603 = vmatpush1.msra.mxu0 0.0
    %6604 = vmatprep.subr.mxu0 0.0
    %6605 = vmatpush1.msra.mxu0 0.0
    %6606 = vmatprep.subr.mxu0 0.0
    %6607 = vmatpush1.msra.mxu0 0.0
    %6608 = vmatprep.subr.mxu0 0.0
    %6609 = vmatpush1.msra.mxu0 0.0
    %6610 = vmatprep.subr.mxu0 0.0
    %6611 = vmatpush1.msra.mxu0 0.0
    %6612 = vmatprep.subr.mxu0 0.0
    %6613 = vmatpush1.msra.mxu0 0.0
    %6614 = vmatprep.subr.mxu0 0.0
    %6615 = vmatpush1.msra.mxu0 0.0
    %6616 = vmatprep.subr.mxu0 0.0
    %6617 = vmatpush1.msra.mxu0 0.0
    %6618 = vmatprep.subr.mxu0 0.0
    %6619 = vmatpush1.msra.mxu0 0.0
    %6620 = vmatprep.subr.mxu0 0.0
    %6621 = vmatpush1.msra.mxu0 0.0
    %6622 = vmatprep.subr.mxu0 0.0
    %6623 = vmatpush1.msra.mxu0 0.0
    %6624 = vmatprep.subr.mxu0 0.0
    %6625 = vmatpush1.msra.mxu0 0.0
    %6626 = vmatprep.subr.mxu0 0.0
    %6627 = vmatpush1.msra.mxu0 0.0
    %6628 = vmatprep.subr.mxu0 0.0
    %6629 = vmatpush1.msra.mxu0 0.0
    %6630 = vmatprep.subr.mxu0 0.0
    %6631 = vmatpush1.msra.mxu0 0.0
    %6632 = vmatprep.subr.mxu0 0.0
    %6633 = vmatpush1.msra.mxu0 0.0
    %6634 = vmatprep.subr.mxu0 0.0
    %6635 = vmatpush1.msra.mxu0 0.0
    %6636 = vmatprep.subr.mxu0 0.0
    %6637 = vmatpush1.msra.mxu0 0.0
    %6638 = vmatprep.subr.mxu0 0.0
    %6639 = vmatpush1.msra.mxu0 0.0
    %6640 = vmatprep.subr.mxu0 0.0
    %6641 = vmatpush1.msra.mxu0 0.0
    %6642 = vmatprep.subr.mxu0 0.0
    %6643 = vmatpush1.msra.mxu0 0.0
    %6644 = vmatprep.subr.mxu0 0.0
    %6645 = vmatpush1.msra.mxu0 0.0
    %6646 = vmatprep.subr.mxu0 0.0
    %6647 = vmatpush1.msra.mxu0 0.0
    %6648 = vmatprep.subr.mxu0 0.0
    %6649 = vmatpush1.msra.mxu0 0.0
    %6650 = vmatprep.subr.mxu0 0.0
    %6651 = vmatpush1.msra.mxu0 0.0
    %6652 = vmatprep.subr.mxu0 0.0
    %6653 = vmatpush1.msra.mxu0 0.0
    %6654 = vmatprep.subr.mxu0 0.0
    %6655 = vmatpush1.msra.mxu0 0.0
    %6656 = vmatprep.subr.mxu0 0.0
    %6657 = vmatpush1.msra.mxu0 0.0
    %6658 = vmatprep.mubr.f32.mxu0 0.0
    %6659 = vmatmul.mubr.f32.gmra.mrb[0].mxu0 %v6592
    %v6660 = vpop.f32.mrb[0].mxu0
    %v6661 = vadd.f32 %v6588, %v6660
    %v6662 = vpop.f32.mrb[0].mxu0
    %6663 = vdwg.mxu0
    %v6664 = vadd.f32 %v6661, %v3992
    %v6665 = vxor.u32 %v6664, 2147483648
    %v6666 = vmul.f32 %v6665, 1.442695
    %v6667 = vpow.pop %v6666
    %v6668 = vadd.f32 %v6667, 1.0
    %v6669 = vrcp.pop %v6668
    %v6670 = vmul.f32 1.0, %v6669
    %6671 = vmatprep.subr.mxu0 0.0
    %6672 = vmatpush1.msra.mxu0 %v171
    %6673 = vmatprep.subr.mxu0 0.0
    %6674 = vmatpush1.msra.mxu0 %v172
    %6675 = vmatprep.subr.mxu0 0.0
    %6676 = vmatpush1.msra.mxu0 %v173
    %6677 = vmatprep.subr.mxu0 0.0
    %6678 = vmatpush1.msra.mxu0 %v174
    %6679 = vmatprep.subr.mxu0 0.0
    %6680 = vmatpush1.msra.mxu0 %v175
    %6681 = vmatprep.subr.mxu0 0.0
    %6682 = vmatpush1.msra.mxu0 %v176
    %6683 = vmatprep.subr.mxu0 0.0
    %6684 = vmatpush1.msra.mxu0 %v177
    %6685 = vmatprep.subr.mxu0 0.0
    %6686 = vmatpush1.msra.mxu0 %v178
    %6687 = vmatprep.subr.mxu0 0.0
    %6688 = vmatpush1.msra.mxu0 0.0
    %6689 = vmatprep.subr.mxu0 0.0
    %6690 = vmatpush1.msra.mxu0 0.0
    %6691 = vmatprep.subr.mxu0 0.0
    %6692 = vmatpush1.msra.mxu0 0.0
    %6693 = vmatprep.subr.mxu0 0.0
    %6694 = vmatpush1.msra.mxu0 0.0
    %6695 = vmatprep.subr.mxu0 0.0
    %6696 = vmatpush1.msra.mxu0 0.0
    %6697 = vmatprep.subr.mxu0 0.0
    %6698 = vmatpush1.msra.mxu0 0.0
    %6699 = vmatprep.subr.mxu0 0.0
    %6700 = vmatpush1.msra.mxu0 0.0
    %6701 = vmatprep.subr.mxu0 0.0
    %6702 = vmatpush1.msra.mxu0 0.0
    %6703 = vmatprep.subr.mxu0 0.0
    %6704 = vmatpush1.msra.mxu0 0.0
    %6705 = vmatprep.subr.mxu0 0.0
    %6706 = vmatpush1.msra.mxu0 0.0
    %6707 = vmatprep.subr.mxu0 0.0
    %6708 = vmatpush1.msra.mxu0 0.0
    %6709 = vmatprep.subr.mxu0 0.0
    %6710 = vmatpush1.msra.mxu0 0.0
    %6711 = vmatprep.subr.mxu0 0.0
    %6712 = vmatpush1.msra.mxu0 0.0
    %6713 = vmatprep.subr.mxu0 0.0
    %6714 = vmatpush1.msra.mxu0 0.0
    %6715 = vmatprep.subr.mxu0 0.0
    %6716 = vmatpush1.msra.mxu0 0.0
    %6717 = vmatprep.subr.mxu0 0.0
    %6718 = vmatpush1.msra.mxu0 0.0
    %6719 = vmatprep.subr.mxu0 0.0
    %6720 = vmatpush1.msra.mxu0 0.0
    %6721 = vmatprep.subr.mxu0 0.0
    %6722 = vmatpush1.msra.mxu0 0.0
    %6723 = vmatprep.subr.mxu0 0.0
    %6724 = vmatpush1.msra.mxu0 0.0
    %6725 = vmatprep.subr.mxu0 0.0
    %6726 = vmatpush1.msra.mxu0 0.0
    %6727 = vmatprep.subr.mxu0 0.0
    %6728 = vmatpush1.msra.mxu0 0.0
    %6729 = vmatprep.subr.mxu0 0.0
    %6730 = vmatpush1.msra.mxu0 0.0
    %6731 = vmatprep.subr.mxu0 0.0
    %6732 = vmatpush1.msra.mxu0 0.0
    %6733 = vmatprep.subr.mxu0 0.0
    %6734 = vmatpush1.msra.mxu0 0.0
    %6735 = vmatprep.mubr.f32.mxu0 0.0
    %6736 = vmatmul.mubr.f32.gmra.mrb[0].mxu0 %v6438
    %v6737 = vpop.f32.mrb[0].mxu0
    %v6738 = vadd.f32 0.0, %v6737
    %v6739 = vpop.f32.mrb[0].mxu0
    %6740 = vdwg.mxu0
    %6741 = vmatprep.subr.mxu0 0.0
    %6742 = vmatpush1.msra.mxu0 %v4072
    %6743 = vmatprep.subr.mxu0 0.0
    %6744 = vmatpush1.msra.mxu0 0.0
    %6745 = vmatprep.subr.mxu0 0.0
    %6746 = vmatpush1.msra.mxu0 0.0
    %6747 = vmatprep.subr.mxu0 0.0
    %6748 = vmatpush1.msra.mxu0 0.0
    %6749 = vmatprep.subr.mxu0 0.0
    %6750 = vmatpush1.msra.mxu0 0.0
    %6751 = vmatprep.subr.mxu0 0.0
    %6752 = vmatpush1.msra.mxu0 0.0
    %6753 = vmatprep.subr.mxu0 0.0
    %6754 = vmatpush1.msra.mxu0 0.0
    %6755 = vmatprep.subr.mxu0 0.0
    %6756 = vmatpush1.msra.mxu0 0.0
    %6757 = vmatprep.subr.mxu0 0.0
    %6758 = vmatpush1.msra.mxu0 0.0
    %6759 = vmatprep.subr.mxu0 0.0
    %6760 = vmatpush1.msra.mxu0 0.0
    %6761 = vmatprep.subr.mxu0 0.0
    %6762 = vmatpush1.msra.mxu0 0.0
    %6763 = vmatprep.subr.mxu0 0.0
    %6764 = vmatpush1.msra.mxu0 0.0
    %6765 = vmatprep.subr.mxu0 0.0
    %6766 = vmatpush1.msra.mxu0 0.0
    %6767 = vmatprep.subr.mxu0 0.0
    %6768 = vmatpush1.msra.mxu0 0.0
    %6769 = vmatprep.subr.mxu0 0.0
    %6770 = vmatpush1.msra.mxu0 0.0
    %6771 = vmatprep.subr.mxu0 0.0
    %6772 = vmatpush1.msra.mxu0 0.0
    %6773 = vmatprep.subr.mxu0 0.0
    %6774 = vmatpush1.msra.mxu0 0.0
    %6775 = vmatprep.subr.mxu0 0.0
    %6776 = vmatpush1.msra.mxu0 0.0
    %6777 = vmatprep.subr.mxu0 0.0
    %6778 = vmatpush1.msra.mxu0 0.0
    %6779 = vmatprep.subr.mxu0 0.0
    %6780 = vmatpush1.msra.mxu0 0.0
    %6781 = vmatprep.subr.mxu0 0.0
    %6782 = vmatpush1.msra.mxu0 0.0
    %6783 = vmatprep.subr.mxu0 0.0
    %6784 = vmatpush1.msra.mxu0 0.0
    %6785 = vmatprep.subr.mxu0 0.0
    %6786 = vmatpush1.msra.mxu0 0.0
    %6787 = vmatprep.subr.mxu0 0.0
    %6788 = vmatpush1.msra.mxu0 0.0
    %6789 = vmatprep.subr.mxu0 0.0
    %6790 = vmatpush1.msra.mxu0 0.0
    %6791 = vmatprep.subr.mxu0 0.0
    %6792 = vmatpush1.msra.mxu0 0.0
    %6793 = vmatprep.subr.mxu0 0.0
    %6794 = vmatpush1.msra.mxu0 0.0
    %6795 = vmatprep.subr.mxu0 0.0
    %6796 = vmatpush1.msra.mxu0 0.0
    %6797 = vmatprep.subr.mxu0 0.0
    %6798 = vmatpush1.msra.mxu0 0.0
    %6799 = vmatprep.subr.mxu0 0.0
    %6800 = vmatpush1.msra.mxu0 0.0
    %6801 = vmatprep.subr.mxu0 0.0
    %6802 = vmatpush1.msra.mxu0 0.0
    %6803 = vmatprep.subr.mxu0 0.0
    %6804 = vmatpush1.msra.mxu0 0.0
    %6805 = vmatprep.mubr.f32.mxu0 0.0
    %6806 = vmatmul.mubr.f32.gmra.mrb[0].mxu0 %v6592
    %v6807 = vpop.f32.mrb[0].mxu0
    %v6808 = vadd.f32 %v6738, %v6807
    %v6809 = vpop.f32.mrb[0].mxu0
    %6810 = vdwg.mxu0
    %v6811 = vadd.f32 %v6808, %v4148
    %v6812 = vxor.u32 %v6811, 2147483648
    %v6813 = vmul.f32 %v6812, 1.442695
    %v6814 = vpow.pop %v6813
    %v6815 = vadd.f32 %v6814, 1.0
    %v6816 = vrcp.pop %v6815
    %v6817 = vmul.f32 1.0, %v6816
    %6818 = vmatprep.subr.mxu0 0.0
    %6819 = vmatpush1.msra.mxu0 %v4164
    %6820 = vmatprep.subr.mxu0 0.0
    %6821 = vmatpush1.msra.mxu0 0.0
    %6822 = vmatprep.subr.mxu0 0.0
    %6823 = vmatpush1.msra.mxu0 0.0
    %6824 = vmatprep.subr.mxu0 0.0
    %6825 = vmatpush1.msra.mxu0 0.0
    %6826 = vmatprep.subr.mxu0 0.0
    %6827 = vmatpush1.msra.mxu0 0.0
    %6828 = vmatprep.subr.mxu0 0.0
    %6829 = vmatpush1.msra.mxu0 0.0
    %6830 = vmatprep.subr.mxu0 0.0
    %6831 = vmatpush1.msra.mxu0 0.0
    %6832 = vmatprep.subr.mxu0 0.0
    %6833 = vmatpush1.msra.mxu0 0.0
    %6834 = vmatprep.subr.mxu0 0.0
    %6835 = vmatpush1.msra.mxu0 0.0
    %6836 = vmatprep.subr.mxu0 0.0
    %6837 = vmatpush1.msra.mxu0 0.0
    %6838 = vmatprep.subr.mxu0 0.0
    %6839 = vmatpush1.msra.mxu0 0.0
    %6840 = vmatprep.subr.mxu0 0.0
    %6841 = vmatpush1.msra.mxu0 0.0
    %6842 = vmatprep.subr.mxu0 0.0
    %6843 = vmatpush1.msra.mxu0 0.0
    %6844 = vmatprep.subr.mxu0 0.0
    %6845 = vmatpush1.msra.mxu0 0.0
    %6846 = vmatprep.subr.mxu0 0.0
    %6847 = vmatpush1.msra.mxu0 0.0
    %6848 = vmatprep.subr.mxu0 0.0
    %6849 = vmatpush1.msra.mxu0 0.0
    %6850 = vmatprep.subr.mxu0 0.0
    %6851 = vmatpush1.msra.mxu0 0.0
    %6852 = vmatprep.subr.mxu0 0.0
    %6853 = vmatpush1.msra.mxu0 0.0
    %6854 = vmatprep.subr.mxu0 0.0
    %6855 = vmatpush1.msra.mxu0 0.0
    %6856 = vmatprep.subr.mxu0 0.0
    %6857 = vmatpush1.msra.mxu0 0.0
    %6858 = vmatprep.subr.mxu0 0.0
    %6859 = vmatpush1.msra.mxu0 0.0
    %6860 = vmatprep.subr.mxu0 0.0
    %6861 = vmatpush1.msra.mxu0 0.0
    %6862 = vmatprep.subr.mxu0 0.0
    %6863 = vmatpush1.msra.mxu0 0.0
    %6864 = vmatprep.subr.mxu0 0.0
    %6865 = vmatpush1.msra.mxu0 0.0
    %6866 = vmatprep.subr.mxu0 0.0
    %6867 = vmatpush1.msra.mxu0 0.0
    %6868 = vmatprep.subr.mxu0 0.0
    %6869 = vmatpush1.msra.mxu0 0.0
    %6870 = vmatprep.subr.mxu0 0.0
    %6871 = vmatpush1.msra.mxu0 0.0
    %6872 = vmatprep.subr.mxu0 0.0
    %6873 = vmatpush1.msra.mxu0 0.0
    %6874 = vmatprep.subr.mxu0 0.0
    %6875 = vmatpush1.msra.mxu0 0.0
    %6876 = vmatprep.subr.mxu0 0.0
    %6877 = vmatpush1.msra.mxu0 0.0
    %6878 = vmatprep.subr.mxu0 0.0
    %6879 = vmatpush1.msra.mxu0 0.0
    %6880 = vmatprep.subr.mxu0 0.0
    %6881 = vmatpush1.msra.mxu0 0.0
    %6882 = vmatprep.mubr.f32.mxu0 0.0
    %6883 = vmatmul.mubr.f32.gmra.mrb[0].mxu0 %v6592
    %v6884 = vpop.f32.mrb[0].mxu0
    %v6885 = vadd.f32 %v4161, %v6884
    %v6886 = vpop.f32.mrb[0].mxu0
    %6887 = vdwg.mxu0
    %6888 = vmatprep.subr.mxu0 0.0
    %6889 = vmatpush1.msra.mxu0 %v180
    %6890 = vmatprep.subr.mxu0 0.0
    %6891 = vmatpush1.msra.mxu0 %v181
    %6892 = vmatprep.subr.mxu0 0.0
    %6893 = vmatpush1.msra.mxu0 %v182
    %6894 = vmatprep.subr.mxu0 0.0
    %6895 = vmatpush1.msra.mxu0 %v183
    %6896 = vmatprep.subr.mxu0 0.0
    %6897 = vmatpush1.msra.mxu0 %v184
    %6898 = vmatprep.subr.mxu0 0.0
    %6899 = vmatpush1.msra.mxu0 %v185
    %6900 = vmatprep.subr.mxu0 0.0
    %6901 = vmatpush1.msra.mxu0 %v186
    %6902 = vmatprep.subr.mxu0 0.0
    %6903 = vmatpush1.msra.mxu0 %v187
    %6904 = vmatprep.subr.mxu0 0.0
    %6905 = vmatpush1.msra.mxu0 0.0
    %6906 = vmatprep.subr.mxu0 0.0
    %6907 = vmatpush1.msra.mxu0 0.0
    %6908 = vmatprep.subr.mxu0 0.0
    %6909 = vmatpush1.msra.mxu0 0.0
    %6910 = vmatprep.subr.mxu0 0.0
    %6911 = vmatpush1.msra.mxu0 0.0
    %6912 = vmatprep.subr.mxu0 0.0
    %6913 = vmatpush1.msra.mxu0 0.0
    %6914 = vmatprep.subr.mxu0 0.0
    %6915 = vmatpush1.msra.mxu0 0.0
    %6916 = vmatprep.subr.mxu0 0.0
    %6917 = vmatpush1.msra.mxu0 0.0
    %6918 = vmatprep.subr.mxu0 0.0
    %6919 = vmatpush1.msra.mxu0 0.0
    %6920 = vmatprep.subr.mxu0 0.0
    %6921 = vmatpush1.msra.mxu0 0.0
    %6922 = vmatprep.subr.mxu0 0.0
    %6923 = vmatpush1.msra.mxu0 0.0
    %6924 = vmatprep.subr.mxu0 0.0
    %6925 = vmatpush1.msra.mxu0 0.0
    %6926 = vmatprep.subr.mxu0 0.0
    %6927 = vmatpush1.msra.mxu0 0.0
    %6928 = vmatprep.subr.mxu0 0.0
    %6929 = vmatpush1.msra.mxu0 0.0
    %6930 = vmatprep.subr.mxu0 0.0
    %6931 = vmatpush1.msra.mxu0 0.0
    %6932 = vmatprep.subr.mxu0 0.0
    %6933 = vmatpush1.msra.mxu0 0.0
    %6934 = vmatprep.subr.mxu0 0.0
    %6935 = vmatpush1.msra.mxu0 0.0
    %6936 = vmatprep.subr.mxu0 0.0
    %6937 = vmatpush1.msra.mxu0 0.0
    %6938 = vmatprep.subr.mxu0 0.0
    %6939 = vmatpush1.msra.mxu0 0.0
    %6940 = vmatprep.subr.mxu0 0.0
    %6941 = vmatpush1.msra.mxu0 0.0
    %6942 = vmatprep.subr.mxu0 0.0
    %6943 = vmatpush1.msra.mxu0 0.0
    %6944 = vmatprep.subr.mxu0 0.0
    %6945 = vmatpush1.msra.mxu0 0.0
    %6946 = vmatprep.subr.mxu0 0.0
    %6947 = vmatpush1.msra.mxu0 0.0
    %6948 = vmatprep.subr.mxu0 0.0
    %6949 = vmatpush1.msra.mxu0 0.0
    %6950 = vmatprep.subr.mxu0 0.0
    %6951 = vmatpush1.msra.mxu0 0.0
    %6952 = vmatprep.mubr.f32.mxu0 0.0
    %6953 = vmatmul.mubr.f32.gmra.mrb[0].mxu0 %v6438
    %v6954 = vpop.f32.mrb[0].mxu0
    %v6955 = vadd.f32 %v4240, %v6954
    %v6956 = vpop.f32.mrb[0].mxu0
    %6957 = vdwg.mxu0
    %v6958 = vmul.f32 %v6670, %v6955
    %v6959 = vadd.f32 %v6885, %v6958
    %v6960 = vtanh.pop %v6959
    %v6961 = vsub.f32 1.0, %v6817
    %v6962 = vmul.f32 %v6961, %v6960
    %v6963 = vmul.f32 %v6817, %v6436
    %v6964 = vadd.f32 %v6962, %v6963
    %v6966 = vsel %vm3838, %v6964, 0
    %6968 = vmatprep.subr.mxu0 0.0
    %6969 = vmatpush1.msra.mxu0 %v192
    %6970 = vmatprep.subr.mxu0 0.0
    %6971 = vmatpush1.msra.mxu0 %v193
    %6972 = vmatprep.subr.mxu0 0.0
    %6973 = vmatpush1.msra.mxu0 %v194
    %6974 = vmatprep.subr.mxu0 0.0
    %6975 = vmatpush1.msra.mxu0 %v195
    %6976 = vmatprep.subr.mxu0 0.0
    %6977 = vmatpush1.msra.mxu0 %v196
    %6978 = vmatprep.subr.mxu0 0.0
    %6979 = vmatpush1.msra.mxu0 %v197
    %6980 = vmatprep.subr.mxu0 0.0
    %6981 = vmatpush1.msra.mxu0 %v198
    %6982 = vmatprep.subr.mxu0 0.0
    %6983 = vmatpush1.msra.mxu0 %v199
    %6984 = vmatprep.subr.mxu0 0.0
    %6985 = vmatpush1.msra.mxu0 0.0
    %6986 = vmatprep.subr.mxu0 0.0
    %6987 = vmatpush1.msra.mxu0 0.0
    %6988 = vmatprep.subr.mxu0 0.0
    %6989 = vmatpush1.msra.mxu0 0.0
    %6990 = vmatprep.subr.mxu0 0.0
    %6991 = vmatpush1.msra.mxu0 0.0
    %6992 = vmatprep.subr.mxu0 0.0
    %6993 = vmatpush1.msra.mxu0 0.0
    %6994 = vmatprep.subr.mxu0 0.0
    %6995 = vmatpush1.msra.mxu0 0.0
    %6996 = vmatprep.subr.mxu0 0.0
    %6997 = vmatpush1.msra.mxu0 0.0
    %6998 = vmatprep.subr.mxu0 0.0
    %6999 = vmatpush1.msra.mxu0 0.0
    %7000 = vmatprep.subr.mxu0 0.0
    %7001 = vmatpush1.msra.mxu0 0.0
    %7002 = vmatprep.subr.mxu0 0.0
    %7003 = vmatpush1.msra.mxu0 0.0
    %7004 = vmatprep.subr.mxu0 0.0
    %7005 = vmatpush1.msra.mxu0 0.0
    %7006 = vmatprep.subr.mxu0 0.0
    %7007 = vmatpush1.msra.mxu0 0.0
    %7008 = vmatprep.subr.mxu0 0.0
    %7009 = vmatpush1.msra.mxu0 0.0
    %7010 = vmatprep.subr.mxu0 0.0
    %7011 = vmatpush1.msra.mxu0 0.0
    %7012 = vmatprep.subr.mxu0 0.0
    %7013 = vmatpush1.msra.mxu0 0.0
    %7014 = vmatprep.subr.mxu0 0.0
    %7015 = vmatpush1.msra.mxu0 0.0
    %7016 = vmatprep.subr.mxu0 0.0
    %7017 = vmatpush1.msra.mxu0 0.0
    %7018 = vmatprep.subr.mxu0 0.0
    %7019 = vmatpush1.msra.mxu0 0.0
    %7020 = vmatprep.subr.mxu0 0.0
    %7021 = vmatpush1.msra.mxu0 0.0
    %7022 = vmatprep.subr.mxu0 0.0
    %7023 = vmatpush1.msra.mxu0 0.0
    %7024 = vmatprep.subr.mxu0 0.0
    %7025 = vmatpush1.msra.mxu0 0.0
    %7026 = vmatprep.subr.mxu0 0.0
    %7027 = vmatpush1.msra.mxu0 0.0
    %7028 = vmatprep.subr.mxu0 0.0
    %7029 = vmatpush1.msra.mxu0 0.0
    %7030 = vmatprep.subr.mxu0 0.0
    %7031 = vmatpush1.msra.mxu0 0.0
    %7032 = vmatprep.mubr.f32.mxu0 0.0
    %7033 = vmatmul.mubr.f32.gmra.mrb[0].mxu0 %v6966
    %v7034 = vpop.f32.mrb[0].mxu0
    %v7035 = vadd.f32 %v4323, %v7034
    %v7036 = vpop.f32.mrb[0].mxu0
    %7037 = vdwg.mxu0
    %s7038 = scalar_lea.vmem %s25, 40
    %7039 = vst.msk [vmem:[%s7038] sm:$0xff] %vm4398, %v7035
    %7040 = vst.msk [vmem:[#allocation3] sm:$0xff] %vm4398, %v7035
    %s7041 = scalar_lea.vmem %s1, 40
    %v7042 = vld [vmem:[%s7041] sm:$0xff]
    %7044 = vrot.lane.b32.xlu0 %v7042, 1
    %v7045 = vpop.permute.xlu0 %7044
    %7047 = vst.msk [vmem:[#allocation3] sm:$0xff] %vm4406, %v7045
    %v7048 = vld [vmem:[#allocation3] sm:$0xff]
    %7049 = vmatprep.subr.mxu0 0.0
    %7050 = vmatpush1.msra.mxu0 %v162
    %7051 = vmatprep.subr.mxu0 0.0
    %7052 = vmatpush1.msra.mxu0 %v163
    %7053 = vmatprep.subr.mxu0 0.0
    %7054 = vmatpush1.msra.mxu0 %v164
    %7055 = vmatprep.subr.mxu0 0.0
    %7056 = vmatpush1.msra.mxu0 %v165
    %7057 = vmatprep.subr.mxu0 0.0
    %7058 = vmatpush1.msra.mxu0 %v166
    %7059 = vmatprep.subr.mxu0 0.0
    %7060 = vmatpush1.msra.mxu0 %v167
    %7061 = vmatprep.subr.mxu0 0.0
    %7062 = vmatpush1.msra.mxu0 %v168
    %7063 = vmatprep.subr.mxu0 0.0
    %7064 = vmatpush1.msra.mxu0 %v169
    %7065 = vmatprep.subr.mxu0 0.0
    %7066 = vmatpush1.msra.mxu0 0.0
    %7067 = vmatprep.subr.mxu0 0.0
    %7068 = vmatpush1.msra.mxu0 0.0
    %7069 = vmatprep.subr.mxu0 0.0
    %7070 = vmatpush1.msra.mxu0 0.0
    %7071 = vmatprep.subr.mxu0 0.0
    %7072 = vmatpush1.msra.mxu0 0.0
    %7073 = vmatprep.subr.mxu0 0.0
    %7074 = vmatpush1.msra.mxu0 0.0
    %7075 = vmatprep.subr.mxu0 0.0
    %7076 = vmatpush1.msra.mxu0 0.0
    %7077 = vmatprep.subr.mxu0 0.0
    %7078 = vmatpush1.msra.mxu0 0.0
    %7079 = vmatprep.subr.mxu0 0.0
    %7080 = vmatpush1.msra.mxu0 0.0
    %7081 = vmatprep.subr.mxu0 0.0
    %7082 = vmatpush1.msra.mxu0 0.0
    %7083 = vmatprep.subr.mxu0 0.0
    %7084 = vmatpush1.msra.mxu0 0.0
    %7085 = vmatprep.subr.mxu0 0.0
    %7086 = vmatpush1.msra.mxu0 0.0
    %7087 = vmatprep.subr.mxu0 0.0
    %7088 = vmatpush1.msra.mxu0 0.0
    %7089 = vmatprep.subr.mxu0 0.0
    %7090 = vmatpush1.msra.mxu0 0.0
    %7091 = vmatprep.subr.mxu0 0.0
    %7092 = vmatpush1.msra.mxu0 0.0
    %7093 = vmatprep.subr.mxu0 0.0
    %7094 = vmatpush1.msra.mxu0 0.0
    %7095 = vmatprep.subr.mxu0 0.0
    %7096 = vmatpush1.msra.mxu0 0.0
    %7097 = vmatprep.subr.mxu0 0.0
    %7098 = vmatpush1.msra.mxu0 0.0
    %7099 = vmatprep.subr.mxu0 0.0
    %7100 = vmatpush1.msra.mxu0 0.0
    %7101 = vmatprep.subr.mxu0 0.0
    %7102 = vmatpush1.msra.mxu0 0.0
    %7103 = vmatprep.subr.mxu0 0.0
    %7104 = vmatpush1.msra.mxu0 0.0
    %7105 = vmatprep.subr.mxu0 0.0
    %7106 = vmatpush1.msra.mxu0 0.0
    %7107 = vmatprep.subr.mxu0 0.0
    %7108 = vmatpush1.msra.mxu0 0.0
    %7109 = vmatprep.subr.mxu0 0.0
    %7110 = vmatpush1.msra.mxu0 0.0
    %7111 = vmatprep.subr.mxu0 0.0
    %7112 = vmatpush1.msra.mxu0 0.0
    %7113 = vmatprep.mubr.f32.mxu0 0.0
    %7114 = vmatmul.mubr.f32.gmra.mrb[0].mxu0 %v6966
    %v7115 = vpop.f32.mrb[0].mxu0
    %v7116 = vadd.f32 0.0, %v7115
    %v7117 = vpop.f32.mrb[0].mxu0
    %7118 = vdwg.mxu0
    %v7120 = vsel %vm276, %v7048, 0
    %7122 = vmatprep.subr.mxu0 0.0
    %7123 = vmatpush1.msra.mxu0 %v3916
    %7124 = vmatprep.subr.mxu0 0.0
    %7125 = vmatpush1.msra.mxu0 0.0
    %7126 = vmatprep.subr.mxu0 0.0
    %7127 = vmatpush1.msra.mxu0 0.0
    %7128 = vmatprep.subr.mxu0 0.0
    %7129 = vmatpush1.msra.mxu0 0.0
    %7130 = vmatprep.subr.mxu0 0.0
    %7131 = vmatpush1.msra.mxu0 0.0
    %7132 = vmatprep.subr.mxu0 0.0
    %7133 = vmatpush1.msra.mxu0 0.0
    %7134 = vmatprep.subr.mxu0 0.0
    %7135 = vmatpush1.msra.mxu0 0.0
    %7136 = vmatprep.subr.mxu0 0.0
    %7137 = vmatpush1.msra.mxu0 0.0
    %7138 = vmatprep.subr.mxu0 0.0
    %7139 = vmatpush1.msra.mxu0 0.0
    %7140 = vmatprep.subr.mxu0 0.0
    %7141 = vmatpush1.msra.mxu0 0.0
    %7142 = vmatprep.subr.mxu0 0.0
    %7143 = vmatpush1.msra.mxu0 0.0
    %7144 = vmatprep.subr.mxu0 0.0
    %7145 = vmatpush1.msra.mxu0 0.0
    %7146 = vmatprep.subr.mxu0 0.0
    %7147 = vmatpush1.msra.mxu0 0.0
    %7148 = vmatprep.subr.mxu0 0.0
    %7149 = vmatpush1.msra.mxu0 0.0
    %7150 = vmatprep.subr.mxu0 0.0
    %7151 = vmatpush1.msra.mxu0 0.0
    %7152 = vmatprep.subr.mxu0 0.0
    %7153 = vmatpush1.msra.mxu0 0.0
    %7154 = vmatprep.subr.mxu0 0.0
    %7155 = vmatpush1.msra.mxu0 0.0
    %7156 = vmatprep.subr.mxu0 0.0
    %7157 = vmatpush1.msra.mxu0 0.0
    %7158 = vmatprep.subr.mxu0 0.0
    %7159 = vmatpush1.msra.mxu0 0.0
    %7160 = vmatprep.subr.mxu0 0.0
    %7161 = vmatpush1.msra.mxu0 0.0
    %7162 = vmatprep.subr.mxu0 0.0
    %7163 = vmatpush1.msra.mxu0 0.0
    %7164 = vmatprep.subr.mxu0 0.0
    %7165 = vmatpush1.msra.mxu0 0.0
    %7166 = vmatprep.subr.mxu0 0.0
    %7167 = vmatpush1.msra.mxu0 0.0
    %7168 = vmatprep.subr.mxu0 0.0
    %7169 = vmatpush1.msra.mxu0 0.0
    %7170 = vmatprep.subr.mxu0 0.0
    %7171 = vmatpush1.msra.mxu0 0.0
    %7172 = vmatprep.subr.mxu0 0.0
    %7173 = vmatpush1.msra.mxu0 0.0
    %7174 = vmatprep.subr.mxu0 0.0
    %7175 = vmatpush1.msra.mxu0 0.0
    %7176 = vmatprep.subr.mxu0 0.0
    %7177 = vmatpush1.msra.mxu0 0.0
    %7178 = vmatprep.subr.mxu0 0.0
    %7179 = vmatpush1.msra.mxu0 0.0
    %7180 = vmatprep.subr.mxu0 0.0
    %7181 = vmatpush1.msra.mxu0 0.0
    %7182 = vmatprep.subr.mxu0 0.0
    %7183 = vmatpush1.msra.mxu0 0.0
    %7184 = vmatprep.subr.mxu0 0.0
    %7185 = vmatpush1.msra.mxu0 0.0
    %7186 = vmatprep.mubr.f32.mxu0 0.0
    %7187 = vmatmul.mubr.f32.gmra.mrb[0].mxu0 %v7120
    %v7188 = vpop.f32.mrb[0].mxu0
    %v7189 = vadd.f32 %v7116, %v7188
    %v7190 = vpop.f32.mrb[0].mxu0
    %7191 = vdwg.mxu0
    %v7192 = vadd.f32 %v7189, %v3992
    %v7193 = vxor.u32 %v7192, 2147483648
    %v7194 = vmul.f32 %v7193, 1.442695
    %v7195 = vpow.pop %v7194
    %v7196 = vadd.f32 %v7195, 1.0
    %v7197 = vrcp.pop %v7196
    %v7198 = vmul.f32 1.0, %v7197
    %7199 = vmatprep.subr.mxu0 0.0
    %7200 = vmatpush1.msra.mxu0 %v171
    %7201 = vmatprep.subr.mxu0 0.0
    %7202 = vmatpush1.msra.mxu0 %v172
    %7203 = vmatprep.subr.mxu0 0.0
    %7204 = vmatpush1.msra.mxu0 %v173
    %7205 = vmatprep.subr.mxu0 0.0
    %7206 = vmatpush1.msra.mxu0 %v174
    %7207 = vmatprep.subr.mxu0 0.0
    %7208 = vmatpush1.msra.mxu0 %v175
    %7209 = vmatprep.subr.mxu0 0.0
    %7210 = vmatpush1.msra.mxu0 %v176
    %7211 = vmatprep.subr.mxu0 0.0
    %7212 = vmatpush1.msra.mxu0 %v177
    %7213 = vmatprep.subr.mxu0 0.0
    %7214 = vmatpush1.msra.mxu0 %v178
    %7215 = vmatprep.subr.mxu0 0.0
    %7216 = vmatpush1.msra.mxu0 0.0
    %7217 = vmatprep.subr.mxu0 0.0
    %7218 = vmatpush1.msra.mxu0 0.0
    %7219 = vmatprep.subr.mxu0 0.0
    %7220 = vmatpush1.msra.mxu0 0.0
    %7221 = vmatprep.subr.mxu0 0.0
    %7222 = vmatpush1.msra.mxu0 0.0
    %7223 = vmatprep.subr.mxu0 0.0
    %7224 = vmatpush1.msra.mxu0 0.0
    %7225 = vmatprep.subr.mxu0 0.0
    %7226 = vmatpush1.msra.mxu0 0.0
    %7227 = vmatprep.subr.mxu0 0.0
    %7228 = vmatpush1.msra.mxu0 0.0
    %7229 = vmatprep.subr.mxu0 0.0
    %7230 = vmatpush1.msra.mxu0 0.0
    %7231 = vmatprep.subr.mxu0 0.0
    %7232 = vmatpush1.msra.mxu0 0.0
    %7233 = vmatprep.subr.mxu0 0.0
    %7234 = vmatpush1.msra.mxu0 0.0
    %7235 = vmatprep.subr.mxu0 0.0
    %7236 = vmatpush1.msra.mxu0 0.0
    %7237 = vmatprep.subr.mxu0 0.0
    %7238 = vmatpush1.msra.mxu0 0.0
    %7239 = vmatprep.subr.mxu0 0.0
    %7240 = vmatpush1.msra.mxu0 0.0
    %7241 = vmatprep.subr.mxu0 0.0
    %7242 = vmatpush1.msra.mxu0 0.0
    %7243 = vmatprep.subr.mxu0 0.0
    %7244 = vmatpush1.msra.mxu0 0.0
    %7245 = vmatprep.subr.mxu0 0.0
    %7246 = vmatpush1.msra.mxu0 0.0
    %7247 = vmatprep.subr.mxu0 0.0
    %7248 = vmatpush1.msra.mxu0 0.0
    %7249 = vmatprep.subr.mxu0 0.0
    %7250 = vmatpush1.msra.mxu0 0.0
    %7251 = vmatprep.subr.mxu0 0.0
    %7252 = vmatpush1.msra.mxu0 0.0
    %7253 = vmatprep.subr.mxu0 0.0
    %7254 = vmatpush1.msra.mxu0 0.0
    %7255 = vmatprep.subr.mxu0 0.0
    %7256 = vmatpush1.msra.mxu0 0.0
    %7257 = vmatprep.subr.mxu0 0.0
    %7258 = vmatpush1.msra.mxu0 0.0
    %7259 = vmatprep.subr.mxu0 0.0
    %7260 = vmatpush1.msra.mxu0 0.0
    %7261 = vmatprep.subr.mxu0 0.0
    %7262 = vmatpush1.msra.mxu0 0.0
    %7263 = vmatprep.mubr.f32.mxu0 0.0
    %7264 = vmatmul.mubr.f32.gmra.mrb[0].mxu0 %v6966
    %v7265 = vpop.f32.mrb[0].mxu0
    %v7266 = vadd.f32 0.0, %v7265
    %v7267 = vpop.f32.mrb[0].mxu0
    %7268 = vdwg.mxu0
    %7269 = vmatprep.subr.mxu0 0.0
    %7270 = vmatpush1.msra.mxu0 %v4072
    %7271 = vmatprep.subr.mxu0 0.0
    %7272 = vmatpush1.msra.mxu0 0.0
    %7273 = vmatprep.subr.mxu0 0.0
    %7274 = vmatpush1.msra.mxu0 0.0
    %7275 = vmatprep.subr.mxu0 0.0
    %7276 = vmatpush1.msra.mxu0 0.0
    %7277 = vmatprep.subr.mxu0 0.0
    %7278 = vmatpush1.msra.mxu0 0.0
    %7279 = vmatprep.subr.mxu0 0.0
    %7280 = vmatpush1.msra.mxu0 0.0
    %7281 = vmatprep.subr.mxu0 0.0
    %7282 = vmatpush1.msra.mxu0 0.0
    %7283 = vmatprep.subr.mxu0 0.0
    %7284 = vmatpush1.msra.mxu0 0.0
    %7285 = vmatprep.subr.mxu0 0.0
    %7286 = vmatpush1.msra.mxu0 0.0
    %7287 = vmatprep.subr.mxu0 0.0
    %7288 = vmatpush1.msra.mxu0 0.0
    %7289 = vmatprep.subr.mxu0 0.0
    %7290 = vmatpush1.msra.mxu0 0.0
    %7291 = vmatprep.subr.mxu0 0.0
    %7292 = vmatpush1.msra.mxu0 0.0
    %7293 = vmatprep.subr.mxu0 0.0
    %7294 = vmatpush1.msra.mxu0 0.0
    %7295 = vmatprep.subr.mxu0 0.0
    %7296 = vmatpush1.msra.mxu0 0.0
    %7297 = vmatprep.subr.mxu0 0.0
    %7298 = vmatpush1.msra.mxu0 0.0
    %7299 = vmatprep.subr.mxu0 0.0
    %7300 = vmatpush1.msra.mxu0 0.0
    %7301 = vmatprep.subr.mxu0 0.0
    %7302 = vmatpush1.msra.mxu0 0.0
    %7303 = vmatprep.subr.mxu0 0.0
    %7304 = vmatpush1.msra.mxu0 0.0
    %7305 = vmatprep.subr.mxu0 0.0
    %7306 = vmatpush1.msra.mxu0 0.0
    %7307 = vmatprep.subr.mxu0 0.0
    %7308 = vmatpush1.msra.mxu0 0.0
    %7309 = vmatprep.subr.mxu0 0.0
    %7310 = vmatpush1.msra.mxu0 0.0
    %7311 = vmatprep.subr.mxu0 0.0
    %7312 = vmatpush1.msra.mxu0 0.0
    %7313 = vmatprep.subr.mxu0 0.0
    %7314 = vmatpush1.msra.mxu0 0.0
    %7315 = vmatprep.subr.mxu0 0.0
    %7316 = vmatpush1.msra.mxu0 0.0
    %7317 = vmatprep.subr.mxu0 0.0
    %7318 = vmatpush1.msra.mxu0 0.0
    %7319 = vmatprep.subr.mxu0 0.0
    %7320 = vmatpush1.msra.mxu0 0.0
    %7321 = vmatprep.subr.mxu0 0.0
    %7322 = vmatpush1.msra.mxu0 0.0
    %7323 = vmatprep.subr.mxu0 0.0
    %7324 = vmatpush1.msra.mxu0 0.0
    %7325 = vmatprep.subr.mxu0 0.0
    %7326 = vmatpush1.msra.mxu0 0.0
    %7327 = vmatprep.subr.mxu0 0.0
    %7328 = vmatpush1.msra.mxu0 0.0
    %7329 = vmatprep.subr.mxu0 0.0
    %7330 = vmatpush1.msra.mxu0 0.0
    %7331 = vmatprep.subr.mxu0 0.0
    %7332 = vmatpush1.msra.mxu0 0.0
    %7333 = vmatprep.mubr.f32.mxu0 0.0
    %7334 = vmatmul.mubr.f32.gmra.mrb[0].mxu0 %v7120
    %v7335 = vpop.f32.mrb[0].mxu0
    %v7336 = vadd.f32 %v7266, %v7335
    %v7337 = vpop.f32.mrb[0].mxu0
    %7338 = vdwg.mxu0
    %v7339 = vadd.f32 %v7336, %v4148
    %v7340 = vxor.u32 %v7339, 2147483648
    %v7341 = vmul.f32 %v7340, 1.442695
    %v7342 = vpow.pop %v7341
    %v7343 = vadd.f32 %v7342, 1.0
    %v7344 = vrcp.pop %v7343
    %v7345 = vmul.f32 1.0, %v7344
    %7346 = vmatprep.subr.mxu0 0.0
    %7347 = vmatpush1.msra.mxu0 %v4164
    %7348 = vmatprep.subr.mxu0 0.0
    %7349 = vmatpush1.msra.mxu0 0.0
    %7350 = vmatprep.subr.mxu0 0.0
    %7351 = vmatpush1.msra.mxu0 0.0
    %7352 = vmatprep.subr.mxu0 0.0
    %7353 = vmatpush1.msra.mxu0 0.0
    %7354 = vmatprep.subr.mxu0 0.0
    %7355 = vmatpush1.msra.mxu0 0.0
    %7356 = vmatprep.subr.mxu0 0.0
    %7357 = vmatpush1.msra.mxu0 0.0
    %7358 = vmatprep.subr.mxu0 0.0
    %7359 = vmatpush1.msra.mxu0 0.0
    %7360 = vmatprep.subr.mxu0 0.0
    %7361 = vmatpush1.msra.mxu0 0.0
    %7362 = vmatprep.subr.mxu0 0.0
    %7363 = vmatpush1.msra.mxu0 0.0
    %7364 = vmatprep.subr.mxu0 0.0
    %7365 = vmatpush1.msra.mxu0 0.0
    %7366 = vmatprep.subr.mxu0 0.0
    %7367 = vmatpush1.msra.mxu0 0.0
    %7368 = vmatprep.subr.mxu0 0.0
    %7369 = vmatpush1.msra.mxu0 0.0
    %7370 = vmatprep.subr.mxu0 0.0
    %7371 = vmatpush1.msra.mxu0 0.0
    %7372 = vmatprep.subr.mxu0 0.0
    %7373 = vmatpush1.msra.mxu0 0.0
    %7374 = vmatprep.subr.mxu0 0.0
    %7375 = vmatpush1.msra.mxu0 0.0
    %7376 = vmatprep.subr.mxu0 0.0
    %7377 = vmatpush1.msra.mxu0 0.0
    %7378 = vmatprep.subr.mxu0 0.0
    %7379 = vmatpush1.msra.mxu0 0.0
    %7380 = vmatprep.subr.mxu0 0.0
    %7381 = vmatpush1.msra.mxu0 0.0
    %7382 = vmatprep.subr.mxu0 0.0
    %7383 = vmatpush1.msra.mxu0 0.0
    %7384 = vmatprep.subr.mxu0 0.0
    %7385 = vmatpush1.msra.mxu0 0.0
    %7386 = vmatprep.subr.mxu0 0.0
    %7387 = vmatpush1.msra.mxu0 0.0
    %7388 = vmatprep.subr.mxu0 0.0
    %7389 = vmatpush1.msra.mxu0 0.0
    %7390 = vmatprep.subr.mxu0 0.0
    %7391 = vmatpush1.msra.mxu0 0.0
    %7392 = vmatprep.subr.mxu0 0.0
    %7393 = vmatpush1.msra.mxu0 0.0
    %7394 = vmatprep.subr.mxu0 0.0
    %7395 = vmatpush1.msra.mxu0 0.0
    %7396 = vmatprep.subr.mxu0 0.0
    %7397 = vmatpush1.msra.mxu0 0.0
    %7398 = vmatprep.subr.mxu0 0.0
    %7399 = vmatpush1.msra.mxu0 0.0
    %7400 = vmatprep.subr.mxu0 0.0
    %7401 = vmatpush1.msra.mxu0 0.0
    %7402 = vmatprep.subr.mxu0 0.0
    %7403 = vmatpush1.msra.mxu0 0.0
    %7404 = vmatprep.subr.mxu0 0.0
    %7405 = vmatpush1.msra.mxu0 0.0
    %7406 = vmatprep.subr.mxu0 0.0
    %7407 = vmatpush1.msra.mxu0 0.0
    %7408 = vmatprep.subr.mxu0 0.0
    %7409 = vmatpush1.msra.mxu0 0.0
    %7410 = vmatprep.mubr.f32.mxu0 0.0
    %7411 = vmatmul.mubr.f32.gmra.mrb[0].mxu0 %v7120
    %v7412 = vpop.f32.mrb[0].mxu0
    %v7413 = vadd.f32 %v4161, %v7412
    %v7414 = vpop.f32.mrb[0].mxu0
    %7415 = vdwg.mxu0
    %7416 = vmatprep.subr.mxu0 0.0
    %7417 = vmatpush1.msra.mxu0 %v180
    %7418 = vmatprep.subr.mxu0 0.0
    %7419 = vmatpush1.msra.mxu0 %v181
    %7420 = vmatprep.subr.mxu0 0.0
    %7421 = vmatpush1.msra.mxu0 %v182
    %7422 = vmatprep.subr.mxu0 0.0
    %7423 = vmatpush1.msra.mxu0 %v183
    %7424 = vmatprep.subr.mxu0 0.0
    %7425 = vmatpush1.msra.mxu0 %v184
    %7426 = vmatprep.subr.mxu0 0.0
    %7427 = vmatpush1.msra.mxu0 %v185
    %7428 = vmatprep.subr.mxu0 0.0
    %7429 = vmatpush1.msra.mxu0 %v186
    %7430 = vmatprep.subr.mxu0 0.0
    %7431 = vmatpush1.msra.mxu0 %v187
    %7432 = vmatprep.subr.mxu0 0.0
    %7433 = vmatpush1.msra.mxu0 0.0
    %7434 = vmatprep.subr.mxu0 0.0
    %7435 = vmatpush1.msra.mxu0 0.0
    %7436 = vmatprep.subr.mxu0 0.0
    %7437 = vmatpush1.msra.mxu0 0.0
    %7438 = vmatprep.subr.mxu0 0.0
    %7439 = vmatpush1.msra.mxu0 0.0
    %7440 = vmatprep.subr.mxu0 0.0
    %7441 = vmatpush1.msra.mxu0 0.0
    %7442 = vmatprep.subr.mxu0 0.0
    %7443 = vmatpush1.msra.mxu0 0.0
    %7444 = vmatprep.subr.mxu0 0.0
    %7445 = vmatpush1.msra.mxu0 0.0
    %7446 = vmatprep.subr.mxu0 0.0
    %7447 = vmatpush1.msra.mxu0 0.0
    %7448 = vmatprep.subr.mxu0 0.0
    %7449 = vmatpush1.msra.mxu0 0.0
    %7450 = vmatprep.subr.mxu0 0.0
    %7451 = vmatpush1.msra.mxu0 0.0
    %7452 = vmatprep.subr.mxu0 0.0
    %7453 = vmatpush1.msra.mxu0 0.0
    %7454 = vmatprep.subr.mxu0 0.0
    %7455 = vmatpush1.msra.mxu0 0.0
    %7456 = vmatprep.subr.mxu0 0.0
    %7457 = vmatpush1.msra.mxu0 0.0
    %7458 = vmatprep.subr.mxu0 0.0
    %7459 = vmatpush1.msra.mxu0 0.0
    %7460 = vmatprep.subr.mxu0 0.0
    %7461 = vmatpush1.msra.mxu0 0.0
    %7462 = vmatprep.subr.mxu0 0.0
    %7463 = vmatpush1.msra.mxu0 0.0
    %7464 = vmatprep.subr.mxu0 0.0
    %7465 = vmatpush1.msra.mxu0 0.0
    %7466 = vmatprep.subr.mxu0 0.0
    %7467 = vmatpush1.msra.mxu0 0.0
    %7468 = vmatprep.subr.mxu0 0.0
    %7469 = vmatpush1.msra.mxu0 0.0
    %7470 = vmatprep.subr.mxu0 0.0
    %7471 = vmatpush1.msra.mxu0 0.0
    %7472 = vmatprep.subr.mxu0 0.0
    %7473 = vmatpush1.msra.mxu0 0.0
    %7474 = vmatprep.subr.mxu0 0.0
    %7475 = vmatpush1.msra.mxu0 0.0
    %7476 = vmatprep.subr.mxu0 0.0
    %7477 = vmatpush1.msra.mxu0 0.0
    %7478 = vmatprep.subr.mxu0 0.0
    %7479 = vmatpush1.msra.mxu0 0.0
    %7480 = vmatprep.mubr.f32.mxu0 0.0
    %7481 = vmatmul.mubr.f32.gmra.mrb[0].mxu0 %v6966
    %v7482 = vpop.f32.mrb[0].mxu0
    %v7483 = vadd.f32 %v4240, %v7482
    %v7484 = vpop.f32.mrb[0].mxu0
    %7485 = vdwg.mxu0
    %v7486 = vmul.f32 %v7198, %v7483
    %v7487 = vadd.f32 %v7413, %v7486
    %v7488 = vtanh.pop %v7487
    %v7489 = vsub.f32 1.0, %v7345
    %v7490 = vmul.f32 %v7489, %v7488
    %v7491 = vmul.f32 %v7345, %v6964
    %v7492 = vadd.f32 %v7490, %v7491
    %v7494 = vsel %vm3838, %v7492, 0
    %7496 = vmatprep.subr.mxu0 0.0
    %7497 = vmatpush1.msra.mxu0 %v192
    %7498 = vmatprep.subr.mxu0 0.0
    %7499 = vmatpush1.msra.mxu0 %v193
    %7500 = vmatprep.subr.mxu0 0.0
    %7501 = vmatpush1.msra.mxu0 %v194
    %7502 = vmatprep.subr.mxu0 0.0
    %7503 = vmatpush1.msra.mxu0 %v195
    %7504 = vmatprep.subr.mxu0 0.0
    %7505 = vmatpush1.msra.mxu0 %v196
    %7506 = vmatprep.subr.mxu0 0.0
    %7507 = vmatpush1.msra.mxu0 %v197
    %7508 = vmatprep.subr.mxu0 0.0
    %7509 = vmatpush1.msra.mxu0 %v198
    %7510 = vmatprep.subr.mxu0 0.0
    %7511 = vmatpush1.msra.mxu0 %v199
    %7512 = vmatprep.subr.mxu0 0.0
    %7513 = vmatpush1.msra.mxu0 0.0
    %7514 = vmatprep.subr.mxu0 0.0
    %7515 = vmatpush1.msra.mxu0 0.0
    %7516 = vmatprep.subr.mxu0 0.0
    %7517 = vmatpush1.msra.mxu0 0.0
    %7518 = vmatprep.subr.mxu0 0.0
    %7519 = vmatpush1.msra.mxu0 0.0
    %7520 = vmatprep.subr.mxu0 0.0
    %7521 = vmatpush1.msra.mxu0 0.0
    %7522 = vmatprep.subr.mxu0 0.0
    %7523 = vmatpush1.msra.mxu0 0.0
    %7524 = vmatprep.subr.mxu0 0.0
    %7525 = vmatpush1.msra.mxu0 0.0
    %7526 = vmatprep.subr.mxu0 0.0
    %7527 = vmatpush1.msra.mxu0 0.0
    %7528 = vmatprep.subr.mxu0 0.0
    %7529 = vmatpush1.msra.mxu0 0.0
    %7530 = vmatprep.subr.mxu0 0.0
    %7531 = vmatpush1.msra.mxu0 0.0
    %7532 = vmatprep.subr.mxu0 0.0
    %7533 = vmatpush1.msra.mxu0 0.0
    %7534 = vmatprep.subr.mxu0 0.0
    %7535 = vmatpush1.msra.mxu0 0.0
    %7536 = vmatprep.subr.mxu0 0.0
    %7537 = vmatpush1.msra.mxu0 0.0
    %7538 = vmatprep.subr.mxu0 0.0
    %7539 = vmatpush1.msra.mxu0 0.0
    %7540 = vmatprep.subr.mxu0 0.0
    %7541 = vmatpush1.msra.mxu0 0.0
    %7542 = vmatprep.subr.mxu0 0.0
    %7543 = vmatpush1.msra.mxu0 0.0
    %7544 = vmatprep.subr.mxu0 0.0
    %7545 = vmatpush1.msra.mxu0 0.0
    %7546 = vmatprep.subr.mxu0 0.0
    %7547 = vmatpush1.msra.mxu0 0.0
    %7548 = vmatprep.subr.mxu0 0.0
    %7549 = vmatpush1.msra.mxu0 0.0
    %7550 = vmatprep.subr.mxu0 0.0
    %7551 = vmatpush1.msra.mxu0 0.0
    %7552 = vmatprep.subr.mxu0 0.0
    %7553 = vmatpush1.msra.mxu0 0.0
    %7554 = vmatprep.subr.mxu0 0.0
    %7555 = vmatpush1.msra.mxu0 0.0
    %7556 = vmatprep.subr.mxu0 0.0
    %7557 = vmatpush1.msra.mxu0 0.0
    %7558 = vmatprep.subr.mxu0 0.0
    %7559 = vmatpush1.msra.mxu0 0.0
    %7560 = vmatprep.mubr.f32.mxu0 0.0
    %7561 = vmatmul.mubr.f32.gmra.mrb[0].mxu0 %v7494
    %v7562 = vpop.f32.mrb[0].mxu0
    %v7563 = vadd.f32 %v4323, %v7562
    %v7564 = vpop.f32.mrb[0].mxu0
    %7565 = vdwg.mxu0
    %s7566 = scalar_lea.vmem %s25, 48
    %7567 = vst.msk [vmem:[%s7566] sm:$0xff] %vm4398, %v7563
    %7568 = vst.msk [vmem:[#allocation3] sm:$0xff] %vm4398, %v7563
    %s7569 = scalar_lea.vmem %s1, 48
    %v7570 = vld [vmem:[%s7569] sm:$0xff]
    %7572 = vrot.lane.b32.xlu0 %v7570, 1
    %v7573 = vpop.permute.xlu0 %7572
    %7575 = vst.msk [vmem:[#allocation3] sm:$0xff] %vm4406, %v7573
    %v7576 = vld [vmem:[#allocation3] sm:$0xff]
    %7577 = vmatprep.subr.mxu0 0.0
    %7578 = vmatpush1.msra.mxu0 %v162
    %7579 = vmatprep.subr.mxu0 0.0
    %7580 = vmatpush1.msra.mxu0 %v163
    %7581 = vmatprep.subr.mxu0 0.0
    %7582 = vmatpush1.msra.mxu0 %v164
    %7583 = vmatprep.subr.mxu0 0.0
    %7584 = vmatpush1.msra.mxu0 %v165
    %7585 = vmatprep.subr.mxu0 0.0
    %7586 = vmatpush1.msra.mxu0 %v166
    %7587 = vmatprep.subr.mxu0 0.0
    %7588 = vmatpush1.msra.mxu0 %v167
    %7589 = vmatprep.subr.mxu0 0.0
    %7590 = vmatpush1.msra.mxu0 %v168
    %7591 = vmatprep.subr.mxu0 0.0
    %7592 = vmatpush1.msra.mxu0 %v169
    %7593 = vmatprep.subr.mxu0 0.0
    %7594 = vmatpush1.msra.mxu0 0.0
    %7595 = vmatprep.subr.mxu0 0.0
    %7596 = vmatpush1.msra.mxu0 0.0
    %7597 = vmatprep.subr.mxu0 0.0
    %7598 = vmatpush1.msra.mxu0 0.0
    %7599 = vmatprep.subr.mxu0 0.0
    %7600 = vmatpush1.msra.mxu0 0.0
    %7601 = vmatprep.subr.mxu0 0.0
    %7602 = vmatpush1.msra.mxu0 0.0
    %7603 = vmatprep.subr.mxu0 0.0
    %7604 = vmatpush1.msra.mxu0 0.0
    %7605 = vmatprep.subr.mxu0 0.0
    %7606 = vmatpush1.msra.mxu0 0.0
    %7607 = vmatprep.subr.mxu0 0.0
    %7608 = vmatpush1.msra.mxu0 0.0
    %7609 = vmatprep.subr.mxu0 0.0
    %7610 = vmatpush1.msra.mxu0 0.0
    %7611 = vmatprep.subr.mxu0 0.0
    %7612 = vmatpush1.msra.mxu0 0.0
    %7613 = vmatprep.subr.mxu0 0.0
    %7614 = vmatpush1.msra.mxu0 0.0
    %7615 = vmatprep.subr.mxu0 0.0
    %7616 = vmatpush1.msra.mxu0 0.0
    %7617 = vmatprep.subr.mxu0 0.0
    %7618 = vmatpush1.msra.mxu0 0.0
    %7619 = vmatprep.subr.mxu0 0.0
    %7620 = vmatpush1.msra.mxu0 0.0
    %7621 = vmatprep.subr.mxu0 0.0
    %7622 = vmatpush1.msra.mxu0 0.0
    %7623 = vmatprep.subr.mxu0 0.0
    %7624 = vmatpush1.msra.mxu0 0.0
    %7625 = vmatprep.subr.mxu0 0.0
    %7626 = vmatpush1.msra.mxu0 0.0
    %7627 = vmatprep.subr.mxu0 0.0
    %7628 = vmatpush1.msra.mxu0 0.0
    %7629 = vmatprep.subr.mxu0 0.0
    %7630 = vmatpush1.msra.mxu0 0.0
    %7631 = vmatprep.subr.mxu0 0.0
    %7632 = vmatpush1.msra.mxu0 0.0
    %7633 = vmatprep.subr.mxu0 0.0
    %7634 = vmatpush1.msra.mxu0 0.0
    %7635 = vmatprep.subr.mxu0 0.0
    %7636 = vmatpush1.msra.mxu0 0.0
    %7637 = vmatprep.subr.mxu0 0.0
    %7638 = vmatpush1.msra.mxu0 0.0
    %7639 = vmatprep.subr.mxu0 0.0
    %7640 = vmatpush1.msra.mxu0 0.0
    %7641 = vmatprep.mubr.f32.mxu0 0.0
    %7642 = vmatmul.mubr.f32.gmra.mrb[0].mxu0 %v7494
    %v7643 = vpop.f32.mrb[0].mxu0
    %v7644 = vadd.f32 0.0, %v7643
    %v7645 = vpop.f32.mrb[0].mxu0
    %7646 = vdwg.mxu0
    %v7648 = vsel %vm276, %v7576, 0
    %7650 = vmatprep.subr.mxu0 0.0
    %7651 = vmatpush1.msra.mxu0 %v3916
    %7652 = vmatprep.subr.mxu0 0.0
    %7653 = vmatpush1.msra.mxu0 0.0
    %7654 = vmatprep.subr.mxu0 0.0
    %7655 = vmatpush1.msra.mxu0 0.0
    %7656 = vmatprep.subr.mxu0 0.0
    %7657 = vmatpush1.msra.mxu0 0.0
    %7658 = vmatprep.subr.mxu0 0.0
    %7659 = vmatpush1.msra.mxu0 0.0
    %7660 = vmatprep.subr.mxu0 0.0
    %7661 = vmatpush1.msra.mxu0 0.0
    %7662 = vmatprep.subr.mxu0 0.0
    %7663 = vmatpush1.msra.mxu0 0.0
    %7664 = vmatprep.subr.mxu0 0.0
    %7665 = vmatpush1.msra.mxu0 0.0
    %7666 = vmatprep.subr.mxu0 0.0
    %7667 = vmatpush1.msra.mxu0 0.0
    %7668 = vmatprep.subr.mxu0 0.0
    %7669 = vmatpush1.msra.mxu0 0.0
    %7670 = vmatprep.subr.mxu0 0.0
    %7671 = vmatpush1.msra.mxu0 0.0
    %7672 = vmatprep.subr.mxu0 0.0
    %7673 = vmatpush1.msra.mxu0 0.0
    %7674 = vmatprep.subr.mxu0 0.0
    %7675 = vmatpush1.msra.mxu0 0.0
    %7676 = vmatprep.subr.mxu0 0.0
    %7677 = vmatpush1.msra.mxu0 0.0
    %7678 = vmatprep.subr.mxu0 0.0
    %7679 = vmatpush1.msra.mxu0 0.0
    %7680 = vmatprep.subr.mxu0 0.0
    %7681 = vmatpush1.msra.mxu0 0.0
    %7682 = vmatprep.subr.mxu0 0.0
    %7683 = vmatpush1.msra.mxu0 0.0
    %7684 = vmatprep.subr.mxu0 0.0
    %7685 = vmatpush1.msra.mxu0 0.0
    %7686 = vmatprep.subr.mxu0 0.0
    %7687 = vmatpush1.msra.mxu0 0.0
    %7688 = vmatprep.subr.mxu0 0.0
    %7689 = vmatpush1.msra.mxu0 0.0
    %7690 = vmatprep.subr.mxu0 0.0
    %7691 = vmatpush1.msra.mxu0 0.0
    %7692 = vmatprep.subr.mxu0 0.0
    %7693 = vmatpush1.msra.mxu0 0.0
    %7694 = vmatprep.subr.mxu0 0.0
    %7695 = vmatpush1.msra.mxu0 0.0
    %7696 = vmatprep.subr.mxu0 0.0
    %7697 = vmatpush1.msra.mxu0 0.0
    %7698 = vmatprep.subr.mxu0 0.0
    %7699 = vmatpush1.msra.mxu0 0.0
    %7700 = vmatprep.subr.mxu0 0.0
    %7701 = vmatpush1.msra.mxu0 0.0
    %7702 = vmatprep.subr.mxu0 0.0
    %7703 = vmatpush1.msra.mxu0 0.0
    %7704 = vmatprep.subr.mxu0 0.0
    %7705 = vmatpush1.msra.mxu0 0.0
    %7706 = vmatprep.subr.mxu0 0.0
    %7707 = vmatpush1.msra.mxu0 0.0
    %7708 = vmatprep.subr.mxu0 0.0
    %7709 = vmatpush1.msra.mxu0 0.0
    %7710 = vmatprep.subr.mxu0 0.0
    %7711 = vmatpush1.msra.mxu0 0.0
    %7712 = vmatprep.subr.mxu0 0.0
    %7713 = vmatpush1.msra.mxu0 0.0
    %7714 = vmatprep.mubr.f32.mxu0 0.0
    %7715 = vmatmul.mubr.f32.gmra.mrb[0].mxu0 %v7648
    %v7716 = vpop.f32.mrb[0].mxu0
    %v7717 = vadd.f32 %v7644, %v7716
    %v7718 = vpop.f32.mrb[0].mxu0
    %7719 = vdwg.mxu0
    %v7720 = vadd.f32 %v7717, %v3992
    %v7721 = vxor.u32 %v7720, 2147483648
    %v7722 = vmul.f32 %v7721, 1.442695
    %v7723 = vpow.pop %v7722
    %v7724 = vadd.f32 %v7723, 1.0
    %v7725 = vrcp.pop %v7724
    %v7726 = vmul.f32 1.0, %v7725
    %7727 = vmatprep.subr.mxu0 0.0
    %7728 = vmatpush1.msra.mxu0 %v171
    %7729 = vmatprep.subr.mxu0 0.0
    %7730 = vmatpush1.msra.mxu0 %v172
    %7731 = vmatprep.subr.mxu0 0.0
    %7732 = vmatpush1.msra.mxu0 %v173
    %7733 = vmatprep.subr.mxu0 0.0
    %7734 = vmatpush1.msra.mxu0 %v174
    %7735 = vmatprep.subr.mxu0 0.0
    %7736 = vmatpush1.msra.mxu0 %v175
    %7737 = vmatprep.subr.mxu0 0.0
    %7738 = vmatpush1.msra.mxu0 %v176
    %7739 = vmatprep.subr.mxu0 0.0
    %7740 = vmatpush1.msra.mxu0 %v177
    %7741 = vmatprep.subr.mxu0 0.0
    %7742 = vmatpush1.msra.mxu0 %v178
    %7743 = vmatprep.subr.mxu0 0.0
    %7744 = vmatpush1.msra.mxu0 0.0
    %7745 = vmatprep.subr.mxu0 0.0
    %7746 = vmatpush1.msra.mxu0 0.0
    %7747 = vmatprep.subr.mxu0 0.0
    %7748 = vmatpush1.msra.mxu0 0.0
    %7749 = vmatprep.subr.mxu0 0.0
    %7750 = vmatpush1.msra.mxu0 0.0
    %7751 = vmatprep.subr.mxu0 0.0
    %7752 = vmatpush1.msra.mxu0 0.0
    %7753 = vmatprep.subr.mxu0 0.0
    %7754 = vmatpush1.msra.mxu0 0.0
    %7755 = vmatprep.subr.mxu0 0.0
    %7756 = vmatpush1.msra.mxu0 0.0
    %7757 = vmatprep.subr.mxu0 0.0
    %7758 = vmatpush1.msra.mxu0 0.0
    %7759 = vmatprep.subr.mxu0 0.0
    %7760 = vmatpush1.msra.mxu0 0.0
    %7761 = vmatprep.subr.mxu0 0.0
    %7762 = vmatpush1.msra.mxu0 0.0
    %7763 = vmatprep.subr.mxu0 0.0
    %7764 = vmatpush1.msra.mxu0 0.0
    %7765 = vmatprep.subr.mxu0 0.0
    %7766 = vmatpush1.msra.mxu0 0.0
    %7767 = vmatprep.subr.mxu0 0.0
    %7768 = vmatpush1.msra.mxu0 0.0
    %7769 = vmatprep.subr.mxu0 0.0
    %7770 = vmatpush1.msra.mxu0 0.0
    %7771 = vmatprep.subr.mxu0 0.0
    %7772 = vmatpush1.msra.mxu0 0.0
    %7773 = vmatprep.subr.mxu0 0.0
    %7774 = vmatpush1.msra.mxu0 0.0
    %7775 = vmatprep.subr.mxu0 0.0
    %7776 = vmatpush1.msra.mxu0 0.0
    %7777 = vmatprep.subr.mxu0 0.0
    %7778 = vmatpush1.msra.mxu0 0.0
    %7779 = vmatprep.subr.mxu0 0.0
    %7780 = vmatpush1.msra.mxu0 0.0
    %7781 = vmatprep.subr.mxu0 0.0
    %7782 = vmatpush1.msra.mxu0 0.0
    %7783 = vmatprep.subr.mxu0 0.0
    %7784 = vmatpush1.msra.mxu0 0.0
    %7785 = vmatprep.subr.mxu0 0.0
    %7786 = vmatpush1.msra.mxu0 0.0
    %7787 = vmatprep.subr.mxu0 0.0
    %7788 = vmatpush1.msra.mxu0 0.0
    %7789 = vmatprep.subr.mxu0 0.0
    %7790 = vmatpush1.msra.mxu0 0.0
    %7791 = vmatprep.mubr.f32.mxu0 0.0
    %7792 = vmatmul.mubr.f32.gmra.mrb[0].mxu0 %v7494
    %v7793 = vpop.f32.mrb[0].mxu0
    %v7794 = vadd.f32 0.0, %v7793
    %v7795 = vpop.f32.mrb[0].mxu0
    %7796 = vdwg.mxu0
    %7797 = vmatprep.subr.mxu0 0.0
    %7798 = vmatpush1.msra.mxu0 %v4072
    %7799 = vmatprep.subr.mxu0 0.0
    %7800 = vmatpush1.msra.mxu0 0.0
    %7801 = vmatprep.subr.mxu0 0.0
    %7802 = vmatpush1.msra.mxu0 0.0
    %7803 = vmatprep.subr.mxu0 0.0
    %7804 = vmatpush1.msra.mxu0 0.0
    %7805 = vmatprep.subr.mxu0 0.0
    %7806 = vmatpush1.msra.mxu0 0.0
    %7807 = vmatprep.subr.mxu0 0.0
    %7808 = vmatpush1.msra.mxu0 0.0
    %7809 = vmatprep.subr.mxu0 0.0
    %7810 = vmatpush1.msra.mxu0 0.0
    %7811 = vmatprep.subr.mxu0 0.0
    %7812 = vmatpush1.msra.mxu0 0.0
    %7813 = vmatprep.subr.mxu0 0.0
    %7814 = vmatpush1.msra.mxu0 0.0
    %7815 = vmatprep.subr.mxu0 0.0
    %7816 = vmatpush1.msra.mxu0 0.0
    %7817 = vmatprep.subr.mxu0 0.0
    %7818 = vmatpush1.msra.mxu0 0.0
    %7819 = vmatprep.subr.mxu0 0.0
    %7820 = vmatpush1.msra.mxu0 0.0
    %7821 = vmatprep.subr.mxu0 0.0
    %7822 = vmatpush1.msra.mxu0 0.0
    %7823 = vmatprep.subr.mxu0 0.0
    %7824 = vmatpush1.msra.mxu0 0.0
    %7825 = vmatprep.subr.mxu0 0.0
    %7826 = vmatpush1.msra.mxu0 0.0
    %7827 = vmatprep.subr.mxu0 0.0
    %7828 = vmatpush1.msra.mxu0 0.0
    %7829 = vmatprep.subr.mxu0 0.0
    %7830 = vmatpush1.msra.mxu0 0.0
    %7831 = vmatprep.subr.mxu0 0.0
    %7832 = vmatpush1.msra.mxu0 0.0
    %7833 = vmatprep.subr.mxu0 0.0
    %7834 = vmatpush1.msra.mxu0 0.0
    %7835 = vmatprep.subr.mxu0 0.0
    %7836 = vmatpush1.msra.mxu0 0.0
    %7837 = vmatprep.subr.mxu0 0.0
    %7838 = vmatpush1.msra.mxu0 0.0
    %7839 = vmatprep.subr.mxu0 0.0
    %7840 = vmatpush1.msra.mxu0 0.0
    %7841 = vmatprep.subr.mxu0 0.0
    %7842 = vmatpush1.msra.mxu0 0.0
    %7843 = vmatprep.subr.mxu0 0.0
    %7844 = vmatpush1.msra.mxu0 0.0
    %7845 = vmatprep.subr.mxu0 0.0
    %7846 = vmatpush1.msra.mxu0 0.0
    %7847 = vmatprep.subr.mxu0 0.0
    %7848 = vmatpush1.msra.mxu0 0.0
    %7849 = vmatprep.subr.mxu0 0.0
    %7850 = vmatpush1.msra.mxu0 0.0
    %7851 = vmatprep.subr.mxu0 0.0
    %7852 = vmatpush1.msra.mxu0 0.0
    %7853 = vmatprep.subr.mxu0 0.0
    %7854 = vmatpush1.msra.mxu0 0.0
    %7855 = vmatprep.subr.mxu0 0.0
    %7856 = vmatpush1.msra.mxu0 0.0
    %7857 = vmatprep.subr.mxu0 0.0
    %7858 = vmatpush1.msra.mxu0 0.0
    %7859 = vmatprep.subr.mxu0 0.0
    %7860 = vmatpush1.msra.mxu0 0.0
    %7861 = vmatprep.mubr.f32.mxu0 0.0
    %7862 = vmatmul.mubr.f32.gmra.mrb[0].mxu0 %v7648
    %v7863 = vpop.f32.mrb[0].mxu0
    %v7864 = vadd.f32 %v7794, %v7863
    %v7865 = vpop.f32.mrb[0].mxu0
    %7866 = vdwg.mxu0
    %v7867 = vadd.f32 %v7864, %v4148
    %v7868 = vxor.u32 %v7867, 2147483648
    %v7869 = vmul.f32 %v7868, 1.442695
    %v7870 = vpow.pop %v7869
    %v7871 = vadd.f32 %v7870, 1.0
    %v7872 = vrcp.pop %v7871
    %v7873 = vmul.f32 1.0, %v7872
    %7874 = vmatprep.subr.mxu0 0.0
    %7875 = vmatpush1.msra.mxu0 %v4164
    %7876 = vmatprep.subr.mxu0 0.0
    %7877 = vmatpush1.msra.mxu0 0.0
    %7878 = vmatprep.subr.mxu0 0.0
    %7879 = vmatpush1.msra.mxu0 0.0
    %7880 = vmatprep.subr.mxu0 0.0
    %7881 = vmatpush1.msra.mxu0 0.0
    %7882 = vmatprep.subr.mxu0 0.0
    %7883 = vmatpush1.msra.mxu0 0.0
    %7884 = vmatprep.subr.mxu0 0.0
    %7885 = vmatpush1.msra.mxu0 0.0
    %7886 = vmatprep.subr.mxu0 0.0
    %7887 = vmatpush1.msra.mxu0 0.0
    %7888 = vmatprep.subr.mxu0 0.0
    %7889 = vmatpush1.msra.mxu0 0.0
    %7890 = vmatprep.subr.mxu0 0.0
    %7891 = vmatpush1.msra.mxu0 0.0
    %7892 = vmatprep.subr.mxu0 0.0
    %7893 = vmatpush1.msra.mxu0 0.0
    %7894 = vmatprep.subr.mxu0 0.0
    %7895 = vmatpush1.msra.mxu0 0.0
    %7896 = vmatprep.subr.mxu0 0.0
    %7897 = vmatpush1.msra.mxu0 0.0
    %7898 = vmatprep.subr.mxu0 0.0
    %7899 = vmatpush1.msra.mxu0 0.0
    %7900 = vmatprep.subr.mxu0 0.0
    %7901 = vmatpush1.msra.mxu0 0.0
    %7902 = vmatprep.subr.mxu0 0.0
    %7903 = vmatpush1.msra.mxu0 0.0
    %7904 = vmatprep.subr.mxu0 0.0
    %7905 = vmatpush1.msra.mxu0 0.0
    %7906 = vmatprep.subr.mxu0 0.0
    %7907 = vmatpush1.msra.mxu0 0.0
    %7908 = vmatprep.subr.mxu0 0.0
    %7909 = vmatpush1.msra.mxu0 0.0
    %7910 = vmatprep.subr.mxu0 0.0
    %7911 = vmatpush1.msra.mxu0 0.0
    %7912 = vmatprep.subr.mxu0 0.0
    %7913 = vmatpush1.msra.mxu0 0.0
    %7914 = vmatprep.subr.mxu0 0.0
    %7915 = vmatpush1.msra.mxu0 0.0
    %7916 = vmatprep.subr.mxu0 0.0
    %7917 = vmatpush1.msra.mxu0 0.0
    %7918 = vmatprep.subr.mxu0 0.0
    %7919 = vmatpush1.msra.mxu0 0.0
    %7920 = vmatprep.subr.mxu0 0.0
    %7921 = vmatpush1.msra.mxu0 0.0
    %7922 = vmatprep.subr.mxu0 0.0
    %7923 = vmatpush1.msra.mxu0 0.0
    %7924 = vmatprep.subr.mxu0 0.0
    %7925 = vmatpush1.msra.mxu0 0.0
    %7926 = vmatprep.subr.mxu0 0.0
    %7927 = vmatpush1.msra.mxu0 0.0
    %7928 = vmatprep.subr.mxu0 0.0
    %7929 = vmatpush1.msra.mxu0 0.0
    %7930 = vmatprep.subr.mxu0 0.0
    %7931 = vmatpush1.msra.mxu0 0.0
    %7932 = vmatprep.subr.mxu0 0.0
    %7933 = vmatpush1.msra.mxu0 0.0
    %7934 = vmatprep.subr.mxu0 0.0
    %7935 = vmatpush1.msra.mxu0 0.0
    %7936 = vmatprep.subr.mxu0 0.0
    %7937 = vmatpush1.msra.mxu0 0.0
    %7938 = vmatprep.mubr.f32.mxu0 0.0
    %7939 = vmatmul.mubr.f32.gmra.mrb[0].mxu0 %v7648
    %v7940 = vpop.f32.mrb[0].mxu0
    %v7941 = vadd.f32 %v4161, %v7940
    %v7942 = vpop.f32.mrb[0].mxu0
    %7943 = vdwg.mxu0
    %7944 = vmatprep.subr.mxu0 0.0
    %7945 = vmatpush1.msra.mxu0 %v180
    %7946 = vmatprep.subr.mxu0 0.0
    %7947 = vmatpush1.msra.mxu0 %v181
    %7948 = vmatprep.subr.mxu0 0.0
    %7949 = vmatpush1.msra.mxu0 %v182
    %7950 = vmatprep.subr.mxu0 0.0
    %7951 = vmatpush1.msra.mxu0 %v183
    %7952 = vmatprep.subr.mxu0 0.0
    %7953 = vmatpush1.msra.mxu0 %v184
    %7954 = vmatprep.subr.mxu0 0.0
    %7955 = vmatpush1.msra.mxu0 %v185
    %7956 = vmatprep.subr.mxu0 0.0
    %7957 = vmatpush1.msra.mxu0 %v186
    %7958 = vmatprep.subr.mxu0 0.0
    %7959 = vmatpush1.msra.mxu0 %v187
    %7960 = vmatprep.subr.mxu0 0.0
    %7961 = vmatpush1.msra.mxu0 0.0
    %7962 = vmatprep.subr.mxu0 0.0
    %7963 = vmatpush1.msra.mxu0 0.0
    %7964 = vmatprep.subr.mxu0 0.0
    %7965 = vmatpush1.msra.mxu0 0.0
    %7966 = vmatprep.subr.mxu0 0.0
    %7967 = vmatpush1.msra.mxu0 0.0
    %7968 = vmatprep.subr.mxu0 0.0
    %7969 = vmatpush1.msra.mxu0 0.0
    %7970 = vmatprep.subr.mxu0 0.0
    %7971 = vmatpush1.msra.mxu0 0.0
    %7972 = vmatprep.subr.mxu0 0.0
    %7973 = vmatpush1.msra.mxu0 0.0
    %7974 = vmatprep.subr.mxu0 0.0
    %7975 = vmatpush1.msra.mxu0 0.0
    %7976 = vmatprep.subr.mxu0 0.0
    %7977 = vmatpush1.msra.mxu0 0.0
    %7978 = vmatprep.subr.mxu0 0.0
    %7979 = vmatpush1.msra.mxu0 0.0
    %7980 = vmatprep.subr.mxu0 0.0
    %7981 = vmatpush1.msra.mxu0 0.0
    %7982 = vmatprep.subr.mxu0 0.0
    %7983 = vmatpush1.msra.mxu0 0.0
    %7984 = vmatprep.subr.mxu0 0.0
    %7985 = vmatpush1.msra.mxu0 0.0
    %7986 = vmatprep.subr.mxu0 0.0
    %7987 = vmatpush1.msra.mxu0 0.0
    %7988 = vmatprep.subr.mxu0 0.0
    %7989 = vmatpush1.msra.mxu0 0.0
    %7990 = vmatprep.subr.mxu0 0.0
    %7991 = vmatpush1.msra.mxu0 0.0
    %7992 = vmatprep.subr.mxu0 0.0
    %7993 = vmatpush1.msra.mxu0 0.0
    %7994 = vmatprep.subr.mxu0 0.0
    %7995 = vmatpush1.msra.mxu0 0.0
    %7996 = vmatprep.subr.mxu0 0.0
    %7997 = vmatpush1.msra.mxu0 0.0
    %7998 = vmatprep.subr.mxu0 0.0
    %7999 = vmatpush1.msra.mxu0 0.0
    %8000 = vmatprep.subr.mxu0 0.0
    %8001 = vmatpush1.msra.mxu0 0.0
    %8002 = vmatprep.subr.mxu0 0.0
    %8003 = vmatpush1.msra.mxu0 0.0
    %8004 = vmatprep.subr.mxu0 0.0
    %8005 = vmatpush1.msra.mxu0 0.0
    %8006 = vmatprep.subr.mxu0 0.0
    %8007 = vmatpush1.msra.mxu0 0.0
    %8008 = vmatprep.mubr.f32.mxu0 0.0
    %8009 = vmatmul.mubr.f32.gmra.mrb[0].mxu0 %v7494
    %v8010 = vpop.f32.mrb[0].mxu0
    %v8011 = vadd.f32 %v4240, %v8010
    %v8012 = vpop.f32.mrb[0].mxu0
    %8013 = vdwg.mxu0
    %v8014 = vmul.f32 %v7726, %v8011
    %v8015 = vadd.f32 %v7941, %v8014
    %v8016 = vtanh.pop %v8015
    %v8017 = vsub.f32 1.0, %v7873
    %v8018 = vmul.f32 %v8017, %v8016
    %v8019 = vmul.f32 %v7873, %v7492
    %v8020 = vadd.f32 %v8018, %v8019
    %v8022 = vsel %vm3838, %v8020, 0
    %8024 = vmatprep.subr.mxu0 0.0
    %8025 = vmatpush1.msra.mxu0 %v192
    %8026 = vmatprep.subr.mxu0 0.0
    %8027 = vmatpush1.msra.mxu0 %v193
    %8028 = vmatprep.subr.mxu0 0.0
    %8029 = vmatpush1.msra.mxu0 %v194
    %8030 = vmatprep.subr.mxu0 0.0
    %8031 = vmatpush1.msra.mxu0 %v195
    %8032 = vmatprep.subr.mxu0 0.0
    %8033 = vmatpush1.msra.mxu0 %v196
    %8034 = vmatprep.subr.mxu0 0.0
    %8035 = vmatpush1.msra.mxu0 %v197
    %8036 = vmatprep.subr.mxu0 0.0
    %8037 = vmatpush1.msra.mxu0 %v198
    %8038 = vmatprep.subr.mxu0 0.0
    %8039 = vmatpush1.msra.mxu0 %v199
    %8040 = vmatprep.subr.mxu0 0.0
    %8041 = vmatpush1.msra.mxu0 0.0
    %8042 = vmatprep.subr.mxu0 0.0
    %8043 = vmatpush1.msra.mxu0 0.0
    %8044 = vmatprep.subr.mxu0 0.0
    %8045 = vmatpush1.msra.mxu0 0.0
    %8046 = vmatprep.subr.mxu0 0.0
    %8047 = vmatpush1.msra.mxu0 0.0
    %8048 = vmatprep.subr.mxu0 0.0
    %8049 = vmatpush1.msra.mxu0 0.0
    %8050 = vmatprep.subr.mxu0 0.0
    %8051 = vmatpush1.msra.mxu0 0.0
    %8052 = vmatprep.subr.mxu0 0.0
    %8053 = vmatpush1.msra.mxu0 0.0
    %8054 = vmatprep.subr.mxu0 0.0
    %8055 = vmatpush1.msra.mxu0 0.0
    %8056 = vmatprep.subr.mxu0 0.0
    %8057 = vmatpush1.msra.mxu0 0.0
    %8058 = vmatprep.subr.mxu0 0.0
    %8059 = vmatpush1.msra.mxu0 0.0
    %8060 = vmatprep.subr.mxu0 0.0
    %8061 = vmatpush1.msra.mxu0 0.0
    %8062 = vmatprep.subr.mxu0 0.0
    %8063 = vmatpush1.msra.mxu0 0.0
    %8064 = vmatprep.subr.mxu0 0.0
    %8065 = vmatpush1.msra.mxu0 0.0
    %8066 = vmatprep.subr.mxu0 0.0
    %8067 = vmatpush1.msra.mxu0 0.0
    %8068 = vmatprep.subr.mxu0 0.0
    %8069 = vmatpush1.msra.mxu0 0.0
    %8070 = vmatprep.subr.mxu0 0.0
    %8071 = vmatpush1.msra.mxu0 0.0
    %8072 = vmatprep.subr.mxu0 0.0
    %8073 = vmatpush1.msra.mxu0 0.0
    %8074 = vmatprep.subr.mxu0 0.0
    %8075 = vmatpush1.msra.mxu0 0.0
    %8076 = vmatprep.subr.mxu0 0.0
    %8077 = vmatpush1.msra.mxu0 0.0
    %8078 = vmatprep.subr.mxu0 0.0
    %8079 = vmatpush1.msra.mxu0 0.0
    %8080 = vmatprep.subr.mxu0 0.0
    %8081 = vmatpush1.msra.mxu0 0.0
    %8082 = vmatprep.subr.mxu0 0.0
    %8083 = vmatpush1.msra.mxu0 0.0
    %8084 = vmatprep.subr.mxu0 0.0
    %8085 = vmatpush1.msra.mxu0 0.0
    %8086 = vmatprep.subr.mxu0 0.0
    %8087 = vmatpush1.msra.mxu0 0.0
    %8088 = vmatprep.mubr.f32.mxu0 0.0
    %8089 = vmatmul.mubr.f32.gmra.mrb[0].mxu0 %v8022
    %v8090 = vpop.f32.mrb[0].mxu0
    %v8091 = vadd.f32 %v4323, %v8090
    %v8092 = vpop.f32.mrb[0].mxu0
    %8093 = vdwg.mxu0
    %s8094 = scalar_lea.vmem %s25, 56
    %8095 = vst.msk [vmem:[%s8094] sm:$0xff] %vm4398, %v8091
    %8096 = vst.msk [vmem:[#allocation3] sm:$0xff] %vm4398, %v8091
    %s8097 = scalar_lea.vmem %s1, 56
    %v8098 = vld [vmem:[%s8097] sm:$0xff]
    %8100 = vrot.lane.b32.xlu0 %v8098, 1
    %v8101 = vpop.permute.xlu0 %8100
    %8103 = vst.msk [vmem:[#allocation3] sm:$0xff] %vm4406, %v8101
    // Predicated region
    $region122: #{tpu_custom_call.1} parent=1 // pred_check
      _
    $region123: #{tpu_custom_call.1} parent=1 // pred_check_branch
      %8105 = sbr.rel (0) target = $region125
    $region124: #{tpu_custom_call.1} parent=1 // pred_region
      _
    $region125: #{tpu_custom_call.1} parent=1 // pred_fallthru
      _
    // Predicated region
    $region126: #{tpu_custom_call.1} parent=1 // pred_check
      _
    $region127: #{tpu_custom_call.1} parent=1 // pred_check_branch
      %8107 = sbr.rel (0) target = $region129
    $region128: #{tpu_custom_call.1} parent=1 // pred_region
      _
    $region129: #{tpu_custom_call.1} parent=1 // pred_fallthru
      _
    %8108 = vsyncpa [#allocation6], 1
    %8109 = vsyncpa [#allocation8], 1
    %8110 = vsyncpa [#allocation11], 1

</llo_original>
